<compile_context>
chip_gen: v5e
topology: v5e:2x2
jax: 0.10.0
libtpu: 0.0.40
codegen_flags: <defaults>
</compile_context>

<pallas_src>
import math
import functools

import jax
import jax.numpy as jnp
from jax.experimental import pallas as pl
from jax.experimental.pallas import tpu as pltpu

F32 = jnp.float32
BF16 = jnp.bfloat16
_BN_EPS = 1e-5

# Padded (lane-dense) channel sizes.
C_IN_PAD = 128     # 9 input channels
C_COND_PAD = 128   # 36 condition channels
C1 = 256           # base_dim = 144
C2 = 384           # base_dim * 2 = 288
CE = 256           # attention embed dim (already lane aligned; equals true embed dim)
C_OUT_PAD = 128    # 9 output channels


# ----------------------------------------------------------------------------
# In-kernel helpers
# ----------------------------------------------------------------------------
def _row_shift(x, shift, seg):
    """result[r] = x[r - shift] when both rows lie in the same length-`seg` segment
    (= batch element), else 0.  XLU roll + (M,1) row mask; O(M*C), no (M,M) matmul."""
    m = x.shape[0]
    rolled = pltpu.roll(x, shift=shift % m, axis=0)
    r = jax.lax.broadcasted_iota(jnp.int32, (m, 1), 0) % seg
    valid = (r >= shift) if shift >= 0 else (r < seg + shift)
    return jnp.where(valid, rolled, jnp.zeros_like(rolled))


def _conv3_same(x, w_ref, b_ref, seg):
    """k=3 'same' conv along rows of x (M, Cin) f32 as 3 shifted matmuls.
    w_ref: (3, Cin, Cout) bf16 taps; b_ref: (1, Cout) f32.  Returns f32 (M, Cout)."""
    x_prev = _row_shift(x, 1, seg).astype(BF16)     # row r <- x[r - 1]
    x_next = _row_shift(x, -1, seg).astype(BF16)    # row r <- x[r + 1]
    acc = jnp.dot(x.astype(BF16), w_ref[1], preferred_element_type=F32)
    acc = acc + jnp.dot(x_prev, w_ref[0], preferred_element_type=F32)
    acc = acc + jnp.dot(x_next, w_ref[2], preferred_element_type=F32)
    return acc + b_ref[...]


def _bn_act(y, g_ref, b_ref, relu=True):
    """Training-mode BatchNorm over rows (= batch*length) + optional ReLU.
    Padded lanes stay zero because gamma/beta are zero-padded in prepare_params."""
    # TODO(synk): eval-mode running statistics are not modeled (matches the PyTorch
    #             module's default training-mode normalization).
    mean = jnp.mean(y, axis=0, keepdims=True)
    var = jnp.mean(jnp.square(y - mean), axis=0, keepdims=True)
    out = (y - mean) * (g_ref[...] * jax.lax.rsqrt(var + _BN_EPS)) + b_ref[...]
    return jnp.maximum(out, 0.0) if relu else out


# ----------------------------------------------------------------------------
# Fused kernels
# ----------------------------------------------------------------------------
def _init_block_kernel(phase_ref, ws_ref, wc_ref, be_ref, wd_ref, bd_ref,
                       x_ref, wc3_ref, bc3_ref, g_ref, bb_ref, o_ref,
                       *, seg, batch):
    # Time embedding on B rows only: Fourier features -> Linear -> swish -> Dense.
    ph = phase_ref[...]
    e = (jnp.dot(jnp.sin(ph).astype(BF16), ws_ref[...], preferred_element_type=F32)
         + jnp.dot(jnp.cos(ph).astype(BF16), wc_ref[...], preferred_element_type=F32)
         + be_ref[...])
    e = e * pl.reciprocal(1.0 + jnp.exp(-e), approx=True)            # swish (EUP)
    emb = jnp.dot(e.astype(BF16), wd_ref[...], preferred_element_type=F32) + bd_ref[...]
    # init conv (k=3, same) + BN + ReLU, then per-batch embedding add.
    y = _conv3_same(x_ref[...], wc3_ref, bc3_ref, seg)
    y = _bn_act(y, g_ref, bb_ref)
    c = y.shape[-1]
    y3 = y.reshape(batch, seg, c) + emb[:, None, :]
    o_ref[...] = y3.reshape(batch * seg, c)


def _down_block_kernel(hp_ref, w_ref, b_ref, g_ref, bb_ref, o_ref, *, c1, seg):
    # Input rows carry position pairs: [:, :c1] = even positions, [:, c1:] = odd.
    hp = hp_ref[...]
    he = hp[:, :c1]
    ho = hp[:, c1:]
    ho_prev = _row_shift(ho, 1, seg).astype(BF16)
    # stride-2, padding-1, k=3 conv: y[t'] = h[2t'-1] W0 + h[2t'] W1 + h[2t'+1] W2
    y = (jnp.dot(ho_prev, w_ref[0], preferred_element_type=F32)
         + jnp.dot(he.astype(BF16), w_ref[1], preferred_element_type=F32)
         + jnp.dot(ho.astype(BF16), w_ref[2], preferred_element_type=F32)
         + b_ref[...])
    o_ref[...] = _bn_act(y, g_ref, bb_ref)


def _resblock_kernel(hd_ref, cond2_ref, w1_ref, b1_ref, w2_ref, b2_ref,
                     wcp_ref, bcp_ref, wq_ref, bq_ref, wc_ref, bc_ref,
                     wk_ref, bk_ref, wv_ref, bv_ref, wo_ref, bo_ref,
                     g_ref, bb_ref, o_ref, *, seg, ccond, batch):
    x = hd_ref[...]
    # conv1 -> ReLU -> conv2
    r1 = jnp.maximum(_conv3_same(x, w1_ref, b1_ref, seg), 0.0)
    r2 = _conv3_same(r1, w2_ref, b2_ref, seg)
    # condition: avg-pool (pairs packed along lanes) + ScoreNet-level 1x1 projection
    cp = cond2_ref[...]
    cond_pool = 0.5 * (cp[:, :ccond] + cp[:, ccond:])
    cond = jnp.dot(cond_pool.astype(BF16), wcp_ref[...],
                   preferred_element_type=F32) + bcp_ref[...]
    # 1x1 projections (rows = batch*pos)
    q = jnp.dot(r2.astype(BF16), wq_ref[...], preferred_element_type=F32) + bq_ref[...]
    c = jnp.dot(cond.astype(BF16), wc_ref[...], preferred_element_type=F32) + bc_ref[...]
    cb = c.astype(BF16)
    k = jnp.dot(cb, wk_ref[...], preferred_element_type=F32) + bk_ref[...]
    v = jnp.dot(cb, wv_ref[...], preferred_element_type=F32) + bv_ref[...]
    # Per-batch cross attention: (B, seg, E) blocks via batched einsums — no (M1,M1)
    # score matrix and no block-diagonal iota mask.
    ce = q.shape[-1]                                  # == true embed dim (256)
    q3 = q.reshape(batch, seg, ce).astype(BF16)
    k3 = k.reshape(batch, seg, ce).astype(BF16)
    v3 = v.reshape(batch, seg, ce).astype(BF16)
    scale = 1.0 / math.sqrt(ce)
    s = jnp.einsum('bqe,bke->bqk', q3, k3, preferred_element_type=F32) * scale
    smax = jnp.max(s, axis=-1, keepdims=True)
    p = jnp.exp(s - smax)
    p = p * pl.reciprocal(jnp.sum(p, axis=-1, keepdims=True), approx=False)
    attn = jnp.einsum('bqk,bke->bqe', p.astype(BF16), v3, preferred_element_type=F32)
    attn = attn.reshape(batch * seg, ce)
    aout = jnp.dot(attn.astype(BF16), wo_ref[...], preferred_element_type=F32) + bo_ref[...]
    # out_proj(attn) + conv2-output, + residual, then BatchNorm (no activation)
    o_ref[...] = _bn_act(aout + r2 + x, g_ref, bb_ref, relu=False)


def _up_final_kernel(hd2_ref, hp_ref, wu_ref, bu_ref, g_ref, bb_ref,
                     wf_ref, bf_ref, inv_ref, o_ref, *, c1, cout, seg, batch):
    # ConvTranspose1d(k=3, s=2, p=1, op=1) decomposed into even/odd output columns:
    #   y_even[t] = x[t] @ W[:, :, 1]
    #   y_odd[t]  = x[t] @ W[:, :, 2] + x[t+1] @ W[:, :, 0]
    x = hd2_ref[...]
    x_next = _row_shift(x, -1, seg).astype(BF16)
    xb = x.astype(BF16)
    ye = jnp.dot(xb, wu_ref[1], preferred_element_type=F32) + bu_ref[...]
    yo = (jnp.dot(xb, wu_ref[2], preferred_element_type=F32)
          + jnp.dot(x_next, wu_ref[0], preferred_element_type=F32) + bu_ref[...])
    # BatchNorm over all 2*M1 output positions (channel c lives in both halves).
    n = 2.0 * ye.shape[0]
    mean = (jnp.sum(ye, axis=0, keepdims=True) + jnp.sum(yo, axis=0, keepdims=True)) / n
    var = (jnp.sum(jnp.square(ye - mean), axis=0, keepdims=True)
           + jnp.sum(jnp.square(yo - mean), axis=0, keepdims=True)) / n
    scale = g_ref[...] * jax.lax.rsqrt(var + _BN_EPS)
    shift = bb_ref[...] - mean * scale
    # ReLU + skip add with the full-resolution feature map (packed even|odd).
    hp = hp_ref[...]
    fe = jnp.maximum(ye * scale + shift, 0.0) + hp[:, :c1]
    fo = jnp.maximum(yo * scale + shift, 0.0) + hp[:, c1:]
    # Fused final k=3 conv on the packed full-resolution features:
    #   out_even[t] = f_odd[t-1] Wf0 + f_even[t] Wf1 + f_odd[t]    Wf2
    #   out_odd[t]  = f_even[t]  Wf0 + f_odd[t]  Wf1 + f_even[t+1] Wf2
    fo_prev = _row_shift(fo, 1, seg).astype(BF16)
    fe_next = _row_shift(fe, -1, seg).astype(BF16)
    feb, fob = fe.astype(BF16), fo.astype(BF16)
    out_e = (jnp.dot(fo_prev, wf_ref[0], preferred_element_type=F32)
             + jnp.dot(feb, wf_ref[1], preferred_element_type=F32)
             + jnp.dot(fob, wf_ref[2], preferred_element_type=F32) + bf_ref[...])
    out_o = (jnp.dot(feb, wf_ref[0], preferred_element_type=F32)
             + jnp.dot(fob, wf_ref[1], preferred_element_type=F32)
             + jnp.dot(fe_next, wf_ref[2], preferred_element_type=F32) + bf_ref[...])
    # Fused per-batch 1 / marginal_prob_std(t) scaling; store packed (even | odd).
    inv = inv_ref[...]                                               # (B, 1)
    oe3 = out_e.reshape(batch, seg, cout) * inv[:, :, None]
    oo3 = out_o.reshape(batch, seg, cout) * inv[:, :, None]
    o_ref[:, :cout] = oe3.reshape(batch * seg, cout)
    o_ref[:, cout:] = oo3.reshape(batch * seg, cout)


# ----------------------------------------------------------------------------
# pallas_call wrapper (single VMEM-resident block; lane-dense outputs)
# ----------------------------------------------------------------------------
def _call(kernel, args, out_shape, **static):
    return pl.pallas_call(
        functools.partial(kernel, **static),
        out_shape=jax.ShapeDtypeStruct(out_shape, F32),
        grid=(1,),
        in_specs=[pl.BlockSpec(a.shape, lambda i, _n=a.ndim: (0,) * _n) for a in args],
        out_specs=pl.BlockSpec(out_shape, lambda i, _n=len(out_shape): (0,) * _n),
        compiler_params=pltpu.CompilerParams(
            dimension_semantics=("arbitrary",),
            vmem_limit_bytes=48 * 1024 * 1024),
    )(*args)


# ----------------------------------------------------------------------------
# Parameter packing (hoisted out of the jitted forward): pad to lane multiples,
# transpose to (Cin, Cout) taps, cast matmul weights to bf16.
# ----------------------------------------------------------------------------
def prepare_params(p, embed_dim=64):
    def pad2(a, r, c):
        return jnp.pad(a.astype(F32), ((0, r - a.shape[0]), (0, c - a.shape[1])))

    def row(v, n):
        return jnp.pad(v.astype(F32).reshape(1, -1), ((0, 0), (0, n - v.shape[0])))

    def conv_taps(w, cin_p, cout_p):        # w: (Cout, Cin, K) -> (K, cin_p, cout_p)
        taps = [pad2(w[:, :, i].T, cin_p, cout_p) for i in range(w.shape[2])]
        return jnp.stack(taps, axis=0).astype(BF16)

    half = embed_dim // 2
    q = {}
    q["fourier_w2pi"] = (p["fourier_W"] * (2.0 * jnp.pi)).astype(F32)
    wet = p["embed_w"].T.astype(F32)                     # (in, out)
    q["emb_ws"] = wet[:half].astype(BF16)
    q["emb_wc"] = wet[half:].astype(BF16)
    q["emb_b"] = p["embed_b"].astype(F32).reshape(1, -1)
    q["dense1_w"] = pad2(p["dense1_w"].T, embed_dim, C1).astype(BF16)
    q["dense1_b"] = row(p["dense1_b"], C1)
    q["init_w"] = conv_taps(p["init_conv_w"], C_IN_PAD, C1)
    q["init_b"] = row(p["init_conv_b"], C1)
    q["init_g"], q["init_beta"] = row(p["init_bn_g"], C1), row(p["init_bn_b"], C1)
    q["down_w"] = conv_taps(p["down_w"], C1, C2)
    q["down_b"] = row(p["down_b"], C2)
    q["down_g"], q["down_beta"] = row(p["down_bn_g"], C2), row(p["down_bn_b"], C2)
    q["cond_w"] = pad2(p["cond_proj_w"][:, :, 0].T, C_COND_PAD, C2).astype(BF16)
    q["cond_b"] = row(p["cond_proj_b"], C2)
    q["rb1_w"], q["rb1_b"] = conv_taps(p["rb_conv1_w"], C2, C2), row(p["rb_conv1_b"], C2)
    q["rb2_w"], q["rb2_b"] = conv_taps(p["rb_conv2_w"], C2, C2), row(p["rb_conv2_b"], C2)
    q["attn_q_w"] = pad2(p["attn_q_w"][:, :, 0].T, C2, CE).astype(BF16)
    q["attn_q_b"] = row(p["attn_q_b"], CE)
    q["attn_c_w"] = pad2(p["attn_c_w"][:, :, 0].T, C2, CE).astype(BF16)
    q["attn_c_b"] = row(p["attn_c_b"], CE)
    q["attn_k_w"] = pad2(p["attn_k_w"][:, :, 0].T, CE, CE).astype(BF16)
    q["attn_k_b"] = row(p["attn_k_b"], CE)
    q["attn_v_w"] = pad2(p["attn_v_w"][:, :, 0].T, CE, CE).astype(BF16)
    q["attn_v_b"] = row(p["attn_v_b"], CE)
    q["attn_o_w"] = pad2(p["attn_o_w"][:, :, 0].T, CE, C2).astype(BF16)
    q["attn_o_b"] = row(p["attn_o_b"], C2)
    q["rb_g"], q["rb_beta"] = row(p["rb_bn_g"], C2), row(p["rb_bn_b"], C2)
    # ConvTranspose1d weight (Cin, Cout, K): tap k is already a (Cin, Cout) matrix.
    q["up_w"] = jnp.stack([pad2(p["up_w"][:, :, i], C2, C1) for i in range(3)], 0).astype(BF16)
    q["up_b"] = row(p["up_b"], C1)
    q["up_g"], q["up_beta"] = row(p["up_bn_g"], C1), row(p["up_bn_b"], C1)
    q["final_w"] = conv_taps(p["final_w"], C1, C_OUT_PAD)
    q["final_b"] = row(p["final_b"], C_OUT_PAD)
    return q


# ----------------------------------------------------------------------------
# ScoreNet forward
# ----------------------------------------------------------------------------
def marginal_prob_std(t):
    alpha_bar = 0.5 * 19.9 * t ** 2 + 0.1 * t
    return jnp.sqrt(1.0 - jnp.exp(-2.0 * alpha_bar))


def score_net_forward(pp, x, condition, t):
    B, cin, T = x.shape
    ccond = condition.shape[1]
    L2 = T // 2
    M0, M1 = B * T, B * L2

    # Module-boundary layout plumbing (channels-last, lane padded, rows = batch*pos).
    x2d = jnp.pad(jnp.transpose(x, (0, 2, 1)).astype(F32),
                  ((0, 0), (0, 0), (0, C_IN_PAD - cin))).reshape(M0, C_IN_PAD)
    cond2 = jnp.pad(jnp.transpose(condition, (0, 2, 1)).astype(F32),
                    ((0, 0), (0, 0), (0, C_COND_PAD - ccond))
                    ).reshape(M0, C_COND_PAD).reshape(M1, 2 * C_COND_PAD)
    phase = t[:, None].astype(F32) * pp["fourier_w2pi"][None, :]        # (B, 32)
    inv_std = (1.0 / marginal_prob_std(t))[:, None].astype(F32)         # (B, 1)

    # 1) time-embedding MLP (B rows) + init conv + BN + ReLU + embedding add
    h = _call(_init_block_kernel,
              (phase, pp["emb_ws"], pp["emb_wc"], pp["emb_b"],
               pp["dense1_w"], pp["dense1_b"], x2d,
               pp["init_w"], pp["init_b"], pp["init_g"], pp["init_beta"]),
              (M0, C1), seg=T, batch=B)
    hp = h.reshape(M1, 2 * C1)              # free row-major regroup: (even | odd) pairs

    # 2) stride-2 down conv + BN + ReLU
    hd = _call(_down_block_kernel,
               (hp, pp["down_w"], pp["down_b"], pp["down_g"], pp["down_beta"]),
               (M1, C2), c1=C1, seg=L2)

    # 3) residual block with fused per-batch cross attention
    hd2 = _call(_resblock_kernel,
                (hd, cond2, pp["rb1_w"], pp["rb1_b"], pp["rb2_w"], pp["rb2_b"],
                 pp["cond_w"], pp["cond_b"], pp["attn_q_w"], pp["attn_q_b"],
                 pp["attn_c_w"], pp["attn_c_b"], pp["attn_k_w"], pp["attn_k_b"],
                 pp["attn_v_w"], pp["attn_v_b"], pp["attn_o_w"], pp["attn_o_b"],
                 pp["rb_g"], pp["rb_beta"]),
                (M1, C2), seg=L2, ccond=C_COND_PAD, batch=B)

    # 4) transposed conv up + BN + ReLU + skip add + final conv + 1/std (fused)
    outp = _call(_up_final_kernel,
                 (hd2, hp, pp["up_w"], pp["up_b"], pp["up_g"], pp["up_beta"],
                  pp["final_w"], pp["final_b"], inv_std),
                 (M1, 2 * C_OUT_PAD), c1=C1, cout=C_OUT_PAD, seg=L2, batch=B)
    out = outp.reshape(M0, C_OUT_PAD)       # free reshape back to full resolution
    return out[:, :cin].reshape(B, T, cin).transpose(0, 2, 1)


# ----------------------------------------------------------------------------
# Deterministic parameter init (synthetic; shapes match the PyTorch module)
# ----------------------------------------------------------------------------
def init_params(key, in_channels=9, cond_channels=36, base_dim=144, embed_dim=64,
                attn_embed=256):
    keys = iter(jax.random.split(key, 64))

    def nrm(shape, scale=0.05):
        return scale * jax.random.normal(next(keys), shape, dtype=jnp.float32)

    bd2 = base_dim * 2
    p = {}
    p["fourier_W"] = 30.0 * jax.random.normal(next(keys), (embed_dim // 2,), jnp.float32)
    p["embed_w"], p["embed_b"] = nrm((embed_dim, embed_dim)), nrm((embed_dim,))
    p["dense1_w"], p["dense1_b"] = nrm((base_dim, embed_dim)), nrm((base_dim,))
    p["init_conv_w"], p["init_conv_b"] = nrm((base_dim, in_channels, 3)), nrm((base_dim,))
    p["init_bn_g"], p["init_bn_b"] = jnp.ones((base_dim,)), jnp.zeros((base_dim,))
    p["down_w"], p["down_b"] = nrm((bd2, base_dim, 3)), nrm((bd2,))
    p["down_bn_g"], p["down_bn_b"] = jnp.ones((bd2,)), jnp.zeros((bd2,))
    p["cond_proj_w"], p["cond_proj_b"] = nrm((bd2, cond_channels, 1)), nrm((bd2,))
    p["rb_conv1_w"], p["rb_conv1_b"] = nrm((bd2, bd2, 3)), nrm((bd2,))
    p["rb_conv2_w"], p["rb_conv2_b"] = nrm((bd2, bd2, 3)), nrm((bd2,))
    p["attn_q_w"], p["attn_q_b"] = nrm((attn_embed, bd2, 1)), nrm((attn_embed,))
    p["attn_c_w"], p["attn_c_b"] = nrm((attn_embed, bd2, 1)), nrm((attn_embed,))
    p["attn_k_w"], p["attn_k_b"] = nrm((attn_embed, attn_embed, 1)), nrm((attn_embed,))
    p["attn_v_w"], p["attn_v_b"] = nrm((attn_embed, attn_embed, 1)), nrm((attn_embed,))
    p["attn_o_w"], p["attn_o_b"] = nrm((bd2, attn_embed, 1)), nrm((bd2,))
    p["rb_bn_g"], p["rb_bn_b"] = jnp.ones((bd2,)), jnp.zeros((bd2,))
    p["up_w"], p["up_b"] = nrm((bd2, base_dim, 3)), nrm((base_dim,))   # ConvTranspose1d (Cin, Cout, K)
    p["up_bn_g"], p["up_bn_b"] = jnp.ones((base_dim,)), jnp.zeros((base_dim,))
    p["final_w"], p["final_b"] = nrm((in_channels, base_dim, 3)), nrm((in_channels,))
    return p


# ----------------------------------------------------------------------------
if __name__ == "__main__":
    key = jax.random.PRNGKey(0)
    k_params, k_x, k_cond, k_t = jax.random.split(key, 4)

    B, C_in, C_cond, T = 2, 9, 36, 16
    params = init_params(k_params)
    packed = prepare_params(params)     # one-time weight packing, outside the hot path
    x = jax.random.normal(k_x, (B, C_in, T), dtype=jnp.float32)
    condition = jax.random.normal(k_cond, (B, C_cond, T), dtype=jnp.float32)
    t = jax.random.uniform(k_t, (B,), dtype=jnp.float32, minval=0.1, maxval=1.0)

    fwd = jax.jit(score_net_forward)
    out = jax.block_until_ready(fwd(packed, x, condition, t))
    assert out.shape == (B, C_in, T), out.shape
    assert bool(jnp.all(jnp.isfinite(out)))
    print("KERNEL_OK")
</pallas_src>

<mosaic_0001>
module attributes {stable_mosaic.version = 11 : i64} {
  func.func @_init_block_kernel(%arg0: i32, %arg1: memref<2x32xf32, #tpu.memory_space<vmem>>, %arg2: memref<32x64xbf16, #tpu.memory_space<vmem>>, %arg3: memref<32x64xbf16, #tpu.memory_space<vmem>>, %arg4: memref<1x64xf32, #tpu.memory_space<vmem>>, %arg5: memref<64x256xbf16, #tpu.memory_space<vmem>>, %arg6: memref<1x256xf32, #tpu.memory_space<vmem>>, %arg7: memref<32x128xf32, #tpu.memory_space<vmem>>, %arg8: memref<3x128x256xbf16, #tpu.memory_space<vmem>>, %arg9: memref<1x256xf32, #tpu.memory_space<vmem>>, %arg10: memref<1x256xf32, #tpu.memory_space<vmem>>, %arg11: memref<1x256xf32, #tpu.memory_space<vmem>>, %arg12: memref<32x256xf32, #tpu.memory_space<vmem>>) attributes {dimension_semantics = [#tpu.dimension_semantics<arbitrary>], iteration_bounds = array<i64: 1>, scalar_prefetch = 0 : i64, scratch_operands = 0 : i64, tpu.core_type = #tpu.core_type<tc>, window_params = [{pipeline_mode = #tpu.pipeline_mode<synchronous>, transform_indices = @transform_0, window_bounds = array<i64: 2, 32>}, {pipeline_mode = #tpu.pipeline_mode<synchronous>, transform_indices = @transform_1, window_bounds = array<i64: 32, 64>}, {pipeline_mode = #tpu.pipeline_mode<synchronous>, transform_indices = @transform_2, window_bounds = array<i64: 32, 64>}, {pipeline_mode = #tpu.pipeline_mode<synchronous>, transform_indices = @transform_3, window_bounds = array<i64: 1, 64>}, {pipeline_mode = #tpu.pipeline_mode<synchronous>, transform_indices = @transform_4, window_bounds = array<i64: 64, 256>}, {pipeline_mode = #tpu.pipeline_mode<synchronous>, transform_indices = @transform_5, window_bounds = array<i64: 1, 256>}, {pipeline_mode = #tpu.pipeline_mode<synchronous>, transform_indices = @transform_6, window_bounds = array<i64: 32, 128>}, {pipeline_mode = #tpu.pipeline_mode<synchronous>, transform_indices = @transform_7, window_bounds = array<i64: 3, 128, 256>}, {pipeline_mode = #tpu.pipeline_mode<synchronous>, transform_indices = @transform_8, window_bounds = array<i64: 1, 256>}, {pipeline_mode = #tpu.pipeline_mode<synchronous>, transform_indices = @transform_9, window_bounds = array<i64: 1, 256>}, {pipeline_mode = #tpu.pipeline_mode<synchronous>, transform_indices = @transform_10, window_bounds = array<i64: 1, 256>}, {pipeline_mode = #tpu.pipeline_mode<synchronous>, transform_indices = @transform_11, window_bounds = array<i64: 32, 256>}]} {
    %c0 = arith.constant 0 : index
    %c0_0 = arith.constant 0 : index
    %0 = vector.load %arg1[%c0, %c0_0] : memref<2x32xf32, #tpu.memory_space<vmem>>, vector<2x32xf32>
    %1 = math.sin %0 : vector<2x32xf32>
    %2 = arith.truncf %1 : vector<2x32xf32> to vector<2x32xbf16>
    %c0_1 = arith.constant 0 : index
    %c0_2 = arith.constant 0 : index
    %3 = vector.load %arg2[%c0_1, %c0_2] : memref<32x64xbf16, #tpu.memory_space<vmem>>, vector<32x64xbf16>
    %cst = arith.constant dense<0.000000e+00> : vector<2x64xf32>
    %4 = tpu.matmul %2, %3, %cst {dimension_numbers = #tpu.dot_dimension_numbers<[1], [0], [0], [1], [0, 0, 1, 1], [], []>} : vector<2x32xbf16>, vector<32x64xbf16>, vector<2x64xf32> -> vector<2x64xf32>
    %5 = math.cos %0 : vector<2x32xf32>
    %6 = arith.truncf %5 : vector<2x32xf32> to vector<2x32xbf16>
    %c0_3 = arith.constant 0 : index
    %c0_4 = arith.constant 0 : index
    %7 = vector.load %arg3[%c0_3, %c0_4] : memref<32x64xbf16, #tpu.memory_space<vmem>>, vector<32x64xbf16>
    %cst_5 = arith.constant dense<0.000000e+00> : vector<2x64xf32>
    %8 = tpu.matmul %6, %7, %cst_5 {dimension_numbers = #tpu.dot_dimension_numbers<[1], [0], [0], [1], [0, 0, 1, 1], [], []>} : vector<2x32xbf16>, vector<32x64xbf16>, vector<2x64xf32> -> vector<2x64xf32>
    %9 = arith.addf %4, %8 : vector<2x64xf32>
    %c0_6 = arith.constant 0 : index
    %c0_7 = arith.constant 0 : index
    %10 = vector.load %arg4[%c0_6, %c0_7] : memref<1x64xf32, #tpu.memory_space<vmem>>, vector<1x64xf32>
    %11 = vector.broadcast %10 : vector<1x64xf32> to vector<2x64xf32>
    %12 = arith.addf %9, %11 : vector<2x64xf32>
    %cst_8 = arith.constant 0.000000e+00 : f32
    %13 = vector.broadcast %cst_8 : f32 to vector<2x64xf32>
    %14 = arith.subf %13, %12 : vector<2x64xf32>
    %15 = math.exp %14 : vector<2x64xf32>
    %cst_9 = arith.constant 1.000000e+00 : f32
    %16 = vector.broadcast %cst_9 : f32 to vector<2x64xf32>
    %17 = arith.addf %16, %15 : vector<2x64xf32>
    %18 = tpu.reciprocal %17 {approx = true} : vector<2x64xf32> -> vector<2x64xf32>
    %19 = arith.mulf %12, %18 : vector<2x64xf32>
    %20 = arith.truncf %19 : vector<2x64xf32> to vector<2x64xbf16>
    %c0_10 = arith.constant 0 : index
    %c0_11 = arith.constant 0 : index
    %21 = vector.load %arg5[%c0_10, %c0_11] : memref<64x256xbf16, #tpu.memory_space<vmem>>, vector<64x256xbf16>
    %cst_12 = arith.constant dense<0.000000e+00> : vector<2x256xf32>
    %22 = tpu.matmul %20, %21, %cst_12 {dimension_numbers = #tpu.dot_dimension_numbers<[1], [0], [0], [1], [0, 0, 1, 1], [], []>} : vector<2x64xbf16>, vector<64x256xbf16>, vector<2x256xf32> -> vector<2x256xf32>
    %c0_13 = arith.constant 0 : index
    %c0_14 = arith.constant 0 : index
    %23 = vector.load %arg6[%c0_13, %c0_14] : memref<1x256xf32, #tpu.memory_space<vmem>>, vector<1x256xf32>
    %24 = vector.broadcast %23 : vector<1x256xf32> to vector<2x256xf32>
    %25 = arith.addf %22, %24 : vector<2x256xf32>
    %c0_15 = arith.constant 0 : index
    %c0_16 = arith.constant 0 : index
    %26 = vector.load %arg7[%c0_15, %c0_16] : memref<32x128xf32, #tpu.memory_space<vmem>>, vector<32x128xf32>
    %c1_i32 = arith.constant 1 : i32
    %27 = tpu.dynamic_rotate %26 by %c1_i32 dim 0 : vector<32x128xf32>, i32 -> vector<32x128xf32>
    %28 = tpu.iota {dimensions = array<i32: 0>} : vector<32x1xi32>
    %c16_i32 = arith.constant 16 : i32
    %c0_i32 = arith.constant 0 : i32
    %29 = arith.cmpi eq, %c16_i32, %c0_i32 : i32
    %c1_i32_17 = arith.constant 1 : i32
    %30 = arith.select %29, %c1_i32_17, %c16_i32 : i32
    %31 = vector.broadcast %30 : i32 to vector<32x1xi32>
    %32 = arith.remsi %28, %31 : vector<32x1xi32>
    %c0_i32_18 = arith.constant 0 : i32
    %33 = vector.broadcast %c0_i32_18 : i32 to vector<32x1xi32>
    %34 = arith.cmpi ne, %32, %33 : vector<32x1xi32>
    %c0_i32_19 = arith.constant 0 : i32
    %35 = vector.broadcast %c0_i32_19 : i32 to vector<32x1xi32>
    %36 = arith.cmpi slt, %32, %35 : vector<32x1xi32>
    %c0_i32_20 = arith.constant 0 : i32
    %37 = arith.cmpi slt, %30, %c0_i32_20 : i32
    %38 = vector.broadcast %37 : i1 to vector<32x1xi1>
    %39 = vector.broadcast %38 : vector<32x1xi1> to vector<32x1xi1>
    %40 = arith.xori %36, %39 : vector<32x1xi1>
    %41 = arith.andi %40, %34 : vector<32x1xi1>
    %42 = vector.broadcast %30 : i32 to vector<32x1xi32>
    %43 = arith.addi %32, %42 : vector<32x1xi32>
    %44 = arith.select %41, %43, %32 : vector<32x1xi1>, vector<32x1xi32>
    %c1_i32_21 = arith.constant 1 : i32
    %45 = vector.broadcast %c1_i32_21 : i32 to vector<32x1xi32>
    %46 = arith.cmpi sge, %44, %45 : vector<32x1xi32>
    %cst_22 = arith.constant 0.000000e+00 : f32
    %47 = vector.broadcast %cst_22 : f32 to vector<32x128xf32>
    %48 = vector.shape_cast %46 : vector<32x1xi1> to vector<32x1xi1>
    %49 = vector.broadcast %48 : vector<32x1xi1> to vector<32x128xi1>
    %50 = arith.select %49, %27, %47 : vector<32x128xi1>, vector<32x128xf32>
    %51 = arith.truncf %50 : vector<32x128xf32> to vector<32x128xbf16>
    %c31_i32 = arith.constant 31 : i32
    %52 = tpu.dynamic_rotate %26 by %c31_i32 dim 0 : vector<32x128xf32>, i32 -> vector<32x128xf32>
    %53 = tpu.iota {dimensions = array<i32: 0>} : vector<32x1xi32>
    %c16_i32_23 = arith.constant 16 : i32
    %c0_i32_24 = arith.constant 0 : i32
    %54 = arith.cmpi eq, %c16_i32_23, %c0_i32_24 : i32
    %c1_i32_25 = arith.constant 1 : i32
    %55 = arith.select %54, %c1_i32_25, %c16_i32_23 : i32
    %56 = vector.broadcast %55 : i32 to vector<32x1xi32>
    %57 = arith.remsi %53, %56 : vector<32x1xi32>
    %c0_i32_26 = arith.constant 0 : i32
    %58 = vector.broadcast %c0_i32_26 : i32 to vector<32x1xi32>
    %59 = arith.cmpi ne, %57, %58 : vector<32x1xi32>
    %c0_i32_27 = arith.constant 0 : i32
    %60 = vector.broadcast %c0_i32_27 : i32 to vector<32x1xi32>
    %61 = arith.cmpi slt, %57, %60 : vector<32x1xi32>
    %c0_i32_28 = arith.constant 0 : i32
    %62 = arith.cmpi slt, %55, %c0_i32_28 : i32
    %63 = vector.broadcast %62 : i1 to vector<32x1xi1>
    %64 = vector.broadcast %63 : vector<32x1xi1> to vector<32x1xi1>
    %65 = arith.xori %61, %64 : vector<32x1xi1>
    %66 = arith.andi %65, %59 : vector<32x1xi1>
    %67 = vector.broadcast %55 : i32 to vector<32x1xi32>
    %68 = arith.addi %57, %67 : vector<32x1xi32>
    %69 = arith.select %66, %68, %57 : vector<32x1xi1>, vector<32x1xi32>
    %c15_i32 = arith.constant 15 : i32
    %70 = vector.broadcast %c15_i32 : i32 to vector<32x1xi32>
    %71 = arith.cmpi slt, %69, %70 : vector<32x1xi32>
    %cst_29 = arith.constant 0.000000e+00 : f32
    %72 = vector.broadcast %cst_29 : f32 to vector<32x128xf32>
    %73 = vector.shape_cast %71 : vector<32x1xi1> to vector<32x1xi1>
    %74 = vector.broadcast %73 : vector<32x1xi1> to vector<32x128xi1>
    %75 = arith.select %74, %52, %72 : vector<32x128xi1>, vector<32x128xf32>
    %76 = arith.truncf %75 : vector<32x128xf32> to vector<32x128xbf16>
    %77 = arith.truncf %26 : vector<32x128xf32> to vector<32x128xbf16>
    %c1 = arith.constant 1 : index
    %c0_30 = arith.constant 0 : index
    %c0_31 = arith.constant 0 : index
    %78 = vector.load %arg8[%c1, %c0_30, %c0_31] : memref<3x128x256xbf16, #tpu.memory_space<vmem>>, vector<1x128x256xbf16>
    %79 = vector.shape_cast %78 : vector<1x128x256xbf16> to vector<128x256xbf16>
    %cst_32 = arith.constant dense<0.000000e+00> : vector<32x256xf32>
    %80 = tpu.matmul %77, %79, %cst_32 {dimension_numbers = #tpu.dot_dimension_numbers<[1], [0], [0], [1], [0, 0, 1, 1], [], []>} : vector<32x128xbf16>, vector<128x256xbf16>, vector<32x256xf32> -> vector<32x256xf32>
    %c0_33 = arith.constant 0 : index
    %c0_34 = arith.constant 0 : index
    %c0_35 = arith.constant 0 : index
    %81 = vector.load %arg8[%c0_33, %c0_34, %c0_35] : memref<3x128x256xbf16, #tpu.memory_space<vmem>>, vector<1x128x256xbf16>
    %82 = vector.shape_cast %81 : vector<1x128x256xbf16> to vector<128x256xbf16>
    %cst_36 = arith.constant dense<0.000000e+00> : vector<32x256xf32>
    %83 = tpu.matmul %51, %82, %cst_36 {dimension_numbers = #tpu.dot_dimension_numbers<[1], [0], [0], [1], [0, 0, 1, 1], [], []>} : vector<32x128xbf16>, vector<128x256xbf16>, vector<32x256xf32> -> vector<32x256xf32>
    %84 = arith.addf %80, %83 : vector<32x256xf32>
    %c2 = arith.constant 2 : index
    %c0_37 = arith.constant 0 : index
    %c0_38 = arith.constant 0 : index
    %85 = vector.load %arg8[%c2, %c0_37, %c0_38] : memref<3x128x256xbf16, #tpu.memory_space<vmem>>, vector<1x128x256xbf16>
    %86 = vector.shape_cast %85 : vector<1x128x256xbf16> to vector<128x256xbf16>
    %cst_39 = arith.constant dense<0.000000e+00> : vector<32x256xf32>
    %87 = tpu.matmul %76, %86, %cst_39 {dimension_numbers = #tpu.dot_dimension_numbers<[1], [0], [0], [1], [0, 0, 1, 1], [], []>} : vector<32x128xbf16>, vector<128x256xbf16>, vector<32x256xf32> -> vector<32x256xf32>
    %88 = arith.addf %84, %87 : vector<32x256xf32>
    %c0_40 = arith.constant 0 : index
    %c0_41 = arith.constant 0 : index
    %89 = vector.load %arg9[%c0_40, %c0_41] : memref<1x256xf32, #tpu.memory_space<vmem>>, vector<1x256xf32>
    %90 = vector.broadcast %89 : vector<1x256xf32> to vector<32x256xf32>
    %91 = arith.addf %88, %90 : vector<32x256xf32>
    %cst_42 = arith.constant dense<0.000000e+00> : vector<256xf32>
    %92 = vector.multi_reduction <add>, %91, %cst_42 [0] : vector<32x256xf32> to vector<256xf32>
    %93 = vector.shape_cast %92 : vector<256xf32> to vector<1x256xf32>
    %cst_43 = arith.constant 3.200000e+01 : f32
    %94 = vector.broadcast %cst_43 : f32 to vector<1x256xf32>
    %95 = arith.divf %93, %94 : vector<1x256xf32>
    %96 = vector.broadcast %95 : vector<1x256xf32> to vector<32x256xf32>
    %97 = arith.subf %91, %96 : vector<32x256xf32>
    %98 = arith.mulf %97, %97 : vector<32x256xf32>
    %cst_44 = arith.constant dense<0.000000e+00> : vector<256xf32>
    %99 = vector.multi_reduction <add>, %98, %cst_44 [0] : vector<32x256xf32> to vector<256xf32>
    %100 = vector.shape_cast %99 : vector<256xf32> to vector<1x256xf32>
    %cst_45 = arith.constant 3.200000e+01 : f32
    %101 = vector.broadcast %cst_45 : f32 to vector<1x256xf32>
    %102 = arith.divf %100, %101 : vector<1x256xf32>
    %103 = vector.broadcast %95 : vector<1x256xf32> to vector<32x256xf32>
    %104 = arith.subf %91, %103 : vector<32x256xf32>
    %c0_46 = arith.constant 0 : index
    %c0_47 = arith.constant 0 : index
    %105 = vector.load %arg10[%c0_46, %c0_47] : memref<1x256xf32, #tpu.memory_space<vmem>>, vector<1x256xf32>
    %cst_48 = arith.constant 9.99999974E-6 : f32
    %106 = vector.broadcast %cst_48 : f32 to vector<1x256xf32>
    %107 = arith.addf %102, %106 : vector<1x256xf32>
    %108 = math.rsqrt %107 : vector<1x256xf32>
    %109 = arith.mulf %105, %108 : vector<1x256xf32>
    %110 = vector.broadcast %109 : vector<1x256xf32> to vector<32x256xf32>
    %111 = arith.mulf %104, %110 : vector<32x256xf32>
    %c0_49 = arith.constant 0 : index
    %c0_50 = arith.constant 0 : index
    %112 = vector.load %arg11[%c0_49, %c0_50] : memref<1x256xf32, #tpu.memory_space<vmem>>, vector<1x256xf32>
    %113 = vector.broadcast %112 : vector<1x256xf32> to vector<32x256xf32>
    %114 = arith.addf %111, %113 : vector<32x256xf32>
    %cst_51 = arith.constant 0.000000e+00 : f32
    %115 = vector.broadcast %cst_51 : f32 to vector<32x256xf32>
    %116 = arith.maximumf %114, %115 : vector<32x256xf32>
    %117 = vector.shape_cast %116 : vector<32x256xf32> to vector<2x16x256xf32>
    %118 = vector.shape_cast %25 : vector<2x256xf32> to vector<2x1x256xf32>
    %119 = vector.broadcast %118 : vector<2x1x256xf32> to vector<2x16x256xf32>
    %120 = arith.addf %117, %119 : vector<2x16x256xf32>
    %121 = vector.shape_cast %120 : vector<2x16x256xf32> to vector<32x256xf32>
    %c0_52 = arith.constant 0 : index
    %c0_53 = arith.constant 0 : index
    %122 = vector.load %arg12[%c0_52, %c0_53] : memref<32x256xf32, #tpu.memory_space<vmem>>, vector<32x256xf32>
    tpu.vector_store %arg12[%c0_52, %c0_53], %121 {strides = array<i32>} : memref<32x256xf32, #tpu.memory_space<vmem>>, vector<32x256xf32>,
    return
  }
  func.func @transform_0(%arg0: i32) -> (i32, i32) {
    %c0_i32 = arith.constant 0 : i32
    %c0_i32_0 = arith.constant 0 : i32
    %c0_i32_1 = arith.constant 0 : i32
    return %c0_i32, %c0_i32_0 : i32, i32
  }
  func.func @transform_1(%arg0: i32) -> (i32, i32) {
    %c0_i32 = arith.constant 0 : i32
    %c0_i32_0 = arith.constant 0 : i32
    %c0_i32_1 = arith.constant 0 : i32
    return %c0_i32, %c0_i32_0 : i32, i32
  }
  func.func @transform_2(%arg0: i32) -> (i32, i32) {
    %c0_i32 = arith.constant 0 : i32
    %c0_i32_0 = arith.constant 0 : i32
    %c0_i32_1 = arith.constant 0 : i32
    return %c0_i32, %c0_i32_0 : i32, i32
  }
  func.func @transform_3(%arg0: i32) -> (i32, i32) {
    %c0_i32 = arith.constant 0 : i32
    %c0_i32_0 = arith.constant 0 : i32
    %c0_i32_1 = arith.constant 0 : i32
    return %c0_i32, %c0_i32_0 : i32, i32
  }
  func.func @transform_4(%arg0: i32) -> (i32, i32) {
    %c0_i32 = arith.constant 0 : i32
    %c0_i32_0 = arith.constant 0 : i32
    %c0_i32_1 = arith.constant 0 : i32
    return %c0_i32, %c0_i32_0 : i32, i32
  }
  func.func @transform_5(%arg0: i32) -> (i32, i32) {
    %c0_i32 = arith.constant 0 : i32
    %c0_i32_0 = arith.constant 0 : i32
    %c0_i32_1 = arith.constant 0 : i32
    return %c0_i32, %c0_i32_0 : i32, i32
  }
  func.func @transform_6(%arg0: i32) -> (i32, i32) {
    %c0_i32 = arith.constant 0 : i32
    %c0_i32_0 = arith.constant 0 : i32
    %c0_i32_1 = arith.constant 0 : i32
    return %c0_i32, %c0_i32_0 : i32, i32
  }
  func.func @transform_7(%arg0: i32) -> (i32, i32, i32) {
    %c0_i32 = arith.constant 0 : i32
    %c0_i32_0 = arith.constant 0 : i32
    %c0_i32_1 = arith.constant 0 : i32
    %c0_i32_2 = arith.constant 0 : i32
    return %c0_i32, %c0_i32_0, %c0_i32_1 : i32, i32, i32
  }
  func.func @transform_8(%arg0: i32) -> (i32, i32) {
    %c0_i32 = arith.constant 0 : i32
    %c0_i32_0 = arith.constant 0 : i32
    %c0_i32_1 = arith.constant 0 : i32
    return %c0_i32, %c0_i32_0 : i32, i32
  }
  func.func @transform_9(%arg0: i32) -> (i32, i32) {
    %c0_i32 = arith.constant 0 : i32
    %c0_i32_0 = arith.constant 0 : i32
    %c0_i32_1 = arith.constant 0 : i32
    return %c0_i32, %c0_i32_0 : i32, i32
  }
  func.func @transform_10(%arg0: i32) -> (i32, i32) {
    %c0_i32 = arith.constant 0 : i32
    %c0_i32_0 = arith.constant 0 : i32
    %c0_i32_1 = arith.constant 0 : i32
    return %c0_i32, %c0_i32_0 : i32, i32
  }
  func.func @transform_11(%arg0: i32) -> (i32, i32) {
    %c0_i32 = arith.constant 0 : i32
    %c0_i32_0 = arith.constant 0 : i32
    %c0_i32_1 = arith.constant 0 : i32
    return %c0_i32, %c0_i32_0 : i32, i32
  }
}

module attributes {stable_mosaic.version = 11 : i64} {
  func.func @_down_block_kernel(%arg0: i32, %arg1: memref<16x512xf32, #tpu.memory_space<vmem>>, %arg2: memref<3x256x384xbf16, #tpu.memory_space<vmem>>, %arg3: memref<1x384xf32, #tpu.memory_space<vmem>>, %arg4: memref<1x384xf32, #tpu.memory_space<vmem>>, %arg5: memref<1x384xf32, #tpu.memory_space<vmem>>, %arg6: memref<16x384xf32, #tpu.memory_space<vmem>>) attributes {dimension_semantics = [#tpu.dimension_semantics<arbitrary>], iteration_bounds = array<i64: 1>, scalar_prefetch = 0 : i64, scratch_operands = 0 : i64, tpu.core_type = #tpu.core_type<tc>, window_params = [{pipeline_mode = #tpu.pipeline_mode<synchronous>, transform_indices = @transform_0, window_bounds = array<i64: 16, 512>}, {pipeline_mode = #tpu.pipeline_mode<synchronous>, transform_indices = @transform_1, window_bounds = array<i64: 3, 256, 384>}, {pipeline_mode = #tpu.pipeline_mode<synchronous>, transform_indices = @transform_2, window_bounds = array<i64: 1, 384>}, {pipeline_mode = #tpu.pipeline_mode<synchronous>, transform_indices = @transform_3, window_bounds = array<i64: 1, 384>}, {pipeline_mode = #tpu.pipeline_mode<synchronous>, transform_indices = @transform_4, window_bounds = array<i64: 1, 384>}, {pipeline_mode = #tpu.pipeline_mode<synchronous>, transform_indices = @transform_5, window_bounds = array<i64: 16, 384>}]} {
    %c0 = arith.constant 0 : index
    %c0_0 = arith.constant 0 : index
    %0 = vector.load %arg1[%c0, %c0_0] : memref<16x512xf32, #tpu.memory_space<vmem>>, vector<16x512xf32>
    %1 = vector.extract_strided_slice %0 {offsets = [0, 0], sizes = [16, 256], strides = [1, 1]} : vector<16x512xf32> to vector<16x256xf32>
    %2 = vector.extract_strided_slice %0 {offsets = [0, 256], sizes = [16, 256], strides = [1, 1]} : vector<16x512xf32> to vector<16x256xf32>
    %c1_i32 = arith.constant 1 : i32
    %3 = tpu.dynamic_rotate %2 by %c1_i32 dim 0 : vector<16x256xf32>, i32 -> vector<16x256xf32>
    %4 = tpu.iota {dimensions = array<i32: 0>} : vector<16x1xi32>
    %c8_i32 = arith.constant 8 : i32
    %c0_i32 = arith.constant 0 : i32
    %5 = arith.cmpi eq, %c8_i32, %c0_i32 : i32
    %c1_i32_1 = arith.constant 1 : i32
    %6 = arith.select %5, %c1_i32_1, %c8_i32 : i32
    %7 = vector.broadcast %6 : i32 to vector<16x1xi32>
    %8 = arith.remsi %4, %7 : vector<16x1xi32>
    %c0_i32_2 = arith.constant 0 : i32
    %9 = vector.broadcast %c0_i32_2 : i32 to vector<16x1xi32>
    %10 = arith.cmpi ne, %8, %9 : vector<16x1xi32>
    %c0_i32_3 = arith.constant 0 : i32
    %11 = vector.broadcast %c0_i32_3 : i32 to vector<16x1xi32>
    %12 = arith.cmpi slt, %8, %11 : vector<16x1xi32>
    %c0_i32_4 = arith.constant 0 : i32
    %13 = arith.cmpi slt, %6, %c0_i32_4 : i32
    %14 = vector.broadcast %13 : i1 to vector<16x1xi1>
    %15 = vector.broadcast %14 : vector<16x1xi1> to vector<16x1xi1>
    %16 = arith.xori %12, %15 : vector<16x1xi1>
    %17 = arith.andi %16, %10 : vector<16x1xi1>
    %18 = vector.broadcast %6 : i32 to vector<16x1xi32>
    %19 = arith.addi %8, %18 : vector<16x1xi32>
    %20 = arith.select %17, %19, %8 : vector<16x1xi1>, vector<16x1xi32>
    %c1_i32_5 = arith.constant 1 : i32
    %21 = vector.broadcast %c1_i32_5 : i32 to vector<16x1xi32>
    %22 = arith.cmpi sge, %20, %21 : vector<16x1xi32>
    %cst = arith.constant 0.000000e+00 : f32
    %23 = vector.broadcast %cst : f32 to vector<16x256xf32>
    %24 = vector.shape_cast %22 : vector<16x1xi1> to vector<16x1xi1>
    %25 = vector.broadcast %24 : vector<16x1xi1> to vector<16x256xi1>
    %26 = arith.select %25, %3, %23 : vector<16x256xi1>, vector<16x256xf32>
    %27 = arith.truncf %26 : vector<16x256xf32> to vector<16x256xbf16>
    %c0_6 = arith.constant 0 : index
    %c0_7 = arith.constant 0 : index
    %c0_8 = arith.constant 0 : index
    %28 = vector.load %arg2[%c0_6, %c0_7, %c0_8] : memref<3x256x384xbf16, #tpu.memory_space<vmem>>, vector<1x256x384xbf16>
    %29 = vector.shape_cast %28 : vector<1x256x384xbf16> to vector<256x384xbf16>
    %cst_9 = arith.constant dense<0.000000e+00> : vector<16x384xf32>
    %30 = tpu.matmul %27, %29, %cst_9 {dimension_numbers = #tpu.dot_dimension_numbers<[1], [0], [0], [1], [0, 0, 1, 1], [], []>} : vector<16x256xbf16>, vector<256x384xbf16>, vector<16x384xf32> -> vector<16x384xf32>
    %31 = arith.truncf %1 : vector<16x256xf32> to vector<16x256xbf16>
    %c1 = arith.constant 1 : index
    %c0_10 = arith.constant 0 : index
    %c0_11 = arith.constant 0 : index
    %32 = vector.load %arg2[%c1, %c0_10, %c0_11] : memref<3x256x384xbf16, #tpu.memory_space<vmem>>, vector<1x256x384xbf16>
    %33 = vector.shape_cast %32 : vector<1x256x384xbf16> to vector<256x384xbf16>
    %cst_12 = arith.constant dense<0.000000e+00> : vector<16x384xf32>
    %34 = tpu.matmul %31, %33, %cst_12 {dimension_numbers = #tpu.dot_dimension_numbers<[1], [0], [0], [1], [0, 0, 1, 1], [], []>} : vector<16x256xbf16>, vector<256x384xbf16>, vector<16x384xf32> -> vector<16x384xf32>
    %35 = arith.addf %30, %34 : vector<16x384xf32>
    %36 = arith.truncf %2 : vector<16x256xf32> to vector<16x256xbf16>
    %c2 = arith.constant 2 : index
    %c0_13 = arith.constant 0 : index
    %c0_14 = arith.constant 0 : index
    %37 = vector.load %arg2[%c2, %c0_13, %c0_14] : memref<3x256x384xbf16, #tpu.memory_space<vmem>>, vector<1x256x384xbf16>
    %38 = vector.shape_cast %37 : vector<1x256x384xbf16> to vector<256x384xbf16>
    %cst_15 = arith.constant dense<0.000000e+00> : vector<16x384xf32>
    %39 = tpu.matmul %36, %38, %cst_15 {dimension_numbers = #tpu.dot_dimension_numbers<[1], [0], [0], [1], [0, 0, 1, 1], [], []>} : vector<16x256xbf16>, vector<256x384xbf16>, vector<16x384xf32> -> vector<16x384xf32>
    %40 = arith.addf %35, %39 : vector<16x384xf32>
    %c0_16 = arith.constant 0 : index
    %c0_17 = arith.constant 0 : index
    %41 = vector.load %arg3[%c0_16, %c0_17] : memref<1x384xf32, #tpu.memory_space<vmem>>, vector<1x384xf32>
    %42 = vector.broadcast %41 : vector<1x384xf32> to vector<16x384xf32>
    %43 = arith.addf %40, %42 : vector<16x384xf32>
    %cst_18 = arith.constant dense<0.000000e+00> : vector<384xf32>
    %44 = vector.multi_reduction <add>, %43, %cst_18 [0] : vector<16x384xf32> to vector<384xf32>
    %45 = vector.shape_cast %44 : vector<384xf32> to vector<1x384xf32>
    %cst_19 = arith.constant 1.600000e+01 : f32
    %46 = vector.broadcast %cst_19 : f32 to vector<1x384xf32>
    %47 = arith.divf %45, %46 : vector<1x384xf32>
    %48 = vector.broadcast %47 : vector<1x384xf32> to vector<16x384xf32>
    %49 = arith.subf %43, %48 : vector<16x384xf32>
    %50 = arith.mulf %49, %49 : vector<16x384xf32>
    %cst_20 = arith.constant dense<0.000000e+00> : vector<384xf32>
    %51 = vector.multi_reduction <add>, %50, %cst_20 [0] : vector<16x384xf32> to vector<384xf32>
    %52 = vector.shape_cast %51 : vector<384xf32> to vector<1x384xf32>
    %cst_21 = arith.constant 1.600000e+01 : f32
    %53 = vector.broadcast %cst_21 : f32 to vector<1x384xf32>
    %54 = arith.divf %52, %53 : vector<1x384xf32>
    %55 = vector.broadcast %47 : vector<1x384xf32> to vector<16x384xf32>
    %56 = arith.subf %43, %55 : vector<16x384xf32>
    %c0_22 = arith.constant 0 : index
    %c0_23 = arith.constant 0 : index
    %57 = vector.load %arg4[%c0_22, %c0_23] : memref<1x384xf32, #tpu.memory_space<vmem>>, vector<1x384xf32>
    %cst_24 = arith.constant 9.99999974E-6 : f32
    %58 = vector.broadcast %cst_24 : f32 to vector<1x384xf32>
    %59 = arith.addf %54, %58 : vector<1x384xf32>
    %60 = math.rsqrt %59 : vector<1x384xf32>
    %61 = arith.mulf %57, %60 : vector<1x384xf32>
    %62 = vector.broadcast %61 : vector<1x384xf32> to vector<16x384xf32>
    %63 = arith.mulf %56, %62 : vector<16x384xf32>
    %c0_25 = arith.constant 0 : index
    %c0_26 = arith.constant 0 : index
    %64 = vector.load %arg5[%c0_25, %c0_26] : memref<1x384xf32, #tpu.memory_space<vmem>>, vector<1x384xf32>
    %65 = vector.broadcast %64 : vector<1x384xf32> to vector<16x384xf32>
    %66 = arith.addf %63, %65 : vector<16x384xf32>
    %cst_27 = arith.constant 0.000000e+00 : f32
    %67 = vector.broadcast %cst_27 : f32 to vector<16x384xf32>
    %68 = arith.maximumf %66, %67 : vector<16x384xf32>
    %c0_28 = arith.constant 0 : index
    %c0_29 = arith.constant 0 : index
    %69 = vector.load %arg6[%c0_28, %c0_29] : memref<16x384xf32, #tpu.memory_space<vmem>>, vector<16x384xf32>
    tpu.vector_store %arg6[%c0_28, %c0_29], %68 {strides = array<i32>} : memref<16x384xf32, #tpu.memory_space<vmem>>, vector<16x384xf32>,
    return
  }
  func.func @transform_0(%arg0: i32) -> (i32, i32) {
    %c0_i32 = arith.constant 0 : i32
    %c0_i32_0 = arith.constant 0 : i32
    %c0_i32_1 = arith.constant 0 : i32
    return %c0_i32, %c0_i32_0 : i32, i32
  }
  func.func @transform_1(%arg0: i32) -> (i32, i32, i32) {
    %c0_i32 = arith.constant 0 : i32
    %c0_i32_0 = arith.constant 0 : i32
    %c0_i32_1 = arith.constant 0 : i32
    %c0_i32_2 = arith.constant 0 : i32
    return %c0_i32, %c0_i32_0, %c0_i32_1 : i32, i32, i32
  }
  func.func @transform_2(%arg0: i32) -> (i32, i32) {
    %c0_i32 = arith.constant 0 : i32
    %c0_i32_0 = arith.constant 0 : i32
    %c0_i32_1 = arith.constant 0 : i32
    return %c0_i32, %c0_i32_0 : i32, i32
  }
  func.func @transform_3(%arg0: i32) -> (i32, i32) {
    %c0_i32 = arith.constant 0 : i32
    %c0_i32_0 = arith.constant 0 : i32
    %c0_i32_1 = arith.constant 0 : i32
    return %c0_i32, %c0_i32_0 : i32, i32
  }
  func.func @transform_4(%arg0: i32) -> (i32, i32) {
    %c0_i32 = arith.constant 0 : i32
    %c0_i32_0 = arith.constant 0 : i32
    %c0_i32_1 = arith.constant 0 : i32
    return %c0_i32, %c0_i32_0 : i32, i32
  }
  func.func @transform_5(%arg0: i32) -> (i32, i32) {
    %c0_i32 = arith.constant 0 : i32
    %c0_i32_0 = arith.constant 0 : i32
    %c0_i32_1 = arith.constant 0 : i32
    return %c0_i32, %c0_i32_0 : i32, i32
  }
}

module attributes {stable_mosaic.version = 11 : i64} {
  func.func @_up_final_kernel(%arg0: i32, %arg1: memref<16x384xf32, #tpu.memory_space<vmem>>, %arg2: memref<16x512xf32, #tpu.memory_space<vmem>>, %arg3: memref<3x384x256xbf16, #tpu.memory_space<vmem>>, %arg4: memref<1x256xf32, #tpu.memory_space<vmem>>, %arg5: memref<1x256xf32, #tpu.memory_space<vmem>>, %arg6: memref<1x256xf32, #tpu.memory_space<vmem>>, %arg7: memref<3x256x128xbf16, #tpu.memory_space<vmem>>, %arg8: memref<1x128xf32, #tpu.memory_space<vmem>>, %arg9: memref<2x1xf32, #tpu.memory_space<vmem>>, %arg10: memref<16x256xf32, #tpu.memory_space<vmem>>) attributes {dimension_semantics = [#tpu.dimension_semantics<arbitrary>], iteration_bounds = array<i64: 1>, scalar_prefetch = 0 : i64, scratch_operands = 0 : i64, tpu.core_type = #tpu.core_type<tc>, window_params = [{pipeline_mode = #tpu.pipeline_mode<synchronous>, transform_indices = @transform_0, window_bounds = array<i64: 16, 384>}, {pipeline_mode = #tpu.pipeline_mode<synchronous>, transform_indices = @transform_1, window_bounds = array<i64: 16, 512>}, {pipeline_mode = #tpu.pipeline_mode<synchronous>, transform_indices = @transform_2, window_bounds = array<i64: 3, 384, 256>}, {pipeline_mode = #tpu.pipeline_mode<synchronous>, transform_indices = @transform_3, window_bounds = array<i64: 1, 256>}, {pipeline_mode = #tpu.pipeline_mode<synchronous>, transform_indices = @transform_4, window_bounds = array<i64: 1, 256>}, {pipeline_mode = #tpu.pipeline_mode<synchronous>, transform_indices = @transform_5, window_bounds = array<i64: 1, 256>}, {pipeline_mode = #tpu.pipeline_mode<synchronous>, transform_indices = @transform_6, window_bounds = array<i64: 3, 256, 128>}, {pipeline_mode = #tpu.pipeline_mode<synchronous>, transform_indices = @transform_7, window_bounds = array<i64: 1, 128>}, {pipeline_mode = #tpu.pipeline_mode<synchronous>, transform_indices = @transform_8, window_bounds = array<i64: 2, 1>}, {pipeline_mode = #tpu.pipeline_mode<synchronous>, transform_indices = @transform_9, window_bounds = array<i64: 16, 256>}]} {
    %c0 = arith.constant 0 : index
    %c0_0 = arith.constant 0 : index
    %0 = vector.load %arg1[%c0, %c0_0] : memref<16x384xf32, #tpu.memory_space<vmem>>, vector<16x384xf32>
    %c15_i32 = arith.constant 15 : i32
    %1 = tpu.dynamic_rotate %0 by %c15_i32 dim 0 : vector<16x384xf32>, i32 -> vector<16x384xf32>
    %2 = tpu.iota {dimensions = array<i32: 0>} : vector<16x1xi32>
    %c8_i32 = arith.constant 8 : i32
    %c0_i32 = arith.constant 0 : i32
    %3 = arith.cmpi eq, %c8_i32, %c0_i32 : i32
    %c1_i32 = arith.constant 1 : i32
    %4 = arith.select %3, %c1_i32, %c8_i32 : i32
    %5 = vector.broadcast %4 : i32 to vector<16x1xi32>
    %6 = arith.remsi %2, %5 : vector<16x1xi32>
    %c0_i32_1 = arith.constant 0 : i32
    %7 = vector.broadcast %c0_i32_1 : i32 to vector<16x1xi32>
    %8 = arith.cmpi ne, %6, %7 : vector<16x1xi32>
    %c0_i32_2 = arith.constant 0 : i32
    %9 = vector.broadcast %c0_i32_2 : i32 to vector<16x1xi32>
    %10 = arith.cmpi slt, %6, %9 : vector<16x1xi32>
    %c0_i32_3 = arith.constant 0 : i32
    %11 = arith.cmpi slt, %4, %c0_i32_3 : i32
    %12 = vector.broadcast %11 : i1 to vector<16x1xi1>
    %13 = vector.broadcast %12 : vector<16x1xi1> to vector<16x1xi1>
    %14 = arith.xori %10, %13 : vector<16x1xi1>
    %15 = arith.andi %14, %8 : vector<16x1xi1>
    %16 = vector.broadcast %4 : i32 to vector<16x1xi32>
    %17 = arith.addi %6, %16 : vector<16x1xi32>
    %18 = arith.select %15, %17, %6 : vector<16x1xi1>, vector<16x1xi32>
    %c7_i32 = arith.constant 7 : i32
    %19 = vector.broadcast %c7_i32 : i32 to vector<16x1xi32>
    %20 = arith.cmpi slt, %18, %19 : vector<16x1xi32>
    %cst = arith.constant 0.000000e+00 : f32
    %21 = vector.broadcast %cst : f32 to vector<16x384xf32>
    %22 = vector.shape_cast %20 : vector<16x1xi1> to vector<16x1xi1>
    %23 = vector.broadcast %22 : vector<16x1xi1> to vector<16x384xi1>
    %24 = arith.select %23, %1, %21 : vector<16x384xi1>, vector<16x384xf32>
    %25 = arith.truncf %24 : vector<16x384xf32> to vector<16x384xbf16>
    %26 = arith.truncf %0 : vector<16x384xf32> to vector<16x384xbf16>
    %c1 = arith.constant 1 : index
    %c0_4 = arith.constant 0 : index
    %c0_5 = arith.constant 0 : index
    %27 = vector.load %arg3[%c1, %c0_4, %c0_5] : memref<3x384x256xbf16, #tpu.memory_space<vmem>>, vector<1x384x256xbf16>
    %28 = vector.shape_cast %27 : vector<1x384x256xbf16> to vector<384x256xbf16>
    %cst_6 = arith.constant dense<0.000000e+00> : vector<16x256xf32>
    %29 = tpu.matmul %26, %28, %cst_6 {dimension_numbers = #tpu.dot_dimension_numbers<[1], [0], [0], [1], [0, 0, 1, 1], [], []>} : vector<16x384xbf16>, vector<384x256xbf16>, vector<16x256xf32> -> vector<16x256xf32>
    %c0_7 = arith.constant 0 : index
    %c0_8 = arith.constant 0 : index
    %30 = vector.load %arg4[%c0_7, %c0_8] : memref<1x256xf32, #tpu.memory_space<vmem>>, vector<1x256xf32>
    %31 = vector.broadcast %30 : vector<1x256xf32> to vector<16x256xf32>
    %32 = arith.addf %29, %31 : vector<16x256xf32>
    %c2 = arith.constant 2 : index
    %c0_9 = arith.constant 0 : index
    %c0_10 = arith.constant 0 : index
    %33 = vector.load %arg3[%c2, %c0_9, %c0_10] : memref<3x384x256xbf16, #tpu.memory_space<vmem>>, vector<1x384x256xbf16>
    %34 = vector.shape_cast %33 : vector<1x384x256xbf16> to vector<384x256xbf16>
    %cst_11 = arith.constant dense<0.000000e+00> : vector<16x256xf32>
    %35 = tpu.matmul %26, %34, %cst_11 {dimension_numbers = #tpu.dot_dimension_numbers<[1], [0], [0], [1], [0, 0, 1, 1], [], []>} : vector<16x384xbf16>, vector<384x256xbf16>, vector<16x256xf32> -> vector<16x256xf32>
    %c0_12 = arith.constant 0 : index
    %c0_13 = arith.constant 0 : index
    %c0_14 = arith.constant 0 : index
    %36 = vector.load %arg3[%c0_12, %c0_13, %c0_14] : memref<3x384x256xbf16, #tpu.memory_space<vmem>>, vector<1x384x256xbf16>
    %37 = vector.shape_cast %36 : vector<1x384x256xbf16> to vector<384x256xbf16>
    %cst_15 = arith.constant dense<0.000000e+00> : vector<16x256xf32>
    %38 = tpu.matmul %25, %37, %cst_15 {dimension_numbers = #tpu.dot_dimension_numbers<[1], [0], [0], [1], [0, 0, 1, 1], [], []>} : vector<16x384xbf16>, vector<384x256xbf16>, vector<16x256xf32> -> vector<16x256xf32>
    %39 = arith.addf %35, %38 : vector<16x256xf32>
    %c0_16 = arith.constant 0 : index
    %c0_17 = arith.constant 0 : index
    %40 = vector.load %arg4[%c0_16, %c0_17] : memref<1x256xf32, #tpu.memory_space<vmem>>, vector<1x256xf32>
    %41 = vector.broadcast %40 : vector<1x256xf32> to vector<16x256xf32>
    %42 = arith.addf %39, %41 : vector<16x256xf32>
    %cst_18 = arith.constant dense<0.000000e+00> : vector<256xf32>
    %43 = vector.multi_reduction <add>, %32, %cst_18 [0] : vector<16x256xf32> to vector<256xf32>
    %44 = vector.shape_cast %43 : vector<256xf32> to vector<1x256xf32>
    %cst_19 = arith.constant dense<0.000000e+00> : vector<256xf32>
    %45 = vector.multi_reduction <add>, %42, %cst_19 [0] : vector<16x256xf32> to vector<256xf32>
    %46 = vector.shape_cast %45 : vector<256xf32> to vector<1x256xf32>
    %47 = arith.addf %44, %46 : vector<1x256xf32>
    %cst_20 = arith.constant 3.200000e+01 : f32
    %48 = vector.broadcast %cst_20 : f32 to vector<1x256xf32>
    %49 = arith.divf %47, %48 : vector<1x256xf32>
    %50 = vector.broadcast %49 : vector<1x256xf32> to vector<16x256xf32>
    %51 = arith.subf %32, %50 : vector<16x256xf32>
    %52 = arith.mulf %51, %51 : vector<16x256xf32>
    %cst_21 = arith.constant dense<0.000000e+00> : vector<256xf32>
    %53 = vector.multi_reduction <add>, %52, %cst_21 [0] : vector<16x256xf32> to vector<256xf32>
    %54 = vector.shape_cast %53 : vector<256xf32> to vector<1x256xf32>
    %55 = vector.broadcast %49 : vector<1x256xf32> to vector<16x256xf32>
    %56 = arith.subf %42, %55 : vector<16x256xf32>
    %57 = arith.mulf %56, %56 : vector<16x256xf32>
    %cst_22 = arith.constant dense<0.000000e+00> : vector<256xf32>
    %58 = vector.multi_reduction <add>, %57, %cst_22 [0] : vector<16x256xf32> to vector<256xf32>
    %59 = vector.shape_cast %58 : vector<256xf32> to vector<1x256xf32>
    %60 = arith.addf %54, %59 : vector<1x256xf32>
    %cst_23 = arith.constant 3.200000e+01 : f32
    %61 = vector.broadcast %cst_23 : f32 to vector<1x256xf32>
    %62 = arith.divf %60, %61 : vector<1x256xf32>
    %c0_24 = arith.constant 0 : index
    %c0_25 = arith.constant 0 : index
    %63 = vector.load %arg5[%c0_24, %c0_25] : memref<1x256xf32, #tpu.memory_space<vmem>>, vector<1x256xf32>
    %cst_26 = arith.constant 9.99999974E-6 : f32
    %64 = vector.broadcast %cst_26 : f32 to vector<1x256xf32>
    %65 = arith.addf %62, %64 : vector<1x256xf32>
    %66 = math.rsqrt %65 : vector<1x256xf32>
    %67 = arith.mulf %63, %66 : vector<1x256xf32>
    %c0_27 = arith.constant 0 : index
    %c0_28 = arith.constant 0 : index
    %68 = vector.load %arg6[%c0_27, %c0_28] : memref<1x256xf32, #tpu.memory_space<vmem>>, vector<1x256xf32>
    %69 = arith.mulf %49, %67 : vector<1x256xf32>
    %70 = arith.subf %68, %69 : vector<1x256xf32>
    %c0_29 = arith.constant 0 : index
    %c0_30 = arith.constant 0 : index
    %71 = vector.load %arg2[%c0_29, %c0_30] : memref<16x512xf32, #tpu.memory_space<vmem>>, vector<16x512xf32>
    %72 = vector.broadcast %67 : vector<1x256xf32> to vector<16x256xf32>
    %73 = arith.mulf %32, %72 : vector<16x256xf32>
    %74 = vector.broadcast %70 : vector<1x256xf32> to vector<16x256xf32>
    %75 = arith.addf %73, %74 : vector<16x256xf32>
    %cst_31 = arith.constant 0.000000e+00 : f32
    %76 = vector.broadcast %cst_31 : f32 to vector<16x256xf32>
    %77 = arith.maximumf %75, %76 : vector<16x256xf32>
    %78 = vector.extract_strided_slice %71 {offsets = [0, 0], sizes = [16, 256], strides = [1, 1]} : vector<16x512xf32> to vector<16x256xf32>
    %79 = arith.addf %77, %78 : vector<16x256xf32>
    %80 = vector.broadcast %67 : vector<1x256xf32> to vector<16x256xf32>
    %81 = arith.mulf %42, %80 : vector<16x256xf32>
    %82 = vector.broadcast %70 : vector<1x256xf32> to vector<16x256xf32>
    %83 = arith.addf %81, %82 : vector<16x256xf32>
    %cst_32 = arith.constant 0.000000e+00 : f32
    %84 = vector.broadcast %cst_32 : f32 to vector<16x256xf32>
    %85 = arith.maximumf %83, %84 : vector<16x256xf32>
    %86 = vector.extract_strided_slice %71 {offsets = [0, 256], sizes = [16, 256], strides = [1, 1]} : vector<16x512xf32> to vector<16x256xf32>
    %87 = arith.addf %85, %86 : vector<16x256xf32>
    %c1_i32_33 = arith.constant 1 : i32
    %88 = tpu.dynamic_rotate %87 by %c1_i32_33 dim 0 : vector<16x256xf32>, i32 -> vector<16x256xf32>
    %89 = tpu.iota {dimensions = array<i32: 0>} : vector<16x1xi32>
    %c8_i32_34 = arith.constant 8 : i32
    %c0_i32_35 = arith.constant 0 : i32
    %90 = arith.cmpi eq, %c8_i32_34, %c0_i32_35 : i32
    %c1_i32_36 = arith.constant 1 : i32
    %91 = arith.select %90, %c1_i32_36, %c8_i32_34 : i32
    %92 = vector.broadcast %91 : i32 to vector<16x1xi32>
    %93 = arith.remsi %89, %92 : vector<16x1xi32>
    %c0_i32_37 = arith.constant 0 : i32
    %94 = vector.broadcast %c0_i32_37 : i32 to vector<16x1xi32>
    %95 = arith.cmpi ne, %93, %94 : vector<16x1xi32>
    %c0_i32_38 = arith.constant 0 : i32
    %96 = vector.broadcast %c0_i32_38 : i32 to vector<16x1xi32>
    %97 = arith.cmpi slt, %93, %96 : vector<16x1xi32>
    %c0_i32_39 = arith.constant 0 : i32
    %98 = arith.cmpi slt, %91, %c0_i32_39 : i32
    %99 = vector.broadcast %98 : i1 to vector<16x1xi1>
    %100 = vector.broadcast %99 : vector<16x1xi1> to vector<16x1xi1>
    %101 = arith.xori %97, %100 : vector<16x1xi1>
    %102 = arith.andi %101, %95 : vector<16x1xi1>
    %103 = vector.broadcast %91 : i32 to vector<16x1xi32>
    %104 = arith.addi %93, %103 : vector<16x1xi32>
    %105 = arith.select %102, %104, %93 : vector<16x1xi1>, vector<16x1xi32>
    %c1_i32_40 = arith.constant 1 : i32
    %106 = vector.broadcast %c1_i32_40 : i32 to vector<16x1xi32>
    %107 = arith.cmpi sge, %105, %106 : vector<16x1xi32>
    %cst_41 = arith.constant 0.000000e+00 : f32
    %108 = vector.broadcast %cst_41 : f32 to vector<16x256xf32>
    %109 = vector.shape_cast %107 : vector<16x1xi1> to vector<16x1xi1>
    %110 = vector.broadcast %109 : vector<16x1xi1> to vector<16x256xi1>
    %111 = arith.select %110, %88, %108 : vector<16x256xi1>, vector<16x256xf32>
    %112 = arith.truncf %111 : vector<16x256xf32> to vector<16x256xbf16>
    %c15_i32_42 = arith.constant 15 : i32
    %113 = tpu.dynamic_rotate %79 by %c15_i32_42 dim 0 : vector<16x256xf32>, i32 -> vector<16x256xf32>
    %114 = tpu.iota {dimensions = array<i32: 0>} : vector<16x1xi32>
    %c8_i32_43 = arith.constant 8 : i32
    %c0_i32_44 = arith.constant 0 : i32
    %115 = arith.cmpi eq, %c8_i32_43, %c0_i32_44 : i32
    %c1_i32_45 = arith.constant 1 : i32
    %116 = arith.select %115, %c1_i32_45, %c8_i32_43 : i32
    %117 = vector.broadcast %116 : i32 to vector<16x1xi32>
    %118 = arith.remsi %114, %117 : vector<16x1xi32>
    %c0_i32_46 = arith.constant 0 : i32
    %119 = vector.broadcast %c0_i32_46 : i32 to vector<16x1xi32>
    %120 = arith.cmpi ne, %118, %119 : vector<16x1xi32>
    %c0_i32_47 = arith.constant 0 : i32
    %121 = vector.broadcast %c0_i32_47 : i32 to vector<16x1xi32>
    %122 = arith.cmpi slt, %118, %121 : vector<16x1xi32>
    %c0_i32_48 = arith.constant 0 : i32
    %123 = arith.cmpi slt, %116, %c0_i32_48 : i32
    %124 = vector.broadcast %123 : i1 to vector<16x1xi1>
    %125 = vector.broadcast %124 : vector<16x1xi1> to vector<16x1xi1>
    %126 = arith.xori %122, %125 : vector<16x1xi1>
    %127 = arith.andi %126, %120 : vector<16x1xi1>
    %128 = vector.broadcast %116 : i32 to vector<16x1xi32>
    %129 = arith.addi %118, %128 : vector<16x1xi32>
    %130 = arith.select %127, %129, %118 : vector<16x1xi1>, vector<16x1xi32>
    %c7_i32_49 = arith.constant 7 : i32
    %131 = vector.broadcast %c7_i32_49 : i32 to vector<16x1xi32>
    %132 = arith.cmpi slt, %130, %131 : vector<16x1xi32>
    %cst_50 = arith.constant 0.000000e+00 : f32
    %133 = vector.broadcast %cst_50 : f32 to vector<16x256xf32>
    %134 = vector.shape_cast %132 : vector<16x1xi1> to vector<16x1xi1>
    %135 = vector.broadcast %134 : vector<16x1xi1> to vector<16x256xi1>
    %136 = arith.select %135, %113, %133 : vector<16x256xi1>, vector<16x256xf32>
    %137 = arith.truncf %136 : vector<16x256xf32> to vector<16x256xbf16>
    %138 = arith.truncf %79 : vector<16x256xf32> to vector<16x256xbf16>
    %139 = arith.truncf %87 : vector<16x256xf32> to vector<16x256xbf16>
    %c0_51 = arith.constant 0 : index
    %c0_52 = arith.constant 0 : index
    %c0_53 = arith.constant 0 : index
    %140 = vector.load %arg7[%c0_51, %c0_52, %c0_53] : memref<3x256x128xbf16, #tpu.memory_space<vmem>>, vector<1x256x128xbf16>
    %141 = vector.shape_cast %140 : vector<1x256x128xbf16> to vector<256x128xbf16>
    %cst_54 = arith.constant dense<0.000000e+00> : vector<16x128xf32>
    %142 = tpu.matmul %112, %141, %cst_54 {dimension_numbers = #tpu.dot_dimension_numbers<[1], [0], [0], [1], [0, 0, 1, 1], [], []>} : vector<16x256xbf16>, vector<256x128xbf16>, vector<16x128xf32> -> vector<16x128xf32>
    %c1_55 = arith.constant 1 : index
    %c0_56 = arith.constant 0 : index
    %c0_57 = arith.constant 0 : index
    %143 = vector.load %arg7[%c1_55, %c0_56, %c0_57] : memref<3x256x128xbf16, #tpu.memory_space<vmem>>, vector<1x256x128xbf16>
    %144 = vector.shape_cast %143 : vector<1x256x128xbf16> to vector<256x128xbf16>
    %cst_58 = arith.constant dense<0.000000e+00> : vector<16x128xf32>
    %145 = tpu.matmul %138, %144, %cst_58 {dimension_numbers = #tpu.dot_dimension_numbers<[1], [0], [0], [1], [0, 0, 1, 1], [], []>} : vector<16x256xbf16>, vector<256x128xbf16>, vector<16x128xf32> -> vector<16x128xf32>
    %146 = arith.addf %142, %145 : vector<16x128xf32>
    %c2_59 = arith.constant 2 : index
    %c0_60 = arith.constant 0 : index
    %c0_61 = arith.constant 0 : index
    %147 = vector.load %arg7[%c2_59, %c0_60, %c0_61] : memref<3x256x128xbf16, #tpu.memory_space<vmem>>, vector<1x256x128xbf16>
    %148 = vector.shape_cast %147 : vector<1x256x128xbf16> to vector<256x128xbf16>
    %cst_62 = arith.constant dense<0.000000e+00> : vector<16x128xf32>
    %149 = tpu.matmul %139, %148, %cst_62 {dimension_numbers = #tpu.dot_dimension_numbers<[1], [0], [0], [1], [0, 0, 1, 1], [], []>} : vector<16x256xbf16>, vector<256x128xbf16>, vector<16x128xf32> -> vector<16x128xf32>
    %150 = arith.addf %146, %149 : vector<16x128xf32>
    %c0_63 = arith.constant 0 : index
    %c0_64 = arith.constant 0 : index
    %151 = vector.load %arg8[%c0_63, %c0_64] : memref<1x128xf32, #tpu.memory_space<vmem>>, vector<1x128xf32>
    %152 = vector.broadcast %151 : vector<1x128xf32> to vector<16x128xf32>
    %153 = arith.addf %150, %152 : vector<16x128xf32>
    %c0_65 = arith.constant 0 : index
    %c0_66 = arith.constant 0 : index
    %c0_67 = arith.constant 0 : index
    %154 = vector.load %arg7[%c0_65, %c0_66, %c0_67] : memref<3x256x128xbf16, #tpu.memory_space<vmem>>, vector<1x256x128xbf16>
    %155 = vector.shape_cast %154 : vector<1x256x128xbf16> to vector<256x128xbf16>
    %cst_68 = arith.constant dense<0.000000e+00> : vector<16x128xf32>
    %156 = tpu.matmul %138, %155, %cst_68 {dimension_numbers = #tpu.dot_dimension_numbers<[1], [0], [0], [1], [0, 0, 1, 1], [], []>} : vector<16x256xbf16>, vector<256x128xbf16>, vector<16x128xf32> -> vector<16x128xf32>
    %c1_69 = arith.constant 1 : index
    %c0_70 = arith.constant 0 : index
    %c0_71 = arith.constant 0 : index
    %157 = vector.load %arg7[%c1_69, %c0_70, %c0_71] : memref<3x256x128xbf16, #tpu.memory_space<vmem>>, vector<1x256x128xbf16>
    %158 = vector.shape_cast %157 : vector<1x256x128xbf16> to vector<256x128xbf16>
    %cst_72 = arith.constant dense<0.000000e+00> : vector<16x128xf32>
    %159 = tpu.matmul %139, %158, %cst_72 {dimension_numbers = #tpu.dot_dimension_numbers<[1], [0], [0], [1], [0, 0, 1, 1], [], []>} : vector<16x256xbf16>, vector<256x128xbf16>, vector<16x128xf32> -> vector<16x128xf32>
    %160 = arith.addf %156, %159 : vector<16x128xf32>
    %c2_73 = arith.constant 2 : index
    %c0_74 = arith.constant 0 : index
    %c0_75 = arith.constant 0 : index
    %161 = vector.load %arg7[%c2_73, %c0_74, %c0_75] : memref<3x256x128xbf16, #tpu.memory_space<vmem>>, vector<1x256x128xbf16>
    %162 = vector.shape_cast %161 : vector<1x256x128xbf16> to vector<256x128xbf16>
    %cst_76 = arith.constant dense<0.000000e+00> : vector<16x128xf32>
    %163 = tpu.matmul %137, %162, %cst_76 {dimension_numbers = #tpu.dot_dimension_numbers<[1], [0], [0], [1], [0, 0, 1, 1], [], []>} : vector<16x256xbf16>, vector<256x128xbf16>, vector<16x128xf32> -> vector<16x128xf32>
    %164 = arith.addf %160, %163 : vector<16x128xf32>
    %c0_77 = arith.constant 0 : index
    %c0_78 = arith.constant 0 : index
    %165 = vector.load %arg8[%c0_77, %c0_78] : memref<1x128xf32, #tpu.memory_space<vmem>>, vector<1x128xf32>
    %166 = vector.broadcast %165 : vector<1x128xf32> to vector<16x128xf32>
    %167 = arith.addf %164, %166 : vector<16x128xf32>
    %c0_79 = arith.constant 0 : index
    %c0_80 = arith.constant 0 : index
    %168 = vector.load %arg9[%c0_79, %c0_80] : memref<2x1xf32, #tpu.memory_space<vmem>>, vector<2x1xf32>
    %169 = vector.shape_cast %153 : vector<16x128xf32> to vector<2x8x128xf32>
    %170 = vector.shape_cast %168 : vector<2x1xf32> to vector<2x1x1xf32>
    %171 = vector.broadcast %170 : vector<2x1x1xf32> to vector<2x8x128xf32>
    %172 = arith.mulf %169, %171 : vector<2x8x128xf32>
    %173 = vector.shape_cast %167 : vector<16x128xf32> to vector<2x8x128xf32>
    %174 = vector.shape_cast %168 : vector<2x1xf32> to vector<2x1x1xf32>
    %175 = vector.broadcast %174 : vector<2x1x1xf32> to vector<2x8x128xf32>
    %176 = arith.mulf %173, %175 : vector<2x8x128xf32>
    %177 = vector.shape_cast %172 : vector<2x8x128xf32> to vector<16x128xf32>
    %c0_81 = arith.constant 0 : index
    %c0_82 = arith.constant 0 : index
    %178 = vector.load %arg10[%c0_81, %c0_82] : memref<16x256xf32, #tpu.memory_space<vmem>>, vector<16x128xf32>
    tpu.vector_store %arg10[%c0_81, %c0_82], %177 {strides = array<i32>} : memref<16x256xf32, #tpu.memory_space<vmem>>, vector<16x128xf32>,
    %179 = vector.shape_cast %176 : vector<2x8x128xf32> to vector<16x128xf32>
    %c0_83 = arith.constant 0 : index
    %c128 = arith.constant 128 : index
    %180 = vector.load %arg10[%c0_83, %c128] : memref<16x256xf32, #tpu.memory_space<vmem>>, vector<16x128xf32>
    tpu.vector_store %arg10[%c0_83, %c128], %179 {strides = array<i32>} : memref<16x256xf32, #tpu.memory_space<vmem>>, vector<16x128xf32>,
    return
  }
  func.func @transform_0(%arg0: i32) -> (i32, i32) {
    %c0_i32 = arith.constant 0 : i32
    %c0_i32_0 = arith.constant 0 : i32
    %c0_i32_1 = arith.constant 0 : i32
    return %c0_i32, %c0_i32_0 : i32, i32
  }
  func.func @transform_1(%arg0: i32) -> (i32, i32) {
    %c0_i32 = arith.constant 0 : i32
    %c0_i32_0 = arith.constant 0 : i32
    %c0_i32_1 = arith.constant 0 : i32
    return %c0_i32, %c0_i32_0 : i32, i32
  }
  func.func @transform_2(%arg0: i32) -> (i32, i32, i32) {
    %c0_i32 = arith.constant 0 : i32
    %c0_i32_0 = arith.constant 0 : i32
    %c0_i32_1 = arith.constant 0 : i32
    %c0_i32_2 = arith.constant 0 : i32
    return %c0_i32, %c0_i32_0, %c0_i32_1 : i32, i32, i32
  }
  func.func @transform_3(%arg0: i32) -> (i32, i32) {
    %c0_i32 = arith.constant 0 : i32
    %c0_i32_0 = arith.constant 0 : i32
    %c0_i32_1 = arith.constant 0 : i32
    return %c0_i32, %c0_i32_0 : i32, i32
  }
  func.func @transform_4(%arg0: i32) -> (i32, i32) {
    %c0_i32 = arith.constant 0 : i32
    %c0_i32_0 = arith.constant 0 : i32
    %c0_i32_1 = arith.constant 0 : i32
    return %c0_i32, %c0_i32_0 : i32, i32
  }
  func.func @transform_5(%arg0: i32) -> (i32, i32) {
    %c0_i32 = arith.constant 0 : i32
    %c0_i32_0 = arith.constant 0 : i32
    %c0_i32_1 = arith.constant 0 : i32
    return %c0_i32, %c0_i32_0 : i32, i32
  }
  func.func @transform_6(%arg0: i32) -> (i32, i32, i32) {
    %c0_i32 = arith.constant 0 : i32
    %c0_i32_0 = arith.constant 0 : i32
    %c0_i32_1 = arith.constant 0 : i32
    %c0_i32_2 = arith.constant 0 : i32
    return %c0_i32, %c0_i32_0, %c0_i32_1 : i32, i32, i32
  }
  func.func @transform_7(%arg0: i32) -> (i32, i32) {
    %c0_i32 = arith.constant 0 : i32
    %c0_i32_0 = arith.constant 0 : i32
    %c0_i32_1 = arith.constant 0 : i32
    return %c0_i32, %c0_i32_0 : i32, i32
  }
  func.func @transform_8(%arg0: i32) -> (i32, i32) {
    %c0_i32 = arith.constant 0 : i32
    %c0_i32_0 = arith.constant 0 : i32
    %c0_i32_1 = arith.constant 0 : i32
    return %c0_i32, %c0_i32_0 : i32, i32
  }
  func.func @transform_9(%arg0: i32) -> (i32, i32) {
    %c0_i32 = arith.constant 0 : i32
    %c0_i32_0 = arith.constant 0 : i32
    %c0_i32_1 = arith.constant 0 : i32
    return %c0_i32, %c0_i32_0 : i32, i32
  }
}

module attributes {stable_mosaic.version = 11 : i64} {
  func.func @_resblock_kernel(%arg0: i32, %arg1: memref<16x384xf32, #tpu.memory_space<vmem>>, %arg2: memref<16x256xf32, #tpu.memory_space<vmem>>, %arg3: memref<3x384x384xbf16, #tpu.memory_space<vmem>>, %arg4: memref<1x384xf32, #tpu.memory_space<vmem>>, %arg5: memref<3x384x384xbf16, #tpu.memory_space<vmem>>, %arg6: memref<1x384xf32, #tpu.memory_space<vmem>>, %arg7: memref<128x384xbf16, #tpu.memory_space<vmem>>, %arg8: memref<1x384xf32, #tpu.memory_space<vmem>>, %arg9: memref<384x256xbf16, #tpu.memory_space<vmem>>, %arg10: memref<1x256xf32, #tpu.memory_space<vmem>>, %arg11: memref<384x256xbf16, #tpu.memory_space<vmem>>, %arg12: memref<1x256xf32, #tpu.memory_space<vmem>>, %arg13: memref<256x256xbf16, #tpu.memory_space<vmem>>, %arg14: memref<1x256xf32, #tpu.memory_space<vmem>>, %arg15: memref<256x256xbf16, #tpu.memory_space<vmem>>, %arg16: memref<1x256xf32, #tpu.memory_space<vmem>>, %arg17: memref<256x384xbf16, #tpu.memory_space<vmem>>, %arg18: memref<1x384xf32, #tpu.memory_space<vmem>>, %arg19: memref<1x384xf32, #tpu.memory_space<vmem>>, %arg20: memref<1x384xf32, #tpu.memory_space<vmem>>, %arg21: memref<16x384xf32, #tpu.memory_space<vmem>>) attributes {dimension_semantics = [#tpu.dimension_semantics<arbitrary>], iteration_bounds = array<i64: 1>, scalar_prefetch = 0 : i64, scratch_operands = 0 : i64, tpu.core_type = #tpu.core_type<tc>, window_params = [{pipeline_mode = #tpu.pipeline_mode<synchronous>, transform_indices = @transform_0, window_bounds = array<i64: 16, 384>}, {pipeline_mode = #tpu.pipeline_mode<synchronous>, transform_indices = @transform_1, window_bounds = array<i64: 16, 256>}, {pipeline_mode = #tpu.pipeline_mode<synchronous>, transform_indices = @transform_2, window_bounds = array<i64: 3, 384, 384>}, {pipeline_mode = #tpu.pipeline_mode<synchronous>, transform_indices = @transform_3, window_bounds = array<i64: 1, 384>}, {pipeline_mode = #tpu.pipeline_mode<synchronous>, transform_indices = @transform_4, window_bounds = array<i64: 3, 384, 384>}, {pipeline_mode = #tpu.pipeline_mode<synchronous>, transform_indices = @transform_5, window_bounds = array<i64: 1, 384>}, {pipeline_mode = #tpu.pipeline_mode<synchronous>, transform_indices = @transform_6, window_bounds = array<i64: 128, 384>}, {pipeline_mode = #tpu.pipeline_mode<synchronous>, transform_indices = @transform_7, window_bounds = array<i64: 1, 384>}, {pipeline_mode = #tpu.pipeline_mode<synchronous>, transform_indices = @transform_8, window_bounds = array<i64: 384, 256>}, {pipeline_mode = #tpu.pipeline_mode<synchronous>, transform_indices = @transform_9, window_bounds = array<i64: 1, 256>}, {pipeline_mode = #tpu.pipeline_mode<synchronous>, transform_indices = @transform_10, window_bounds = array<i64: 384, 256>}, {pipeline_mode = #tpu.pipeline_mode<synchronous>, transform_indices = @transform_11, window_bounds = array<i64: 1, 256>}, {pipeline_mode = #tpu.pipeline_mode<synchronous>, transform_indices = @transform_12, window_bounds = array<i64: 256, 256>}, {pipeline_mode = #tpu.pipeline_mode<synchronous>, transform_indices = @transform_13, window_bounds = array<i64: 1, 256>}, {pipeline_mode = #tpu.pipeline_mode<synchronous>, transform_indices = @transform_14, window_bounds = array<i64: 256, 256>}, {pipeline_mode = #tpu.pipeline_mode<synchronous>, transform_indices = @transform_15, window_bounds = array<i64: 1, 256>}, {pipeline_mode = #tpu.pipeline_mode<synchronous>, transform_indices = @transform_16, window_bounds = array<i64: 256, 384>}, {pipeline_mode = #tpu.pipeline_mode<synchronous>, transform_indices = @transform_17, window_bounds = array<i64: 1, 384>}, {pipeline_mode = #tpu.pipeline_mode<synchronous>, transform_indices = @transform_18, window_bounds = array<i64: 1, 384>}, {pipeline_mode = #tpu.pipeline_mode<synchronous>, transform_indices = @transform_19, window_bounds = array<i64: 1, 384>}, {pipeline_mode = #tpu.pipeline_mode<synchronous>, transform_indices = @transform_20, window_bounds = array<i64: 16, 384>}]} {
    %c0 = arith.constant 0 : index
    %c0_0 = arith.constant 0 : index
    %0 = vector.load %arg1[%c0, %c0_0] : memref<16x384xf32, #tpu.memory_space<vmem>>, vector<16x384xf32>
    %c1_i32 = arith.constant 1 : i32
    %1 = tpu.dynamic_rotate %0 by %c1_i32 dim 0 : vector<16x384xf32>, i32 -> vector<16x384xf32>
    %2 = tpu.iota {dimensions = array<i32: 0>} : vector<16x1xi32>
    %c8_i32 = arith.constant 8 : i32
    %c0_i32 = arith.constant 0 : i32
    %3 = arith.cmpi eq, %c8_i32, %c0_i32 : i32
    %c1_i32_1 = arith.constant 1 : i32
    %4 = arith.select %3, %c1_i32_1, %c8_i32 : i32
    %5 = vector.broadcast %4 : i32 to vector<16x1xi32>
    %6 = arith.remsi %2, %5 : vector<16x1xi32>
    %c0_i32_2 = arith.constant 0 : i32
    %7 = vector.broadcast %c0_i32_2 : i32 to vector<16x1xi32>
    %8 = arith.cmpi ne, %6, %7 : vector<16x1xi32>
    %c0_i32_3 = arith.constant 0 : i32
    %9 = vector.broadcast %c0_i32_3 : i32 to vector<16x1xi32>
    %10 = arith.cmpi slt, %6, %9 : vector<16x1xi32>
    %c0_i32_4 = arith.constant 0 : i32
    %11 = arith.cmpi slt, %4, %c0_i32_4 : i32
    %12 = vector.broadcast %11 : i1 to vector<16x1xi1>
    %13 = vector.broadcast %12 : vector<16x1xi1> to vector<16x1xi1>
    %14 = arith.xori %10, %13 : vector<16x1xi1>
    %15 = arith.andi %14, %8 : vector<16x1xi1>
    %16 = vector.broadcast %4 : i32 to vector<16x1xi32>
    %17 = arith.addi %6, %16 : vector<16x1xi32>
    %18 = arith.select %15, %17, %6 : vector<16x1xi1>, vector<16x1xi32>
    %c1_i32_5 = arith.constant 1 : i32
    %19 = vector.broadcast %c1_i32_5 : i32 to vector<16x1xi32>
    %20 = arith.cmpi sge, %18, %19 : vector<16x1xi32>
    %cst = arith.constant 0.000000e+00 : f32
    %21 = vector.broadcast %cst : f32 to vector<16x384xf32>
    %22 = vector.shape_cast %20 : vector<16x1xi1> to vector<16x1xi1>
    %23 = vector.broadcast %22 : vector<16x1xi1> to vector<16x384xi1>
    %24 = arith.select %23, %1, %21 : vector<16x384xi1>, vector<16x384xf32>
    %25 = arith.truncf %24 : vector<16x384xf32> to vector<16x384xbf16>
    %c15_i32 = arith.constant 15 : i32
    %26 = tpu.dynamic_rotate %0 by %c15_i32 dim 0 : vector<16x384xf32>, i32 -> vector<16x384xf32>
    %27 = tpu.iota {dimensions = array<i32: 0>} : vector<16x1xi32>
    %c8_i32_6 = arith.constant 8 : i32
    %c0_i32_7 = arith.constant 0 : i32
    %28 = arith.cmpi eq, %c8_i32_6, %c0_i32_7 : i32
    %c1_i32_8 = arith.constant 1 : i32
    %29 = arith.select %28, %c1_i32_8, %c8_i32_6 : i32
    %30 = vector.broadcast %29 : i32 to vector<16x1xi32>
    %31 = arith.remsi %27, %30 : vector<16x1xi32>
    %c0_i32_9 = arith.constant 0 : i32
    %32 = vector.broadcast %c0_i32_9 : i32 to vector<16x1xi32>
    %33 = arith.cmpi ne, %31, %32 : vector<16x1xi32>
    %c0_i32_10 = arith.constant 0 : i32
    %34 = vector.broadcast %c0_i32_10 : i32 to vector<16x1xi32>
    %35 = arith.cmpi slt, %31, %34 : vector<16x1xi32>
    %c0_i32_11 = arith.constant 0 : i32
    %36 = arith.cmpi slt, %29, %c0_i32_11 : i32
    %37 = vector.broadcast %36 : i1 to vector<16x1xi1>
    %38 = vector.broadcast %37 : vector<16x1xi1> to vector<16x1xi1>
    %39 = arith.xori %35, %38 : vector<16x1xi1>
    %40 = arith.andi %39, %33 : vector<16x1xi1>
    %41 = vector.broadcast %29 : i32 to vector<16x1xi32>
    %42 = arith.addi %31, %41 : vector<16x1xi32>
    %43 = arith.select %40, %42, %31 : vector<16x1xi1>, vector<16x1xi32>
    %c7_i32 = arith.constant 7 : i32
    %44 = vector.broadcast %c7_i32 : i32 to vector<16x1xi32>
    %45 = arith.cmpi slt, %43, %44 : vector<16x1xi32>
    %cst_12 = arith.constant 0.000000e+00 : f32
    %46 = vector.broadcast %cst_12 : f32 to vector<16x384xf32>
    %47 = vector.shape_cast %45 : vector<16x1xi1> to vector<16x1xi1>
    %48 = vector.broadcast %47 : vector<16x1xi1> to vector<16x384xi1>
    %49 = arith.select %48, %26, %46 : vector<16x384xi1>, vector<16x384xf32>
    %50 = arith.truncf %49 : vector<16x384xf32> to vector<16x384xbf16>
    %51 = arith.truncf %0 : vector<16x384xf32> to vector<16x384xbf16>
    %c1 = arith.constant 1 : index
    %c0_13 = arith.constant 0 : index
    %c0_14 = arith.constant 0 : index
    %52 = vector.load %arg3[%c1, %c0_13, %c0_14] : memref<3x384x384xbf16, #tpu.memory_space<vmem>>, vector<1x384x384xbf16>
    %53 = vector.shape_cast %52 : vector<1x384x384xbf16> to vector<384x384xbf16>
    %cst_15 = arith.constant dense<0.000000e+00> : vector<16x384xf32>
    %54 = tpu.matmul %51, %53, %cst_15 {dimension_numbers = #tpu.dot_dimension_numbers<[1], [0], [0], [1], [0, 0, 1, 1], [], []>} : vector<16x384xbf16>, vector<384x384xbf16>, vector<16x384xf32> -> vector<16x384xf32>
    %c0_16 = arith.constant 0 : index
    %c0_17 = arith.constant 0 : index
    %c0_18 = arith.constant 0 : index
    %55 = vector.load %arg3[%c0_16, %c0_17, %c0_18] : memref<3x384x384xbf16, #tpu.memory_space<vmem>>, vector<1x384x384xbf16>
    %56 = vector.shape_cast %55 : vector<1x384x384xbf16> to vector<384x384xbf16>
    %cst_19 = arith.constant dense<0.000000e+00> : vector<16x384xf32>
    %57 = tpu.matmul %25, %56, %cst_19 {dimension_numbers = #tpu.dot_dimension_numbers<[1], [0], [0], [1], [0, 0, 1, 1], [], []>} : vector<16x384xbf16>, vector<384x384xbf16>, vector<16x384xf32> -> vector<16x384xf32>
    %58 = arith.addf %54, %57 : vector<16x384xf32>
    %c2 = arith.constant 2 : index
    %c0_20 = arith.constant 0 : index
    %c0_21 = arith.constant 0 : index
    %59 = vector.load %arg3[%c2, %c0_20, %c0_21] : memref<3x384x384xbf16, #tpu.memory_space<vmem>>, vector<1x384x384xbf16>
    %60 = vector.shape_cast %59 : vector<1x384x384xbf16> to vector<384x384xbf16>
    %cst_22 = arith.constant dense<0.000000e+00> : vector<16x384xf32>
    %61 = tpu.matmul %50, %60, %cst_22 {dimension_numbers = #tpu.dot_dimension_numbers<[1], [0], [0], [1], [0, 0, 1, 1], [], []>} : vector<16x384xbf16>, vector<384x384xbf16>, vector<16x384xf32> -> vector<16x384xf32>
    %62 = arith.addf %58, %61 : vector<16x384xf32>
    %c0_23 = arith.constant 0 : index
    %c0_24 = arith.constant 0 : index
    %63 = vector.load %arg4[%c0_23, %c0_24] : memref<1x384xf32, #tpu.memory_space<vmem>>, vector<1x384xf32>
    %64 = vector.broadcast %63 : vector<1x384xf32> to vector<16x384xf32>
    %65 = arith.addf %62, %64 : vector<16x384xf32>
    %cst_25 = arith.constant 0.000000e+00 : f32
    %66 = vector.broadcast %cst_25 : f32 to vector<16x384xf32>
    %67 = arith.maximumf %65, %66 : vector<16x384xf32>
    %c1_i32_26 = arith.constant 1 : i32
    %68 = tpu.dynamic_rotate %67 by %c1_i32_26 dim 0 : vector<16x384xf32>, i32 -> vector<16x384xf32>
    %69 = tpu.iota {dimensions = array<i32: 0>} : vector<16x1xi32>
    %c8_i32_27 = arith.constant 8 : i32
    %c0_i32_28 = arith.constant 0 : i32
    %70 = arith.cmpi eq, %c8_i32_27, %c0_i32_28 : i32
    %c1_i32_29 = arith.constant 1 : i32
    %71 = arith.select %70, %c1_i32_29, %c8_i32_27 : i32
    %72 = vector.broadcast %71 : i32 to vector<16x1xi32>
    %73 = arith.remsi %69, %72 : vector<16x1xi32>
    %c0_i32_30 = arith.constant 0 : i32
    %74 = vector.broadcast %c0_i32_30 : i32 to vector<16x1xi32>
    %75 = arith.cmpi ne, %73, %74 : vector<16x1xi32>
    %c0_i32_31 = arith.constant 0 : i32
    %76 = vector.broadcast %c0_i32_31 : i32 to vector<16x1xi32>
    %77 = arith.cmpi slt, %73, %76 : vector<16x1xi32>
    %c0_i32_32 = arith.constant 0 : i32
    %78 = arith.cmpi slt, %71, %c0_i32_32 : i32
    %79 = vector.broadcast %78 : i1 to vector<16x1xi1>
    %80 = vector.broadcast %79 : vector<16x1xi1> to vector<16x1xi1>
    %81 = arith.xori %77, %80 : vector<16x1xi1>
    %82 = arith.andi %81, %75 : vector<16x1xi1>
    %83 = vector.broadcast %71 : i32 to vector<16x1xi32>
    %84 = arith.addi %73, %83 : vector<16x1xi32>
    %85 = arith.select %82, %84, %73 : vector<16x1xi1>, vector<16x1xi32>
    %c1_i32_33 = arith.constant 1 : i32
    %86 = vector.broadcast %c1_i32_33 : i32 to vector<16x1xi32>
    %87 = arith.cmpi sge, %85, %86 : vector<16x1xi32>
    %cst_34 = arith.constant 0.000000e+00 : f32
    %88 = vector.broadcast %cst_34 : f32 to vector<16x384xf32>
    %89 = vector.shape_cast %87 : vector<16x1xi1> to vector<16x1xi1>
    %90 = vector.broadcast %89 : vector<16x1xi1> to vector<16x384xi1>
    %91 = arith.select %90, %68, %88 : vector<16x384xi1>, vector<16x384xf32>
    %92 = arith.truncf %91 : vector<16x384xf32> to vector<16x384xbf16>
    %c15_i32_35 = arith.constant 15 : i32
    %93 = tpu.dynamic_rotate %67 by %c15_i32_35 dim 0 : vector<16x384xf32>, i32 -> vector<16x384xf32>
    %94 = tpu.iota {dimensions = array<i32: 0>} : vector<16x1xi32>
    %c8_i32_36 = arith.constant 8 : i32
    %c0_i32_37 = arith.constant 0 : i32
    %95 = arith.cmpi eq, %c8_i32_36, %c0_i32_37 : i32
    %c1_i32_38 = arith.constant 1 : i32
    %96 = arith.select %95, %c1_i32_38, %c8_i32_36 : i32
    %97 = vector.broadcast %96 : i32 to vector<16x1xi32>
    %98 = arith.remsi %94, %97 : vector<16x1xi32>
    %c0_i32_39 = arith.constant 0 : i32
    %99 = vector.broadcast %c0_i32_39 : i32 to vector<16x1xi32>
    %100 = arith.cmpi ne, %98, %99 : vector<16x1xi32>
    %c0_i32_40 = arith.constant 0 : i32
    %101 = vector.broadcast %c0_i32_40 : i32 to vector<16x1xi32>
    %102 = arith.cmpi slt, %98, %101 : vector<16x1xi32>
    %c0_i32_41 = arith.constant 0 : i32
    %103 = arith.cmpi slt, %96, %c0_i32_41 : i32
    %104 = vector.broadcast %103 : i1 to vector<16x1xi1>
    %105 = vector.broadcast %104 : vector<16x1xi1> to vector<16x1xi1>
    %106 = arith.xori %102, %105 : vector<16x1xi1>
    %107 = arith.andi %106, %100 : vector<16x1xi1>
    %108 = vector.broadcast %96 : i32 to vector<16x1xi32>
    %109 = arith.addi %98, %108 : vector<16x1xi32>
    %110 = arith.select %107, %109, %98 : vector<16x1xi1>, vector<16x1xi32>
    %c7_i32_42 = arith.constant 7 : i32
    %111 = vector.broadcast %c7_i32_42 : i32 to vector<16x1xi32>
    %112 = arith.cmpi slt, %110, %111 : vector<16x1xi32>
    %cst_43 = arith.constant 0.000000e+00 : f32
    %113 = vector.broadcast %cst_43 : f32 to vector<16x384xf32>
    %114 = vector.shape_cast %112 : vector<16x1xi1> to vector<16x1xi1>
    %115 = vector.broadcast %114 : vector<16x1xi1> to vector<16x384xi1>
    %116 = arith.select %115, %93, %113 : vector<16x384xi1>, vector<16x384xf32>
    %117 = arith.truncf %116 : vector<16x384xf32> to vector<16x384xbf16>
    %118 = arith.truncf %67 : vector<16x384xf32> to vector<16x384xbf16>
    %c1_44 = arith.constant 1 : index
    %c0_45 = arith.constant 0 : index
    %c0_46 = arith.constant 0 : index
    %119 = vector.load %arg5[%c1_44, %c0_45, %c0_46] : memref<3x384x384xbf16, #tpu.memory_space<vmem>>, vector<1x384x384xbf16>
    %120 = vector.shape_cast %119 : vector<1x384x384xbf16> to vector<384x384xbf16>
    %cst_47 = arith.constant dense<0.000000e+00> : vector<16x384xf32>
    %121 = tpu.matmul %118, %120, %cst_47 {dimension_numbers = #tpu.dot_dimension_numbers<[1], [0], [0], [1], [0, 0, 1, 1], [], []>} : vector<16x384xbf16>, vector<384x384xbf16>, vector<16x384xf32> -> vector<16x384xf32>
    %c0_48 = arith.constant 0 : index
    %c0_49 = arith.constant 0 : index
    %c0_50 = arith.constant 0 : index
    %122 = vector.load %arg5[%c0_48, %c0_49, %c0_50] : memref<3x384x384xbf16, #tpu.memory_space<vmem>>, vector<1x384x384xbf16>
    %123 = vector.shape_cast %122 : vector<1x384x384xbf16> to vector<384x384xbf16>
    %cst_51 = arith.constant dense<0.000000e+00> : vector<16x384xf32>
    %124 = tpu.matmul %92, %123, %cst_51 {dimension_numbers = #tpu.dot_dimension_numbers<[1], [0], [0], [1], [0, 0, 1, 1], [], []>} : vector<16x384xbf16>, vector<384x384xbf16>, vector<16x384xf32> -> vector<16x384xf32>
    %125 = arith.addf %121, %124 : vector<16x384xf32>
    %c2_52 = arith.constant 2 : index
    %c0_53 = arith.constant 0 : index
    %c0_54 = arith.constant 0 : index
    %126 = vector.load %arg5[%c2_52, %c0_53, %c0_54] : memref<3x384x384xbf16, #tpu.memory_space<vmem>>, vector<1x384x384xbf16>
    %127 = vector.shape_cast %126 : vector<1x384x384xbf16> to vector<384x384xbf16>
    %cst_55 = arith.constant dense<0.000000e+00> : vector<16x384xf32>
    %128 = tpu.matmul %117, %127, %cst_55 {dimension_numbers = #tpu.dot_dimension_numbers<[1], [0], [0], [1], [0, 0, 1, 1], [], []>} : vector<16x384xbf16>, vector<384x384xbf16>, vector<16x384xf32> -> vector<16x384xf32>
    %129 = arith.addf %125, %128 : vector<16x384xf32>
    %c0_56 = arith.constant 0 : index
    %c0_57 = arith.constant 0 : index
    %130 = vector.load %arg6[%c0_56, %c0_57] : memref<1x384xf32, #tpu.memory_space<vmem>>, vector<1x384xf32>
    %131 = vector.broadcast %130 : vector<1x384xf32> to vector<16x384xf32>
    %132 = arith.addf %129, %131 : vector<16x384xf32>
    %c0_58 = arith.constant 0 : index
    %c0_59 = arith.constant 0 : index
    %133 = vector.load %arg2[%c0_58, %c0_59] : memref<16x256xf32, #tpu.memory_space<vmem>>, vector<16x256xf32>
    %134 = vector.extract_strided_slice %133 {offsets = [0, 0], sizes = [16, 128], strides = [1, 1]} : vector<16x256xf32> to vector<16x128xf32>
    %135 = vector.extract_strided_slice %133 {offsets = [0, 128], sizes = [16, 128], strides = [1, 1]} : vector<16x256xf32> to vector<16x128xf32>
    %136 = arith.addf %134, %135 : vector<16x128xf32>
    %cst_60 = arith.constant 5.000000e-01 : f32
    %137 = vector.broadcast %cst_60 : f32 to vector<16x128xf32>
    %138 = arith.mulf %137, %136 : vector<16x128xf32>
    %139 = arith.truncf %138 : vector<16x128xf32> to vector<16x128xbf16>
    %c0_61 = arith.constant 0 : index
    %c0_62 = arith.constant 0 : index
    %140 = vector.load %arg7[%c0_61, %c0_62] : memref<128x384xbf16, #tpu.memory_space<vmem>>, vector<128x384xbf16>
    %cst_63 = arith.constant dense<0.000000e+00> : vector<16x384xf32>
    %141 = tpu.matmul %139, %140, %cst_63 {dimension_numbers = #tpu.dot_dimension_numbers<[1], [0], [0], [1], [0, 0, 1, 1], [], []>} : vector<16x128xbf16>, vector<128x384xbf16>, vector<16x384xf32> -> vector<16x384xf32>
    %c0_64 = arith.constant 0 : index
    %c0_65 = arith.constant 0 : index
    %142 = vector.load %arg8[%c0_64, %c0_65] : memref<1x384xf32, #tpu.memory_space<vmem>>, vector<1x384xf32>
    %143 = vector.broadcast %142 : vector<1x384xf32> to vector<16x384xf32>
    %144 = arith.addf %141, %143 : vector<16x384xf32>
    %145 = arith.truncf %132 : vector<16x384xf32> to vector<16x384xbf16>
    %c0_66 = arith.constant 0 : index
    %c0_67 = arith.constant 0 : index
    %146 = vector.load %arg9[%c0_66, %c0_67] : memref<384x256xbf16, #tpu.memory_space<vmem>>, vector<384x256xbf16>
    %cst_68 = arith.constant dense<0.000000e+00> : vector<16x256xf32>
    %147 = tpu.matmul %145, %146, %cst_68 {dimension_numbers = #tpu.dot_dimension_numbers<[1], [0], [0], [1], [0, 0, 1, 1], [], []>} : vector<16x384xbf16>, vector<384x256xbf16>, vector<16x256xf32> -> vector<16x256xf32>
    %c0_69 = arith.constant 0 : index
    %c0_70 = arith.constant 0 : index
    %148 = vector.load %arg10[%c0_69, %c0_70] : memref<1x256xf32, #tpu.memory_space<vmem>>, vector<1x256xf32>
    %149 = vector.broadcast %148 : vector<1x256xf32> to vector<16x256xf32>
    %150 = arith.addf %147, %149 : vector<16x256xf32>
    %151 = arith.truncf %144 : vector<16x384xf32> to vector<16x384xbf16>
    %c0_71 = arith.constant 0 : index
    %c0_72 = arith.constant 0 : index
    %152 = vector.load %arg11[%c0_71, %c0_72] : memref<384x256xbf16, #tpu.memory_space<vmem>>, vector<384x256xbf16>
    %cst_73 = arith.constant dense<0.000000e+00> : vector<16x256xf32>
    %153 = tpu.matmul %151, %152, %cst_73 {dimension_numbers = #tpu.dot_dimension_numbers<[1], [0], [0], [1], [0, 0, 1, 1], [], []>} : vector<16x384xbf16>, vector<384x256xbf16>, vector<16x256xf32> -> vector<16x256xf32>
    %c0_74 = arith.constant 0 : index
    %c0_75 = arith.constant 0 : index
    %154 = vector.load %arg12[%c0_74, %c0_75] : memref<1x256xf32, #tpu.memory_space<vmem>>, vector<1x256xf32>
    %155 = vector.broadcast %154 : vector<1x256xf32> to vector<16x256xf32>
    %156 = arith.addf %153, %155 : vector<16x256xf32>
    %157 = arith.truncf %156 : vector<16x256xf32> to vector<16x256xbf16>
    %c0_76 = arith.constant 0 : index
    %c0_77 = arith.constant 0 : index
    %158 = vector.load %arg13[%c0_76, %c0_77] : memref<256x256xbf16, #tpu.memory_space<vmem>>, vector<256x256xbf16>
    %cst_78 = arith.constant dense<0.000000e+00> : vector<16x256xf32>
    %159 = tpu.matmul %157, %158, %cst_78 {dimension_numbers = #tpu.dot_dimension_numbers<[1], [0], [0], [1], [0, 0, 1, 1], [], []>} : vector<16x256xbf16>, vector<256x256xbf16>, vector<16x256xf32> -> vector<16x256xf32>
    %c0_79 = arith.constant 0 : index
    %c0_80 = arith.constant 0 : index
    %160 = vector.load %arg14[%c0_79, %c0_80] : memref<1x256xf32, #tpu.memory_space<vmem>>, vector<1x256xf32>
    %161 = vector.broadcast %160 : vector<1x256xf32> to vector<16x256xf32>
    %162 = arith.addf %159, %161 : vector<16x256xf32>
    %c0_81 = arith.constant 0 : index
    %c0_82 = arith.constant 0 : index
    %163 = vector.load %arg15[%c0_81, %c0_82] : memref<256x256xbf16, #tpu.memory_space<vmem>>, vector<256x256xbf16>
    %cst_83 = arith.constant dense<0.000000e+00> : vector<16x256xf32>
    %164 = tpu.matmul %157, %163, %cst_83 {dimension_numbers = #tpu.dot_dimension_numbers<[1], [0], [0], [1], [0, 0, 1, 1], [], []>} : vector<16x256xbf16>, vector<256x256xbf16>, vector<16x256xf32> -> vector<16x256xf32>
    %c0_84 = arith.constant 0 : index
    %c0_85 = arith.constant 0 : index
    %165 = vector.load %arg16[%c0_84, %c0_85] : memref<1x256xf32, #tpu.memory_space<vmem>>, vector<1x256xf32>
    %166 = vector.broadcast %165 : vector<1x256xf32> to vector<16x256xf32>
    %167 = arith.addf %164, %166 : vector<16x256xf32>
    %168 = vector.shape_cast %150 : vector<16x256xf32> to vector<2x8x256xf32>
    %169 = arith.truncf %168 : vector<2x8x256xf32> to vector<2x8x256xbf16>
    %170 = vector.shape_cast %162 : vector<16x256xf32> to vector<2x8x256xf32>
    %171 = arith.truncf %170 : vector<2x8x256xf32> to vector<2x8x256xbf16>
    %172 = vector.shape_cast %167 : vector<16x256xf32> to vector<2x8x256xf32>
    %173 = arith.truncf %172 : vector<2x8x256xf32> to vector<2x8x256xbf16>
    "tpu.trace_start"() <{level = 10 : i32, message = "bqe,bke->bqk"}> : () -> ()
    %cst_86 = arith.constant dense<0.000000e+00> : vector<2x8x8xf32>
    %174 = tpu.matmul %169, %171, %cst_86 {dimension_numbers = #tpu.dot_dimension_numbers<[2], [2], [1], [1], [0, 0, 0, 1, 1, 1], [0], [0]>} : vector<2x8x256xbf16>, vector<2x8x256xbf16>, vector<2x8x8xf32> -> vector<2x8x8xf32>
    "tpu.trace_stop"() : () -> ()
    %cst_87 = arith.constant 6.250000e-02 : f32
    %175 = vector.broadcast %cst_87 : f32 to vector<2x8x8xf32>
    %176 = arith.mulf %174, %175 : vector<2x8x8xf32>
    %cst_88 = arith.constant dense<0xFF800000> : vector<2x8xf32>
    %177 = vector.multi_reduction <maximumf>, %176, %cst_88 [2] : vector<2x8x8xf32> to vector<2x8xf32>
    %178 = vector.shape_cast %177 : vector<2x8xf32> to vector<2x8x1xf32>
    %179 = vector.broadcast %178 : vector<2x8x1xf32> to vector<2x8x8xf32>
    %180 = arith.subf %176, %179 : vector<2x8x8xf32>
    %181 = math.exp %180 : vector<2x8x8xf32>
    %cst_89 = arith.constant dense<0.000000e+00> : vector<2x8xf32>
    %182 = vector.multi_reduction <add>, %181, %cst_89 [2] : vector<2x8x8xf32> to vector<2x8xf32>
    %183 = vector.shape_cast %182 : vector<2x8xf32> to vector<2x8x1xf32>
    %184 = tpu.reciprocal %183 : vector<2x8x1xf32> -> vector<2x8x1xf32>
    %185 = vector.broadcast %184 : vector<2x8x1xf32> to vector<2x8x8xf32>
    %186 = arith.mulf %181, %185 : vector<2x8x8xf32>
    %187 = arith.truncf %186 : vector<2x8x8xf32> to vector<2x8x8xbf16>
    "tpu.trace_start"() <{level = 10 : i32, message = "bqk,bke->bqe"}> : () -> ()
    %cst_90 = arith.constant dense<0.000000e+00> : vector<2x8x256xf32>
    %188 = tpu.matmul %187, %173, %cst_90 {dimension_numbers = #tpu.dot_dimension_numbers<[2], [1], [1], [2], [0, 0, 0, 1, 1, 2], [0], [0]>} : vector<2x8x8xbf16>, vector<2x8x256xbf16>, vector<2x8x256xf32> -> vector<2x8x256xf32>
    "tpu.trace_stop"() : () -> ()
    %189 = vector.shape_cast %188 : vector<2x8x256xf32> to vector<16x256xf32>
    %190 = arith.truncf %189 : vector<16x256xf32> to vector<16x256xbf16>
    %c0_91 = arith.constant 0 : index
    %c0_92 = arith.constant 0 : index
    %191 = vector.load %arg17[%c0_91, %c0_92] : memref<256x384xbf16, #tpu.memory_space<vmem>>, vector<256x384xbf16>
    %cst_93 = arith.constant dense<0.000000e+00> : vector<16x384xf32>
    %192 = tpu.matmul %190, %191, %cst_93 {dimension_numbers = #tpu.dot_dimension_numbers<[1], [0], [0], [1], [0, 0, 1, 1], [], []>} : vector<16x256xbf16>, vector<256x384xbf16>, vector<16x384xf32> -> vector<16x384xf32>
    %c0_94 = arith.constant 0 : index
    %c0_95 = arith.constant 0 : index
    %193 = vector.load %arg18[%c0_94, %c0_95] : memref<1x384xf32, #tpu.memory_space<vmem>>, vector<1x384xf32>
    %194 = vector.broadcast %193 : vector<1x384xf32> to vector<16x384xf32>
    %195 = arith.addf %192, %194 : vector<16x384xf32>
    %196 = arith.addf %195, %132 : vector<16x384xf32>
    %197 = arith.addf %196, %0 : vector<16x384xf32>
    %cst_96 = arith.constant dense<0.000000e+00> : vector<384xf32>
    %198 = vector.multi_reduction <add>, %197, %cst_96 [0] : vector<16x384xf32> to vector<384xf32>
    %199 = vector.shape_cast %198 : vector<384xf32> to vector<1x384xf32>
    %cst_97 = arith.constant 1.600000e+01 : f32
    %200 = vector.broadcast %cst_97 : f32 to vector<1x384xf32>
    %201 = arith.divf %199, %200 : vector<1x384xf32>
    %202 = vector.broadcast %201 : vector<1x384xf32> to vector<16x384xf32>
    %203 = arith.subf %197, %202 : vector<16x384xf32>
    %204 = arith.mulf %203, %203 : vector<16x384xf32>
    %cst_98 = arith.constant dense<0.000000e+00> : vector<384xf32>
    %205 = vector.multi_reduction <add>, %204, %cst_98 [0] : vector<16x384xf32> to vector<384xf32>
    %206 = vector.shape_cast %205 : vector<384xf32> to vector<1x384xf32>
    %cst_99 = arith.constant 1.600000e+01 : f32
    %207 = vector.broadcast %cst_99 : f32 to vector<1x384xf32>
    %208 = arith.divf %206, %207 : vector<1x384xf32>
    %209 = vector.broadcast %201 : vector<1x384xf32> to vector<16x384xf32>
    %210 = arith.subf %197, %209 : vector<16x384xf32>
    %c0_100 = arith.constant 0 : index
    %c0_101 = arith.constant 0 : index
    %211 = vector.load %arg19[%c0_100, %c0_101] : memref<1x384xf32, #tpu.memory_space<vmem>>, vector<1x384xf32>
    %cst_102 = arith.constant 9.99999974E-6 : f32
    %212 = vector.broadcast %cst_102 : f32 to vector<1x384xf32>
    %213 = arith.addf %208, %212 : vector<1x384xf32>
    %214 = math.rsqrt %213 : vector<1x384xf32>
    %215 = arith.mulf %211, %214 : vector<1x384xf32>
    %216 = vector.broadcast %215 : vector<1x384xf32> to vector<16x384xf32>
    %217 = arith.mulf %210, %216 : vector<16x384xf32>
    %c0_103 = arith.constant 0 : index
    %c0_104 = arith.constant 0 : index
    %218 = vector.load %arg20[%c0_103, %c0_104] : memref<1x384xf32, #tpu.memory_space<vmem>>, vector<1x384xf32>
    %219 = vector.broadcast %218 : vector<1x384xf32> to vector<16x384xf32>
    %220 = arith.addf %217, %219 : vector<16x384xf32>
    %c0_105 = arith.constant 0 : index
    %c0_106 = arith.constant 0 : index
    %221 = vector.load %arg21[%c0_105, %c0_106] : memref<16x384xf32, #tpu.memory_space<vmem>>, vector<16x384xf32>
    tpu.vector_store %arg21[%c0_105, %c0_106], %220 {strides = array<i32>} : memref<16x384xf32, #tpu.memory_space<vmem>>, vector<16x384xf32>,
    return
  }
  func.func @transform_0(%arg0: i32) -> (i32, i32) {
    %c0_i32 = arith.constant 0 : i32
    %c0_i32_0 = arith.constant 0 : i32
    %c0_i32_1 = arith.constant 0 : i32
    return %c0_i32, %c0_i32_0 : i32, i32
  }
  func.func @transform_1(%arg0: i32) -> (i32, i32) {
    %c0_i32 = arith.constant 0 : i32
    %c0_i32_0 = arith.constant 0 : i32
    %c0_i32_1 = arith.constant 0 : i32
    return %c0_i32, %c0_i32_0 : i32, i32
  }
  func.func @transform_2(%arg0: i32) -> (i32, i32, i32) {
    %c0_i32 = arith.constant 0 : i32
    %c0_i32_0 = arith.constant 0 : i32
    %c0_i32_1 = arith.constant 0 : i32
    %c0_i32_2 = arith.constant 0 : i32
    return %c0_i32, %c0_i32_0, %c0_i32_1 : i32, i32, i32
  }
  func.func @transform_3(%arg0: i32) -> (i32, i32) {
    %c0_i32 = arith.constant 0 : i32
    %c0_i32_0 = arith.constant 0 : i32
    %c0_i32_1 = arith.constant 0 : i32
    return %c0_i32, %c0_i32_0 : i32, i32
  }
  func.func @transform_4(%arg0: i32) -> (i32, i32, i32) {
    %c0_i32 = arith.constant 0 : i32
    %c0_i32_0 = arith.constant 0 : i32
    %c0_i32_1 = arith.constant 0 : i32
    %c0_i32_2 = arith.constant 0 : i32
    return %c0_i32, %c0_i32_0, %c0_i32_1 : i32, i32, i32
  }
  func.func @transform_5(%arg0: i32) -> (i32, i32) {
    %c0_i32 = arith.constant 0 : i32
    %c0_i32_0 = arith.constant 0 : i32
    %c0_i32_1 = arith.constant 0 : i32
    return %c0_i32, %c0_i32_0 : i32, i32
  }
  func.func @transform_6(%arg0: i32) -> (i32, i32) {
    %c0_i32 = arith.constant 0 : i32
    %c0_i32_0 = arith.constant 0 : i32
    %c0_i32_1 = arith.constant 0 : i32
    return %c0_i32, %c0_i32_0 : i32, i32
  }
  func.func @transform_7(%arg0: i32) -> (i32, i32) {
    %c0_i32 = arith.constant 0 : i32
    %c0_i32_0 = arith.constant 0 : i32
    %c0_i32_1 = arith.constant 0 : i32
    return %c0_i32, %c0_i32_0 : i32, i32
  }
  func.func @transform_8(%arg0: i32) -> (i32, i32) {
    %c0_i32 = arith.constant 0 : i32
    %c0_i32_0 = arith.constant 0 : i32
    %c0_i32_1 = arith.constant 0 : i32
    return %c0_i32, %c0_i32_0 : i32, i32
  }
  func.func @transform_9(%arg0: i32) -> (i32, i32) {
    %c0_i32 = arith.constant 0 : i32
    %c0_i32_0 = arith.constant 0 : i32
    %c0_i32_1 = arith.constant 0 : i32
    return %c0_i32, %c0_i32_0 : i32, i32
  }
  func.func @transform_10(%arg0: i32) -> (i32, i32) {
    %c0_i32 = arith.constant 0 : i32
    %c0_i32_0 = arith.constant 0 : i32
    %c0_i32_1 = arith.constant 0 : i32
    return %c0_i32, %c0_i32_0 : i32, i32
  }
  func.func @transform_11(%arg0: i32) -> (i32, i32) {
    %c0_i32 = arith.constant 0 : i32
    %c0_i32_0 = arith.constant 0 : i32
    %c0_i32_1 = arith.constant 0 : i32
    return %c0_i32, %c0_i32_0 : i32, i32
  }
  func.func @transform_12(%arg0: i32) -> (i32, i32) {
    %c0_i32 = arith.constant 0 : i32
    %c0_i32_0 = arith.constant 0 : i32
    %c0_i32_1 = arith.constant 0 : i32
    return %c0_i32, %c0_i32_0 : i32, i32
  }
  func.func @transform_13(%arg0: i32) -> (i32, i32) {
    %c0_i32 = arith.constant 0 : i32
    %c0_i32_0 = arith.constant 0 : i32
    %c0_i32_1 = arith.constant 0 : i32
    return %c0_i32, %c0_i32_0 : i32, i32
  }
  func.func @transform_14(%arg0: i32) -> (i32, i32) {
    %c0_i32 = arith.constant 0 : i32
    %c0_i32_0 = arith.constant 0 : i32
    %c0_i32_1 = arith.constant 0 : i32
    return %c0_i32, %c0_i32_0 : i32, i32
  }
  func.func @transform_15(%arg0: i32) -> (i32, i32) {
    %c0_i32 = arith.constant 0 : i32
    %c0_i32_0 = arith.constant 0 : i32
    %c0_i32_1 = arith.constant 0 : i32
    return %c0_i32, %c0_i32_0 : i32, i32
  }
  func.func @transform_16(%arg0: i32) -> (i32, i32) {
    %c0_i32 = arith.constant 0 : i32
    %c0_i32_0 = arith.constant 0 : i32
    %c0_i32_1 = arith.constant 0 : i32
    return %c0_i32, %c0_i32_0 : i32, i32
  }
  func.func @transform_17(%arg0: i32) -> (i32, i32) {
    %c0_i32 = arith.constant 0 : i32
    %c0_i32_0 = arith.constant 0 : i32
    %c0_i32_1 = arith.constant 0 : i32
    return %c0_i32, %c0_i32_0 : i32, i32
  }
  func.func @transform_18(%arg0: i32) -> (i32, i32) {
    %c0_i32 = arith.constant 0 : i32
    %c0_i32_0 = arith.constant 0 : i32
    %c0_i32_1 = arith.constant 0 : i32
    return %c0_i32, %c0_i32_0 : i32, i32
  }
  func.func @transform_19(%arg0: i32) -> (i32, i32) {
    %c0_i32 = arith.constant 0 : i32
    %c0_i32_0 = arith.constant 0 : i32
    %c0_i32_1 = arith.constant 0 : i32
    return %c0_i32, %c0_i32_0 : i32, i32
  }
  func.func @transform_20(%arg0: i32) -> (i32, i32) {
    %c0_i32 = arith.constant 0 : i32
    %c0_i32_0 = arith.constant 0 : i32
    %c0_i32_1 = arith.constant 0 : i32
    return %c0_i32, %c0_i32_0 : i32, i32
  }
}

</mosaic_0001>

<llo_original>
// kernel: score_net_forward.4
$region0: #{score_net_forward.4}
  #allocation0 [shape = 'u32[]', space=smem, size = 0x4, offset = 0x4, fixed_abs, tag = 'smem constant byte address 0x4 - core index']
  #allocation1 [shape = 'u32[72,128]{1,0:T(1,128)}', space=vmem, size = 0x9000, scoped, tag = 'internal scratch']
  %s0 = inlined_call_operand.vmem [shape: f32[2,32], index: 0, kind: input, shape index: {}]
  %s1 = inlined_call_operand.vmem [shape: bf16[32,64], index: 1, kind: input, shape index: {}]
  %s2 = inlined_call_operand.vmem [shape: bf16[32,64], index: 2, kind: input, shape index: {}]
  %s3 = inlined_call_operand.vmem [shape: f32[1,64], index: 3, kind: input, shape index: {}]
  %s4 = inlined_call_operand.vmem [shape: bf16[64,256], index: 4, kind: input, shape index: {}]
  %s5 = inlined_call_operand.vmem [shape: f32[1,256], index: 5, kind: input, shape index: {}]
  %s6 = inlined_call_operand.vmem [shape: f32[32,128], index: 6, kind: input, shape index: {}]
  %s7 = inlined_call_operand.hbm [shape: bf16[3,128,256], index: 7, kind: input, shape index: {}]
  %s8 = inlined_call_operand.vmem [shape: f32[1,256], index: 8, kind: input, shape index: {}]
  %s9 = inlined_call_operand.vmem [shape: f32[1,256], index: 9, kind: input, shape index: {}]
  %s10 = inlined_call_operand.vmem [shape: f32[1,256], index: 10, kind: input, shape index: {}]
  %s11 = inlined_call_operand.vmem [shape: f32[32,256], index: 11, kind: output, shape index: {}]
  %s12 = sld [smem:[#allocation0]]
  $region58: #{score_net_forward.4} parent=0
    _
  %s14 = ssub.s32 1, %s12
  %s15 = scalar_select 0, %s14, %s12
  $region1: #{score_net_forward.4} parent=0
    #allocation2 [shape = 'u8[196608]{0}', space=vmem, size = 0x30000, scoped, tag = 'input window, operand 7, single buffered']
    #allocation3 [shape = 's32[1]{0}', space=sflag, size = 0x4, scoped, tag = 'scoped memory for score_net_forward.4']
    %16 = vsyncpa [#allocation3], 0
    // Predicated region
    $region2: #{score_net_forward.4} parent=1 // pred_check
      _
    $region3: #{score_net_forward.4} parent=1 // pred_check_branch
      %18 = sbr.rel (0) target = $region5
    $region4: #{score_net_forward.4} parent=1 // pred_region
      _
    $region5: #{score_net_forward.4} parent=1 // pred_fallthru
      _
    // Predicated region
    $region6: #{score_net_forward.4} parent=1 // pred_check
      _
    $region7: #{score_net_forward.4} parent=1 // pred_check_branch
      %20 = sbr.rel (0) target = $region9
    $region8: #{score_net_forward.4} parent=1 // pred_region
      _
    $region9: #{score_net_forward.4} parent=1 // pred_fallthru
      _
    // Predicated region
    $region10: #{score_net_forward.4} parent=1 // pred_check
      _
    $region11: #{score_net_forward.4} parent=1 // pred_check_branch
      %22 = sbr.rel (0) target = $region13
    $region12: #{score_net_forward.4} parent=1 // pred_region
      _
    $region13: #{score_net_forward.4} parent=1 // pred_fallthru
      _
    // Predicated region
    $region14: #{score_net_forward.4} parent=1 // pred_check
      _
    $region15: #{score_net_forward.4} parent=1 // pred_check_branch
      %24 = sbr.rel (0) target = $region17
    $region16: #{score_net_forward.4} parent=1 // pred_region
      _
    $region17: #{score_net_forward.4} parent=1 // pred_fallthru
      _
    // Predicated region
    $region18: #{score_net_forward.4} parent=1 // pred_check
      _
    $region19: #{score_net_forward.4} parent=1 // pred_check_branch
      %26 = sbr.rel (0) target = $region21
    $region20: #{score_net_forward.4} parent=1 // pred_region
      _
    $region21: #{score_net_forward.4} parent=1 // pred_fallthru
      _
    // Predicated region
    $region22: #{score_net_forward.4} parent=1 // pred_check
      _
    $region23: #{score_net_forward.4} parent=1 // pred_check_branch
      %28 = sbr.rel (0) target = $region25
    $region24: #{score_net_forward.4} parent=1 // pred_region
      _
    $region25: #{score_net_forward.4} parent=1 // pred_fallthru
      _
    // Predicated region
    $region26: #{score_net_forward.4} parent=1 // pred_check
      _
    $region27: #{score_net_forward.4} parent=1 // pred_check_branch
      %30 = sbr.rel (0) target = $region29
    $region28: #{score_net_forward.4} parent=1 // pred_region
      _
    $region29: #{score_net_forward.4} parent=1 // pred_fallthru
      _
    // Predicated region
    $region30: #{score_net_forward.4} parent=1 // pred_check
      _
    $region31: #{score_net_forward.4} parent=1 // pred_check_branch
      %32 = sbr.rel (0) target = $region33
    $region32: #{score_net_forward.4} parent=1 // pred_region
      %34 = vsyncadd [#allocation3], 0
      %s35 = sshll.u32 %s7, 4
      %s36 = int_to_ptr.hbm [resolvable:$true] %s35
      %s37 = sshll.u32 [#allocation2], 4
      %s38 = int_to_ptr.vmem [resolvable:$true] %s37
      %43 = dma.hbm_to_vmem [thread:$0]  %s36, 6144, %s38, [#allocation3], 128, 128, 8
    $region33: #{score_net_forward.4} parent=1 // pred_fallthru
      _
    // Predicated region
    $region34: #{score_net_forward.4} parent=1 // pred_check
      _
    $region35: #{score_net_forward.4} parent=1 // pred_check_branch
      %45 = sbr.rel (0) target = $region37
    $region36: #{score_net_forward.4} parent=1 // pred_region
      _
    $region37: #{score_net_forward.4} parent=1 // pred_fallthru
      _
    // Predicated region
    $region38: #{score_net_forward.4} parent=1 // pred_check
      _
    $region39: #{score_net_forward.4} parent=1 // pred_check_branch
      %47 = sbr.rel (0) target = $region41
    $region40: #{score_net_forward.4} parent=1 // pred_region
      _
    $region41: #{score_net_forward.4} parent=1 // pred_fallthru
      _
    // Predicated region
    $region42: #{score_net_forward.4} parent=1 // pred_check
      _
    $region43: #{score_net_forward.4} parent=1 // pred_check_branch
      %49 = sbr.rel (0) target = $region45
    $region44: #{score_net_forward.4} parent=1 // pred_region
      _
    $region45: #{score_net_forward.4} parent=1 // pred_fallthru
      _
    // Predicated region
    $region46: #{score_net_forward.4} parent=1 // pred_check
      _
    $region47: #{score_net_forward.4} parent=1 // pred_check_branch
      %51 = sbr.rel (0) target = $region49
    $region48: #{score_net_forward.4} parent=1 // pred_region
      %53 = dma.done [#allocation3], 6144
    $region49: #{score_net_forward.4} parent=1 // pred_fallthru
      _
    %v55 = vld [vmem:[%s0] sm:$0x3]
    %v56 = vand.u32 2147483647, %v55
    %vm57 = vcmp.le.f32.partialorder %v56, 0.7853982
    %vm58 = vcmp.lt.s32.totalorder %v55, 0
    %v59 = vand.u32 %v55, 2139095040
    %v60 = vshrl.u32 %v59, 23
    %v61 = vsub.s32 %v60, 127
    %v62 = vand.u32 2147483647, %v55
    %v63 = vand.u32 %v62, 8388607
    %v64 = vor.u32 %v63, 8388608
    %v65 = vsub.s32 0, %v64
    %v66 = vadd.s32 %v61, 1
    %vm67 = vcmp.gt.s32.totalorder %v66, 0
    %v68 = vsel %vm67, %v66, 0
    %v69 = vshrl.u32 %v68, 5
    %v70 = vand.u32 %v68, 31
    %v71 = vsub.s32 32, %v70
    %v72 = vshrl.u32 683565275, %v71
    %v73 = vshll.u32 683565275, %v70
    %v74 = vshrl.u32 2475754826, %v71
    %v75 = vor.u32 %v73, %v74
    %v76 = vshll.u32 2475754826, %v70
    %v77 = vshrl.u32 2131351028, %v71
    %v78 = vor.u32 %v76, %v77
    %v79 = vshll.u32 2131351028, %v70
    %v80 = vshrl.u32 2102212464, %v71
    %v81 = vor.u32 %v79, %v80
    %v82 = vshll.u32 2102212464, %v70
    %v83 = vshrl.u32 920167782, %v71
    %v84 = vor.u32 %v82, %v83
    %v85 = vshll.u32 920167782, %v70
    %v86 = vshrl.u32 1326507024, %v71
    %v87 = vor.u32 %v85, %v86
    %vm88 = vcmp.lt.s32.totalorder %v69, 1
    %vm89 = vcmp.lt.s32.totalorder %v69, 2
    %vm90 = vcmp.lt.s32.totalorder %v69, 3
    %vm91 = vcmp.lt.s32.totalorder %v69, 4
    %v92 = vsel %vm88, %v72, %v75
    %v93 = vsel %vm91, %v81, 2102212464
    %v94 = vsel %vm90, %v78, %v93
    %v95 = vsel %vm89, %v92, %v94
    %v96 = vsel %vm88, %v75, %v78
    %v97 = vsel %vm91, %v84, 920167782
    %v98 = vsel %vm90, %v81, %v97
    %v99 = vsel %vm89, %v96, %v98
    %v100 = vsel %vm88, %v78, %v81
    %v101 = vsel %vm91, %v87, 1326507024
    %v102 = vsel %vm90, %v84, %v101
    %v103 = vsel %vm89, %v100, %v102
    %v104 = vshll.u32 %v64, 8
    %v105 = vand.u32 %v104, 65535
    %v106 = vshrl.u32 %v104, 16
    %v107 = vand.u32 %v103, 65535
    %v108 = vshrl.u32 %v103, 16
    %v109 = vmul.u32 %v105, %v107
    %v110 = vmul.u32 %v105, %v108
    %v111 = vmul.u32 %v106, %v107
    %v112 = vmul.u32 %v106, %v108
    %v113 = vshll.u32 %v110, 16
    %v114 = vshrl.u32 %v110, 16
    %v115 = vshll.u32 %v111, 16
    %v116 = vshrl.u32 %v111, 16
    %vm117 = vc.u32 %v109, %v113
    %v118 = vsel %vm117, 1, 0
    %v119 = vadd.s32 %v109, %v113
    %v120 = vadd.s32 %v112, %v118
    %vm121 = vc.u32 %v119, %v115
    %v122 = vsel %vm121, 1, 0
    %v123 = vadd.s32 %v119, %v115
    %v124 = vadd.s32 %v120, %v122
    %v125 = vadd.s32 %v124, %v114
    %v126 = vadd.s32 %v125, %v116
    %v127 = vand.u32 %v104, 65535
    %v128 = vshrl.u32 %v104, 16
    %v129 = vand.u32 %v99, 65535
    %v130 = vshrl.u32 %v99, 16
    %v131 = vmul.u32 %v127, %v129
    %v132 = vmul.u32 %v127, %v130
    %v133 = vmul.u32 %v128, %v129
    %v134 = vmul.u32 %v128, %v130
    %v135 = vshll.u32 %v132, 16
    %v136 = vshrl.u32 %v132, 16
    %v137 = vshll.u32 %v133, 16
    %v138 = vshrl.u32 %v133, 16
    %vm139 = vc.u32 %v131, %v135
    %v140 = vsel %vm139, 1, 0
    %v141 = vadd.s32 %v131, %v135
    %v142 = vadd.s32 %v134, %v140
    %vm143 = vc.u32 %v141, %v137
    %v144 = vsel %vm143, 1, 0
    %v145 = vadd.s32 %v141, %v137
    %v146 = vadd.s32 %v142, %v144
    %v147 = vadd.s32 %v146, %v136
    %v148 = vadd.s32 %v147, %v138
    %v149 = vmul.u32 %v104, %v95
    %v150 = vadd.s32 %v126, %v145
    %vm151 = vc.u32 %v126, %v145
    %v152 = vadd.s32 %v148, 1
    %v153 = vsel %vm151, %v152, %v148
    %v154 = vadd.s32 %v149, %v153
    %v155 = vadd.s32 %v154, 536870912
    %v156 = vshrl.u32 %v155, 30
    %v157 = vshll.u32 %v156, 30
    %v158 = vsub.s32 %v154, %v157
    %vm159 = vcmp.lt.s32.totalorder %v158, 0
    %v160 = vsub.s32 0, %v158
    %v161 = vsel %vm159, %v160, %v158
    %v162 = vclz %v161
    %v163 = vsub.s32 %v162, 2
    %vm164 = vcmp.gt.s32.totalorder 0, %v163
    %v165 = vsel %vm164, 0, %v163
    %v166 = vsub.s32 32, %v165
    %v167 = vshll.u32 %v158, %v165
    %v168 = vshrl.u32 %v150, %v166
    %v169 = vor.u32 %v167, %v168
    %v170 = vsub.s32 4294967266, %v165
    %v171 = vadd.s32 %v170, 127
    %v172 = vshll.u32 %v171, 23
    %v173 = vor.u32 4788187, %v172
    %v174 = vand.u32 2147483647, %v173
    %v176 = vcvt.s32.f32 %v169
    %v177 = vmul.f32 %v176, %v174
    %v178 = vxor.u32 %v177, 2147483648
    %v179 = vsel %vm58, %v178, %v177
    %v180 = vsub.s32 4, %v156
    %v181 = vsel %vm58, %v180, %v156
    %v182 = vsel %vm57, %v55, %v179
    %v183 = vsel %vm57, 0, %v181
    %v184 = vmul.f32 %v182, %v182
    %v185 = vmul.f32 %v184, -0.001358992
    %v186 = vadd.f32 %v185, 0.041655596
    %v187 = vmul.f32 %v184, %v186
    %v188 = vadd.f32 %v187, -0.4999988
    %v189 = vmul.f32 %v184, %v188
    %v190 = vadd.f32 1.0, %v189
    %v191 = vmul.f32 %v182, %v182
    %v192 = vmul.f32 %v191, -0.00019511016
    %v193 = vadd.f32 %v192, 0.008332121
    %v194 = vmul.f32 %v191, %v193
    %v195 = vadd.f32 %v194, -0.16666654
    %v196 = vmul.f32 %v191, %v195
    %v197 = vadd.f32 %v196, 1.0
    %v198 = vmul.f32 %v197, %v182
    %vm199 = vweird.f32 %v55
    %v200 = vadd.s32 %v183, 3
    %v201 = vand.u32 %v200, 3
    %vm202 = vcmp.lt.s32.totalorder %v201, 2
    %vm203 = vcmp.eq.s32.totalorder %v201, 0
    %v204 = vxor.u32 %v198, 2147483648
    %v205 = vsel %vm203, %v190, %v204
    %vm206 = vcmp.eq.s32.totalorder %v201, 2
    %v207 = vxor.u32 %v190, 2147483648
    %v208 = vsel %vm206, %v207, %v198
    %v209 = vsel %vm202, %v205, %v208
    %v210 = vsel %vm199, nan, %v209
    %v211 = vpack.c.bf16 %v210, %v210
    %v212 = vld [vmem:[%s1] sm:$0xf]
    %v213 = vld [vmem:[%s1 + $0x4] sm:$0xf]
    %v214 = vld [vmem:[%s1 + $0x8] sm:$0xf]
    %v215 = vld [vmem:[%s1 + $0xc] sm:$0xf]
    %v216 = vand.u32 2147483647, %v55
    %vm217 = vcmp.le.f32.partialorder %v216, 0.7853982
    %vm218 = vcmp.lt.s32.totalorder %v55, 0
    %v219 = vand.u32 %v55, 2139095040
    %v220 = vshrl.u32 %v219, 23
    %v221 = vsub.s32 %v220, 127
    %v222 = vand.u32 2147483647, %v55
    %v223 = vand.u32 %v222, 8388607
    %v224 = vor.u32 %v223, 8388608
    %v225 = vsub.s32 0, %v224
    %v226 = vadd.s32 %v221, 1
    %vm227 = vcmp.gt.s32.totalorder %v226, 0
    %v228 = vsel %vm227, %v226, 0
    %v229 = vshrl.u32 %v228, 5
    %v230 = vand.u32 %v228, 31
    %v231 = vsub.s32 32, %v230
    %v232 = vshrl.u32 683565275, %v231
    %v233 = vshll.u32 683565275, %v230
    %v234 = vshrl.u32 2475754826, %v231
    %v235 = vor.u32 %v233, %v234
    %v236 = vshll.u32 2475754826, %v230
    %v237 = vshrl.u32 2131351028, %v231
    %v238 = vor.u32 %v236, %v237
    %v239 = vshll.u32 2131351028, %v230
    %v240 = vshrl.u32 2102212464, %v231
    %v241 = vor.u32 %v239, %v240
    %v242 = vshll.u32 2102212464, %v230
    %v243 = vshrl.u32 920167782, %v231
    %v244 = vor.u32 %v242, %v243
    %v245 = vshll.u32 920167782, %v230
    %v246 = vshrl.u32 1326507024, %v231
    %v247 = vor.u32 %v245, %v246
    %vm248 = vcmp.lt.s32.totalorder %v229, 1
    %vm249 = vcmp.lt.s32.totalorder %v229, 2
    %vm250 = vcmp.lt.s32.totalorder %v229, 3
    %vm251 = vcmp.lt.s32.totalorder %v229, 4
    %v252 = vsel %vm248, %v232, %v235
    %v253 = vsel %vm251, %v241, 2102212464
    %v254 = vsel %vm250, %v238, %v253
    %v255 = vsel %vm249, %v252, %v254
    %v256 = vsel %vm248, %v235, %v238
    %v257 = vsel %vm251, %v244, 920167782
    %v258 = vsel %vm250, %v241, %v257
    %v259 = vsel %vm249, %v256, %v258
    %v260 = vsel %vm248, %v238, %v241
    %v261 = vsel %vm251, %v247, 1326507024
    %v262 = vsel %vm250, %v244, %v261
    %v263 = vsel %vm249, %v260, %v262
    %v264 = vshll.u32 %v224, 8
    %v265 = vand.u32 %v264, 65535
    %v266 = vshrl.u32 %v264, 16
    %v267 = vand.u32 %v263, 65535
    %v268 = vshrl.u32 %v263, 16
    %v269 = vmul.u32 %v265, %v267
    %v270 = vmul.u32 %v265, %v268
    %v271 = vmul.u32 %v266, %v267
    %v272 = vmul.u32 %v266, %v268
    %v273 = vshll.u32 %v270, 16
    %v274 = vshrl.u32 %v270, 16
    %v275 = vshll.u32 %v271, 16
    %v276 = vshrl.u32 %v271, 16
    %vm277 = vc.u32 %v269, %v273
    %v278 = vsel %vm277, 1, 0
    %v279 = vadd.s32 %v269, %v273
    %v280 = vadd.s32 %v272, %v278
    %vm281 = vc.u32 %v279, %v275
    %v282 = vsel %vm281, 1, 0
    %v283 = vadd.s32 %v279, %v275
    %v284 = vadd.s32 %v280, %v282
    %v285 = vadd.s32 %v284, %v274
    %v286 = vadd.s32 %v285, %v276
    %v287 = vand.u32 %v264, 65535
    %v288 = vshrl.u32 %v264, 16
    %v289 = vand.u32 %v259, 65535
    %v290 = vshrl.u32 %v259, 16
    %v291 = vmul.u32 %v287, %v289
    %v292 = vmul.u32 %v287, %v290
    %v293 = vmul.u32 %v288, %v289
    %v294 = vmul.u32 %v288, %v290
    %v295 = vshll.u32 %v292, 16
    %v296 = vshrl.u32 %v292, 16
    %v297 = vshll.u32 %v293, 16
    %v298 = vshrl.u32 %v293, 16
    %vm299 = vc.u32 %v291, %v295
    %v300 = vsel %vm299, 1, 0
    %v301 = vadd.s32 %v291, %v295
    %v302 = vadd.s32 %v294, %v300
    %vm303 = vc.u32 %v301, %v297
    %v304 = vsel %vm303, 1, 0
    %v305 = vadd.s32 %v301, %v297
    %v306 = vadd.s32 %v302, %v304
    %v307 = vadd.s32 %v306, %v296
    %v308 = vadd.s32 %v307, %v298
    %v309 = vmul.u32 %v264, %v255
    %v310 = vadd.s32 %v286, %v305
    %vm311 = vc.u32 %v286, %v305
    %v312 = vadd.s32 %v308, 1
    %v313 = vsel %vm311, %v312, %v308
    %v314 = vadd.s32 %v309, %v313
    %v315 = vadd.s32 %v314, 536870912
    %v316 = vshrl.u32 %v315, 30
    %v317 = vshll.u32 %v316, 30
    %v318 = vsub.s32 %v314, %v317
    %vm319 = vcmp.lt.s32.totalorder %v318, 0
    %v320 = vsub.s32 0, %v318
    %v321 = vsel %vm319, %v320, %v318
    %v322 = vclz %v321
    %v323 = vsub.s32 %v322, 2
    %vm324 = vcmp.gt.s32.totalorder 0, %v323
    %v325 = vsel %vm324, 0, %v323
    %v326 = vsub.s32 32, %v325
    %v327 = vshll.u32 %v318, %v325
    %v328 = vshrl.u32 %v310, %v326
    %v329 = vor.u32 %v327, %v328
    %v330 = vsub.s32 4294967266, %v325
    %v331 = vadd.s32 %v330, 127
    %v332 = vshll.u32 %v331, 23
    %v333 = vor.u32 4788187, %v332
    %v334 = vand.u32 2147483647, %v333
    %v336 = vcvt.s32.f32 %v329
    %v337 = vmul.f32 %v336, %v334
    %v338 = vxor.u32 %v337, 2147483648
    %v339 = vsel %vm218, %v338, %v337
    %v340 = vsub.s32 4, %v316
    %v341 = vsel %vm218, %v340, %v316
    %v342 = vsel %vm217, %v55, %v339
    %v343 = vsel %vm217, 0, %v341
    %v344 = vmul.f32 %v342, %v342
    %v345 = vmul.f32 %v344, -0.001358992
    %v346 = vadd.f32 %v345, 0.041655596
    %v347 = vmul.f32 %v344, %v346
    %v348 = vadd.f32 %v347, -0.4999988
    %v349 = vmul.f32 %v344, %v348
    %v350 = vadd.f32 1.0, %v349
    %v351 = vmul.f32 %v342, %v342
    %v352 = vmul.f32 %v351, -0.00019511016
    %v353 = vadd.f32 %v352, 0.008332121
    %v354 = vmul.f32 %v351, %v353
    %v355 = vadd.f32 %v354, -0.16666654
    %v356 = vmul.f32 %v351, %v355
    %v357 = vadd.f32 %v356, 1.0
    %v358 = vmul.f32 %v357, %v342
    %vm359 = vweird.f32 %v55
    %v360 = vand.u32 %v343, 3
    %vm361 = vcmp.lt.s32.totalorder %v360, 2
    %vm362 = vcmp.eq.s32.totalorder %v360, 0
    %v363 = vxor.u32 %v358, 2147483648
    %v364 = vsel %vm362, %v350, %v363
    %vm365 = vcmp.eq.s32.totalorder %v360, 2
    %v366 = vxor.u32 %v350, 2147483648
    %v367 = vsel %vm365, %v366, %v358
    %v368 = vsel %vm361, %v364, %v367
    %v369 = vsel %vm359, nan, %v368
    %v370 = vpack.c.bf16 %v369, %v369
    %v371 = vld [vmem:[%s2] sm:$0xf]
    %v372 = vld [vmem:[%s2 + $0x4] sm:$0xf]
    %v373 = vld [vmem:[%s2 + $0x8] sm:$0xf]
    %v374 = vld [vmem:[%s2 + $0xc] sm:$0xf]
    %v379 = vunpack.c.l.b16 %v371
    %v380 = vunpack.c.l.b16 %v372
    %v381 = vunpack.c.l.b16 %v373
    %v382 = vunpack.c.l.b16 %v374
    %v383 = vpack.c.b16 %v380, %v379
    %v384 = vpack.c.b16 %v382, %v381
    %vm387 = vcmask 261120
    %v389 = vsel %vm387, %v370, 0
    %391 = vmatpush.bf16.msra.mxu0 0
    %392 = vmatpush.bf16.msra.mxu0 0
    %393 = vmatpush.bf16.msra.mxu0 0
    %394 = vmatpush.bf16.msra.mxu0 0
    %395 = vmatpush.bf16.msra.mxu0 0
    %396 = vmatpush.bf16.msra.mxu0 0
    %397 = vmatpush.bf16.msra.mxu0 %v384
    %398 = vmatpush.bf16.msra.mxu0 %v383
    %399 = vmatmul.bf16.gmra.mxu0 %v389
    %v400 = vpop.f32.mrf.mxu0
    %v401 = vadd.f32 0.0, %v400
    %v402 = vpop.f32.mrf.mxu0
    %403 = vdwg.mxu0
    %v408 = vunpack.c.l.b16 %v212
    %v409 = vunpack.c.l.b16 %v213
    %v410 = vunpack.c.l.b16 %v214
    %v411 = vunpack.c.l.b16 %v215
    %v412 = vpack.c.b16 %v409, %v408
    %v413 = vpack.c.b16 %v411, %v410
    %v417 = vsel %vm387, %v211, 0
    %419 = vmatpush.bf16.msra.mxu0 0
    %420 = vmatpush.bf16.msra.mxu0 0
    %421 = vmatpush.bf16.msra.mxu0 0
    %422 = vmatpush.bf16.msra.mxu0 0
    %423 = vmatpush.bf16.msra.mxu0 0
    %424 = vmatpush.bf16.msra.mxu0 0
    %425 = vmatpush.bf16.msra.mxu0 %v413
    %426 = vmatpush.bf16.msra.mxu0 %v412
    %427 = vmatmul.bf16.gmra.mxu0 %v417
    %v428 = vpop.f32.mrf.mxu0
    %v429 = vadd.f32 %v401, %v428
    %v430 = vpop.f32.mrf.mxu0
    %431 = vdwg.mxu0
    %v432 = vld [vmem:[%s3] sm:$0x1]
    %v434 = vperm.slane %v432, 0
    %v436 = vadd.f32 %v429, %v434
    %v437 = vsub.f32 0.0, %v436
    %v438 = vmul.f32 %v437, 1.442695
    %v439 = vpow.pop %v438
    %v440 = vadd.f32 %v439, 1.0
    %v441 = vrcp.pop %v440
    %v442 = vmul.f32 %v436, %v441
    %v443 = vpack.c.bf16 %v442, %v442
    %v444 = vld [vmem:[%s4] sm:$0xff]
    %v445 = vld [vmem:[%s4 + $0x8] sm:$0xff]
    %v446 = vld [vmem:[%s4 + $0x10] sm:$0xff]
    %v447 = vld [vmem:[%s4 + $0x18] sm:$0xff]
    %v448 = vld [vmem:[%s4 + $0x20] sm:$0xff]
    %v449 = vld [vmem:[%s4 + $0x28] sm:$0xff]
    %v450 = vld [vmem:[%s4 + $0x30] sm:$0xff]
    %v451 = vld [vmem:[%s4 + $0x38] sm:$0xff]
    %v452 = vld [vmem:[%s5] sm:$0x3]
    %v454 = vperm.slane %v452, 0
    %v455 = vperm.slane %v452, 1
    %v466 = vunpack.c.l.b16 %v444
    %v467 = vunpack.c.h.b16 %v444
    %v468 = vunpack.c.l.b16 %v445
    %v469 = vunpack.c.h.b16 %v445
    %v470 = vunpack.c.l.b16 %v446
    %v471 = vunpack.c.h.b16 %v446
    %v472 = vunpack.c.l.b16 %v447
    %v473 = vunpack.c.h.b16 %v447
    %v474 = vunpack.c.l.b16 %v448
    %v475 = vunpack.c.h.b16 %v448
    %v476 = vunpack.c.l.b16 %v449
    %v477 = vunpack.c.h.b16 %v449
    %v478 = vunpack.c.l.b16 %v450
    %v479 = vunpack.c.h.b16 %v450
    %v480 = vunpack.c.l.b16 %v451
    %v481 = vunpack.c.h.b16 %v451
    %v482 = vpack.c.b16 %v468, %v466
    %v483 = vpack.c.b16 %v469, %v467
    %v484 = vpack.c.b16 %v472, %v470
    %v485 = vpack.c.b16 %v473, %v471
    %v486 = vpack.c.b16 %v476, %v474
    %v487 = vpack.c.b16 %v477, %v475
    %v488 = vpack.c.b16 %v480, %v478
    %v489 = vpack.c.b16 %v481, %v479
    %vm498 = vcmask 523264
    %v500 = vsel %vm498, %v443, 0
    %502 = vmatpush.bf16.msra.mxu0 0
    %503 = vmatpush.bf16.msra.mxu0 0
    %504 = vmatpush.bf16.msra.mxu0 0
    %505 = vmatpush.bf16.msra.mxu0 0
    %506 = vmatpush.bf16.msra.mxu0 %v488
    %507 = vmatpush.bf16.msra.mxu0 %v486
    %508 = vmatpush.bf16.msra.mxu0 %v484
    %509 = vmatpush.bf16.msra.mxu0 %v482
    %510 = vmatmul.bf16.gmra.mxu0 %v500
    %v511 = vpop.f32.mrf.mxu0
    %v512 = vadd.f32 %v454, %v511
    %v513 = vpop.f32.mrf.mxu0
    %514 = vdwg.mxu0
    %515 = vmatpush.bf16.msra.mxu0 0
    %516 = vmatpush.bf16.msra.mxu0 0
    %517 = vmatpush.bf16.msra.mxu0 0
    %518 = vmatpush.bf16.msra.mxu0 0
    %519 = vmatpush.bf16.msra.mxu0 %v489
    %520 = vmatpush.bf16.msra.mxu0 %v487
    %521 = vmatpush.bf16.msra.mxu0 %v485
    %522 = vmatpush.bf16.msra.mxu0 %v483
    %523 = vmatmul.bf16.gmra.mxu0 %v500
    %v524 = vpop.f32.mrf.mxu0
    %v525 = vadd.f32 %v455, %v524
    %v526 = vpop.f32.mrf.mxu0
    %527 = vdwg.mxu0
    %v528 = vld [vmem:[%s6] sm:$0xff]
    %v529 = vld [vmem:[%s6 + $0x8] sm:$0xff]
    %v530 = vld [vmem:[%s6 + $0x10] sm:$0xff]
    %v531 = vld [vmem:[%s6 + $0x18] sm:$0xff]
    %v532 = vrot.slane %v528, 7
    %v533 = vrot.slane %v529, 7
    %v534 = vrot.slane %v530, 7
    %v535 = vrot.slane %v531, 7
    %v536 = vlaneseq
    %v537 = vshrl.u32 %v536, 7
    %vm538 = vcmp.lt.s32.totalorder %v537, 1
    %v539 = vsel %vm538, %v534, %v535
    %v540 = vsel %vm538, %v533, %v534
    %v541 = vsel %vm538, %v532, %v533
    %v542 = vsel %vm538, %v535, %v532
    %v543 = vadd.s32 %v537, 8
    %v544 = vadd.s32 %v537, 16
    %v545 = vadd.s32 %v537, 24
    %vm546 = vcmp.lt.s32.totalorder %v537, 0
    %v547 = vsub.s32 0, %v537
    %v548 = vsel %vm546, %v547, %v537
    %v549 = vshrl.u32 %v548, 4
    %v550 = vand.u32 %v548, 15
    %v551 = vsub.s32 0, %v550
    %v552 = vsel %vm546, %v551, %v550
    %vm553 = vcmp.lt.s32.totalorder %v543, 0
    %v554 = vsub.s32 0, %v543
    %v555 = vsel %vm553, %v554, %v543
    %v556 = vshrl.u32 %v555, 4
    %v557 = vand.u32 %v555, 15
    %v558 = vsub.s32 0, %v557
    %v559 = vsel %vm553, %v558, %v557
    %vm560 = vcmp.lt.s32.totalorder %v544, 0
    %v561 = vsub.s32 0, %v544
    %v562 = vsel %vm560, %v561, %v544
    %v563 = vshrl.u32 %v562, 4
    %v564 = vand.u32 %v562, 15
    %v565 = vsub.s32 0, %v564
    %v566 = vsel %vm560, %v565, %v564
    %vm567 = vcmp.lt.s32.totalorder %v545, 0
    %v568 = vsub.s32 0, %v545
    %v569 = vsel %vm567, %v568, %v545
    %v570 = vshrl.u32 %v569, 4
    %v571 = vand.u32 %v569, 15
    %v572 = vsub.s32 0, %v571
    %v573 = vsel %vm567, %v572, %v571
    %vm574 = vcmp.ne.s32.totalorder %v552, 0
    %vm575 = vcmp.ne.s32.totalorder %v559, 0
    %vm576 = vcmp.ne.s32.totalorder %v566, 0
    %vm577 = vcmp.ne.s32.totalorder %v573, 0
    %vm578 = vcmp.lt.s32.totalorder %v552, 0
    %vm579 = vcmp.lt.s32.totalorder %v559, 0
    %vm580 = vcmp.lt.s32.totalorder %v566, 0
    %vm581 = vcmp.lt.s32.totalorder %v573, 0
    %vm582 = vmand %vm578, %vm574
    %vm583 = vmand %vm579, %vm575
    %vm584 = vmand %vm580, %vm576
    %vm585 = vmand %vm581, %vm577
    %v586 = vadd.s32 %v552, 16
    %v587 = vadd.s32 %v559, 16
    %v588 = vadd.s32 %v566, 16
    %v589 = vadd.s32 %v573, 16
    %v590 = vsel %vm582, %v586, %v552
    %v591 = vsel %vm583, %v587, %v559
    %v592 = vsel %vm584, %v588, %v566
    %v593 = vsel %vm585, %v589, %v573
    %vm594 = vcmp.ge.s32.totalorder %v590, 1
    %vm595 = vcmp.ge.s32.totalorder %v591, 1
    %vm596 = vcmp.ge.s32.totalorder %v592, 1
    %vm597 = vcmp.ge.s32.totalorder %v593, 1
    %v598 = vsel %vm594, 1, 0
    %v599 = vsel %vm595, 1, 0
    %v600 = vsel %vm596, 1, 0
    %v601 = vsel %vm597, 1, 0
    %vm602 = vcmp.eq.s32.totalorder %v598, 1
    %vm603 = vcmp.eq.s32.totalorder %v599, 1
    %vm604 = vcmp.eq.s32.totalorder %v600, 1
    %vm605 = vcmp.eq.s32.totalorder %v601, 1
    %v606 = vsel %vm602, %v542, 0.0
    %v607 = vsel %vm603, %v541, 0.0
    %v608 = vsel %vm604, %v540, 0.0
    %v609 = vsel %vm605, %v539, 0.0
    %v610 = vpack.c.bf16 %v607, %v606
    %v611 = vpack.c.bf16 %v609, %v608
    %v612 = vrot.slane %v528, 1
    %v613 = vrot.slane %v529, 1
    %v614 = vrot.slane %v530, 1
    %v615 = vrot.slane %v531, 1
    %vm616 = vcmp.lt.s32.totalorder %v537, 7
    %v617 = vsel %vm616, %v614, %v615
    %v618 = vsel %vm616, %v613, %v614
    %v619 = vsel %vm616, %v612, %v613
    %v620 = vsel %vm616, %v615, %v612
    %vm621 = vcmp.lt.s32.totalorder %v590, 15
    %vm622 = vcmp.lt.s32.totalorder %v591, 15
    %vm623 = vcmp.lt.s32.totalorder %v592, 15
    %vm624 = vcmp.lt.s32.totalorder %v593, 15
    %v625 = vsel %vm621, 1, 0
    %v626 = vsel %vm622, 1, 0
    %v627 = vsel %vm623, 1, 0
    %v628 = vsel %vm624, 1, 0
    %vm629 = vcmp.eq.s32.totalorder %v625, 1
    %vm630 = vcmp.eq.s32.totalorder %v626, 1
    %vm631 = vcmp.eq.s32.totalorder %v627, 1
    %vm632 = vcmp.eq.s32.totalorder %v628, 1
    %v633 = vsel %vm629, %v619, 0.0
    %v634 = vsel %vm630, %v618, 0.0
    %v635 = vsel %vm631, %v617, 0.0
    %v636 = vsel %vm632, %v620, 0.0
    %v637 = vpack.c.bf16 %v634, %v633
    %v638 = vpack.c.bf16 %v636, %v635
    %v639 = vpack.c.bf16 %v529, %v528
    %v640 = vpack.c.bf16 %v531, %v530
    %s641 = scalar_lea.vmem [#allocation2], 128
    %v642 = vld [vmem:[%s641] sm:$0xff]
    %v643 = vld [vmem:[%s641 + $0x8] sm:$0xff]
    %v644 = vld [vmem:[%s641 + $0x10] sm:$0xff]
    %v645 = vld [vmem:[%s641 + $0x18] sm:$0xff]
    %v646 = vld [vmem:[%s641 + $0x20] sm:$0xff]
    %v647 = vld [vmem:[%s641 + $0x28] sm:$0xff]
    %v648 = vld [vmem:[%s641 + $0x30] sm:$0xff]
    %v649 = vld [vmem:[%s641 + $0x38] sm:$0xff]
    %v650 = vld [vmem:[%s641 + $0x40] sm:$0xff]
    %v651 = vld [vmem:[%s641 + $0x48] sm:$0xff]
    %v652 = vld [vmem:[%s641 + $0x50] sm:$0xff]
    %v653 = vld [vmem:[%s641 + $0x58] sm:$0xff]
    %v654 = vld [vmem:[%s641 + $0x60] sm:$0xff]
    %v655 = vld [vmem:[%s641 + $0x68] sm:$0xff]
    %v656 = vld [vmem:[%s641 + $0x70] sm:$0xff]
    %v657 = vld [vmem:[%s641 + $0x78] sm:$0xff]
    %v658 = vld [vmem:[#allocation2] sm:$0xff]
    %v659 = vld [vmem:[#allocation2 + $0x8] sm:$0xff]
    %v660 = vld [vmem:[#allocation2 + $0x10] sm:$0xff]
    %v661 = vld [vmem:[#allocation2 + $0x18] sm:$0xff]
    %v662 = vld [vmem:[#allocation2 + $0x20] sm:$0xff]
    %v663 = vld [vmem:[#allocation2 + $0x28] sm:$0xff]
    %v664 = vld [vmem:[#allocation2 + $0x30] sm:$0xff]
    %v665 = vld [vmem:[#allocation2 + $0x38] sm:$0xff]
    %v666 = vld [vmem:[#allocation2 + $0x40] sm:$0xff]
    %v667 = vld [vmem:[#allocation2 + $0x48] sm:$0xff]
    %v668 = vld [vmem:[#allocation2 + $0x50] sm:$0xff]
    %v669 = vld [vmem:[#allocation2 + $0x58] sm:$0xff]
    %v670 = vld [vmem:[#allocation2 + $0x60] sm:$0xff]
    %v671 = vld [vmem:[#allocation2 + $0x68] sm:$0xff]
    %v672 = vld [vmem:[#allocation2 + $0x70] sm:$0xff]
    %v673 = vld [vmem:[#allocation2 + $0x78] sm:$0xff]
    %v690 = vunpack.c.l.b16 %v658
    %v691 = vunpack.c.h.b16 %v658
    %v692 = vunpack.c.l.b16 %v659
    %v693 = vunpack.c.h.b16 %v659
    %v694 = vunpack.c.l.b16 %v660
    %v695 = vunpack.c.h.b16 %v660
    %v696 = vunpack.c.l.b16 %v661
    %v697 = vunpack.c.h.b16 %v661
    %v698 = vunpack.c.l.b16 %v662
    %v699 = vunpack.c.h.b16 %v662
    %v700 = vunpack.c.l.b16 %v663
    %v701 = vunpack.c.h.b16 %v663
    %v702 = vunpack.c.l.b16 %v664
    %v703 = vunpack.c.h.b16 %v664
    %v704 = vunpack.c.l.b16 %v665
    %v705 = vunpack.c.h.b16 %v665
    %v706 = vunpack.c.l.b16 %v666
    %v707 = vunpack.c.h.b16 %v666
    %v708 = vunpack.c.l.b16 %v667
    %v709 = vunpack.c.h.b16 %v667
    %v710 = vunpack.c.l.b16 %v668
    %v711 = vunpack.c.h.b16 %v668
    %v712 = vunpack.c.l.b16 %v669
    %v713 = vunpack.c.h.b16 %v669
    %v714 = vunpack.c.l.b16 %v670
    %v715 = vunpack.c.h.b16 %v670
    %v716 = vunpack.c.l.b16 %v671
    %v717 = vunpack.c.h.b16 %v671
    %v718 = vunpack.c.l.b16 %v672
    %v719 = vunpack.c.h.b16 %v672
    %v720 = vunpack.c.l.b16 %v673
    %v721 = vunpack.c.h.b16 %v673
    %v722 = vpack.c.b16 %v692, %v690
    %v723 = vpack.c.b16 %v693, %v691
    %v724 = vpack.c.b16 %v696, %v694
    %v725 = vpack.c.b16 %v697, %v695
    %v726 = vpack.c.b16 %v700, %v698
    %v727 = vpack.c.b16 %v701, %v699
    %v728 = vpack.c.b16 %v704, %v702
    %v729 = vpack.c.b16 %v705, %v703
    %v730 = vpack.c.b16 %v708, %v706
    %v731 = vpack.c.b16 %v709, %v707
    %v732 = vpack.c.b16 %v712, %v710
    %v733 = vpack.c.b16 %v713, %v711
    %v734 = vpack.c.b16 %v716, %v714
    %v735 = vpack.c.b16 %v717, %v715
    %v736 = vpack.c.b16 %v720, %v718
    %v737 = vpack.c.b16 %v721, %v719
    %754 = vmatpush.bf16.msra.mxu0 %v736
    %755 = vmatpush.bf16.msra.mxu0 %v734
    %756 = vmatpush.bf16.msra.mxu0 %v732
    %757 = vmatpush.bf16.msra.mxu0 %v730
    %758 = vmatpush.bf16.msra.mxu0 %v728
    %759 = vmatpush.bf16.msra.mxu0 %v726
    %760 = vmatpush.bf16.msra.mxu0 %v724
    %761 = vmatpush.bf16.msra.mxu0 %v722
    %762 = vmatmul.bf16.gmra.mxu0 %v610
    %v763 = vpop.f32.mrf.mxu0
    %v764 = vadd.f32 0.0, %v763
    %v765 = vpop.f32.mrf.mxu0
    %v766 = vadd.f32 0.0, %v765
    %767 = vmatmul.bf16.gmra.mxu0 %v611
    %v768 = vpop.f32.mrf.mxu0
    %v769 = vadd.f32 0.0, %v768
    %v770 = vpop.f32.mrf.mxu0
    %v771 = vadd.f32 0.0, %v770
    %772 = vdwg.mxu0
    %773 = vmatpush.bf16.msra.mxu0 %v737
    %774 = vmatpush.bf16.msra.mxu0 %v735
    %775 = vmatpush.bf16.msra.mxu0 %v733
    %776 = vmatpush.bf16.msra.mxu0 %v731
    %777 = vmatpush.bf16.msra.mxu0 %v729
    %778 = vmatpush.bf16.msra.mxu0 %v727
    %779 = vmatpush.bf16.msra.mxu0 %v725
    %780 = vmatpush.bf16.msra.mxu0 %v723
    %781 = vmatmul.bf16.gmra.mxu0 %v610
    %v782 = vpop.f32.mrf.mxu0
    %v783 = vadd.f32 0.0, %v782
    %v784 = vpop.f32.mrf.mxu0
    %v785 = vadd.f32 0.0, %v784
    %786 = vmatmul.bf16.gmra.mxu0 %v611
    %v787 = vpop.f32.mrf.mxu0
    %v788 = vadd.f32 0.0, %v787
    %v789 = vpop.f32.mrf.mxu0
    %v790 = vadd.f32 0.0, %v789
    %791 = vdwg.mxu0
    %v808 = vunpack.c.l.b16 %v642
    %v809 = vunpack.c.h.b16 %v642
    %v810 = vunpack.c.l.b16 %v643
    %v811 = vunpack.c.h.b16 %v643
    %v812 = vunpack.c.l.b16 %v644
    %v813 = vunpack.c.h.b16 %v644
    %v814 = vunpack.c.l.b16 %v645
    %v815 = vunpack.c.h.b16 %v645
    %v816 = vunpack.c.l.b16 %v646
    %v817 = vunpack.c.h.b16 %v646
    %v818 = vunpack.c.l.b16 %v647
    %v819 = vunpack.c.h.b16 %v647
    %v820 = vunpack.c.l.b16 %v648
    %v821 = vunpack.c.h.b16 %v648
    %v822 = vunpack.c.l.b16 %v649
    %v823 = vunpack.c.h.b16 %v649
    %v824 = vunpack.c.l.b16 %v650
    %v825 = vunpack.c.h.b16 %v650
    %v826 = vunpack.c.l.b16 %v651
    %v827 = vunpack.c.h.b16 %v651
    %v828 = vunpack.c.l.b16 %v652
    %v829 = vunpack.c.h.b16 %v652
    %v830 = vunpack.c.l.b16 %v653
    %v831 = vunpack.c.h.b16 %v653
    %v832 = vunpack.c.l.b16 %v654
    %v833 = vunpack.c.h.b16 %v654
    %v834 = vunpack.c.l.b16 %v655
    %v835 = vunpack.c.h.b16 %v655
    %v836 = vunpack.c.l.b16 %v656
    %v837 = vunpack.c.h.b16 %v656
    %v838 = vunpack.c.l.b16 %v657
    %v839 = vunpack.c.h.b16 %v657
    %v840 = vpack.c.b16 %v810, %v808
    %v841 = vpack.c.b16 %v811, %v809
    %v842 = vpack.c.b16 %v814, %v812
    %v843 = vpack.c.b16 %v815, %v813
    %v844 = vpack.c.b16 %v818, %v816
    %v845 = vpack.c.b16 %v819, %v817
    %v846 = vpack.c.b16 %v822, %v820
    %v847 = vpack.c.b16 %v823, %v821
    %v848 = vpack.c.b16 %v826, %v824
    %v849 = vpack.c.b16 %v827, %v825
    %v850 = vpack.c.b16 %v830, %v828
    %v851 = vpack.c.b16 %v831, %v829
    %v852 = vpack.c.b16 %v834, %v832
    %v853 = vpack.c.b16 %v835, %v833
    %v854 = vpack.c.b16 %v838, %v836
    %v855 = vpack.c.b16 %v839, %v837
    %872 = vmatpush.bf16.msra.mxu0 %v854
    %873 = vmatpush.bf16.msra.mxu0 %v852
    %874 = vmatpush.bf16.msra.mxu0 %v850
    %875 = vmatpush.bf16.msra.mxu0 %v848
    %876 = vmatpush.bf16.msra.mxu0 %v846
    %877 = vmatpush.bf16.msra.mxu0 %v844
    %878 = vmatpush.bf16.msra.mxu0 %v842
    %879 = vmatpush.bf16.msra.mxu0 %v840
    %880 = vmatmul.bf16.gmra.mxu0 %v639
    %v881 = vpop.f32.mrf.mxu0
    %v882 = vadd.f32 %v764, %v881
    %v883 = vpop.f32.mrf.mxu0
    %v884 = vadd.f32 %v766, %v883
    %885 = vmatmul.bf16.gmra.mxu0 %v640
    %v886 = vpop.f32.mrf.mxu0
    %v887 = vadd.f32 %v769, %v886
    %v888 = vpop.f32.mrf.mxu0
    %v889 = vadd.f32 %v771, %v888
    %890 = vdwg.mxu0
    %891 = vmatpush.bf16.msra.mxu0 %v855
    %892 = vmatpush.bf16.msra.mxu0 %v853
    %893 = vmatpush.bf16.msra.mxu0 %v851
    %894 = vmatpush.bf16.msra.mxu0 %v849
    %895 = vmatpush.bf16.msra.mxu0 %v847
    %896 = vmatpush.bf16.msra.mxu0 %v845
    %897 = vmatpush.bf16.msra.mxu0 %v843
    %898 = vmatpush.bf16.msra.mxu0 %v841
    %899 = vmatmul.bf16.gmra.mxu0 %v639
    %v900 = vpop.f32.mrf.mxu0
    %v901 = vadd.f32 %v783, %v900
    %v902 = vpop.f32.mrf.mxu0
    %v903 = vadd.f32 %v785, %v902
    %904 = vmatmul.bf16.gmra.mxu0 %v640
    %v905 = vpop.f32.mrf.mxu0
    %v906 = vadd.f32 %v788, %v905
    %v907 = vpop.f32.mrf.mxu0
    %v908 = vadd.f32 %v790, %v907
    %909 = vdwg.mxu0
    %s910 = scalar_lea.vmem [#allocation2], 256
    %v911 = vld [vmem:[%s910] sm:$0xff]
    %v912 = vld [vmem:[%s910 + $0x8] sm:$0xff]
    %v913 = vld [vmem:[%s910 + $0x10] sm:$0xff]
    %v914 = vld [vmem:[%s910 + $0x18] sm:$0xff]
    %v915 = vld [vmem:[%s910 + $0x20] sm:$0xff]
    %v916 = vld [vmem:[%s910 + $0x28] sm:$0xff]
    %v917 = vld [vmem:[%s910 + $0x30] sm:$0xff]
    %v918 = vld [vmem:[%s910 + $0x38] sm:$0xff]
    %v919 = vld [vmem:[%s910 + $0x40] sm:$0xff]
    %v920 = vld [vmem:[%s910 + $0x48] sm:$0xff]
    %v921 = vld [vmem:[%s910 + $0x50] sm:$0xff]
    %v922 = vld [vmem:[%s910 + $0x58] sm:$0xff]
    %v923 = vld [vmem:[%s910 + $0x60] sm:$0xff]
    %v924 = vld [vmem:[%s910 + $0x68] sm:$0xff]
    %v925 = vld [vmem:[%s910 + $0x70] sm:$0xff]
    %v926 = vld [vmem:[%s910 + $0x78] sm:$0xff]
    %v943 = vunpack.c.l.b16 %v911
    %v944 = vunpack.c.h.b16 %v911
    %v945 = vunpack.c.l.b16 %v912
    %v946 = vunpack.c.h.b16 %v912
    %v947 = vunpack.c.l.b16 %v913
    %v948 = vunpack.c.h.b16 %v913
    %v949 = vunpack.c.l.b16 %v914
    %v950 = vunpack.c.h.b16 %v914
    %v951 = vunpack.c.l.b16 %v915
    %v952 = vunpack.c.h.b16 %v915
    %v953 = vunpack.c.l.b16 %v916
    %v954 = vunpack.c.h.b16 %v916
    %v955 = vunpack.c.l.b16 %v917
    %v956 = vunpack.c.h.b16 %v917
    %v957 = vunpack.c.l.b16 %v918
    %v958 = vunpack.c.h.b16 %v918
    %v959 = vunpack.c.l.b16 %v919
    %v960 = vunpack.c.h.b16 %v919
    %v961 = vunpack.c.l.b16 %v920
    %v962 = vunpack.c.h.b16 %v920
    %v963 = vunpack.c.l.b16 %v921
    %v964 = vunpack.c.h.b16 %v921
    %v965 = vunpack.c.l.b16 %v922
    %v966 = vunpack.c.h.b16 %v922
    %v967 = vunpack.c.l.b16 %v923
    %v968 = vunpack.c.h.b16 %v923
    %v969 = vunpack.c.l.b16 %v924
    %v970 = vunpack.c.h.b16 %v924
    %v971 = vunpack.c.l.b16 %v925
    %v972 = vunpack.c.h.b16 %v925
    %v973 = vunpack.c.l.b16 %v926
    %v974 = vunpack.c.h.b16 %v926
    %v975 = vpack.c.b16 %v945, %v943
    %v976 = vpack.c.b16 %v946, %v944
    %v977 = vpack.c.b16 %v949, %v947
    %v978 = vpack.c.b16 %v950, %v948
    %v979 = vpack.c.b16 %v953, %v951
    %v980 = vpack.c.b16 %v954, %v952
    %v981 = vpack.c.b16 %v957, %v955
    %v982 = vpack.c.b16 %v958, %v956
    %v983 = vpack.c.b16 %v961, %v959
    %v984 = vpack.c.b16 %v962, %v960
    %v985 = vpack.c.b16 %v965, %v963
    %v986 = vpack.c.b16 %v966, %v964
    %v987 = vpack.c.b16 %v969, %v967
    %v988 = vpack.c.b16 %v970, %v968
    %v989 = vpack.c.b16 %v973, %v971
    %v990 = vpack.c.b16 %v974, %v972
    %1007 = vmatpush.bf16.msra.mxu0 %v989
    %1008 = vmatpush.bf16.msra.mxu0 %v987
    %1009 = vmatpush.bf16.msra.mxu0 %v985
    %1010 = vmatpush.bf16.msra.mxu0 %v983
    %1011 = vmatpush.bf16.msra.mxu0 %v981
    %1012 = vmatpush.bf16.msra.mxu0 %v979
    %1013 = vmatpush.bf16.msra.mxu0 %v977
    %1014 = vmatpush.bf16.msra.mxu0 %v975
    %1015 = vmatmul.bf16.gmra.mxu0 %v637
    %v1016 = vpop.f32.mrf.mxu0
    %v1017 = vadd.f32 0.0, %v1016
    %v1018 = vpop.f32.mrf.mxu0
    %v1019 = vadd.f32 0.0, %v1018
    %1020 = vmatmul.bf16.gmra.mxu0 %v638
    %v1021 = vpop.f32.mrf.mxu0
    %v1022 = vadd.f32 0.0, %v1021
    %v1023 = vpop.f32.mrf.mxu0
    %v1024 = vadd.f32 0.0, %v1023
    %1025 = vdwg.mxu0
    %1026 = vmatpush.bf16.msra.mxu0 %v990
    %1027 = vmatpush.bf16.msra.mxu0 %v988
    %1028 = vmatpush.bf16.msra.mxu0 %v986
    %1029 = vmatpush.bf16.msra.mxu0 %v984
    %1030 = vmatpush.bf16.msra.mxu0 %v982
    %1031 = vmatpush.bf16.msra.mxu0 %v980
    %1032 = vmatpush.bf16.msra.mxu0 %v978
    %1033 = vmatpush.bf16.msra.mxu0 %v976
    %1034 = vmatmul.bf16.gmra.mxu0 %v637
    %v1035 = vpop.f32.mrf.mxu0
    %v1036 = vadd.f32 0.0, %v1035
    %v1037 = vpop.f32.mrf.mxu0
    %v1038 = vadd.f32 0.0, %v1037
    %1039 = vmatmul.bf16.gmra.mxu0 %v638
    %v1040 = vpop.f32.mrf.mxu0
    %v1041 = vadd.f32 0.0, %v1040
    %v1042 = vpop.f32.mrf.mxu0
    %v1043 = vadd.f32 0.0, %v1042
    %1044 = vdwg.mxu0
    %v1045 = vadd.f32 %v882, %v1017
    %v1046 = vadd.f32 %v901, %v1036
    %v1047 = vadd.f32 %v884, %v1019
    %v1048 = vadd.f32 %v903, %v1038
    %v1049 = vadd.f32 %v887, %v1022
    %v1050 = vadd.f32 %v906, %v1041
    %v1051 = vadd.f32 %v889, %v1024
    %v1052 = vadd.f32 %v908, %v1043
    %v1053 = vld [vmem:[%s8] sm:$0x3]
    %v1055 = vperm.slane %v1053, 0
    %v1056 = vperm.slane %v1053, 1
    %v1059 = vadd.f32 %v1045, %v1055
    %v1060 = vadd.f32 %v1046, %v1056
    %v1061 = vadd.f32 %v1047, %v1055
    %v1062 = vadd.f32 %v1048, %v1056
    %v1063 = vadd.f32 %v1049, %v1055
    %v1064 = vadd.f32 %v1050, %v1056
    %v1065 = vadd.f32 %v1051, %v1055
    %v1066 = vadd.f32 %v1052, %v1056
    %v1067 = vadd.f32 %v1059, %v1061
    %v1068 = vadd.f32 %v1067, %v1063
    %v1069 = vadd.f32 %v1068, %v1065
    %v1070 = vrot.slane %v1069, 4
    %v1071 = vadd.f32 %v1069, %v1070
    %v1072 = vrot.slane %v1071, 2
    %v1073 = vadd.f32 %v1071, %v1072
    %v1074 = vrot.slane %v1073, 1
    %v1075 = vadd.f32 %v1073, %v1074
    %v1076 = vadd.f32 %v1060, %v1062
    %v1077 = vadd.f32 %v1076, %v1064
    %v1078 = vadd.f32 %v1077, %v1066
    %v1079 = vrot.slane %v1078, 4
    %v1080 = vadd.f32 %v1078, %v1079
    %v1081 = vrot.slane %v1080, 2
    %v1082 = vadd.f32 %v1080, %v1081
    %v1083 = vrot.slane %v1082, 1
    %v1084 = vadd.f32 %v1082, %v1083
    %v1085 = vrcp.pop 32.0
    %v1086 = vmul.f32 32.0, %v1085
    %v1087 = vsub.f32 1.0, %v1086
    %v1088 = vmul.f32 %v1085, %v1087
    %v1089 = vadd.f32 %v1085, %v1088
    %vm1090 = vweird.f32 %v1085
    %v1091 = vsel %vm1090, %v1085, %v1089
    %v1092 = vmul.f32 %v1075, %v1091
    %v1093 = vmul.f32 %v1084, %v1091
    %v1094 = vsub.f32 %v1059, %v1092
    %v1095 = vsub.f32 %v1060, %v1093
    %v1096 = vsub.f32 %v1061, %v1092
    %v1097 = vsub.f32 %v1062, %v1093
    %v1098 = vsub.f32 %v1063, %v1092
    %v1099 = vsub.f32 %v1064, %v1093
    %v1100 = vsub.f32 %v1065, %v1092
    %v1101 = vsub.f32 %v1066, %v1093
    %v1102 = vmul.f32 %v1094, %v1094
    %v1103 = vmul.f32 %v1095, %v1095
    %v1104 = vmul.f32 %v1096, %v1096
    %v1105 = vmul.f32 %v1097, %v1097
    %v1106 = vmul.f32 %v1098, %v1098
    %v1107 = vmul.f32 %v1099, %v1099
    %v1108 = vmul.f32 %v1100, %v1100
    %v1109 = vmul.f32 %v1101, %v1101
    %v1110 = vadd.f32 %v1102, %v1104
    %v1111 = vadd.f32 %v1110, %v1106
    %v1112 = vadd.f32 %v1111, %v1108
    %v1113 = vrot.slane %v1112, 4
    %v1114 = vadd.f32 %v1112, %v1113
    %v1115 = vrot.slane %v1114, 2
    %v1116 = vadd.f32 %v1114, %v1115
    %v1117 = vrot.slane %v1116, 1
    %v1118 = vadd.f32 %v1116, %v1117
    %v1119 = vadd.f32 %v1103, %v1105
    %v1120 = vadd.f32 %v1119, %v1107
    %v1121 = vadd.f32 %v1120, %v1109
    %v1122 = vrot.slane %v1121, 4
    %v1123 = vadd.f32 %v1121, %v1122
    %v1124 = vrot.slane %v1123, 2
    %v1125 = vadd.f32 %v1123, %v1124
    %v1126 = vrot.slane %v1125, 1
    %v1127 = vadd.f32 %v1125, %v1126
    %v1128 = vmul.f32 %v1118, %v1091
    %v1129 = vmul.f32 %v1127, %v1091
    %v1130 = vld [vmem:[%s9] sm:$0x3]
    %v1131 = vadd.f32 %v1128, 1e-05
    %v1132 = vadd.f32 %v1129, 1e-05
    %v1133 = vrsqrt.pop %v1131
    %v1134 = vmul.f32 %v1133, %v1131
    %v1135 = vmul.f32 %v1134, %v1133
    %v1136 = vmul.f32 0.5, %v1135
    %v1137 = vsub.f32 1.5, %v1136
    %v1138 = vmul.f32 %v1133, %v1137
    %vm1139 = vweird.f32 %v1131
    %vm1140 = vweird.f32 %v1133
    %vm1141 = vmor %vm1139, %vm1140
    %v1142 = vsel %vm1141, %v1133, %v1138
    %v1143 = vrsqrt.pop %v1132
    %v1144 = vmul.f32 %v1143, %v1132
    %v1145 = vmul.f32 %v1144, %v1143
    %v1146 = vmul.f32 0.5, %v1145
    %v1147 = vsub.f32 1.5, %v1146
    %v1148 = vmul.f32 %v1143, %v1147
    %vm1149 = vweird.f32 %v1132
    %vm1150 = vweird.f32 %v1143
    %vm1151 = vmor %vm1149, %vm1150
    %v1152 = vsel %vm1151, %v1143, %v1148
    %v1155 = vrot.slane %v1152, 7
    %vm1156 = vcmask 1040384
    %v1157 = vsel %vm1156, %v1142, %v1155
    %v1159 = vmul.f32 %v1130, %v1157
    %v1161 = vperm.slane %v1159, 0
    %v1162 = vperm.slane %v1159, 1
    %v1165 = vmul.f32 %v1094, %v1161
    %v1166 = vmul.f32 %v1095, %v1162
    %v1167 = vmul.f32 %v1096, %v1161
    %v1168 = vmul.f32 %v1097, %v1162
    %v1169 = vmul.f32 %v1098, %v1161
    %v1170 = vmul.f32 %v1099, %v1162
    %v1171 = vmul.f32 %v1100, %v1161
    %v1172 = vmul.f32 %v1101, %v1162
    %v1173 = vld [vmem:[%s10] sm:$0x3]
    %v1175 = vperm.slane %v1173, 0
    %v1176 = vperm.slane %v1173, 1
    %v1179 = vadd.f32 %v1165, %v1175
    %v1180 = vadd.f32 %v1166, %v1176
    %v1181 = vadd.f32 %v1167, %v1175
    %v1182 = vadd.f32 %v1168, %v1176
    %v1183 = vadd.f32 %v1169, %v1175
    %v1184 = vadd.f32 %v1170, %v1176
    %v1185 = vadd.f32 %v1171, %v1175
    %v1186 = vadd.f32 %v1172, %v1176
    %v1187 = vmax.f32 %v1179, 0.0
    %v1188 = vmax.f32 %v1180, 0.0
    %v1189 = vmax.f32 %v1181, 0.0
    %v1190 = vmax.f32 %v1182, 0.0
    %v1191 = vmax.f32 %v1183, 0.0
    %v1192 = vmax.f32 %v1184, 0.0
    %v1193 = vmax.f32 %v1185, 0.0
    %v1194 = vmax.f32 %v1186, 0.0
    %v1197 = vrot.slane %v525, 7
    %v1198 = vsel %vm1156, %v512, %v1197
    %vm1199 = vcmask 1041409
    %v1200 = vsel %vm1199, %v512, %v1197
    %v1201 = vrot.slane %v1200, 1
    %v1202 = vperm.slane %v1198, 0
    %v1203 = vperm.slane %v1198, 1
    %v1204 = vperm.slane %v1201, 0
    %v1205 = vperm.slane %v1201, 1
    %v1210 = vadd.f32 %v1187, %v1202
    %v1211 = vadd.f32 %v1188, %v1203
    %v1212 = vadd.f32 %v1189, %v1202
    %v1213 = vadd.f32 %v1190, %v1203
    %v1214 = vadd.f32 %v1191, %v1204
    %v1215 = vadd.f32 %v1192, %v1205
    %v1216 = vadd.f32 %v1193, %v1204
    %v1217 = vadd.f32 %v1194, %v1205
    %1218 = vst [vmem:[%s11] sm:$0xff] %v1210
    %1219 = vst [vmem:[%s11 + $0x8] sm:$0xff] %v1211
    %1220 = vst [vmem:[%s11 + $0x10] sm:$0xff] %v1212
    %1221 = vst [vmem:[%s11 + $0x18] sm:$0xff] %v1213
    %1222 = vst [vmem:[%s11 + $0x20] sm:$0xff] %v1214
    %1223 = vst [vmem:[%s11 + $0x28] sm:$0xff] %v1215
    %1224 = vst [vmem:[%s11 + $0x30] sm:$0xff] %v1216
    %1225 = vst [vmem:[%s11 + $0x38] sm:$0xff] %v1217
    // Predicated region
    $region50: #{score_net_forward.4} parent=1 // pred_check
      _
    $region51: #{score_net_forward.4} parent=1 // pred_check_branch
      %1227 = sbr.rel (0) target = $region53
    $region52: #{score_net_forward.4} parent=1 // pred_region
      _
    $region53: #{score_net_forward.4} parent=1 // pred_fallthru
      _
    // Predicated region
    $region54: #{score_net_forward.4} parent=1 // pred_check
      _
    $region55: #{score_net_forward.4} parent=1 // pred_check_branch
      %1229 = sbr.rel (0) target = $region57
    $region56: #{score_net_forward.4} parent=1 // pred_region
      _
    $region57: #{score_net_forward.4} parent=1 // pred_fallthru
      _
    %1230 = vsyncpa [#allocation3], 1

// kernel: score_net_forward.5
$region0: #{score_net_forward.5}
  #allocation0 [shape = 'u32[]', space=smem, size = 0x4, offset = 0x4, fixed_abs, tag = 'smem constant byte address 0x4 - core index']
  #allocation1 [shape = 'u32[72,128]{1,0:T(1,128)}', space=vmem, size = 0x9000, scoped, tag = 'internal scratch']
  %s0 = inlined_call_operand.vmem [shape: f32[16,512], index: 0, kind: input, shape index: {}]
  %s1 = inlined_call_operand.hbm [shape: bf16[3,256,384], index: 1, kind: input, shape index: {}]
  %s2 = inlined_call_operand.vmem [shape: f32[1,384], index: 2, kind: input, shape index: {}]
  %s3 = inlined_call_operand.vmem [shape: f32[1,384], index: 3, kind: input, shape index: {}]
  %s4 = inlined_call_operand.vmem [shape: f32[1,384], index: 4, kind: input, shape index: {}]
  %s5 = inlined_call_operand.vmem [shape: f32[16,384], index: 5, kind: output, shape index: {}]
  %s6 = sld [smem:[#allocation0]]
  $region34: #{score_net_forward.5} parent=0
    _
  %s8 = ssub.s32 1, %s6
  %s9 = scalar_select 0, %s8, %s6
  $region1: #{score_net_forward.5} parent=0
    #allocation2 [shape = 'u8[589824]{0}', space=vmem, size = 0x90000, scoped, tag = 'input window, operand 1, single buffered']
    #allocation3 [shape = 's32[1]{0}', space=sflag, size = 0x4, scoped, tag = 'scoped memory for score_net_forward.5']
    %10 = vsyncpa [#allocation3], 0
    // Predicated region
    $region2: #{score_net_forward.5} parent=1 // pred_check
      _
    $region3: #{score_net_forward.5} parent=1 // pred_check_branch
      %12 = sbr.rel (0) target = $region5
    $region4: #{score_net_forward.5} parent=1 // pred_region
      _
    $region5: #{score_net_forward.5} parent=1 // pred_fallthru
      _
    // Predicated region
    $region6: #{score_net_forward.5} parent=1 // pred_check
      _
    $region7: #{score_net_forward.5} parent=1 // pred_check_branch
      %14 = sbr.rel (0) target = $region9
    $region8: #{score_net_forward.5} parent=1 // pred_region
      %16 = vsyncadd [#allocation3], 0
      %s17 = sshll.u32 %s1, 4
      %s18 = int_to_ptr.hbm [resolvable:$true] %s17
      %s19 = sshll.u32 [#allocation2], 4
      %s20 = int_to_ptr.vmem [resolvable:$true] %s19
      %25 = dma.hbm_to_vmem [thread:$0]  %s18, 18432, %s20, [#allocation3], 192, 192, 12
    $region9: #{score_net_forward.5} parent=1 // pred_fallthru
      _
    // Predicated region
    $region10: #{score_net_forward.5} parent=1 // pred_check
      _
    $region11: #{score_net_forward.5} parent=1 // pred_check_branch
      %27 = sbr.rel (0) target = $region13
    $region12: #{score_net_forward.5} parent=1 // pred_region
      _
    $region13: #{score_net_forward.5} parent=1 // pred_fallthru
      _
    // Predicated region
    $region14: #{score_net_forward.5} parent=1 // pred_check
      _
    $region15: #{score_net_forward.5} parent=1 // pred_check_branch
      %29 = sbr.rel (0) target = $region17
    $region16: #{score_net_forward.5} parent=1 // pred_region
      _
    $region17: #{score_net_forward.5} parent=1 // pred_fallthru
      _
    // Predicated region
    $region18: #{score_net_forward.5} parent=1 // pred_check
      _
    $region19: #{score_net_forward.5} parent=1 // pred_check_branch
      %31 = sbr.rel (0) target = $region21
    $region20: #{score_net_forward.5} parent=1 // pred_region
      _
    $region21: #{score_net_forward.5} parent=1 // pred_fallthru
      _
    // Predicated region
    $region22: #{score_net_forward.5} parent=1 // pred_check
      _
    $region23: #{score_net_forward.5} parent=1 // pred_check_branch
      %33 = sbr.rel (0) target = $region25
    $region24: #{score_net_forward.5} parent=1 // pred_region
      %35 = dma.done [#allocation3], 18432
    $region25: #{score_net_forward.5} parent=1 // pred_fallthru
      _
    %v36 = vld [vmem:[%s0] sm:$0xff]
    %v37 = vld [vmem:[%s0 + $0x8] sm:$0xff]
    %v38 = vld [vmem:[%s0 + $0x10] sm:$0xff]
    %v39 = vld [vmem:[%s0 + $0x18] sm:$0xff]
    %v40 = vld [vmem:[%s0 + $0x20] sm:$0xff]
    %v41 = vld [vmem:[%s0 + $0x28] sm:$0xff]
    %v42 = vld [vmem:[%s0 + $0x30] sm:$0xff]
    %v43 = vld [vmem:[%s0 + $0x38] sm:$0xff]
    %v44 = vrot.slane %v38, 7
    %v45 = vrot.slane %v39, 7
    %v46 = vrot.slane %v42, 7
    %v47 = vrot.slane %v43, 7
    %v48 = vlaneseq
    %v49 = vshrl.u32 %v48, 7
    %vm50 = vcmp.lt.s32.totalorder %v49, 1
    %v51 = vsel %vm50, %v44, %v46
    %v52 = vsel %vm50, %v45, %v47
    %v53 = vsel %vm50, %v46, %v44
    %v54 = vsel %vm50, %v47, %v45
    %v55 = vadd.s32 %v49, 8
    %vm56 = vcmp.lt.s32.totalorder %v49, 0
    %v57 = vsub.s32 0, %v49
    %v58 = vsel %vm56, %v57, %v49
    %v59 = vshrl.u32 %v58, 3
    %v60 = vand.u32 %v58, 7
    %v61 = vsub.s32 0, %v60
    %v62 = vsel %vm56, %v61, %v60
    %vm63 = vcmp.lt.s32.totalorder %v55, 0
    %v64 = vsub.s32 0, %v55
    %v65 = vsel %vm63, %v64, %v55
    %v66 = vshrl.u32 %v65, 3
    %v67 = vand.u32 %v65, 7
    %v68 = vsub.s32 0, %v67
    %v69 = vsel %vm63, %v68, %v67
    %vm70 = vcmp.ne.s32.totalorder %v62, 0
    %vm71 = vcmp.ne.s32.totalorder %v69, 0
    %vm72 = vcmp.lt.s32.totalorder %v62, 0
    %vm73 = vcmp.lt.s32.totalorder %v69, 0
    %vm74 = vmand %vm72, %vm70
    %vm75 = vmand %vm73, %vm71
    %v76 = vadd.s32 %v62, 8
    %v77 = vadd.s32 %v69, 8
    %v78 = vsel %vm74, %v76, %v62
    %v79 = vsel %vm75, %v77, %v69
    %vm80 = vcmp.ge.s32.totalorder %v78, 1
    %vm81 = vcmp.ge.s32.totalorder %v79, 1
    %v82 = vsel %vm80, 1, 0
    %v83 = vsel %vm81, 1, 0
    %vm84 = vcmp.eq.s32.totalorder %v82, 1
    %vm85 = vcmp.eq.s32.totalorder %v83, 1
    %v86 = vsel %vm84, %v53, 0.0
    %v87 = vsel %vm84, %v54, 0.0
    %v88 = vsel %vm85, %v51, 0.0
    %v89 = vsel %vm85, %v52, 0.0
    %v90 = vpack.c.bf16 %v88, %v86
    %v91 = vpack.c.bf16 %v89, %v87
    %v92 = vld [vmem:[#allocation2] sm:$0xff]
    %v93 = vld [vmem:[#allocation2 + $0x8] sm:$0xf]
    %v94 = vld [vmem:[#allocation2 + $0xc] sm:$0xff]
    %v95 = vld [vmem:[#allocation2 + $0x14] sm:$0xf]
    %v96 = vld [vmem:[#allocation2 + $0x18] sm:$0xff]
    %v97 = vld [vmem:[#allocation2 + $0x20] sm:$0xf]
    %v98 = vld [vmem:[#allocation2 + $0x24] sm:$0xff]
    %v99 = vld [vmem:[#allocation2 + $0x2c] sm:$0xf]
    %v100 = vld [vmem:[#allocation2 + $0x30] sm:$0xff]
    %v101 = vld [vmem:[#allocation2 + $0x38] sm:$0xf]
    %v102 = vld [vmem:[#allocation2 + $0x3c] sm:$0xff]
    %v103 = vld [vmem:[#allocation2 + $0x44] sm:$0xf]
    %v104 = vld [vmem:[#allocation2 + $0x48] sm:$0xff]
    %v105 = vld [vmem:[#allocation2 + $0x50] sm:$0xf]
    %v106 = vld [vmem:[#allocation2 + $0x54] sm:$0xff]
    %v107 = vld [vmem:[#allocation2 + $0x5c] sm:$0xf]
    %v108 = vld [vmem:[#allocation2 + $0x60] sm:$0xff]
    %v109 = vld [vmem:[#allocation2 + $0x68] sm:$0xf]
    %v110 = vld [vmem:[#allocation2 + $0x6c] sm:$0xff]
    %v111 = vld [vmem:[#allocation2 + $0x74] sm:$0xf]
    %v112 = vld [vmem:[#allocation2 + $0x78] sm:$0xff]
    %v113 = vld [vmem:[#allocation2 + $0x80] sm:$0xf]
    %v114 = vld [vmem:[#allocation2 + $0x84] sm:$0xff]
    %v115 = vld [vmem:[#allocation2 + $0x8c] sm:$0xf]
    %v116 = vld [vmem:[#allocation2 + $0x90] sm:$0xff]
    %v117 = vld [vmem:[#allocation2 + $0x98] sm:$0xf]
    %v118 = vld [vmem:[#allocation2 + $0x9c] sm:$0xff]
    %v119 = vld [vmem:[#allocation2 + $0xa4] sm:$0xf]
    %v120 = vld [vmem:[#allocation2 + $0xa8] sm:$0xff]
    %v121 = vld [vmem:[#allocation2 + $0xb0] sm:$0xf]
    %v122 = vld [vmem:[#allocation2 + $0xb4] sm:$0xff]
    %v123 = vld [vmem:[#allocation2 + $0xbc] sm:$0xf]
    %v124 = vld [vmem:[#allocation2 + $0xc0] sm:$0xff]
    %v125 = vld [vmem:[#allocation2 + $0xc8] sm:$0xf]
    %v126 = vld [vmem:[#allocation2 + $0xcc] sm:$0xff]
    %v127 = vld [vmem:[#allocation2 + $0xd4] sm:$0xf]
    %v128 = vld [vmem:[#allocation2 + $0xd8] sm:$0xff]
    %v129 = vld [vmem:[#allocation2 + $0xe0] sm:$0xf]
    %v130 = vld [vmem:[#allocation2 + $0xe4] sm:$0xff]
    %v131 = vld [vmem:[#allocation2 + $0xec] sm:$0xf]
    %v132 = vld [vmem:[#allocation2 + $0xf0] sm:$0xff]
    %v133 = vld [vmem:[#allocation2 + $0xf8] sm:$0xf]
    %v134 = vld [vmem:[#allocation2 + $0xfc] sm:$0xff]
    %v135 = vld [vmem:[#allocation2 + $0x104] sm:$0xf]
    %v136 = vld [vmem:[#allocation2 + $0x108] sm:$0xff]
    %v137 = vld [vmem:[#allocation2 + $0x110] sm:$0xf]
    %v138 = vld [vmem:[#allocation2 + $0x114] sm:$0xff]
    %v139 = vld [vmem:[#allocation2 + $0x11c] sm:$0xf]
    %v140 = vld [vmem:[#allocation2 + $0x120] sm:$0xff]
    %v141 = vld [vmem:[#allocation2 + $0x128] sm:$0xf]
    %v142 = vld [vmem:[#allocation2 + $0x12c] sm:$0xff]
    %v143 = vld [vmem:[#allocation2 + $0x134] sm:$0xf]
    %v144 = vld [vmem:[#allocation2 + $0x138] sm:$0xff]
    %v145 = vld [vmem:[#allocation2 + $0x140] sm:$0xf]
    %v146 = vld [vmem:[#allocation2 + $0x144] sm:$0xff]
    %v147 = vld [vmem:[#allocation2 + $0x14c] sm:$0xf]
    %v148 = vld [vmem:[#allocation2 + $0x150] sm:$0xff]
    %v149 = vld [vmem:[#allocation2 + $0x158] sm:$0xf]
    %v150 = vld [vmem:[#allocation2 + $0x15c] sm:$0xff]
    %v151 = vld [vmem:[#allocation2 + $0x164] sm:$0xf]
    %v152 = vld [vmem:[#allocation2 + $0x168] sm:$0xff]
    %v153 = vld [vmem:[#allocation2 + $0x170] sm:$0xf]
    %v154 = vld [vmem:[#allocation2 + $0x174] sm:$0xff]
    %v155 = vld [vmem:[#allocation2 + $0x17c] sm:$0xf]
    %v156 = vpack.c.bf16 %v40, %v36
    %v157 = vpack.c.bf16 %v41, %v37
    %s158 = scalar_lea.vmem [#allocation2], 384
    %v159 = vld [vmem:[%s158] sm:$0xff]
    %v160 = vld [vmem:[%s158 + $0x8] sm:$0xf]
    %v161 = vld [vmem:[%s158 + $0xc] sm:$0xff]
    %v162 = vld [vmem:[%s158 + $0x14] sm:$0xf]
    %v163 = vld [vmem:[%s158 + $0x18] sm:$0xff]
    %v164 = vld [vmem:[%s158 + $0x20] sm:$0xf]
    %v165 = vld [vmem:[%s158 + $0x24] sm:$0xff]
    %v166 = vld [vmem:[%s158 + $0x2c] sm:$0xf]
    %v167 = vld [vmem:[%s158 + $0x30] sm:$0xff]
    %v168 = vld [vmem:[%s158 + $0x38] sm:$0xf]
    %v169 = vld [vmem:[%s158 + $0x3c] sm:$0xff]
    %v170 = vld [vmem:[%s158 + $0x44] sm:$0xf]
    %v171 = vld [vmem:[%s158 + $0x48] sm:$0xff]
    %v172 = vld [vmem:[%s158 + $0x50] sm:$0xf]
    %v173 = vld [vmem:[%s158 + $0x54] sm:$0xff]
    %v174 = vld [vmem:[%s158 + $0x5c] sm:$0xf]
    %v175 = vld [vmem:[%s158 + $0x60] sm:$0xff]
    %v176 = vld [vmem:[%s158 + $0x68] sm:$0xf]
    %v177 = vld [vmem:[%s158 + $0x6c] sm:$0xff]
    %v178 = vld [vmem:[%s158 + $0x74] sm:$0xf]
    %v179 = vld [vmem:[%s158 + $0x78] sm:$0xff]
    %v180 = vld [vmem:[%s158 + $0x80] sm:$0xf]
    %v181 = vld [vmem:[%s158 + $0x84] sm:$0xff]
    %v182 = vld [vmem:[%s158 + $0x8c] sm:$0xf]
    %v183 = vld [vmem:[%s158 + $0x90] sm:$0xff]
    %v184 = vld [vmem:[%s158 + $0x98] sm:$0xf]
    %v185 = vld [vmem:[%s158 + $0x9c] sm:$0xff]
    %v186 = vld [vmem:[%s158 + $0xa4] sm:$0xf]
    %v187 = vld [vmem:[%s158 + $0xa8] sm:$0xff]
    %v188 = vld [vmem:[%s158 + $0xb0] sm:$0xf]
    %v189 = vld [vmem:[%s158 + $0xb4] sm:$0xff]
    %v190 = vld [vmem:[%s158 + $0xbc] sm:$0xf]
    %v191 = vld [vmem:[%s158 + $0xc0] sm:$0xff]
    %v192 = vld [vmem:[%s158 + $0xc8] sm:$0xf]
    %v193 = vld [vmem:[%s158 + $0xcc] sm:$0xff]
    %v194 = vld [vmem:[%s158 + $0xd4] sm:$0xf]
    %v195 = vld [vmem:[%s158 + $0xd8] sm:$0xff]
    %v196 = vld [vmem:[%s158 + $0xe0] sm:$0xf]
    %v197 = vld [vmem:[%s158 + $0xe4] sm:$0xff]
    %v198 = vld [vmem:[%s158 + $0xec] sm:$0xf]
    %v199 = vld [vmem:[%s158 + $0xf0] sm:$0xff]
    %v200 = vld [vmem:[%s158 + $0xf8] sm:$0xf]
    %v201 = vld [vmem:[%s158 + $0xfc] sm:$0xff]
    %v202 = vld [vmem:[%s158 + $0x104] sm:$0xf]
    %v203 = vld [vmem:[%s158 + $0x108] sm:$0xff]
    %v204 = vld [vmem:[%s158 + $0x110] sm:$0xf]
    %v205 = vld [vmem:[%s158 + $0x114] sm:$0xff]
    %v206 = vld [vmem:[%s158 + $0x11c] sm:$0xf]
    %v207 = vld [vmem:[%s158 + $0x120] sm:$0xff]
    %v208 = vld [vmem:[%s158 + $0x128] sm:$0xf]
    %v209 = vld [vmem:[%s158 + $0x12c] sm:$0xff]
    %v210 = vld [vmem:[%s158 + $0x134] sm:$0xf]
    %v211 = vld [vmem:[%s158 + $0x138] sm:$0xff]
    %v212 = vld [vmem:[%s158 + $0x140] sm:$0xf]
    %v213 = vld [vmem:[%s158 + $0x144] sm:$0xff]
    %v214 = vld [vmem:[%s158 + $0x14c] sm:$0xf]
    %v215 = vld [vmem:[%s158 + $0x150] sm:$0xff]
    %v216 = vld [vmem:[%s158 + $0x158] sm:$0xf]
    %v217 = vld [vmem:[%s158 + $0x15c] sm:$0xff]
    %v218 = vld [vmem:[%s158 + $0x164] sm:$0xf]
    %v219 = vld [vmem:[%s158 + $0x168] sm:$0xff]
    %v220 = vld [vmem:[%s158 + $0x170] sm:$0xf]
    %v221 = vld [vmem:[%s158 + $0x174] sm:$0xff]
    %v222 = vld [vmem:[%s158 + $0x17c] sm:$0xf]
    %v287 = vunpack.c.l.b16 %v159
    %v288 = vunpack.c.h.b16 %v159
    %v289 = vunpack.c.l.b16 %v160
    %v290 = vunpack.c.l.b16 %v161
    %v291 = vunpack.c.h.b16 %v161
    %v292 = vunpack.c.l.b16 %v162
    %v293 = vunpack.c.l.b16 %v163
    %v294 = vunpack.c.h.b16 %v163
    %v295 = vunpack.c.l.b16 %v164
    %v296 = vunpack.c.l.b16 %v165
    %v297 = vunpack.c.h.b16 %v165
    %v298 = vunpack.c.l.b16 %v166
    %v299 = vunpack.c.l.b16 %v167
    %v300 = vunpack.c.h.b16 %v167
    %v301 = vunpack.c.l.b16 %v168
    %v302 = vunpack.c.l.b16 %v169
    %v303 = vunpack.c.h.b16 %v169
    %v304 = vunpack.c.l.b16 %v170
    %v305 = vunpack.c.l.b16 %v171
    %v306 = vunpack.c.h.b16 %v171
    %v307 = vunpack.c.l.b16 %v172
    %v308 = vunpack.c.l.b16 %v173
    %v309 = vunpack.c.h.b16 %v173
    %v310 = vunpack.c.l.b16 %v174
    %v311 = vunpack.c.l.b16 %v175
    %v312 = vunpack.c.h.b16 %v175
    %v313 = vunpack.c.l.b16 %v176
    %v314 = vunpack.c.l.b16 %v177
    %v315 = vunpack.c.h.b16 %v177
    %v316 = vunpack.c.l.b16 %v178
    %v317 = vunpack.c.l.b16 %v179
    %v318 = vunpack.c.h.b16 %v179
    %v319 = vunpack.c.l.b16 %v180
    %v320 = vunpack.c.l.b16 %v181
    %v321 = vunpack.c.h.b16 %v181
    %v322 = vunpack.c.l.b16 %v182
    %v323 = vunpack.c.l.b16 %v183
    %v324 = vunpack.c.h.b16 %v183
    %v325 = vunpack.c.l.b16 %v184
    %v326 = vunpack.c.l.b16 %v185
    %v327 = vunpack.c.h.b16 %v185
    %v328 = vunpack.c.l.b16 %v186
    %v329 = vunpack.c.l.b16 %v187
    %v330 = vunpack.c.h.b16 %v187
    %v331 = vunpack.c.l.b16 %v188
    %v332 = vunpack.c.l.b16 %v189
    %v333 = vunpack.c.h.b16 %v189
    %v334 = vunpack.c.l.b16 %v190
    %v335 = vunpack.c.l.b16 %v191
    %v336 = vunpack.c.h.b16 %v191
    %v337 = vunpack.c.l.b16 %v192
    %v338 = vunpack.c.l.b16 %v193
    %v339 = vunpack.c.h.b16 %v193
    %v340 = vunpack.c.l.b16 %v194
    %v341 = vunpack.c.l.b16 %v195
    %v342 = vunpack.c.h.b16 %v195
    %v343 = vunpack.c.l.b16 %v196
    %v344 = vunpack.c.l.b16 %v197
    %v345 = vunpack.c.h.b16 %v197
    %v346 = vunpack.c.l.b16 %v198
    %v347 = vunpack.c.l.b16 %v199
    %v348 = vunpack.c.h.b16 %v199
    %v349 = vunpack.c.l.b16 %v200
    %v350 = vunpack.c.l.b16 %v201
    %v351 = vunpack.c.h.b16 %v201
    %v352 = vunpack.c.l.b16 %v202
    %v353 = vunpack.c.l.b16 %v203
    %v354 = vunpack.c.h.b16 %v203
    %v355 = vunpack.c.l.b16 %v204
    %v356 = vunpack.c.l.b16 %v205
    %v357 = vunpack.c.h.b16 %v205
    %v358 = vunpack.c.l.b16 %v206
    %v359 = vunpack.c.l.b16 %v207
    %v360 = vunpack.c.h.b16 %v207
    %v361 = vunpack.c.l.b16 %v208
    %v362 = vunpack.c.l.b16 %v209
    %v363 = vunpack.c.h.b16 %v209
    %v364 = vunpack.c.l.b16 %v210
    %v365 = vunpack.c.l.b16 %v211
    %v366 = vunpack.c.h.b16 %v211
    %v367 = vunpack.c.l.b16 %v212
    %v368 = vunpack.c.l.b16 %v213
    %v369 = vunpack.c.h.b16 %v213
    %v370 = vunpack.c.l.b16 %v214
    %v371 = vunpack.c.l.b16 %v215
    %v372 = vunpack.c.h.b16 %v215
    %v373 = vunpack.c.l.b16 %v216
    %v374 = vunpack.c.l.b16 %v217
    %v375 = vunpack.c.h.b16 %v217
    %v376 = vunpack.c.l.b16 %v218
    %v377 = vunpack.c.l.b16 %v219
    %v378 = vunpack.c.h.b16 %v219
    %v379 = vunpack.c.l.b16 %v220
    %v380 = vunpack.c.l.b16 %v221
    %v381 = vunpack.c.h.b16 %v221
    %v382 = vunpack.c.l.b16 %v222
    %v383 = vpack.c.b16 %v290, %v287
    %v384 = vpack.c.b16 %v291, %v288
    %v385 = vpack.c.b16 %v292, %v289
    %v386 = vpack.c.b16 %v296, %v293
    %v387 = vpack.c.b16 %v297, %v294
    %v388 = vpack.c.b16 %v298, %v295
    %v389 = vpack.c.b16 %v302, %v299
    %v390 = vpack.c.b16 %v303, %v300
    %v391 = vpack.c.b16 %v304, %v301
    %v392 = vpack.c.b16 %v308, %v305
    %v393 = vpack.c.b16 %v309, %v306
    %v394 = vpack.c.b16 %v310, %v307
    %v395 = vpack.c.b16 %v314, %v311
    %v396 = vpack.c.b16 %v315, %v312
    %v397 = vpack.c.b16 %v316, %v313
    %v398 = vpack.c.b16 %v320, %v317
    %v399 = vpack.c.b16 %v321, %v318
    %v400 = vpack.c.b16 %v322, %v319
    %v401 = vpack.c.b16 %v326, %v323
    %v402 = vpack.c.b16 %v327, %v324
    %v403 = vpack.c.b16 %v328, %v325
    %v404 = vpack.c.b16 %v332, %v329
    %v405 = vpack.c.b16 %v333, %v330
    %v406 = vpack.c.b16 %v334, %v331
    %v407 = vpack.c.b16 %v338, %v335
    %v408 = vpack.c.b16 %v339, %v336
    %v409 = vpack.c.b16 %v340, %v337
    %v410 = vpack.c.b16 %v344, %v341
    %v411 = vpack.c.b16 %v345, %v342
    %v412 = vpack.c.b16 %v346, %v343
    %v413 = vpack.c.b16 %v350, %v347
    %v414 = vpack.c.b16 %v351, %v348
    %v415 = vpack.c.b16 %v352, %v349
    %v416 = vpack.c.b16 %v356, %v353
    %v417 = vpack.c.b16 %v357, %v354
    %v418 = vpack.c.b16 %v358, %v355
    %v419 = vpack.c.b16 %v362, %v359
    %v420 = vpack.c.b16 %v363, %v360
    %v421 = vpack.c.b16 %v364, %v361
    %v422 = vpack.c.b16 %v368, %v365
    %v423 = vpack.c.b16 %v369, %v366
    %v424 = vpack.c.b16 %v370, %v367
    %v425 = vpack.c.b16 %v374, %v371
    %v426 = vpack.c.b16 %v375, %v372
    %v427 = vpack.c.b16 %v376, %v373
    %v428 = vpack.c.b16 %v380, %v377
    %v429 = vpack.c.b16 %v381, %v378
    %v430 = vpack.c.b16 %v382, %v379
    %479 = vmatpush.bf16.msra.mxu0 %v404
    %480 = vmatpush.bf16.msra.mxu0 %v401
    %481 = vmatpush.bf16.msra.mxu0 %v398
    %482 = vmatpush.bf16.msra.mxu0 %v395
    %483 = vmatpush.bf16.msra.mxu0 %v392
    %484 = vmatpush.bf16.msra.mxu0 %v389
    %485 = vmatpush.bf16.msra.mxu0 %v386
    %486 = vmatpush.bf16.msra.mxu0 %v383
    %487 = vmatmul.bf16.gmra.mxu0 %v156
    %v488 = vpop.f32.mrf.mxu0
    %v489 = vadd.f32 0.0, %v488
    %v490 = vpop.f32.mrf.mxu0
    %v491 = vadd.f32 0.0, %v490
    %492 = vdwg.mxu0
    %493 = vmatpush.bf16.msra.mxu0 %v428
    %494 = vmatpush.bf16.msra.mxu0 %v425
    %495 = vmatpush.bf16.msra.mxu0 %v422
    %496 = vmatpush.bf16.msra.mxu0 %v419
    %497 = vmatpush.bf16.msra.mxu0 %v416
    %498 = vmatpush.bf16.msra.mxu0 %v413
    %499 = vmatpush.bf16.msra.mxu0 %v410
    %500 = vmatpush.bf16.msra.mxu0 %v407
    %501 = vmatmul.bf16.gmra.mxu0 %v157
    %v502 = vpop.f32.mrf.mxu0
    %v503 = vadd.f32 %v489, %v502
    %v504 = vpop.f32.mrf.mxu0
    %v505 = vadd.f32 %v491, %v504
    %506 = vdwg.mxu0
    %507 = vmatpush.bf16.msra.mxu0 %v405
    %508 = vmatpush.bf16.msra.mxu0 %v402
    %509 = vmatpush.bf16.msra.mxu0 %v399
    %510 = vmatpush.bf16.msra.mxu0 %v396
    %511 = vmatpush.bf16.msra.mxu0 %v393
    %512 = vmatpush.bf16.msra.mxu0 %v390
    %513 = vmatpush.bf16.msra.mxu0 %v387
    %514 = vmatpush.bf16.msra.mxu0 %v384
    %515 = vmatmul.bf16.gmra.mxu0 %v156
    %v516 = vpop.f32.mrf.mxu0
    %v517 = vadd.f32 0.0, %v516
    %v518 = vpop.f32.mrf.mxu0
    %v519 = vadd.f32 0.0, %v518
    %520 = vdwg.mxu0
    %521 = vmatpush.bf16.msra.mxu0 %v429
    %522 = vmatpush.bf16.msra.mxu0 %v426
    %523 = vmatpush.bf16.msra.mxu0 %v423
    %524 = vmatpush.bf16.msra.mxu0 %v420
    %525 = vmatpush.bf16.msra.mxu0 %v417
    %526 = vmatpush.bf16.msra.mxu0 %v414
    %527 = vmatpush.bf16.msra.mxu0 %v411
    %528 = vmatpush.bf16.msra.mxu0 %v408
    %529 = vmatmul.bf16.gmra.mxu0 %v157
    %v530 = vpop.f32.mrf.mxu0
    %v531 = vadd.f32 %v517, %v530
    %v532 = vpop.f32.mrf.mxu0
    %v533 = vadd.f32 %v519, %v532
    %534 = vdwg.mxu0
    %535 = vmatpush.bf16.msra.mxu0 %v406
    %536 = vmatpush.bf16.msra.mxu0 %v403
    %537 = vmatpush.bf16.msra.mxu0 %v400
    %538 = vmatpush.bf16.msra.mxu0 %v397
    %539 = vmatpush.bf16.msra.mxu0 %v394
    %540 = vmatpush.bf16.msra.mxu0 %v391
    %541 = vmatpush.bf16.msra.mxu0 %v388
    %542 = vmatpush.bf16.msra.mxu0 %v385
    %543 = vmatmul.bf16.gmra.mxu0 %v156
    %v544 = vpop.f32.mrf.mxu0
    %v545 = vadd.f32 0.0, %v544
    %v546 = vpop.f32.mrf.mxu0
    %v547 = vadd.f32 0.0, %v546
    %548 = vdwg.mxu0
    %549 = vmatpush.bf16.msra.mxu0 %v430
    %550 = vmatpush.bf16.msra.mxu0 %v427
    %551 = vmatpush.bf16.msra.mxu0 %v424
    %552 = vmatpush.bf16.msra.mxu0 %v421
    %553 = vmatpush.bf16.msra.mxu0 %v418
    %554 = vmatpush.bf16.msra.mxu0 %v415
    %555 = vmatpush.bf16.msra.mxu0 %v412
    %556 = vmatpush.bf16.msra.mxu0 %v409
    %557 = vmatmul.bf16.gmra.mxu0 %v157
    %v558 = vpop.f32.mrf.mxu0
    %v559 = vadd.f32 %v545, %v558
    %v560 = vpop.f32.mrf.mxu0
    %v561 = vadd.f32 %v547, %v560
    %562 = vdwg.mxu0
    %v627 = vunpack.c.l.b16 %v92
    %v628 = vunpack.c.h.b16 %v92
    %v629 = vunpack.c.l.b16 %v93
    %v630 = vunpack.c.l.b16 %v94
    %v631 = vunpack.c.h.b16 %v94
    %v632 = vunpack.c.l.b16 %v95
    %v633 = vunpack.c.l.b16 %v96
    %v634 = vunpack.c.h.b16 %v96
    %v635 = vunpack.c.l.b16 %v97
    %v636 = vunpack.c.l.b16 %v98
    %v637 = vunpack.c.h.b16 %v98
    %v638 = vunpack.c.l.b16 %v99
    %v639 = vunpack.c.l.b16 %v100
    %v640 = vunpack.c.h.b16 %v100
    %v641 = vunpack.c.l.b16 %v101
    %v642 = vunpack.c.l.b16 %v102
    %v643 = vunpack.c.h.b16 %v102
    %v644 = vunpack.c.l.b16 %v103
    %v645 = vunpack.c.l.b16 %v104
    %v646 = vunpack.c.h.b16 %v104
    %v647 = vunpack.c.l.b16 %v105
    %v648 = vunpack.c.l.b16 %v106
    %v649 = vunpack.c.h.b16 %v106
    %v650 = vunpack.c.l.b16 %v107
    %v651 = vunpack.c.l.b16 %v108
    %v652 = vunpack.c.h.b16 %v108
    %v653 = vunpack.c.l.b16 %v109
    %v654 = vunpack.c.l.b16 %v110
    %v655 = vunpack.c.h.b16 %v110
    %v656 = vunpack.c.l.b16 %v111
    %v657 = vunpack.c.l.b16 %v112
    %v658 = vunpack.c.h.b16 %v112
    %v659 = vunpack.c.l.b16 %v113
    %v660 = vunpack.c.l.b16 %v114
    %v661 = vunpack.c.h.b16 %v114
    %v662 = vunpack.c.l.b16 %v115
    %v663 = vunpack.c.l.b16 %v116
    %v664 = vunpack.c.h.b16 %v116
    %v665 = vunpack.c.l.b16 %v117
    %v666 = vunpack.c.l.b16 %v118
    %v667 = vunpack.c.h.b16 %v118
    %v668 = vunpack.c.l.b16 %v119
    %v669 = vunpack.c.l.b16 %v120
    %v670 = vunpack.c.h.b16 %v120
    %v671 = vunpack.c.l.b16 %v121
    %v672 = vunpack.c.l.b16 %v122
    %v673 = vunpack.c.h.b16 %v122
    %v674 = vunpack.c.l.b16 %v123
    %v675 = vunpack.c.l.b16 %v124
    %v676 = vunpack.c.h.b16 %v124
    %v677 = vunpack.c.l.b16 %v125
    %v678 = vunpack.c.l.b16 %v126
    %v679 = vunpack.c.h.b16 %v126
    %v680 = vunpack.c.l.b16 %v127
    %v681 = vunpack.c.l.b16 %v128
    %v682 = vunpack.c.h.b16 %v128
    %v683 = vunpack.c.l.b16 %v129
    %v684 = vunpack.c.l.b16 %v130
    %v685 = vunpack.c.h.b16 %v130
    %v686 = vunpack.c.l.b16 %v131
    %v687 = vunpack.c.l.b16 %v132
    %v688 = vunpack.c.h.b16 %v132
    %v689 = vunpack.c.l.b16 %v133
    %v690 = vunpack.c.l.b16 %v134
    %v691 = vunpack.c.h.b16 %v134
    %v692 = vunpack.c.l.b16 %v135
    %v693 = vunpack.c.l.b16 %v136
    %v694 = vunpack.c.h.b16 %v136
    %v695 = vunpack.c.l.b16 %v137
    %v696 = vunpack.c.l.b16 %v138
    %v697 = vunpack.c.h.b16 %v138
    %v698 = vunpack.c.l.b16 %v139
    %v699 = vunpack.c.l.b16 %v140
    %v700 = vunpack.c.h.b16 %v140
    %v701 = vunpack.c.l.b16 %v141
    %v702 = vunpack.c.l.b16 %v142
    %v703 = vunpack.c.h.b16 %v142
    %v704 = vunpack.c.l.b16 %v143
    %v705 = vunpack.c.l.b16 %v144
    %v706 = vunpack.c.h.b16 %v144
    %v707 = vunpack.c.l.b16 %v145
    %v708 = vunpack.c.l.b16 %v146
    %v709 = vunpack.c.h.b16 %v146
    %v710 = vunpack.c.l.b16 %v147
    %v711 = vunpack.c.l.b16 %v148
    %v712 = vunpack.c.h.b16 %v148
    %v713 = vunpack.c.l.b16 %v149
    %v714 = vunpack.c.l.b16 %v150
    %v715 = vunpack.c.h.b16 %v150
    %v716 = vunpack.c.l.b16 %v151
    %v717 = vunpack.c.l.b16 %v152
    %v718 = vunpack.c.h.b16 %v152
    %v719 = vunpack.c.l.b16 %v153
    %v720 = vunpack.c.l.b16 %v154
    %v721 = vunpack.c.h.b16 %v154
    %v722 = vunpack.c.l.b16 %v155
    %v723 = vpack.c.b16 %v630, %v627
    %v724 = vpack.c.b16 %v631, %v628
    %v725 = vpack.c.b16 %v632, %v629
    %v726 = vpack.c.b16 %v636, %v633
    %v727 = vpack.c.b16 %v637, %v634
    %v728 = vpack.c.b16 %v638, %v635
    %v729 = vpack.c.b16 %v642, %v639
    %v730 = vpack.c.b16 %v643, %v640
    %v731 = vpack.c.b16 %v644, %v641
    %v732 = vpack.c.b16 %v648, %v645
    %v733 = vpack.c.b16 %v649, %v646
    %v734 = vpack.c.b16 %v650, %v647
    %v735 = vpack.c.b16 %v654, %v651
    %v736 = vpack.c.b16 %v655, %v652
    %v737 = vpack.c.b16 %v656, %v653
    %v738 = vpack.c.b16 %v660, %v657
    %v739 = vpack.c.b16 %v661, %v658
    %v740 = vpack.c.b16 %v662, %v659
    %v741 = vpack.c.b16 %v666, %v663
    %v742 = vpack.c.b16 %v667, %v664
    %v743 = vpack.c.b16 %v668, %v665
    %v744 = vpack.c.b16 %v672, %v669
    %v745 = vpack.c.b16 %v673, %v670
    %v746 = vpack.c.b16 %v674, %v671
    %v747 = vpack.c.b16 %v678, %v675
    %v748 = vpack.c.b16 %v679, %v676
    %v749 = vpack.c.b16 %v680, %v677
    %v750 = vpack.c.b16 %v684, %v681
    %v751 = vpack.c.b16 %v685, %v682
    %v752 = vpack.c.b16 %v686, %v683
    %v753 = vpack.c.b16 %v690, %v687
    %v754 = vpack.c.b16 %v691, %v688
    %v755 = vpack.c.b16 %v692, %v689
    %v756 = vpack.c.b16 %v696, %v693
    %v757 = vpack.c.b16 %v697, %v694
    %v758 = vpack.c.b16 %v698, %v695
    %v759 = vpack.c.b16 %v702, %v699
    %v760 = vpack.c.b16 %v703, %v700
    %v761 = vpack.c.b16 %v704, %v701
    %v762 = vpack.c.b16 %v708, %v705
    %v763 = vpack.c.b16 %v709, %v706
    %v764 = vpack.c.b16 %v710, %v707
    %v765 = vpack.c.b16 %v714, %v711
    %v766 = vpack.c.b16 %v715, %v712
    %v767 = vpack.c.b16 %v716, %v713
    %v768 = vpack.c.b16 %v720, %v717
    %v769 = vpack.c.b16 %v721, %v718
    %v770 = vpack.c.b16 %v722, %v719
    %819 = vmatpush.bf16.msra.mxu0 %v744
    %820 = vmatpush.bf16.msra.mxu0 %v741
    %821 = vmatpush.bf16.msra.mxu0 %v738
    %822 = vmatpush.bf16.msra.mxu0 %v735
    %823 = vmatpush.bf16.msra.mxu0 %v732
    %824 = vmatpush.bf16.msra.mxu0 %v729
    %825 = vmatpush.bf16.msra.mxu0 %v726
    %826 = vmatpush.bf16.msra.mxu0 %v723
    %827 = vmatmul.bf16.gmra.mxu0 %v90
    %v828 = vpop.f32.mrf.mxu0
    %v829 = vadd.f32 %v503, %v828
    %v830 = vpop.f32.mrf.mxu0
    %v831 = vadd.f32 %v505, %v830
    %832 = vdwg.mxu0
    %833 = vmatpush.bf16.msra.mxu0 %v768
    %834 = vmatpush.bf16.msra.mxu0 %v765
    %835 = vmatpush.bf16.msra.mxu0 %v762
    %836 = vmatpush.bf16.msra.mxu0 %v759
    %837 = vmatpush.bf16.msra.mxu0 %v756
    %838 = vmatpush.bf16.msra.mxu0 %v753
    %839 = vmatpush.bf16.msra.mxu0 %v750
    %840 = vmatpush.bf16.msra.mxu0 %v747
    %841 = vmatmul.bf16.gmra.mxu0 %v91
    %v842 = vpop.f32.mrf.mxu0
    %v843 = vadd.f32 %v829, %v842
    %v844 = vpop.f32.mrf.mxu0
    %v845 = vadd.f32 %v831, %v844
    %846 = vdwg.mxu0
    %847 = vmatpush.bf16.msra.mxu0 %v745
    %848 = vmatpush.bf16.msra.mxu0 %v742
    %849 = vmatpush.bf16.msra.mxu0 %v739
    %850 = vmatpush.bf16.msra.mxu0 %v736
    %851 = vmatpush.bf16.msra.mxu0 %v733
    %852 = vmatpush.bf16.msra.mxu0 %v730
    %853 = vmatpush.bf16.msra.mxu0 %v727
    %854 = vmatpush.bf16.msra.mxu0 %v724
    %855 = vmatmul.bf16.gmra.mxu0 %v90
    %v856 = vpop.f32.mrf.mxu0
    %v857 = vadd.f32 %v531, %v856
    %v858 = vpop.f32.mrf.mxu0
    %v859 = vadd.f32 %v533, %v858
    %860 = vdwg.mxu0
    %861 = vmatpush.bf16.msra.mxu0 %v769
    %862 = vmatpush.bf16.msra.mxu0 %v766
    %863 = vmatpush.bf16.msra.mxu0 %v763
    %864 = vmatpush.bf16.msra.mxu0 %v760
    %865 = vmatpush.bf16.msra.mxu0 %v757
    %866 = vmatpush.bf16.msra.mxu0 %v754
    %867 = vmatpush.bf16.msra.mxu0 %v751
    %868 = vmatpush.bf16.msra.mxu0 %v748
    %869 = vmatmul.bf16.gmra.mxu0 %v91
    %v870 = vpop.f32.mrf.mxu0
    %v871 = vadd.f32 %v857, %v870
    %v872 = vpop.f32.mrf.mxu0
    %v873 = vadd.f32 %v859, %v872
    %874 = vdwg.mxu0
    %875 = vmatpush.bf16.msra.mxu0 %v746
    %876 = vmatpush.bf16.msra.mxu0 %v743
    %877 = vmatpush.bf16.msra.mxu0 %v740
    %878 = vmatpush.bf16.msra.mxu0 %v737
    %879 = vmatpush.bf16.msra.mxu0 %v734
    %880 = vmatpush.bf16.msra.mxu0 %v731
    %881 = vmatpush.bf16.msra.mxu0 %v728
    %882 = vmatpush.bf16.msra.mxu0 %v725
    %883 = vmatmul.bf16.gmra.mxu0 %v90
    %v884 = vpop.f32.mrf.mxu0
    %v885 = vadd.f32 %v559, %v884
    %v886 = vpop.f32.mrf.mxu0
    %v887 = vadd.f32 %v561, %v886
    %888 = vdwg.mxu0
    %889 = vmatpush.bf16.msra.mxu0 %v770
    %890 = vmatpush.bf16.msra.mxu0 %v767
    %891 = vmatpush.bf16.msra.mxu0 %v764
    %892 = vmatpush.bf16.msra.mxu0 %v761
    %893 = vmatpush.bf16.msra.mxu0 %v758
    %894 = vmatpush.bf16.msra.mxu0 %v755
    %895 = vmatpush.bf16.msra.mxu0 %v752
    %896 = vmatpush.bf16.msra.mxu0 %v749
    %897 = vmatmul.bf16.gmra.mxu0 %v91
    %v898 = vpop.f32.mrf.mxu0
    %v899 = vadd.f32 %v885, %v898
    %v900 = vpop.f32.mrf.mxu0
    %v901 = vadd.f32 %v887, %v900
    %902 = vdwg.mxu0
    %v903 = vpack.c.bf16 %v42, %v38
    %v904 = vpack.c.bf16 %v43, %v39
    %s905 = scalar_lea.vmem [#allocation2], 768
    %v906 = vld [vmem:[%s905] sm:$0xff]
    %v907 = vld [vmem:[%s905 + $0x8] sm:$0xf]
    %v908 = vld [vmem:[%s905 + $0xc] sm:$0xff]
    %v909 = vld [vmem:[%s905 + $0x14] sm:$0xf]
    %v910 = vld [vmem:[%s905 + $0x18] sm:$0xff]
    %v911 = vld [vmem:[%s905 + $0x20] sm:$0xf]
    %v912 = vld [vmem:[%s905 + $0x24] sm:$0xff]
    %v913 = vld [vmem:[%s905 + $0x2c] sm:$0xf]
    %v914 = vld [vmem:[%s905 + $0x30] sm:$0xff]
    %v915 = vld [vmem:[%s905 + $0x38] sm:$0xf]
    %v916 = vld [vmem:[%s905 + $0x3c] sm:$0xff]
    %v917 = vld [vmem:[%s905 + $0x44] sm:$0xf]
    %v918 = vld [vmem:[%s905 + $0x48] sm:$0xff]
    %v919 = vld [vmem:[%s905 + $0x50] sm:$0xf]
    %v920 = vld [vmem:[%s905 + $0x54] sm:$0xff]
    %v921 = vld [vmem:[%s905 + $0x5c] sm:$0xf]
    %v922 = vld [vmem:[%s905 + $0x60] sm:$0xff]
    %v923 = vld [vmem:[%s905 + $0x68] sm:$0xf]
    %v924 = vld [vmem:[%s905 + $0x6c] sm:$0xff]
    %v925 = vld [vmem:[%s905 + $0x74] sm:$0xf]
    %v926 = vld [vmem:[%s905 + $0x78] sm:$0xff]
    %v927 = vld [vmem:[%s905 + $0x80] sm:$0xf]
    %v928 = vld [vmem:[%s905 + $0x84] sm:$0xff]
    %v929 = vld [vmem:[%s905 + $0x8c] sm:$0xf]
    %v930 = vld [vmem:[%s905 + $0x90] sm:$0xff]
    %v931 = vld [vmem:[%s905 + $0x98] sm:$0xf]
    %v932 = vld [vmem:[%s905 + $0x9c] sm:$0xff]
    %v933 = vld [vmem:[%s905 + $0xa4] sm:$0xf]
    %v934 = vld [vmem:[%s905 + $0xa8] sm:$0xff]
    %v935 = vld [vmem:[%s905 + $0xb0] sm:$0xf]
    %v936 = vld [vmem:[%s905 + $0xb4] sm:$0xff]
    %v937 = vld [vmem:[%s905 + $0xbc] sm:$0xf]
    %v938 = vld [vmem:[%s905 + $0xc0] sm:$0xff]
    %v939 = vld [vmem:[%s905 + $0xc8] sm:$0xf]
    %v940 = vld [vmem:[%s905 + $0xcc] sm:$0xff]
    %v941 = vld [vmem:[%s905 + $0xd4] sm:$0xf]
    %v942 = vld [vmem:[%s905 + $0xd8] sm:$0xff]
    %v943 = vld [vmem:[%s905 + $0xe0] sm:$0xf]
    %v944 = vld [vmem:[%s905 + $0xe4] sm:$0xff]
    %v945 = vld [vmem:[%s905 + $0xec] sm:$0xf]
    %v946 = vld [vmem:[%s905 + $0xf0] sm:$0xff]
    %v947 = vld [vmem:[%s905 + $0xf8] sm:$0xf]
    %v948 = vld [vmem:[%s905 + $0xfc] sm:$0xff]
    %v949 = vld [vmem:[%s905 + $0x104] sm:$0xf]
    %v950 = vld [vmem:[%s905 + $0x108] sm:$0xff]
    %v951 = vld [vmem:[%s905 + $0x110] sm:$0xf]
    %v952 = vld [vmem:[%s905 + $0x114] sm:$0xff]
    %v953 = vld [vmem:[%s905 + $0x11c] sm:$0xf]
    %v954 = vld [vmem:[%s905 + $0x120] sm:$0xff]
    %v955 = vld [vmem:[%s905 + $0x128] sm:$0xf]
    %v956 = vld [vmem:[%s905 + $0x12c] sm:$0xff]
    %v957 = vld [vmem:[%s905 + $0x134] sm:$0xf]
    %v958 = vld [vmem:[%s905 + $0x138] sm:$0xff]
    %v959 = vld [vmem:[%s905 + $0x140] sm:$0xf]
    %v960 = vld [vmem:[%s905 + $0x144] sm:$0xff]
    %v961 = vld [vmem:[%s905 + $0x14c] sm:$0xf]
    %v962 = vld [vmem:[%s905 + $0x150] sm:$0xff]
    %v963 = vld [vmem:[%s905 + $0x158] sm:$0xf]
    %v964 = vld [vmem:[%s905 + $0x15c] sm:$0xff]
    %v965 = vld [vmem:[%s905 + $0x164] sm:$0xf]
    %v966 = vld [vmem:[%s905 + $0x168] sm:$0xff]
    %v967 = vld [vmem:[%s905 + $0x170] sm:$0xf]
    %v968 = vld [vmem:[%s905 + $0x174] sm:$0xff]
    %v969 = vld [vmem:[%s905 + $0x17c] sm:$0xf]
    %v1034 = vunpack.c.l.b16 %v906
    %v1035 = vunpack.c.h.b16 %v906
    %v1036 = vunpack.c.l.b16 %v907
    %v1037 = vunpack.c.l.b16 %v908
    %v1038 = vunpack.c.h.b16 %v908
    %v1039 = vunpack.c.l.b16 %v909
    %v1040 = vunpack.c.l.b16 %v910
    %v1041 = vunpack.c.h.b16 %v910
    %v1042 = vunpack.c.l.b16 %v911
    %v1043 = vunpack.c.l.b16 %v912
    %v1044 = vunpack.c.h.b16 %v912
    %v1045 = vunpack.c.l.b16 %v913
    %v1046 = vunpack.c.l.b16 %v914
    %v1047 = vunpack.c.h.b16 %v914
    %v1048 = vunpack.c.l.b16 %v915
    %v1049 = vunpack.c.l.b16 %v916
    %v1050 = vunpack.c.h.b16 %v916
    %v1051 = vunpack.c.l.b16 %v917
    %v1052 = vunpack.c.l.b16 %v918
    %v1053 = vunpack.c.h.b16 %v918
    %v1054 = vunpack.c.l.b16 %v919
    %v1055 = vunpack.c.l.b16 %v920
    %v1056 = vunpack.c.h.b16 %v920
    %v1057 = vunpack.c.l.b16 %v921
    %v1058 = vunpack.c.l.b16 %v922
    %v1059 = vunpack.c.h.b16 %v922
    %v1060 = vunpack.c.l.b16 %v923
    %v1061 = vunpack.c.l.b16 %v924
    %v1062 = vunpack.c.h.b16 %v924
    %v1063 = vunpack.c.l.b16 %v925
    %v1064 = vunpack.c.l.b16 %v926
    %v1065 = vunpack.c.h.b16 %v926
    %v1066 = vunpack.c.l.b16 %v927
    %v1067 = vunpack.c.l.b16 %v928
    %v1068 = vunpack.c.h.b16 %v928
    %v1069 = vunpack.c.l.b16 %v929
    %v1070 = vunpack.c.l.b16 %v930
    %v1071 = vunpack.c.h.b16 %v930
    %v1072 = vunpack.c.l.b16 %v931
    %v1073 = vunpack.c.l.b16 %v932
    %v1074 = vunpack.c.h.b16 %v932
    %v1075 = vunpack.c.l.b16 %v933
    %v1076 = vunpack.c.l.b16 %v934
    %v1077 = vunpack.c.h.b16 %v934
    %v1078 = vunpack.c.l.b16 %v935
    %v1079 = vunpack.c.l.b16 %v936
    %v1080 = vunpack.c.h.b16 %v936
    %v1081 = vunpack.c.l.b16 %v937
    %v1082 = vunpack.c.l.b16 %v938
    %v1083 = vunpack.c.h.b16 %v938
    %v1084 = vunpack.c.l.b16 %v939
    %v1085 = vunpack.c.l.b16 %v940
    %v1086 = vunpack.c.h.b16 %v940
    %v1087 = vunpack.c.l.b16 %v941
    %v1088 = vunpack.c.l.b16 %v942
    %v1089 = vunpack.c.h.b16 %v942
    %v1090 = vunpack.c.l.b16 %v943
    %v1091 = vunpack.c.l.b16 %v944
    %v1092 = vunpack.c.h.b16 %v944
    %v1093 = vunpack.c.l.b16 %v945
    %v1094 = vunpack.c.l.b16 %v946
    %v1095 = vunpack.c.h.b16 %v946
    %v1096 = vunpack.c.l.b16 %v947
    %v1097 = vunpack.c.l.b16 %v948
    %v1098 = vunpack.c.h.b16 %v948
    %v1099 = vunpack.c.l.b16 %v949
    %v1100 = vunpack.c.l.b16 %v950
    %v1101 = vunpack.c.h.b16 %v950
    %v1102 = vunpack.c.l.b16 %v951
    %v1103 = vunpack.c.l.b16 %v952
    %v1104 = vunpack.c.h.b16 %v952
    %v1105 = vunpack.c.l.b16 %v953
    %v1106 = vunpack.c.l.b16 %v954
    %v1107 = vunpack.c.h.b16 %v954
    %v1108 = vunpack.c.l.b16 %v955
    %v1109 = vunpack.c.l.b16 %v956
    %v1110 = vunpack.c.h.b16 %v956
    %v1111 = vunpack.c.l.b16 %v957
    %v1112 = vunpack.c.l.b16 %v958
    %v1113 = vunpack.c.h.b16 %v958
    %v1114 = vunpack.c.l.b16 %v959
    %v1115 = vunpack.c.l.b16 %v960
    %v1116 = vunpack.c.h.b16 %v960
    %v1117 = vunpack.c.l.b16 %v961
    %v1118 = vunpack.c.l.b16 %v962
    %v1119 = vunpack.c.h.b16 %v962
    %v1120 = vunpack.c.l.b16 %v963
    %v1121 = vunpack.c.l.b16 %v964
    %v1122 = vunpack.c.h.b16 %v964
    %v1123 = vunpack.c.l.b16 %v965
    %v1124 = vunpack.c.l.b16 %v966
    %v1125 = vunpack.c.h.b16 %v966
    %v1126 = vunpack.c.l.b16 %v967
    %v1127 = vunpack.c.l.b16 %v968
    %v1128 = vunpack.c.h.b16 %v968
    %v1129 = vunpack.c.l.b16 %v969
    %v1130 = vpack.c.b16 %v1037, %v1034
    %v1131 = vpack.c.b16 %v1038, %v1035
    %v1132 = vpack.c.b16 %v1039, %v1036
    %v1133 = vpack.c.b16 %v1043, %v1040
    %v1134 = vpack.c.b16 %v1044, %v1041
    %v1135 = vpack.c.b16 %v1045, %v1042
    %v1136 = vpack.c.b16 %v1049, %v1046
    %v1137 = vpack.c.b16 %v1050, %v1047
    %v1138 = vpack.c.b16 %v1051, %v1048
    %v1139 = vpack.c.b16 %v1055, %v1052
    %v1140 = vpack.c.b16 %v1056, %v1053
    %v1141 = vpack.c.b16 %v1057, %v1054
    %v1142 = vpack.c.b16 %v1061, %v1058
    %v1143 = vpack.c.b16 %v1062, %v1059
    %v1144 = vpack.c.b16 %v1063, %v1060
    %v1145 = vpack.c.b16 %v1067, %v1064
    %v1146 = vpack.c.b16 %v1068, %v1065
    %v1147 = vpack.c.b16 %v1069, %v1066
    %v1148 = vpack.c.b16 %v1073, %v1070
    %v1149 = vpack.c.b16 %v1074, %v1071
    %v1150 = vpack.c.b16 %v1075, %v1072
    %v1151 = vpack.c.b16 %v1079, %v1076
    %v1152 = vpack.c.b16 %v1080, %v1077
    %v1153 = vpack.c.b16 %v1081, %v1078
    %v1154 = vpack.c.b16 %v1085, %v1082
    %v1155 = vpack.c.b16 %v1086, %v1083
    %v1156 = vpack.c.b16 %v1087, %v1084
    %v1157 = vpack.c.b16 %v1091, %v1088
    %v1158 = vpack.c.b16 %v1092, %v1089
    %v1159 = vpack.c.b16 %v1093, %v1090
    %v1160 = vpack.c.b16 %v1097, %v1094
    %v1161 = vpack.c.b16 %v1098, %v1095
    %v1162 = vpack.c.b16 %v1099, %v1096
    %v1163 = vpack.c.b16 %v1103, %v1100
    %v1164 = vpack.c.b16 %v1104, %v1101
    %v1165 = vpack.c.b16 %v1105, %v1102
    %v1166 = vpack.c.b16 %v1109, %v1106
    %v1167 = vpack.c.b16 %v1110, %v1107
    %v1168 = vpack.c.b16 %v1111, %v1108
    %v1169 = vpack.c.b16 %v1115, %v1112
    %v1170 = vpack.c.b16 %v1116, %v1113
    %v1171 = vpack.c.b16 %v1117, %v1114
    %v1172 = vpack.c.b16 %v1121, %v1118
    %v1173 = vpack.c.b16 %v1122, %v1119
    %v1174 = vpack.c.b16 %v1123, %v1120
    %v1175 = vpack.c.b16 %v1127, %v1124
    %v1176 = vpack.c.b16 %v1128, %v1125
    %v1177 = vpack.c.b16 %v1129, %v1126
    %1226 = vmatpush.bf16.msra.mxu0 %v1151
    %1227 = vmatpush.bf16.msra.mxu0 %v1148
    %1228 = vmatpush.bf16.msra.mxu0 %v1145
    %1229 = vmatpush.bf16.msra.mxu0 %v1142
    %1230 = vmatpush.bf16.msra.mxu0 %v1139
    %1231 = vmatpush.bf16.msra.mxu0 %v1136
    %1232 = vmatpush.bf16.msra.mxu0 %v1133
    %1233 = vmatpush.bf16.msra.mxu0 %v1130
    %1234 = vmatmul.bf16.gmra.mxu0 %v903
    %v1235 = vpop.f32.mrf.mxu0
    %v1236 = vadd.f32 0.0, %v1235
    %v1237 = vpop.f32.mrf.mxu0
    %v1238 = vadd.f32 0.0, %v1237
    %1239 = vdwg.mxu0
    %1240 = vmatpush.bf16.msra.mxu0 %v1175
    %1241 = vmatpush.bf16.msra.mxu0 %v1172
    %1242 = vmatpush.bf16.msra.mxu0 %v1169
    %1243 = vmatpush.bf16.msra.mxu0 %v1166
    %1244 = vmatpush.bf16.msra.mxu0 %v1163
    %1245 = vmatpush.bf16.msra.mxu0 %v1160
    %1246 = vmatpush.bf16.msra.mxu0 %v1157
    %1247 = vmatpush.bf16.msra.mxu0 %v1154
    %1248 = vmatmul.bf16.gmra.mxu0 %v904
    %v1249 = vpop.f32.mrf.mxu0
    %v1250 = vadd.f32 %v1236, %v1249
    %v1251 = vpop.f32.mrf.mxu0
    %v1252 = vadd.f32 %v1238, %v1251
    %1253 = vdwg.mxu0
    %1254 = vmatpush.bf16.msra.mxu0 %v1152
    %1255 = vmatpush.bf16.msra.mxu0 %v1149
    %1256 = vmatpush.bf16.msra.mxu0 %v1146
    %1257 = vmatpush.bf16.msra.mxu0 %v1143
    %1258 = vmatpush.bf16.msra.mxu0 %v1140
    %1259 = vmatpush.bf16.msra.mxu0 %v1137
    %1260 = vmatpush.bf16.msra.mxu0 %v1134
    %1261 = vmatpush.bf16.msra.mxu0 %v1131
    %1262 = vmatmul.bf16.gmra.mxu0 %v903
    %v1263 = vpop.f32.mrf.mxu0
    %v1264 = vadd.f32 0.0, %v1263
    %v1265 = vpop.f32.mrf.mxu0
    %v1266 = vadd.f32 0.0, %v1265
    %1267 = vdwg.mxu0
    %1268 = vmatpush.bf16.msra.mxu0 %v1176
    %1269 = vmatpush.bf16.msra.mxu0 %v1173
    %1270 = vmatpush.bf16.msra.mxu0 %v1170
    %1271 = vmatpush.bf16.msra.mxu0 %v1167
    %1272 = vmatpush.bf16.msra.mxu0 %v1164
    %1273 = vmatpush.bf16.msra.mxu0 %v1161
    %1274 = vmatpush.bf16.msra.mxu0 %v1158
    %1275 = vmatpush.bf16.msra.mxu0 %v1155
    %1276 = vmatmul.bf16.gmra.mxu0 %v904
    %v1277 = vpop.f32.mrf.mxu0
    %v1278 = vadd.f32 %v1264, %v1277
    %v1279 = vpop.f32.mrf.mxu0
    %v1280 = vadd.f32 %v1266, %v1279
    %1281 = vdwg.mxu0
    %1282 = vmatpush.bf16.msra.mxu0 %v1153
    %1283 = vmatpush.bf16.msra.mxu0 %v1150
    %1284 = vmatpush.bf16.msra.mxu0 %v1147
    %1285 = vmatpush.bf16.msra.mxu0 %v1144
    %1286 = vmatpush.bf16.msra.mxu0 %v1141
    %1287 = vmatpush.bf16.msra.mxu0 %v1138
    %1288 = vmatpush.bf16.msra.mxu0 %v1135
    %1289 = vmatpush.bf16.msra.mxu0 %v1132
    %1290 = vmatmul.bf16.gmra.mxu0 %v903
    %v1291 = vpop.f32.mrf.mxu0
    %v1292 = vadd.f32 0.0, %v1291
    %v1293 = vpop.f32.mrf.mxu0
    %v1294 = vadd.f32 0.0, %v1293
    %1295 = vdwg.mxu0
    %1296 = vmatpush.bf16.msra.mxu0 %v1177
    %1297 = vmatpush.bf16.msra.mxu0 %v1174
    %1298 = vmatpush.bf16.msra.mxu0 %v1171
    %1299 = vmatpush.bf16.msra.mxu0 %v1168
    %1300 = vmatpush.bf16.msra.mxu0 %v1165
    %1301 = vmatpush.bf16.msra.mxu0 %v1162
    %1302 = vmatpush.bf16.msra.mxu0 %v1159
    %1303 = vmatpush.bf16.msra.mxu0 %v1156
    %1304 = vmatmul.bf16.gmra.mxu0 %v904
    %v1305 = vpop.f32.mrf.mxu0
    %v1306 = vadd.f32 %v1292, %v1305
    %v1307 = vpop.f32.mrf.mxu0
    %v1308 = vadd.f32 %v1294, %v1307
    %1309 = vdwg.mxu0
    %v1310 = vadd.f32 %v843, %v1250
    %v1311 = vadd.f32 %v871, %v1278
    %v1312 = vadd.f32 %v899, %v1306
    %v1313 = vadd.f32 %v845, %v1252
    %v1314 = vadd.f32 %v873, %v1280
    %v1315 = vadd.f32 %v901, %v1308
    %v1316 = vld [vmem:[%s2] sm:$0x7]
    %v1318 = vperm.slane %v1316, 0
    %v1319 = vperm.slane %v1316, 1
    %v1320 = vperm.slane %v1316, 2
    %v1324 = vadd.f32 %v1310, %v1318
    %v1325 = vadd.f32 %v1311, %v1319
    %v1326 = vadd.f32 %v1312, %v1320
    %v1327 = vadd.f32 %v1313, %v1318
    %v1328 = vadd.f32 %v1314, %v1319
    %v1329 = vadd.f32 %v1315, %v1320
    %v1330 = vadd.f32 %v1324, %v1327
    %v1331 = vrot.slane %v1330, 4
    %v1332 = vadd.f32 %v1330, %v1331
    %v1333 = vrot.slane %v1332, 2
    %v1334 = vadd.f32 %v1332, %v1333
    %v1335 = vrot.slane %v1334, 1
    %v1336 = vadd.f32 %v1334, %v1335
    %v1337 = vadd.f32 %v1325, %v1328
    %v1338 = vrot.slane %v1337, 4
    %v1339 = vadd.f32 %v1337, %v1338
    %v1340 = vrot.slane %v1339, 2
    %v1341 = vadd.f32 %v1339, %v1340
    %v1342 = vrot.slane %v1341, 1
    %v1343 = vadd.f32 %v1341, %v1342
    %v1344 = vadd.f32 %v1326, %v1329
    %v1345 = vrot.slane %v1344, 4
    %v1346 = vadd.f32 %v1344, %v1345
    %v1347 = vrot.slane %v1346, 2
    %v1348 = vadd.f32 %v1346, %v1347
    %v1349 = vrot.slane %v1348, 1
    %v1350 = vadd.f32 %v1348, %v1349
    %v1351 = vrcp.pop 16.0
    %v1352 = vmul.f32 16.0, %v1351
    %v1353 = vsub.f32 1.0, %v1352
    %v1354 = vmul.f32 %v1351, %v1353
    %v1355 = vadd.f32 %v1351, %v1354
    %vm1356 = vweird.f32 %v1351
    %v1357 = vsel %vm1356, %v1351, %v1355
    %v1358 = vmul.f32 %v1336, %v1357
    %v1359 = vmul.f32 %v1343, %v1357
    %v1360 = vmul.f32 %v1350, %v1357
    %v1361 = vsub.f32 %v1324, %v1358
    %v1362 = vsub.f32 %v1325, %v1359
    %v1363 = vsub.f32 %v1326, %v1360
    %v1364 = vsub.f32 %v1327, %v1358
    %v1365 = vsub.f32 %v1328, %v1359
    %v1366 = vsub.f32 %v1329, %v1360
    %v1367 = vmul.f32 %v1361, %v1361
    %v1368 = vmul.f32 %v1362, %v1362
    %v1369 = vmul.f32 %v1363, %v1363
    %v1370 = vmul.f32 %v1364, %v1364
    %v1371 = vmul.f32 %v1365, %v1365
    %v1372 = vmul.f32 %v1366, %v1366
    %v1373 = vadd.f32 %v1367, %v1370
    %v1374 = vrot.slane %v1373, 4
    %v1375 = vadd.f32 %v1373, %v1374
    %v1376 = vrot.slane %v1375, 2
    %v1377 = vadd.f32 %v1375, %v1376
    %v1378 = vrot.slane %v1377, 1
    %v1379 = vadd.f32 %v1377, %v1378
    %v1380 = vadd.f32 %v1368, %v1371
    %v1381 = vrot.slane %v1380, 4
    %v1382 = vadd.f32 %v1380, %v1381
    %v1383 = vrot.slane %v1382, 2
    %v1384 = vadd.f32 %v1382, %v1383
    %v1385 = vrot.slane %v1384, 1
    %v1386 = vadd.f32 %v1384, %v1385
    %v1387 = vadd.f32 %v1369, %v1372
    %v1388 = vrot.slane %v1387, 4
    %v1389 = vadd.f32 %v1387, %v1388
    %v1390 = vrot.slane %v1389, 2
    %v1391 = vadd.f32 %v1389, %v1390
    %v1392 = vrot.slane %v1391, 1
    %v1393 = vadd.f32 %v1391, %v1392
    %v1394 = vmul.f32 %v1379, %v1357
    %v1395 = vmul.f32 %v1386, %v1357
    %v1396 = vmul.f32 %v1393, %v1357
    %v1397 = vld [vmem:[%s3] sm:$0x7]
    %v1398 = vadd.f32 %v1394, 1e-05
    %v1399 = vadd.f32 %v1395, 1e-05
    %v1400 = vadd.f32 %v1396, 1e-05
    %v1401 = vrsqrt.pop %v1398
    %v1402 = vmul.f32 %v1401, %v1398
    %v1403 = vmul.f32 %v1402, %v1401
    %v1404 = vmul.f32 0.5, %v1403
    %v1405 = vsub.f32 1.5, %v1404
    %v1406 = vmul.f32 %v1401, %v1405
    %vm1407 = vweird.f32 %v1398
    %vm1408 = vweird.f32 %v1401
    %vm1409 = vmor %vm1407, %vm1408
    %v1410 = vsel %vm1409, %v1401, %v1406
    %v1411 = vrsqrt.pop %v1399
    %v1412 = vmul.f32 %v1411, %v1399
    %v1413 = vmul.f32 %v1412, %v1411
    %v1414 = vmul.f32 0.5, %v1413
    %v1415 = vsub.f32 1.5, %v1414
    %v1416 = vmul.f32 %v1411, %v1415
    %vm1417 = vweird.f32 %v1399
    %vm1418 = vweird.f32 %v1411
    %vm1419 = vmor %vm1417, %vm1418
    %v1420 = vsel %vm1419, %v1411, %v1416
    %v1421 = vrsqrt.pop %v1400
    %v1422 = vmul.f32 %v1421, %v1400
    %v1423 = vmul.f32 %v1422, %v1421
    %v1424 = vmul.f32 0.5, %v1423
    %v1425 = vsub.f32 1.5, %v1424
    %v1426 = vmul.f32 %v1421, %v1425
    %vm1427 = vweird.f32 %v1400
    %vm1428 = vweird.f32 %v1421
    %vm1429 = vmor %vm1427, %vm1428
    %v1430 = vsel %vm1429, %v1421, %v1426
    %v1434 = vrot.slane %v1420, 7
    %v1435 = vrot.slane %v1430, 6
    %vm1436 = vcmask 1040384
    %v1437 = vsel %vm1436, %v1410, %v1434
    %vm1438 = vcmask 1041408
    %v1439 = vsel %vm1438, %v1437, %v1435
    %v1441 = vmul.f32 %v1397, %v1439
    %v1443 = vperm.slane %v1441, 0
    %v1444 = vperm.slane %v1441, 1
    %v1445 = vperm.slane %v1441, 2
    %v1449 = vmul.f32 %v1361, %v1443
    %v1450 = vmul.f32 %v1362, %v1444
    %v1451 = vmul.f32 %v1363, %v1445
    %v1452 = vmul.f32 %v1364, %v1443
    %v1453 = vmul.f32 %v1365, %v1444
    %v1454 = vmul.f32 %v1366, %v1445
    %v1455 = vld [vmem:[%s4] sm:$0x7]
    %v1457 = vperm.slane %v1455, 0
    %v1458 = vperm.slane %v1455, 1
    %v1459 = vperm.slane %v1455, 2
    %v1463 = vadd.f32 %v1449, %v1457
    %v1464 = vadd.f32 %v1450, %v1458
    %v1465 = vadd.f32 %v1451, %v1459
    %v1466 = vadd.f32 %v1452, %v1457
    %v1467 = vadd.f32 %v1453, %v1458
    %v1468 = vadd.f32 %v1454, %v1459
    %v1469 = vmax.f32 %v1463, 0.0
    %v1470 = vmax.f32 %v1464, 0.0
    %v1471 = vmax.f32 %v1465, 0.0
    %v1472 = vmax.f32 %v1466, 0.0
    %v1473 = vmax.f32 %v1467, 0.0
    %v1474 = vmax.f32 %v1468, 0.0
    %1475 = vst [vmem:[%s5] sm:$0xff] %v1469
    %1476 = vst [vmem:[%s5 + $0x8] sm:$0xff] %v1470
    %1477 = vst [vmem:[%s5 + $0x10] sm:$0xff] %v1471
    %1478 = vst [vmem:[%s5 + $0x18] sm:$0xff] %v1472
    %1479 = vst [vmem:[%s5 + $0x20] sm:$0xff] %v1473
    %1480 = vst [vmem:[%s5 + $0x28] sm:$0xff] %v1474
    // Predicated region
    $region26: #{score_net_forward.5} parent=1 // pred_check
      _
    $region27: #{score_net_forward.5} parent=1 // pred_check_branch
      %1482 = sbr.rel (0) target = $region29
    $region28: #{score_net_forward.5} parent=1 // pred_region
      _
    $region29: #{score_net_forward.5} parent=1 // pred_fallthru
      _
    // Predicated region
    $region30: #{score_net_forward.5} parent=1 // pred_check
      _
    $region31: #{score_net_forward.5} parent=1 // pred_check_branch
      %1484 = sbr.rel (0) target = $region33
    $region32: #{score_net_forward.5} parent=1 // pred_region
      _
    $region33: #{score_net_forward.5} parent=1 // pred_fallthru
      _
    %1485 = vsyncpa [#allocation3], 1

// kernel: score_net_forward.7
$region0: #{score_net_forward.7}
  #allocation0 [shape = 'u32[]', space=smem, size = 0x4, offset = 0x4, fixed_abs, tag = 'smem constant byte address 0x4 - core index']
  #allocation1 [shape = 'u32[72,128]{1,0:T(1,128)}', space=vmem, size = 0x9000, scoped, tag = 'internal scratch']
  %s0 = inlined_call_operand.vmem [shape: f32[16,384], index: 0, kind: input, shape index: {}]
  %s1 = inlined_call_operand.vmem [shape: f32[16,512], index: 1, kind: input, shape index: {}]
  %s2 = inlined_call_operand.hbm [shape: bf16[3,384,256], index: 2, kind: input, shape index: {}]
  %s3 = inlined_call_operand.vmem [shape: f32[1,256], index: 3, kind: input, shape index: {}]
  %s4 = inlined_call_operand.vmem [shape: f32[1,256], index: 4, kind: input, shape index: {}]
  %s5 = inlined_call_operand.vmem [shape: f32[1,256], index: 5, kind: input, shape index: {}]
  %s6 = inlined_call_operand.hbm [shape: bf16[3,256,128], index: 6, kind: input, shape index: {}]
  %s7 = inlined_call_operand.vmem [shape: f32[1,128], index: 7, kind: input, shape index: {}]
  %s8 = inlined_call_operand.vmem [shape: f32[2,1], index: 8, kind: input, shape index: {}]
  %s9 = inlined_call_operand.vmem [shape: f32[16,256], index: 9, kind: output, shape index: {}]
  %s10 = sld [smem:[#allocation0]]
  $region54: #{score_net_forward.7} parent=0
    _
  %s12 = ssub.s32 1, %s10
  %s13 = scalar_select 0, %s12, %s10
  $region1: #{score_net_forward.7} parent=0
    #allocation2 [shape = 'u8[589824]{0}', space=vmem, size = 0x90000, scoped, tag = 'input window, operand 2, single buffered']
    #allocation3 [shape = 's32[1]{0}', space=sflag, size = 0x4, scoped, tag = 'scoped memory for score_net_forward.7']
    #allocation4 [shape = 'u8[196608]{0}', space=vmem, size = 0x30000, scoped, tag = 'input window, operand 6, single buffered']
    #allocation5 [shape = 's32[1]{0}', space=sflag, size = 0x4, scoped, tag = 'scoped memory for score_net_forward.7']
    %14 = vsyncpa [#allocation3], 0
    %15 = vsyncpa [#allocation5], 0
    // Predicated region
    $region2: #{score_net_forward.7} parent=1 // pred_check
      _
    $region3: #{score_net_forward.7} parent=1 // pred_check_branch
      %17 = sbr.rel (0) target = $region5
    $region4: #{score_net_forward.7} parent=1 // pred_region
      _
    $region5: #{score_net_forward.7} parent=1 // pred_fallthru
      _
    // Predicated region
    $region6: #{score_net_forward.7} parent=1 // pred_check
      _
    $region7: #{score_net_forward.7} parent=1 // pred_check_branch
      %19 = sbr.rel (0) target = $region9
    $region8: #{score_net_forward.7} parent=1 // pred_region
      _
    $region9: #{score_net_forward.7} parent=1 // pred_fallthru
      _
    // Predicated region
    $region10: #{score_net_forward.7} parent=1 // pred_check
      _
    $region11: #{score_net_forward.7} parent=1 // pred_check_branch
      %21 = sbr.rel (0) target = $region13
    $region12: #{score_net_forward.7} parent=1 // pred_region
      %23 = vsyncadd [#allocation3], 0
      %s24 = sshll.u32 %s2, 4
      %s25 = int_to_ptr.hbm [resolvable:$true] %s24
      %s26 = sshll.u32 [#allocation2], 4
      %s27 = int_to_ptr.vmem [resolvable:$true] %s26
      %32 = dma.hbm_to_vmem [thread:$0]  %s25, 18432, %s27, [#allocation3], 128, 128, 8
    $region13: #{score_net_forward.7} parent=1 // pred_fallthru
      _
    // Predicated region
    $region14: #{score_net_forward.7} parent=1 // pred_check
      _
    $region15: #{score_net_forward.7} parent=1 // pred_check_branch
      %34 = sbr.rel (0) target = $region17
    $region16: #{score_net_forward.7} parent=1 // pred_region
      _
    $region17: #{score_net_forward.7} parent=1 // pred_fallthru
      _
    // Predicated region
    $region18: #{score_net_forward.7} parent=1 // pred_check
      _
    $region19: #{score_net_forward.7} parent=1 // pred_check_branch
      %36 = sbr.rel (0) target = $region21
    $region20: #{score_net_forward.7} parent=1 // pred_region
      _
    $region21: #{score_net_forward.7} parent=1 // pred_fallthru
      _
    // Predicated region
    $region22: #{score_net_forward.7} parent=1 // pred_check
      _
    $region23: #{score_net_forward.7} parent=1 // pred_check_branch
      %38 = sbr.rel (0) target = $region25
    $region24: #{score_net_forward.7} parent=1 // pred_region
      _
    $region25: #{score_net_forward.7} parent=1 // pred_fallthru
      _
    // Predicated region
    $region26: #{score_net_forward.7} parent=1 // pred_check
      _
    $region27: #{score_net_forward.7} parent=1 // pred_check_branch
      %40 = sbr.rel (0) target = $region29
    $region28: #{score_net_forward.7} parent=1 // pred_region
      %42 = vsyncadd [#allocation5], 0
      %s43 = sshll.u32 %s6, 4
      %s44 = int_to_ptr.hbm [resolvable:$true] %s43
      %s45 = sshll.u32 [#allocation4], 4
      %s46 = int_to_ptr.vmem [resolvable:$true] %s45
      %51 = dma.hbm_to_vmem [thread:$0]  %s44, 6144, %s46, [#allocation5], 64, 64, 4
    $region29: #{score_net_forward.7} parent=1 // pred_fallthru
      _
    // Predicated region
    $region30: #{score_net_forward.7} parent=1 // pred_check
      _
    $region31: #{score_net_forward.7} parent=1 // pred_check_branch
      %53 = sbr.rel (0) target = $region33
    $region32: #{score_net_forward.7} parent=1 // pred_region
      _
    $region33: #{score_net_forward.7} parent=1 // pred_fallthru
      _
    // Predicated region
    $region34: #{score_net_forward.7} parent=1 // pred_check
      _
    $region35: #{score_net_forward.7} parent=1 // pred_check_branch
      %55 = sbr.rel (0) target = $region37
    $region36: #{score_net_forward.7} parent=1 // pred_region
      _
    $region37: #{score_net_forward.7} parent=1 // pred_fallthru
      _
    // Predicated region
    $region38: #{score_net_forward.7} parent=1 // pred_check
      _
    $region39: #{score_net_forward.7} parent=1 // pred_check_branch
      %57 = sbr.rel (0) target = $region41
    $region40: #{score_net_forward.7} parent=1 // pred_region
      %59 = dma.done [#allocation3], 18432
    $region41: #{score_net_forward.7} parent=1 // pred_fallthru
      _
    // Predicated region
    $region42: #{score_net_forward.7} parent=1 // pred_check
      _
    $region43: #{score_net_forward.7} parent=1 // pred_check_branch
      %61 = sbr.rel (0) target = $region45
    $region44: #{score_net_forward.7} parent=1 // pred_region
      %63 = dma.done [#allocation5], 6144
    $region45: #{score_net_forward.7} parent=1 // pred_fallthru
      _
    %v64 = vld [vmem:[%s0] sm:$0xff]
    %v65 = vld [vmem:[%s0 + $0x8] sm:$0xff]
    %v66 = vld [vmem:[%s0 + $0x10] sm:$0xff]
    %v67 = vld [vmem:[%s0 + $0x18] sm:$0xff]
    %v68 = vld [vmem:[%s0 + $0x20] sm:$0xff]
    %v69 = vld [vmem:[%s0 + $0x28] sm:$0xff]
    %v70 = vrot.slane %v64, 1
    %v71 = vrot.slane %v65, 1
    %v72 = vrot.slane %v66, 1
    %v73 = vrot.slane %v67, 1
    %v74 = vrot.slane %v68, 1
    %v75 = vrot.slane %v69, 1
    %v76 = vlaneseq
    %v77 = vshrl.u32 %v76, 7
    %vm78 = vcmp.lt.s32.totalorder %v77, 7
    %v79 = vsel %vm78, %v70, %v73
    %v80 = vsel %vm78, %v71, %v74
    %v81 = vsel %vm78, %v72, %v75
    %v82 = vsel %vm78, %v73, %v70
    %v83 = vsel %vm78, %v74, %v71
    %v84 = vsel %vm78, %v75, %v72
    %v85 = vadd.s32 %v77, 8
    %vm86 = vcmp.lt.s32.totalorder %v77, 0
    %v87 = vsub.s32 0, %v77
    %v88 = vsel %vm86, %v87, %v77
    %v89 = vshrl.u32 %v88, 3
    %v90 = vand.u32 %v88, 7
    %v91 = vsub.s32 0, %v90
    %v92 = vsel %vm86, %v91, %v90
    %vm93 = vcmp.lt.s32.totalorder %v85, 0
    %v94 = vsub.s32 0, %v85
    %v95 = vsel %vm93, %v94, %v85
    %v96 = vshrl.u32 %v95, 3
    %v97 = vand.u32 %v95, 7
    %v98 = vsub.s32 0, %v97
    %v99 = vsel %vm93, %v98, %v97
    %vm100 = vcmp.ne.s32.totalorder %v92, 0
    %vm101 = vcmp.ne.s32.totalorder %v99, 0
    %vm102 = vcmp.lt.s32.totalorder %v92, 0
    %vm103 = vcmp.lt.s32.totalorder %v99, 0
    %vm104 = vmand %vm102, %vm100
    %vm105 = vmand %vm103, %vm101
    %v106 = vadd.s32 %v92, 8
    %v107 = vadd.s32 %v99, 8
    %v108 = vsel %vm104, %v106, %v92
    %v109 = vsel %vm105, %v107, %v99
    %vm110 = vcmp.lt.s32.totalorder %v108, 7
    %vm111 = vcmp.lt.s32.totalorder %v109, 7
    %v112 = vsel %vm110, 1, 0
    %v113 = vsel %vm111, 1, 0
    %vm114 = vcmp.eq.s32.totalorder %v112, 1
    %vm115 = vcmp.eq.s32.totalorder %v113, 1
    %v116 = vsel %vm114, %v79, 0.0
    %v117 = vsel %vm114, %v80, 0.0
    %v118 = vsel %vm114, %v81, 0.0
    %v119 = vsel %vm115, %v82, 0.0
    %v120 = vsel %vm115, %v83, 0.0
    %v121 = vsel %vm115, %v84, 0.0
    %v122 = vpack.c.bf16 %v119, %v116
    %v123 = vpack.c.bf16 %v120, %v117
    %v124 = vpack.c.bf16 %v121, %v118
    %v125 = vpack.c.bf16 %v67, %v64
    %v126 = vpack.c.bf16 %v68, %v65
    %v127 = vpack.c.bf16 %v69, %v66
    %s128 = scalar_lea.vmem [#allocation2], 384
    %v129 = vld [vmem:[%s128] sm:$0xff]
    %v130 = vld [vmem:[%s128 + $0x8] sm:$0xff]
    %v131 = vld [vmem:[%s128 + $0x10] sm:$0xff]
    %v132 = vld [vmem:[%s128 + $0x18] sm:$0xff]
    %v133 = vld [vmem:[%s128 + $0x20] sm:$0xff]
    %v134 = vld [vmem:[%s128 + $0x28] sm:$0xff]
    %v135 = vld [vmem:[%s128 + $0x30] sm:$0xff]
    %v136 = vld [vmem:[%s128 + $0x38] sm:$0xff]
    %v137 = vld [vmem:[%s128 + $0x40] sm:$0xff]
    %v138 = vld [vmem:[%s128 + $0x48] sm:$0xff]
    %v139 = vld [vmem:[%s128 + $0x50] sm:$0xff]
    %v140 = vld [vmem:[%s128 + $0x58] sm:$0xff]
    %v141 = vld [vmem:[%s128 + $0x60] sm:$0xff]
    %v142 = vld [vmem:[%s128 + $0x68] sm:$0xff]
    %v143 = vld [vmem:[%s128 + $0x70] sm:$0xff]
    %v144 = vld [vmem:[%s128 + $0x78] sm:$0xff]
    %v145 = vld [vmem:[%s128 + $0x80] sm:$0xff]
    %v146 = vld [vmem:[%s128 + $0x88] sm:$0xff]
    %v147 = vld [vmem:[%s128 + $0x90] sm:$0xff]
    %v148 = vld [vmem:[%s128 + $0x98] sm:$0xff]
    %v149 = vld [vmem:[%s128 + $0xa0] sm:$0xff]
    %v150 = vld [vmem:[%s128 + $0xa8] sm:$0xff]
    %v151 = vld [vmem:[%s128 + $0xb0] sm:$0xff]
    %v152 = vld [vmem:[%s128 + $0xb8] sm:$0xff]
    %v153 = vld [vmem:[%s128 + $0xc0] sm:$0xff]
    %v154 = vld [vmem:[%s128 + $0xc8] sm:$0xff]
    %v155 = vld [vmem:[%s128 + $0xd0] sm:$0xff]
    %v156 = vld [vmem:[%s128 + $0xd8] sm:$0xff]
    %v157 = vld [vmem:[%s128 + $0xe0] sm:$0xff]
    %v158 = vld [vmem:[%s128 + $0xe8] sm:$0xff]
    %v159 = vld [vmem:[%s128 + $0xf0] sm:$0xff]
    %v160 = vld [vmem:[%s128 + $0xf8] sm:$0xff]
    %v161 = vld [vmem:[%s128 + $0x100] sm:$0xff]
    %v162 = vld [vmem:[%s128 + $0x108] sm:$0xff]
    %v163 = vld [vmem:[%s128 + $0x110] sm:$0xff]
    %v164 = vld [vmem:[%s128 + $0x118] sm:$0xff]
    %v165 = vld [vmem:[%s128 + $0x120] sm:$0xff]
    %v166 = vld [vmem:[%s128 + $0x128] sm:$0xff]
    %v167 = vld [vmem:[%s128 + $0x130] sm:$0xff]
    %v168 = vld [vmem:[%s128 + $0x138] sm:$0xff]
    %v169 = vld [vmem:[%s128 + $0x140] sm:$0xff]
    %v170 = vld [vmem:[%s128 + $0x148] sm:$0xff]
    %v171 = vld [vmem:[%s128 + $0x150] sm:$0xff]
    %v172 = vld [vmem:[%s128 + $0x158] sm:$0xff]
    %v173 = vld [vmem:[%s128 + $0x160] sm:$0xff]
    %v174 = vld [vmem:[%s128 + $0x168] sm:$0xff]
    %v175 = vld [vmem:[%s128 + $0x170] sm:$0xff]
    %v176 = vld [vmem:[%s128 + $0x178] sm:$0xff]
    %v177 = vld [vmem:[%s3] sm:$0x3]
    %v179 = vperm.slane %v177, 0
    %v180 = vperm.slane %v177, 1
    %v231 = vunpack.c.l.b16 %v129
    %v232 = vunpack.c.h.b16 %v129
    %v233 = vunpack.c.l.b16 %v130
    %v234 = vunpack.c.h.b16 %v130
    %v235 = vunpack.c.l.b16 %v131
    %v236 = vunpack.c.h.b16 %v131
    %v237 = vunpack.c.l.b16 %v132
    %v238 = vunpack.c.h.b16 %v132
    %v239 = vunpack.c.l.b16 %v133
    %v240 = vunpack.c.h.b16 %v133
    %v241 = vunpack.c.l.b16 %v134
    %v242 = vunpack.c.h.b16 %v134
    %v243 = vunpack.c.l.b16 %v135
    %v244 = vunpack.c.h.b16 %v135
    %v245 = vunpack.c.l.b16 %v136
    %v246 = vunpack.c.h.b16 %v136
    %v247 = vunpack.c.l.b16 %v137
    %v248 = vunpack.c.h.b16 %v137
    %v249 = vunpack.c.l.b16 %v138
    %v250 = vunpack.c.h.b16 %v138
    %v251 = vunpack.c.l.b16 %v139
    %v252 = vunpack.c.h.b16 %v139
    %v253 = vunpack.c.l.b16 %v140
    %v254 = vunpack.c.h.b16 %v140
    %v255 = vunpack.c.l.b16 %v141
    %v256 = vunpack.c.h.b16 %v141
    %v257 = vunpack.c.l.b16 %v142
    %v258 = vunpack.c.h.b16 %v142
    %v259 = vunpack.c.l.b16 %v143
    %v260 = vunpack.c.h.b16 %v143
    %v261 = vunpack.c.l.b16 %v144
    %v262 = vunpack.c.h.b16 %v144
    %v263 = vunpack.c.l.b16 %v145
    %v264 = vunpack.c.h.b16 %v145
    %v265 = vunpack.c.l.b16 %v146
    %v266 = vunpack.c.h.b16 %v146
    %v267 = vunpack.c.l.b16 %v147
    %v268 = vunpack.c.h.b16 %v147
    %v269 = vunpack.c.l.b16 %v148
    %v270 = vunpack.c.h.b16 %v148
    %v271 = vunpack.c.l.b16 %v149
    %v272 = vunpack.c.h.b16 %v149
    %v273 = vunpack.c.l.b16 %v150
    %v274 = vunpack.c.h.b16 %v150
    %v275 = vunpack.c.l.b16 %v151
    %v276 = vunpack.c.h.b16 %v151
    %v277 = vunpack.c.l.b16 %v152
    %v278 = vunpack.c.h.b16 %v152
    %v279 = vunpack.c.l.b16 %v153
    %v280 = vunpack.c.h.b16 %v153
    %v281 = vunpack.c.l.b16 %v154
    %v282 = vunpack.c.h.b16 %v154
    %v283 = vunpack.c.l.b16 %v155
    %v284 = vunpack.c.h.b16 %v155
    %v285 = vunpack.c.l.b16 %v156
    %v286 = vunpack.c.h.b16 %v156
    %v287 = vunpack.c.l.b16 %v157
    %v288 = vunpack.c.h.b16 %v157
    %v289 = vunpack.c.l.b16 %v158
    %v290 = vunpack.c.h.b16 %v158
    %v291 = vunpack.c.l.b16 %v159
    %v292 = vunpack.c.h.b16 %v159
    %v293 = vunpack.c.l.b16 %v160
    %v294 = vunpack.c.h.b16 %v160
    %v295 = vunpack.c.l.b16 %v161
    %v296 = vunpack.c.h.b16 %v161
    %v297 = vunpack.c.l.b16 %v162
    %v298 = vunpack.c.h.b16 %v162
    %v299 = vunpack.c.l.b16 %v163
    %v300 = vunpack.c.h.b16 %v163
    %v301 = vunpack.c.l.b16 %v164
    %v302 = vunpack.c.h.b16 %v164
    %v303 = vunpack.c.l.b16 %v165
    %v304 = vunpack.c.h.b16 %v165
    %v305 = vunpack.c.l.b16 %v166
    %v306 = vunpack.c.h.b16 %v166
    %v307 = vunpack.c.l.b16 %v167
    %v308 = vunpack.c.h.b16 %v167
    %v309 = vunpack.c.l.b16 %v168
    %v310 = vunpack.c.h.b16 %v168
    %v311 = vunpack.c.l.b16 %v169
    %v312 = vunpack.c.h.b16 %v169
    %v313 = vunpack.c.l.b16 %v170
    %v314 = vunpack.c.h.b16 %v170
    %v315 = vunpack.c.l.b16 %v171
    %v316 = vunpack.c.h.b16 %v171
    %v317 = vunpack.c.l.b16 %v172
    %v318 = vunpack.c.h.b16 %v172
    %v319 = vunpack.c.l.b16 %v173
    %v320 = vunpack.c.h.b16 %v173
    %v321 = vunpack.c.l.b16 %v174
    %v322 = vunpack.c.h.b16 %v174
    %v323 = vunpack.c.l.b16 %v175
    %v324 = vunpack.c.h.b16 %v175
    %v325 = vunpack.c.l.b16 %v176
    %v326 = vunpack.c.h.b16 %v176
    %v327 = vpack.c.b16 %v233, %v231
    %v328 = vpack.c.b16 %v234, %v232
    %v329 = vpack.c.b16 %v237, %v235
    %v330 = vpack.c.b16 %v238, %v236
    %v331 = vpack.c.b16 %v241, %v239
    %v332 = vpack.c.b16 %v242, %v240
    %v333 = vpack.c.b16 %v245, %v243
    %v334 = vpack.c.b16 %v246, %v244
    %v335 = vpack.c.b16 %v249, %v247
    %v336 = vpack.c.b16 %v250, %v248
    %v337 = vpack.c.b16 %v253, %v251
    %v338 = vpack.c.b16 %v254, %v252
    %v339 = vpack.c.b16 %v257, %v255
    %v340 = vpack.c.b16 %v258, %v256
    %v341 = vpack.c.b16 %v261, %v259
    %v342 = vpack.c.b16 %v262, %v260
    %v343 = vpack.c.b16 %v265, %v263
    %v344 = vpack.c.b16 %v266, %v264
    %v345 = vpack.c.b16 %v269, %v267
    %v346 = vpack.c.b16 %v270, %v268
    %v347 = vpack.c.b16 %v273, %v271
    %v348 = vpack.c.b16 %v274, %v272
    %v349 = vpack.c.b16 %v277, %v275
    %v350 = vpack.c.b16 %v278, %v276
    %v351 = vpack.c.b16 %v281, %v279
    %v352 = vpack.c.b16 %v282, %v280
    %v353 = vpack.c.b16 %v285, %v283
    %v354 = vpack.c.b16 %v286, %v284
    %v355 = vpack.c.b16 %v289, %v287
    %v356 = vpack.c.b16 %v290, %v288
    %v357 = vpack.c.b16 %v293, %v291
    %v358 = vpack.c.b16 %v294, %v292
    %v359 = vpack.c.b16 %v297, %v295
    %v360 = vpack.c.b16 %v298, %v296
    %v361 = vpack.c.b16 %v301, %v299
    %v362 = vpack.c.b16 %v302, %v300
    %v363 = vpack.c.b16 %v305, %v303
    %v364 = vpack.c.b16 %v306, %v304
    %v365 = vpack.c.b16 %v309, %v307
    %v366 = vpack.c.b16 %v310, %v308
    %v367 = vpack.c.b16 %v313, %v311
    %v368 = vpack.c.b16 %v314, %v312
    %v369 = vpack.c.b16 %v317, %v315
    %v370 = vpack.c.b16 %v318, %v316
    %v371 = vpack.c.b16 %v321, %v319
    %v372 = vpack.c.b16 %v322, %v320
    %v373 = vpack.c.b16 %v325, %v323
    %v374 = vpack.c.b16 %v326, %v324
    %423 = vmatpush.bf16.msra.mxu0 %v341
    %424 = vmatpush.bf16.msra.mxu0 %v339
    %425 = vmatpush.bf16.msra.mxu0 %v337
    %426 = vmatpush.bf16.msra.mxu0 %v335
    %427 = vmatpush.bf16.msra.mxu0 %v333
    %428 = vmatpush.bf16.msra.mxu0 %v331
    %429 = vmatpush.bf16.msra.mxu0 %v329
    %430 = vmatpush.bf16.msra.mxu0 %v327
    %431 = vmatmul.bf16.gmra.mxu0 %v125
    %v432 = vpop.f32.mrf.mxu0
    %v433 = vadd.f32 %v179, %v432
    %v434 = vpop.f32.mrf.mxu0
    %v435 = vadd.f32 %v179, %v434
    %436 = vdwg.mxu0
    %437 = vmatpush.bf16.msra.mxu0 %v357
    %438 = vmatpush.bf16.msra.mxu0 %v355
    %439 = vmatpush.bf16.msra.mxu0 %v353
    %440 = vmatpush.bf16.msra.mxu0 %v351
    %441 = vmatpush.bf16.msra.mxu0 %v349
    %442 = vmatpush.bf16.msra.mxu0 %v347
    %443 = vmatpush.bf16.msra.mxu0 %v345
    %444 = vmatpush.bf16.msra.mxu0 %v343
    %445 = vmatmul.bf16.gmra.mxu0 %v126
    %v446 = vpop.f32.mrf.mxu0
    %v447 = vadd.f32 %v433, %v446
    %v448 = vpop.f32.mrf.mxu0
    %v449 = vadd.f32 %v435, %v448
    %450 = vdwg.mxu0
    %451 = vmatpush.bf16.msra.mxu0 %v373
    %452 = vmatpush.bf16.msra.mxu0 %v371
    %453 = vmatpush.bf16.msra.mxu0 %v369
    %454 = vmatpush.bf16.msra.mxu0 %v367
    %455 = vmatpush.bf16.msra.mxu0 %v365
    %456 = vmatpush.bf16.msra.mxu0 %v363
    %457 = vmatpush.bf16.msra.mxu0 %v361
    %458 = vmatpush.bf16.msra.mxu0 %v359
    %459 = vmatmul.bf16.gmra.mxu0 %v127
    %v460 = vpop.f32.mrf.mxu0
    %v461 = vadd.f32 %v447, %v460
    %v462 = vpop.f32.mrf.mxu0
    %v463 = vadd.f32 %v449, %v462
    %464 = vdwg.mxu0
    %465 = vmatpush.bf16.msra.mxu0 %v342
    %466 = vmatpush.bf16.msra.mxu0 %v340
    %467 = vmatpush.bf16.msra.mxu0 %v338
    %468 = vmatpush.bf16.msra.mxu0 %v336
    %469 = vmatpush.bf16.msra.mxu0 %v334
    %470 = vmatpush.bf16.msra.mxu0 %v332
    %471 = vmatpush.bf16.msra.mxu0 %v330
    %472 = vmatpush.bf16.msra.mxu0 %v328
    %473 = vmatmul.bf16.gmra.mxu0 %v125
    %v474 = vpop.f32.mrf.mxu0
    %v475 = vadd.f32 %v180, %v474
    %v476 = vpop.f32.mrf.mxu0
    %v477 = vadd.f32 %v180, %v476
    %478 = vdwg.mxu0
    %479 = vmatpush.bf16.msra.mxu0 %v358
    %480 = vmatpush.bf16.msra.mxu0 %v356
    %481 = vmatpush.bf16.msra.mxu0 %v354
    %482 = vmatpush.bf16.msra.mxu0 %v352
    %483 = vmatpush.bf16.msra.mxu0 %v350
    %484 = vmatpush.bf16.msra.mxu0 %v348
    %485 = vmatpush.bf16.msra.mxu0 %v346
    %486 = vmatpush.bf16.msra.mxu0 %v344
    %487 = vmatmul.bf16.gmra.mxu0 %v126
    %v488 = vpop.f32.mrf.mxu0
    %v489 = vadd.f32 %v475, %v488
    %v490 = vpop.f32.mrf.mxu0
    %v491 = vadd.f32 %v477, %v490
    %492 = vdwg.mxu0
    %493 = vmatpush.bf16.msra.mxu0 %v374
    %494 = vmatpush.bf16.msra.mxu0 %v372
    %495 = vmatpush.bf16.msra.mxu0 %v370
    %496 = vmatpush.bf16.msra.mxu0 %v368
    %497 = vmatpush.bf16.msra.mxu0 %v366
    %498 = vmatpush.bf16.msra.mxu0 %v364
    %499 = vmatpush.bf16.msra.mxu0 %v362
    %500 = vmatpush.bf16.msra.mxu0 %v360
    %501 = vmatmul.bf16.gmra.mxu0 %v127
    %v502 = vpop.f32.mrf.mxu0
    %v503 = vadd.f32 %v489, %v502
    %v504 = vpop.f32.mrf.mxu0
    %v505 = vadd.f32 %v491, %v504
    %506 = vdwg.mxu0
    %s507 = scalar_lea.vmem [#allocation2], 768
    %v508 = vld [vmem:[%s507] sm:$0xff]
    %v509 = vld [vmem:[%s507 + $0x8] sm:$0xff]
    %v510 = vld [vmem:[%s507 + $0x10] sm:$0xff]
    %v511 = vld [vmem:[%s507 + $0x18] sm:$0xff]
    %v512 = vld [vmem:[%s507 + $0x20] sm:$0xff]
    %v513 = vld [vmem:[%s507 + $0x28] sm:$0xff]
    %v514 = vld [vmem:[%s507 + $0x30] sm:$0xff]
    %v515 = vld [vmem:[%s507 + $0x38] sm:$0xff]
    %v516 = vld [vmem:[%s507 + $0x40] sm:$0xff]
    %v517 = vld [vmem:[%s507 + $0x48] sm:$0xff]
    %v518 = vld [vmem:[%s507 + $0x50] sm:$0xff]
    %v519 = vld [vmem:[%s507 + $0x58] sm:$0xff]
    %v520 = vld [vmem:[%s507 + $0x60] sm:$0xff]
    %v521 = vld [vmem:[%s507 + $0x68] sm:$0xff]
    %v522 = vld [vmem:[%s507 + $0x70] sm:$0xff]
    %v523 = vld [vmem:[%s507 + $0x78] sm:$0xff]
    %v524 = vld [vmem:[%s507 + $0x80] sm:$0xff]
    %v525 = vld [vmem:[%s507 + $0x88] sm:$0xff]
    %v526 = vld [vmem:[%s507 + $0x90] sm:$0xff]
    %v527 = vld [vmem:[%s507 + $0x98] sm:$0xff]
    %v528 = vld [vmem:[%s507 + $0xa0] sm:$0xff]
    %v529 = vld [vmem:[%s507 + $0xa8] sm:$0xff]
    %v530 = vld [vmem:[%s507 + $0xb0] sm:$0xff]
    %v531 = vld [vmem:[%s507 + $0xb8] sm:$0xff]
    %v532 = vld [vmem:[%s507 + $0xc0] sm:$0xff]
    %v533 = vld [vmem:[%s507 + $0xc8] sm:$0xff]
    %v534 = vld [vmem:[%s507 + $0xd0] sm:$0xff]
    %v535 = vld [vmem:[%s507 + $0xd8] sm:$0xff]
    %v536 = vld [vmem:[%s507 + $0xe0] sm:$0xff]
    %v537 = vld [vmem:[%s507 + $0xe8] sm:$0xff]
    %v538 = vld [vmem:[%s507 + $0xf0] sm:$0xff]
    %v539 = vld [vmem:[%s507 + $0xf8] sm:$0xff]
    %v540 = vld [vmem:[%s507 + $0x100] sm:$0xff]
    %v541 = vld [vmem:[%s507 + $0x108] sm:$0xff]
    %v542 = vld [vmem:[%s507 + $0x110] sm:$0xff]
    %v543 = vld [vmem:[%s507 + $0x118] sm:$0xff]
    %v544 = vld [vmem:[%s507 + $0x120] sm:$0xff]
    %v545 = vld [vmem:[%s507 + $0x128] sm:$0xff]
    %v546 = vld [vmem:[%s507 + $0x130] sm:$0xff]
    %v547 = vld [vmem:[%s507 + $0x138] sm:$0xff]
    %v548 = vld [vmem:[%s507 + $0x140] sm:$0xff]
    %v549 = vld [vmem:[%s507 + $0x148] sm:$0xff]
    %v550 = vld [vmem:[%s507 + $0x150] sm:$0xff]
    %v551 = vld [vmem:[%s507 + $0x158] sm:$0xff]
    %v552 = vld [vmem:[%s507 + $0x160] sm:$0xff]
    %v553 = vld [vmem:[%s507 + $0x168] sm:$0xff]
    %v554 = vld [vmem:[%s507 + $0x170] sm:$0xff]
    %v555 = vld [vmem:[%s507 + $0x178] sm:$0xff]
    %v556 = vld [vmem:[#allocation2] sm:$0xff]
    %v557 = vld [vmem:[#allocation2 + $0x8] sm:$0xff]
    %v558 = vld [vmem:[#allocation2 + $0x10] sm:$0xff]
    %v559 = vld [vmem:[#allocation2 + $0x18] sm:$0xff]
    %v560 = vld [vmem:[#allocation2 + $0x20] sm:$0xff]
    %v561 = vld [vmem:[#allocation2 + $0x28] sm:$0xff]
    %v562 = vld [vmem:[#allocation2 + $0x30] sm:$0xff]
    %v563 = vld [vmem:[#allocation2 + $0x38] sm:$0xff]
    %v564 = vld [vmem:[#allocation2 + $0x40] sm:$0xff]
    %v565 = vld [vmem:[#allocation2 + $0x48] sm:$0xff]
    %v566 = vld [vmem:[#allocation2 + $0x50] sm:$0xff]
    %v567 = vld [vmem:[#allocation2 + $0x58] sm:$0xff]
    %v568 = vld [vmem:[#allocation2 + $0x60] sm:$0xff]
    %v569 = vld [vmem:[#allocation2 + $0x68] sm:$0xff]
    %v570 = vld [vmem:[#allocation2 + $0x70] sm:$0xff]
    %v571 = vld [vmem:[#allocation2 + $0x78] sm:$0xff]
    %v572 = vld [vmem:[#allocation2 + $0x80] sm:$0xff]
    %v573 = vld [vmem:[#allocation2 + $0x88] sm:$0xff]
    %v574 = vld [vmem:[#allocation2 + $0x90] sm:$0xff]
    %v575 = vld [vmem:[#allocation2 + $0x98] sm:$0xff]
    %v576 = vld [vmem:[#allocation2 + $0xa0] sm:$0xff]
    %v577 = vld [vmem:[#allocation2 + $0xa8] sm:$0xff]
    %v578 = vld [vmem:[#allocation2 + $0xb0] sm:$0xff]
    %v579 = vld [vmem:[#allocation2 + $0xb8] sm:$0xff]
    %v580 = vld [vmem:[#allocation2 + $0xc0] sm:$0xff]
    %v581 = vld [vmem:[#allocation2 + $0xc8] sm:$0xff]
    %v582 = vld [vmem:[#allocation2 + $0xd0] sm:$0xff]
    %v583 = vld [vmem:[#allocation2 + $0xd8] sm:$0xff]
    %v584 = vld [vmem:[#allocation2 + $0xe0] sm:$0xff]
    %v585 = vld [vmem:[#allocation2 + $0xe8] sm:$0xff]
    %v586 = vld [vmem:[#allocation2 + $0xf0] sm:$0xff]
    %v587 = vld [vmem:[#allocation2 + $0xf8] sm:$0xff]
    %v588 = vld [vmem:[#allocation2 + $0x100] sm:$0xff]
    %v589 = vld [vmem:[#allocation2 + $0x108] sm:$0xff]
    %v590 = vld [vmem:[#allocation2 + $0x110] sm:$0xff]
    %v591 = vld [vmem:[#allocation2 + $0x118] sm:$0xff]
    %v592 = vld [vmem:[#allocation2 + $0x120] sm:$0xff]
    %v593 = vld [vmem:[#allocation2 + $0x128] sm:$0xff]
    %v594 = vld [vmem:[#allocation2 + $0x130] sm:$0xff]
    %v595 = vld [vmem:[#allocation2 + $0x138] sm:$0xff]
    %v596 = vld [vmem:[#allocation2 + $0x140] sm:$0xff]
    %v597 = vld [vmem:[#allocation2 + $0x148] sm:$0xff]
    %v598 = vld [vmem:[#allocation2 + $0x150] sm:$0xff]
    %v599 = vld [vmem:[#allocation2 + $0x158] sm:$0xff]
    %v600 = vld [vmem:[#allocation2 + $0x160] sm:$0xff]
    %v601 = vld [vmem:[#allocation2 + $0x168] sm:$0xff]
    %v602 = vld [vmem:[#allocation2 + $0x170] sm:$0xff]
    %v603 = vld [vmem:[#allocation2 + $0x178] sm:$0xff]
    %v652 = vunpack.c.l.b16 %v556
    %v653 = vunpack.c.h.b16 %v556
    %v654 = vunpack.c.l.b16 %v557
    %v655 = vunpack.c.h.b16 %v557
    %v656 = vunpack.c.l.b16 %v558
    %v657 = vunpack.c.h.b16 %v558
    %v658 = vunpack.c.l.b16 %v559
    %v659 = vunpack.c.h.b16 %v559
    %v660 = vunpack.c.l.b16 %v560
    %v661 = vunpack.c.h.b16 %v560
    %v662 = vunpack.c.l.b16 %v561
    %v663 = vunpack.c.h.b16 %v561
    %v664 = vunpack.c.l.b16 %v562
    %v665 = vunpack.c.h.b16 %v562
    %v666 = vunpack.c.l.b16 %v563
    %v667 = vunpack.c.h.b16 %v563
    %v668 = vunpack.c.l.b16 %v564
    %v669 = vunpack.c.h.b16 %v564
    %v670 = vunpack.c.l.b16 %v565
    %v671 = vunpack.c.h.b16 %v565
    %v672 = vunpack.c.l.b16 %v566
    %v673 = vunpack.c.h.b16 %v566
    %v674 = vunpack.c.l.b16 %v567
    %v675 = vunpack.c.h.b16 %v567
    %v676 = vunpack.c.l.b16 %v568
    %v677 = vunpack.c.h.b16 %v568
    %v678 = vunpack.c.l.b16 %v569
    %v679 = vunpack.c.h.b16 %v569
    %v680 = vunpack.c.l.b16 %v570
    %v681 = vunpack.c.h.b16 %v570
    %v682 = vunpack.c.l.b16 %v571
    %v683 = vunpack.c.h.b16 %v571
    %v684 = vunpack.c.l.b16 %v572
    %v685 = vunpack.c.h.b16 %v572
    %v686 = vunpack.c.l.b16 %v573
    %v687 = vunpack.c.h.b16 %v573
    %v688 = vunpack.c.l.b16 %v574
    %v689 = vunpack.c.h.b16 %v574
    %v690 = vunpack.c.l.b16 %v575
    %v691 = vunpack.c.h.b16 %v575
    %v692 = vunpack.c.l.b16 %v576
    %v693 = vunpack.c.h.b16 %v576
    %v694 = vunpack.c.l.b16 %v577
    %v695 = vunpack.c.h.b16 %v577
    %v696 = vunpack.c.l.b16 %v578
    %v697 = vunpack.c.h.b16 %v578
    %v698 = vunpack.c.l.b16 %v579
    %v699 = vunpack.c.h.b16 %v579
    %v700 = vunpack.c.l.b16 %v580
    %v701 = vunpack.c.h.b16 %v580
    %v702 = vunpack.c.l.b16 %v581
    %v703 = vunpack.c.h.b16 %v581
    %v704 = vunpack.c.l.b16 %v582
    %v705 = vunpack.c.h.b16 %v582
    %v706 = vunpack.c.l.b16 %v583
    %v707 = vunpack.c.h.b16 %v583
    %v708 = vunpack.c.l.b16 %v584
    %v709 = vunpack.c.h.b16 %v584
    %v710 = vunpack.c.l.b16 %v585
    %v711 = vunpack.c.h.b16 %v585
    %v712 = vunpack.c.l.b16 %v586
    %v713 = vunpack.c.h.b16 %v586
    %v714 = vunpack.c.l.b16 %v587
    %v715 = vunpack.c.h.b16 %v587
    %v716 = vunpack.c.l.b16 %v588
    %v717 = vunpack.c.h.b16 %v588
    %v718 = vunpack.c.l.b16 %v589
    %v719 = vunpack.c.h.b16 %v589
    %v720 = vunpack.c.l.b16 %v590
    %v721 = vunpack.c.h.b16 %v590
    %v722 = vunpack.c.l.b16 %v591
    %v723 = vunpack.c.h.b16 %v591
    %v724 = vunpack.c.l.b16 %v592
    %v725 = vunpack.c.h.b16 %v592
    %v726 = vunpack.c.l.b16 %v593
    %v727 = vunpack.c.h.b16 %v593
    %v728 = vunpack.c.l.b16 %v594
    %v729 = vunpack.c.h.b16 %v594
    %v730 = vunpack.c.l.b16 %v595
    %v731 = vunpack.c.h.b16 %v595
    %v732 = vunpack.c.l.b16 %v596
    %v733 = vunpack.c.h.b16 %v596
    %v734 = vunpack.c.l.b16 %v597
    %v735 = vunpack.c.h.b16 %v597
    %v736 = vunpack.c.l.b16 %v598
    %v737 = vunpack.c.h.b16 %v598
    %v738 = vunpack.c.l.b16 %v599
    %v739 = vunpack.c.h.b16 %v599
    %v740 = vunpack.c.l.b16 %v600
    %v741 = vunpack.c.h.b16 %v600
    %v742 = vunpack.c.l.b16 %v601
    %v743 = vunpack.c.h.b16 %v601
    %v744 = vunpack.c.l.b16 %v602
    %v745 = vunpack.c.h.b16 %v602
    %v746 = vunpack.c.l.b16 %v603
    %v747 = vunpack.c.h.b16 %v603
    %v748 = vpack.c.b16 %v654, %v652
    %v749 = vpack.c.b16 %v655, %v653
    %v750 = vpack.c.b16 %v658, %v656
    %v751 = vpack.c.b16 %v659, %v657
    %v752 = vpack.c.b16 %v662, %v660
    %v753 = vpack.c.b16 %v663, %v661
    %v754 = vpack.c.b16 %v666, %v664
    %v755 = vpack.c.b16 %v667, %v665
    %v756 = vpack.c.b16 %v670, %v668
    %v757 = vpack.c.b16 %v671, %v669
    %v758 = vpack.c.b16 %v674, %v672
    %v759 = vpack.c.b16 %v675, %v673
    %v760 = vpack.c.b16 %v678, %v676
    %v761 = vpack.c.b16 %v679, %v677
    %v762 = vpack.c.b16 %v682, %v680
    %v763 = vpack.c.b16 %v683, %v681
    %v764 = vpack.c.b16 %v686, %v684
    %v765 = vpack.c.b16 %v687, %v685
    %v766 = vpack.c.b16 %v690, %v688
    %v767 = vpack.c.b16 %v691, %v689
    %v768 = vpack.c.b16 %v694, %v692
    %v769 = vpack.c.b16 %v695, %v693
    %v770 = vpack.c.b16 %v698, %v696
    %v771 = vpack.c.b16 %v699, %v697
    %v772 = vpack.c.b16 %v702, %v700
    %v773 = vpack.c.b16 %v703, %v701
    %v774 = vpack.c.b16 %v706, %v704
    %v775 = vpack.c.b16 %v707, %v705
    %v776 = vpack.c.b16 %v710, %v708
    %v777 = vpack.c.b16 %v711, %v709
    %v778 = vpack.c.b16 %v714, %v712
    %v779 = vpack.c.b16 %v715, %v713
    %v780 = vpack.c.b16 %v718, %v716
    %v781 = vpack.c.b16 %v719, %v717
    %v782 = vpack.c.b16 %v722, %v720
    %v783 = vpack.c.b16 %v723, %v721
    %v784 = vpack.c.b16 %v726, %v724
    %v785 = vpack.c.b16 %v727, %v725
    %v786 = vpack.c.b16 %v730, %v728
    %v787 = vpack.c.b16 %v731, %v729
    %v788 = vpack.c.b16 %v734, %v732
    %v789 = vpack.c.b16 %v735, %v733
    %v790 = vpack.c.b16 %v738, %v736
    %v791 = vpack.c.b16 %v739, %v737
    %v792 = vpack.c.b16 %v742, %v740
    %v793 = vpack.c.b16 %v743, %v741
    %v794 = vpack.c.b16 %v746, %v744
    %v795 = vpack.c.b16 %v747, %v745
    %844 = vmatpush.bf16.msra.mxu0 %v762
    %845 = vmatpush.bf16.msra.mxu0 %v760
    %846 = vmatpush.bf16.msra.mxu0 %v758
    %847 = vmatpush.bf16.msra.mxu0 %v756
    %848 = vmatpush.bf16.msra.mxu0 %v754
    %849 = vmatpush.bf16.msra.mxu0 %v752
    %850 = vmatpush.bf16.msra.mxu0 %v750
    %851 = vmatpush.bf16.msra.mxu0 %v748
    %852 = vmatmul.bf16.gmra.mxu0 %v122
    %v853 = vpop.f32.mrf.mxu0
    %v854 = vadd.f32 0.0, %v853
    %v855 = vpop.f32.mrf.mxu0
    %v856 = vadd.f32 0.0, %v855
    %857 = vdwg.mxu0
    %858 = vmatpush.bf16.msra.mxu0 %v778
    %859 = vmatpush.bf16.msra.mxu0 %v776
    %860 = vmatpush.bf16.msra.mxu0 %v774
    %861 = vmatpush.bf16.msra.mxu0 %v772
    %862 = vmatpush.bf16.msra.mxu0 %v770
    %863 = vmatpush.bf16.msra.mxu0 %v768
    %864 = vmatpush.bf16.msra.mxu0 %v766
    %865 = vmatpush.bf16.msra.mxu0 %v764
    %866 = vmatmul.bf16.gmra.mxu0 %v123
    %v867 = vpop.f32.mrf.mxu0
    %v868 = vadd.f32 %v854, %v867
    %v869 = vpop.f32.mrf.mxu0
    %v870 = vadd.f32 %v856, %v869
    %871 = vdwg.mxu0
    %872 = vmatpush.bf16.msra.mxu0 %v794
    %873 = vmatpush.bf16.msra.mxu0 %v792
    %874 = vmatpush.bf16.msra.mxu0 %v790
    %875 = vmatpush.bf16.msra.mxu0 %v788
    %876 = vmatpush.bf16.msra.mxu0 %v786
    %877 = vmatpush.bf16.msra.mxu0 %v784
    %878 = vmatpush.bf16.msra.mxu0 %v782
    %879 = vmatpush.bf16.msra.mxu0 %v780
    %880 = vmatmul.bf16.gmra.mxu0 %v124
    %v881 = vpop.f32.mrf.mxu0
    %v882 = vadd.f32 %v868, %v881
    %v883 = vpop.f32.mrf.mxu0
    %v884 = vadd.f32 %v870, %v883
    %885 = vdwg.mxu0
    %886 = vmatpush.bf16.msra.mxu0 %v763
    %887 = vmatpush.bf16.msra.mxu0 %v761
    %888 = vmatpush.bf16.msra.mxu0 %v759
    %889 = vmatpush.bf16.msra.mxu0 %v757
    %890 = vmatpush.bf16.msra.mxu0 %v755
    %891 = vmatpush.bf16.msra.mxu0 %v753
    %892 = vmatpush.bf16.msra.mxu0 %v751
    %893 = vmatpush.bf16.msra.mxu0 %v749
    %894 = vmatmul.bf16.gmra.mxu0 %v122
    %v895 = vpop.f32.mrf.mxu0
    %v896 = vadd.f32 0.0, %v895
    %v897 = vpop.f32.mrf.mxu0
    %v898 = vadd.f32 0.0, %v897
    %899 = vdwg.mxu0
    %900 = vmatpush.bf16.msra.mxu0 %v779
    %901 = vmatpush.bf16.msra.mxu0 %v777
    %902 = vmatpush.bf16.msra.mxu0 %v775
    %903 = vmatpush.bf16.msra.mxu0 %v773
    %904 = vmatpush.bf16.msra.mxu0 %v771
    %905 = vmatpush.bf16.msra.mxu0 %v769
    %906 = vmatpush.bf16.msra.mxu0 %v767
    %907 = vmatpush.bf16.msra.mxu0 %v765
    %908 = vmatmul.bf16.gmra.mxu0 %v123
    %v909 = vpop.f32.mrf.mxu0
    %v910 = vadd.f32 %v896, %v909
    %v911 = vpop.f32.mrf.mxu0
    %v912 = vadd.f32 %v898, %v911
    %913 = vdwg.mxu0
    %914 = vmatpush.bf16.msra.mxu0 %v795
    %915 = vmatpush.bf16.msra.mxu0 %v793
    %916 = vmatpush.bf16.msra.mxu0 %v791
    %917 = vmatpush.bf16.msra.mxu0 %v789
    %918 = vmatpush.bf16.msra.mxu0 %v787
    %919 = vmatpush.bf16.msra.mxu0 %v785
    %920 = vmatpush.bf16.msra.mxu0 %v783
    %921 = vmatpush.bf16.msra.mxu0 %v781
    %922 = vmatmul.bf16.gmra.mxu0 %v124
    %v923 = vpop.f32.mrf.mxu0
    %v924 = vadd.f32 %v910, %v923
    %v925 = vpop.f32.mrf.mxu0
    %v926 = vadd.f32 %v912, %v925
    %927 = vdwg.mxu0
    %v976 = vunpack.c.l.b16 %v508
    %v977 = vunpack.c.h.b16 %v508
    %v978 = vunpack.c.l.b16 %v509
    %v979 = vunpack.c.h.b16 %v509
    %v980 = vunpack.c.l.b16 %v510
    %v981 = vunpack.c.h.b16 %v510
    %v982 = vunpack.c.l.b16 %v511
    %v983 = vunpack.c.h.b16 %v511
    %v984 = vunpack.c.l.b16 %v512
    %v985 = vunpack.c.h.b16 %v512
    %v986 = vunpack.c.l.b16 %v513
    %v987 = vunpack.c.h.b16 %v513
    %v988 = vunpack.c.l.b16 %v514
    %v989 = vunpack.c.h.b16 %v514
    %v990 = vunpack.c.l.b16 %v515
    %v991 = vunpack.c.h.b16 %v515
    %v992 = vunpack.c.l.b16 %v516
    %v993 = vunpack.c.h.b16 %v516
    %v994 = vunpack.c.l.b16 %v517
    %v995 = vunpack.c.h.b16 %v517
    %v996 = vunpack.c.l.b16 %v518
    %v997 = vunpack.c.h.b16 %v518
    %v998 = vunpack.c.l.b16 %v519
    %v999 = vunpack.c.h.b16 %v519
    %v1000 = vunpack.c.l.b16 %v520
    %v1001 = vunpack.c.h.b16 %v520
    %v1002 = vunpack.c.l.b16 %v521
    %v1003 = vunpack.c.h.b16 %v521
    %v1004 = vunpack.c.l.b16 %v522
    %v1005 = vunpack.c.h.b16 %v522
    %v1006 = vunpack.c.l.b16 %v523
    %v1007 = vunpack.c.h.b16 %v523
    %v1008 = vunpack.c.l.b16 %v524
    %v1009 = vunpack.c.h.b16 %v524
    %v1010 = vunpack.c.l.b16 %v525
    %v1011 = vunpack.c.h.b16 %v525
    %v1012 = vunpack.c.l.b16 %v526
    %v1013 = vunpack.c.h.b16 %v526
    %v1014 = vunpack.c.l.b16 %v527
    %v1015 = vunpack.c.h.b16 %v527
    %v1016 = vunpack.c.l.b16 %v528
    %v1017 = vunpack.c.h.b16 %v528
    %v1018 = vunpack.c.l.b16 %v529
    %v1019 = vunpack.c.h.b16 %v529
    %v1020 = vunpack.c.l.b16 %v530
    %v1021 = vunpack.c.h.b16 %v530
    %v1022 = vunpack.c.l.b16 %v531
    %v1023 = vunpack.c.h.b16 %v531
    %v1024 = vunpack.c.l.b16 %v532
    %v1025 = vunpack.c.h.b16 %v532
    %v1026 = vunpack.c.l.b16 %v533
    %v1027 = vunpack.c.h.b16 %v533
    %v1028 = vunpack.c.l.b16 %v534
    %v1029 = vunpack.c.h.b16 %v534
    %v1030 = vunpack.c.l.b16 %v535
    %v1031 = vunpack.c.h.b16 %v535
    %v1032 = vunpack.c.l.b16 %v536
    %v1033 = vunpack.c.h.b16 %v536
    %v1034 = vunpack.c.l.b16 %v537
    %v1035 = vunpack.c.h.b16 %v537
    %v1036 = vunpack.c.l.b16 %v538
    %v1037 = vunpack.c.h.b16 %v538
    %v1038 = vunpack.c.l.b16 %v539
    %v1039 = vunpack.c.h.b16 %v539
    %v1040 = vunpack.c.l.b16 %v540
    %v1041 = vunpack.c.h.b16 %v540
    %v1042 = vunpack.c.l.b16 %v541
    %v1043 = vunpack.c.h.b16 %v541
    %v1044 = vunpack.c.l.b16 %v542
    %v1045 = vunpack.c.h.b16 %v542
    %v1046 = vunpack.c.l.b16 %v543
    %v1047 = vunpack.c.h.b16 %v543
    %v1048 = vunpack.c.l.b16 %v544
    %v1049 = vunpack.c.h.b16 %v544
    %v1050 = vunpack.c.l.b16 %v545
    %v1051 = vunpack.c.h.b16 %v545
    %v1052 = vunpack.c.l.b16 %v546
    %v1053 = vunpack.c.h.b16 %v546
    %v1054 = vunpack.c.l.b16 %v547
    %v1055 = vunpack.c.h.b16 %v547
    %v1056 = vunpack.c.l.b16 %v548
    %v1057 = vunpack.c.h.b16 %v548
    %v1058 = vunpack.c.l.b16 %v549
    %v1059 = vunpack.c.h.b16 %v549
    %v1060 = vunpack.c.l.b16 %v550
    %v1061 = vunpack.c.h.b16 %v550
    %v1062 = vunpack.c.l.b16 %v551
    %v1063 = vunpack.c.h.b16 %v551
    %v1064 = vunpack.c.l.b16 %v552
    %v1065 = vunpack.c.h.b16 %v552
    %v1066 = vunpack.c.l.b16 %v553
    %v1067 = vunpack.c.h.b16 %v553
    %v1068 = vunpack.c.l.b16 %v554
    %v1069 = vunpack.c.h.b16 %v554
    %v1070 = vunpack.c.l.b16 %v555
    %v1071 = vunpack.c.h.b16 %v555
    %v1072 = vpack.c.b16 %v978, %v976
    %v1073 = vpack.c.b16 %v979, %v977
    %v1074 = vpack.c.b16 %v982, %v980
    %v1075 = vpack.c.b16 %v983, %v981
    %v1076 = vpack.c.b16 %v986, %v984
    %v1077 = vpack.c.b16 %v987, %v985
    %v1078 = vpack.c.b16 %v990, %v988
    %v1079 = vpack.c.b16 %v991, %v989
    %v1080 = vpack.c.b16 %v994, %v992
    %v1081 = vpack.c.b16 %v995, %v993
    %v1082 = vpack.c.b16 %v998, %v996
    %v1083 = vpack.c.b16 %v999, %v997
    %v1084 = vpack.c.b16 %v1002, %v1000
    %v1085 = vpack.c.b16 %v1003, %v1001
    %v1086 = vpack.c.b16 %v1006, %v1004
    %v1087 = vpack.c.b16 %v1007, %v1005
    %v1088 = vpack.c.b16 %v1010, %v1008
    %v1089 = vpack.c.b16 %v1011, %v1009
    %v1090 = vpack.c.b16 %v1014, %v1012
    %v1091 = vpack.c.b16 %v1015, %v1013
    %v1092 = vpack.c.b16 %v1018, %v1016
    %v1093 = vpack.c.b16 %v1019, %v1017
    %v1094 = vpack.c.b16 %v1022, %v1020
    %v1095 = vpack.c.b16 %v1023, %v1021
    %v1096 = vpack.c.b16 %v1026, %v1024
    %v1097 = vpack.c.b16 %v1027, %v1025
    %v1098 = vpack.c.b16 %v1030, %v1028
    %v1099 = vpack.c.b16 %v1031, %v1029
    %v1100 = vpack.c.b16 %v1034, %v1032
    %v1101 = vpack.c.b16 %v1035, %v1033
    %v1102 = vpack.c.b16 %v1038, %v1036
    %v1103 = vpack.c.b16 %v1039, %v1037
    %v1104 = vpack.c.b16 %v1042, %v1040
    %v1105 = vpack.c.b16 %v1043, %v1041
    %v1106 = vpack.c.b16 %v1046, %v1044
    %v1107 = vpack.c.b16 %v1047, %v1045
    %v1108 = vpack.c.b16 %v1050, %v1048
    %v1109 = vpack.c.b16 %v1051, %v1049
    %v1110 = vpack.c.b16 %v1054, %v1052
    %v1111 = vpack.c.b16 %v1055, %v1053
    %v1112 = vpack.c.b16 %v1058, %v1056
    %v1113 = vpack.c.b16 %v1059, %v1057
    %v1114 = vpack.c.b16 %v1062, %v1060
    %v1115 = vpack.c.b16 %v1063, %v1061
    %v1116 = vpack.c.b16 %v1066, %v1064
    %v1117 = vpack.c.b16 %v1067, %v1065
    %v1118 = vpack.c.b16 %v1070, %v1068
    %v1119 = vpack.c.b16 %v1071, %v1069
    %1168 = vmatpush.bf16.msra.mxu0 %v1086
    %1169 = vmatpush.bf16.msra.mxu0 %v1084
    %1170 = vmatpush.bf16.msra.mxu0 %v1082
    %1171 = vmatpush.bf16.msra.mxu0 %v1080
    %1172 = vmatpush.bf16.msra.mxu0 %v1078
    %1173 = vmatpush.bf16.msra.mxu0 %v1076
    %1174 = vmatpush.bf16.msra.mxu0 %v1074
    %1175 = vmatpush.bf16.msra.mxu0 %v1072
    %1176 = vmatmul.bf16.gmra.mxu0 %v125
    %v1177 = vpop.f32.mrf.mxu0
    %v1178 = vadd.f32 %v882, %v1177
    %v1179 = vpop.f32.mrf.mxu0
    %v1180 = vadd.f32 %v884, %v1179
    %1181 = vdwg.mxu0
    %1182 = vmatpush.bf16.msra.mxu0 %v1102
    %1183 = vmatpush.bf16.msra.mxu0 %v1100
    %1184 = vmatpush.bf16.msra.mxu0 %v1098
    %1185 = vmatpush.bf16.msra.mxu0 %v1096
    %1186 = vmatpush.bf16.msra.mxu0 %v1094
    %1187 = vmatpush.bf16.msra.mxu0 %v1092
    %1188 = vmatpush.bf16.msra.mxu0 %v1090
    %1189 = vmatpush.bf16.msra.mxu0 %v1088
    %1190 = vmatmul.bf16.gmra.mxu0 %v126
    %v1191 = vpop.f32.mrf.mxu0
    %v1192 = vadd.f32 %v1178, %v1191
    %v1193 = vpop.f32.mrf.mxu0
    %v1194 = vadd.f32 %v1180, %v1193
    %1195 = vdwg.mxu0
    %1196 = vmatpush.bf16.msra.mxu0 %v1118
    %1197 = vmatpush.bf16.msra.mxu0 %v1116
    %1198 = vmatpush.bf16.msra.mxu0 %v1114
    %1199 = vmatpush.bf16.msra.mxu0 %v1112
    %1200 = vmatpush.bf16.msra.mxu0 %v1110
    %1201 = vmatpush.bf16.msra.mxu0 %v1108
    %1202 = vmatpush.bf16.msra.mxu0 %v1106
    %1203 = vmatpush.bf16.msra.mxu0 %v1104
    %1204 = vmatmul.bf16.gmra.mxu0 %v127
    %v1205 = vpop.f32.mrf.mxu0
    %v1206 = vadd.f32 %v1192, %v1205
    %v1207 = vpop.f32.mrf.mxu0
    %v1208 = vadd.f32 %v1194, %v1207
    %1209 = vdwg.mxu0
    %1210 = vmatpush.bf16.msra.mxu0 %v1087
    %1211 = vmatpush.bf16.msra.mxu0 %v1085
    %1212 = vmatpush.bf16.msra.mxu0 %v1083
    %1213 = vmatpush.bf16.msra.mxu0 %v1081
    %1214 = vmatpush.bf16.msra.mxu0 %v1079
    %1215 = vmatpush.bf16.msra.mxu0 %v1077
    %1216 = vmatpush.bf16.msra.mxu0 %v1075
    %1217 = vmatpush.bf16.msra.mxu0 %v1073
    %1218 = vmatmul.bf16.gmra.mxu0 %v125
    %v1219 = vpop.f32.mrf.mxu0
    %v1220 = vadd.f32 %v924, %v1219
    %v1221 = vpop.f32.mrf.mxu0
    %v1222 = vadd.f32 %v926, %v1221
    %1223 = vdwg.mxu0
    %1224 = vmatpush.bf16.msra.mxu0 %v1103
    %1225 = vmatpush.bf16.msra.mxu0 %v1101
    %1226 = vmatpush.bf16.msra.mxu0 %v1099
    %1227 = vmatpush.bf16.msra.mxu0 %v1097
    %1228 = vmatpush.bf16.msra.mxu0 %v1095
    %1229 = vmatpush.bf16.msra.mxu0 %v1093
    %1230 = vmatpush.bf16.msra.mxu0 %v1091
    %1231 = vmatpush.bf16.msra.mxu0 %v1089
    %1232 = vmatmul.bf16.gmra.mxu0 %v126
    %v1233 = vpop.f32.mrf.mxu0
    %v1234 = vadd.f32 %v1220, %v1233
    %v1235 = vpop.f32.mrf.mxu0
    %v1236 = vadd.f32 %v1222, %v1235
    %1237 = vdwg.mxu0
    %1238 = vmatpush.bf16.msra.mxu0 %v1119
    %1239 = vmatpush.bf16.msra.mxu0 %v1117
    %1240 = vmatpush.bf16.msra.mxu0 %v1115
    %1241 = vmatpush.bf16.msra.mxu0 %v1113
    %1242 = vmatpush.bf16.msra.mxu0 %v1111
    %1243 = vmatpush.bf16.msra.mxu0 %v1109
    %1244 = vmatpush.bf16.msra.mxu0 %v1107
    %1245 = vmatpush.bf16.msra.mxu0 %v1105
    %1246 = vmatmul.bf16.gmra.mxu0 %v127
    %v1247 = vpop.f32.mrf.mxu0
    %v1248 = vadd.f32 %v1234, %v1247
    %v1249 = vpop.f32.mrf.mxu0
    %v1250 = vadd.f32 %v1236, %v1249
    %1251 = vdwg.mxu0
    %v1252 = vadd.f32 %v1206, %v179
    %v1253 = vadd.f32 %v1248, %v180
    %v1254 = vadd.f32 %v1208, %v179
    %v1255 = vadd.f32 %v1250, %v180
    %v1256 = vadd.f32 %v461, %v463
    %v1257 = vrot.slane %v1256, 4
    %v1258 = vadd.f32 %v1256, %v1257
    %v1259 = vrot.slane %v1258, 2
    %v1260 = vadd.f32 %v1258, %v1259
    %v1261 = vrot.slane %v1260, 1
    %v1262 = vadd.f32 %v1260, %v1261
    %v1263 = vadd.f32 %v503, %v505
    %v1264 = vrot.slane %v1263, 4
    %v1265 = vadd.f32 %v1263, %v1264
    %v1266 = vrot.slane %v1265, 2
    %v1267 = vadd.f32 %v1265, %v1266
    %v1268 = vrot.slane %v1267, 1
    %v1269 = vadd.f32 %v1267, %v1268
    %v1270 = vadd.f32 %v1252, %v1254
    %v1271 = vrot.slane %v1270, 4
    %v1272 = vadd.f32 %v1270, %v1271
    %v1273 = vrot.slane %v1272, 2
    %v1274 = vadd.f32 %v1272, %v1273
    %v1275 = vrot.slane %v1274, 1
    %v1276 = vadd.f32 %v1274, %v1275
    %v1277 = vadd.f32 %v1253, %v1255
    %v1278 = vrot.slane %v1277, 4
    %v1279 = vadd.f32 %v1277, %v1278
    %v1280 = vrot.slane %v1279, 2
    %v1281 = vadd.f32 %v1279, %v1280
    %v1282 = vrot.slane %v1281, 1
    %v1283 = vadd.f32 %v1281, %v1282
    %v1284 = vadd.f32 %v1262, %v1276
    %v1285 = vadd.f32 %v1269, %v1283
    %v1286 = vrcp.pop 32.0
    %v1287 = vmul.f32 32.0, %v1286
    %v1288 = vsub.f32 1.0, %v1287
    %v1289 = vmul.f32 %v1286, %v1288
    %v1290 = vadd.f32 %v1286, %v1289
    %vm1291 = vweird.f32 %v1286
    %v1292 = vsel %vm1291, %v1286, %v1290
    %v1293 = vmul.f32 %v1284, %v1292
    %v1294 = vmul.f32 %v1285, %v1292
    %v1295 = vsub.f32 %v461, %v1293
    %v1296 = vsub.f32 %v503, %v1294
    %v1297 = vsub.f32 %v463, %v1293
    %v1298 = vsub.f32 %v505, %v1294
    %v1299 = vmul.f32 %v1295, %v1295
    %v1300 = vmul.f32 %v1296, %v1296
    %v1301 = vmul.f32 %v1297, %v1297
    %v1302 = vmul.f32 %v1298, %v1298
    %v1303 = vadd.f32 %v1299, %v1301
    %v1304 = vrot.slane %v1303, 4
    %v1305 = vadd.f32 %v1303, %v1304
    %v1306 = vrot.slane %v1305, 2
    %v1307 = vadd.f32 %v1305, %v1306
    %v1308 = vrot.slane %v1307, 1
    %v1309 = vadd.f32 %v1307, %v1308
    %v1310 = vadd.f32 %v1300, %v1302
    %v1311 = vrot.slane %v1310, 4
    %v1312 = vadd.f32 %v1310, %v1311
    %v1313 = vrot.slane %v1312, 2
    %v1314 = vadd.f32 %v1312, %v1313
    %v1315 = vrot.slane %v1314, 1
    %v1316 = vadd.f32 %v1314, %v1315
    %v1317 = vsub.f32 %v1252, %v1293
    %v1318 = vsub.f32 %v1253, %v1294
    %v1319 = vsub.f32 %v1254, %v1293
    %v1320 = vsub.f32 %v1255, %v1294
    %v1321 = vmul.f32 %v1317, %v1317
    %v1322 = vmul.f32 %v1318, %v1318
    %v1323 = vmul.f32 %v1319, %v1319
    %v1324 = vmul.f32 %v1320, %v1320
    %v1325 = vadd.f32 %v1321, %v1323
    %v1326 = vrot.slane %v1325, 4
    %v1327 = vadd.f32 %v1325, %v1326
    %v1328 = vrot.slane %v1327, 2
    %v1329 = vadd.f32 %v1327, %v1328
    %v1330 = vrot.slane %v1329, 1
    %v1331 = vadd.f32 %v1329, %v1330
    %v1332 = vadd.f32 %v1322, %v1324
    %v1333 = vrot.slane %v1332, 4
    %v1334 = vadd.f32 %v1332, %v1333
    %v1335 = vrot.slane %v1334, 2
    %v1336 = vadd.f32 %v1334, %v1335
    %v1337 = vrot.slane %v1336, 1
    %v1338 = vadd.f32 %v1336, %v1337
    %v1339 = vadd.f32 %v1309, %v1331
    %v1340 = vadd.f32 %v1316, %v1338
    %v1341 = vmul.f32 %v1339, %v1292
    %v1342 = vmul.f32 %v1340, %v1292
    %v1343 = vld [vmem:[%s4] sm:$0x3]
    %v1344 = vadd.f32 %v1341, 1e-05
    %v1345 = vadd.f32 %v1342, 1e-05
    %v1346 = vrsqrt.pop %v1344
    %v1347 = vmul.f32 %v1346, %v1344
    %v1348 = vmul.f32 %v1347, %v1346
    %v1349 = vmul.f32 0.5, %v1348
    %v1350 = vsub.f32 1.5, %v1349
    %v1351 = vmul.f32 %v1346, %v1350
    %vm1352 = vweird.f32 %v1344
    %vm1353 = vweird.f32 %v1346
    %vm1354 = vmor %vm1352, %vm1353
    %v1355 = vsel %vm1354, %v1346, %v1351
    %v1356 = vrsqrt.pop %v1345
    %v1357 = vmul.f32 %v1356, %v1345
    %v1358 = vmul.f32 %v1357, %v1356
    %v1359 = vmul.f32 0.5, %v1358
    %v1360 = vsub.f32 1.5, %v1359
    %v1361 = vmul.f32 %v1356, %v1360
    %vm1362 = vweird.f32 %v1345
    %vm1363 = vweird.f32 %v1356
    %vm1364 = vmor %vm1362, %vm1363
    %v1365 = vsel %vm1364, %v1356, %v1361
    %v1368 = vrot.slane %v1365, 7
    %vm1369 = vcmask 1040384
    %v1370 = vsel %vm1369, %v1355, %v1368
    %v1372 = vmul.f32 %v1343, %v1370
    %v1373 = vld [vmem:[%s5] sm:$0x3]
    %v1375 = vperm.slane %v1372, 0
    %v1376 = vperm.slane %v1372, 1
    %v1379 = vmul.f32 %v1293, %v1375
    %v1380 = vmul.f32 %v1294, %v1376
    %v1383 = vrot.slane %v1380, 7
    %v1384 = vsel %vm1369, %v1379, %v1383
    %v1386 = vsub.f32 %v1373, %v1384
    %v1387 = vld [vmem:[%s1] sm:$0xff]
    %v1388 = vld [vmem:[%s1 + $0x8] sm:$0xff]
    %v1389 = vld [vmem:[%s1 + $0x10] sm:$0xff]
    %v1390 = vld [vmem:[%s1 + $0x18] sm:$0xff]
    %v1391 = vld [vmem:[%s1 + $0x20] sm:$0xff]
    %v1392 = vld [vmem:[%s1 + $0x28] sm:$0xff]
    %v1393 = vld [vmem:[%s1 + $0x30] sm:$0xff]
    %v1394 = vld [vmem:[%s1 + $0x38] sm:$0xff]
    %v1395 = vmul.f32 %v461, %v1375
    %v1396 = vmul.f32 %v503, %v1376
    %v1397 = vmul.f32 %v463, %v1375
    %v1398 = vmul.f32 %v505, %v1376
    %v1400 = vperm.slane %v1386, 0
    %v1401 = vperm.slane %v1386, 1
    %v1404 = vadd.f32 %v1395, %v1400
    %v1405 = vadd.f32 %v1396, %v1401
    %v1406 = vadd.f32 %v1397, %v1400
    %v1407 = vadd.f32 %v1398, %v1401
    %v1408 = vmax.f32 %v1404, 0.0
    %v1409 = vmax.f32 %v1405, 0.0
    %v1410 = vmax.f32 %v1406, 0.0
    %v1411 = vmax.f32 %v1407, 0.0
    %v1412 = vadd.f32 %v1408, %v1387
    %v1413 = vadd.f32 %v1409, %v1388
    %v1414 = vadd.f32 %v1410, %v1391
    %v1415 = vadd.f32 %v1411, %v1392
    %v1416 = vmul.f32 %v1252, %v1375
    %v1417 = vmul.f32 %v1253, %v1376
    %v1418 = vmul.f32 %v1254, %v1375
    %v1419 = vmul.f32 %v1255, %v1376
    %v1420 = vadd.f32 %v1416, %v1400
    %v1421 = vadd.f32 %v1417, %v1401
    %v1422 = vadd.f32 %v1418, %v1400
    %v1423 = vadd.f32 %v1419, %v1401
    %v1424 = vmax.f32 %v1420, 0.0
    %v1425 = vmax.f32 %v1421, 0.0
    %v1426 = vmax.f32 %v1422, 0.0
    %v1427 = vmax.f32 %v1423, 0.0
    %v1428 = vadd.f32 %v1424, %v1389
    %v1429 = vadd.f32 %v1425, %v1390
    %v1430 = vadd.f32 %v1426, %v1393
    %v1431 = vadd.f32 %v1427, %v1394
    %v1432 = vrot.slane %v1428, 7
    %v1433 = vrot.slane %v1429, 7
    %v1434 = vrot.slane %v1430, 7
    %v1435 = vrot.slane %v1431, 7
    %vm1436 = vcmp.lt.s32.totalorder %v77, 1
    %v1437 = vsel %vm1436, %v1432, %v1434
    %v1438 = vsel %vm1436, %v1433, %v1435
    %v1439 = vsel %vm1436, %v1434, %v1432
    %v1440 = vsel %vm1436, %v1435, %v1433
    %vm1441 = vcmp.ge.s32.totalorder %v108, 1
    %vm1442 = vcmp.ge.s32.totalorder %v109, 1
    %v1443 = vsel %vm1441, 1, 0
    %v1444 = vsel %vm1442, 1, 0
    %vm1445 = vcmp.eq.s32.totalorder %v1443, 1
    %vm1446 = vcmp.eq.s32.totalorder %v1444, 1
    %v1447 = vsel %vm1445, %v1439, 0.0
    %v1448 = vsel %vm1445, %v1440, 0.0
    %v1449 = vsel %vm1446, %v1437, 0.0
    %v1450 = vsel %vm1446, %v1438, 0.0
    %v1451 = vpack.c.bf16 %v1449, %v1447
    %v1452 = vpack.c.bf16 %v1450, %v1448
    %v1453 = vrot.slane %v1412, 1
    %v1454 = vrot.slane %v1413, 1
    %v1455 = vrot.slane %v1414, 1
    %v1456 = vrot.slane %v1415, 1
    %v1457 = vsel %vm78, %v1453, %v1455
    %v1458 = vsel %vm78, %v1454, %v1456
    %v1459 = vsel %vm78, %v1455, %v1453
    %v1460 = vsel %vm78, %v1456, %v1454
    %v1461 = vsel %vm114, %v1457, 0.0
    %v1462 = vsel %vm114, %v1458, 0.0
    %v1463 = vsel %vm115, %v1459, 0.0
    %v1464 = vsel %vm115, %v1460, 0.0
    %v1465 = vpack.c.bf16 %v1463, %v1461
    %v1466 = vpack.c.bf16 %v1464, %v1462
    %v1467 = vpack.c.bf16 %v1414, %v1412
    %v1468 = vpack.c.bf16 %v1415, %v1413
    %v1469 = vpack.c.bf16 %v1430, %v1428
    %v1470 = vpack.c.bf16 %v1431, %v1429
    %v1471 = vld [vmem:[#allocation4] sm:$0xf]
    %v1472 = vld [vmem:[#allocation4 + $0x4] sm:$0xf]
    %v1473 = vld [vmem:[#allocation4 + $0x8] sm:$0xf]
    %v1474 = vld [vmem:[#allocation4 + $0xc] sm:$0xf]
    %v1475 = vld [vmem:[#allocation4 + $0x10] sm:$0xf]
    %v1476 = vld [vmem:[#allocation4 + $0x14] sm:$0xf]
    %v1477 = vld [vmem:[#allocation4 + $0x18] sm:$0xf]
    %v1478 = vld [vmem:[#allocation4 + $0x1c] sm:$0xf]
    %v1479 = vld [vmem:[#allocation4 + $0x20] sm:$0xf]
    %v1480 = vld [vmem:[#allocation4 + $0x24] sm:$0xf]
    %v1481 = vld [vmem:[#allocation4 + $0x28] sm:$0xf]
    %v1482 = vld [vmem:[#allocation4 + $0x2c] sm:$0xf]
    %v1483 = vld [vmem:[#allocation4 + $0x30] sm:$0xf]
    %v1484 = vld [vmem:[#allocation4 + $0x34] sm:$0xf]
    %v1485 = vld [vmem:[#allocation4 + $0x38] sm:$0xf]
    %v1486 = vld [vmem:[#allocation4 + $0x3c] sm:$0xf]
    %v1487 = vld [vmem:[#allocation4 + $0x40] sm:$0xf]
    %v1488 = vld [vmem:[#allocation4 + $0x44] sm:$0xf]
    %v1489 = vld [vmem:[#allocation4 + $0x48] sm:$0xf]
    %v1490 = vld [vmem:[#allocation4 + $0x4c] sm:$0xf]
    %v1491 = vld [vmem:[#allocation4 + $0x50] sm:$0xf]
    %v1492 = vld [vmem:[#allocation4 + $0x54] sm:$0xf]
    %v1493 = vld [vmem:[#allocation4 + $0x58] sm:$0xf]
    %v1494 = vld [vmem:[#allocation4 + $0x5c] sm:$0xf]
    %v1495 = vld [vmem:[#allocation4 + $0x60] sm:$0xf]
    %v1496 = vld [vmem:[#allocation4 + $0x64] sm:$0xf]
    %v1497 = vld [vmem:[#allocation4 + $0x68] sm:$0xf]
    %v1498 = vld [vmem:[#allocation4 + $0x6c] sm:$0xf]
    %v1499 = vld [vmem:[#allocation4 + $0x70] sm:$0xf]
    %v1500 = vld [vmem:[#allocation4 + $0x74] sm:$0xf]
    %v1501 = vld [vmem:[#allocation4 + $0x78] sm:$0xf]
    %v1502 = vld [vmem:[#allocation4 + $0x7c] sm:$0xf]
    %s1503 = scalar_lea.vmem [#allocation4], 128
    %v1504 = vld [vmem:[%s1503] sm:$0xf]
    %v1505 = vld [vmem:[%s1503 + $0x4] sm:$0xf]
    %v1506 = vld [vmem:[%s1503 + $0x8] sm:$0xf]
    %v1507 = vld [vmem:[%s1503 + $0xc] sm:$0xf]
    %v1508 = vld [vmem:[%s1503 + $0x10] sm:$0xf]
    %v1509 = vld [vmem:[%s1503 + $0x14] sm:$0xf]
    %v1510 = vld [vmem:[%s1503 + $0x18] sm:$0xf]
    %v1511 = vld [vmem:[%s1503 + $0x1c] sm:$0xf]
    %v1512 = vld [vmem:[%s1503 + $0x20] sm:$0xf]
    %v1513 = vld [vmem:[%s1503 + $0x24] sm:$0xf]
    %v1514 = vld [vmem:[%s1503 + $0x28] sm:$0xf]
    %v1515 = vld [vmem:[%s1503 + $0x2c] sm:$0xf]
    %v1516 = vld [vmem:[%s1503 + $0x30] sm:$0xf]
    %v1517 = vld [vmem:[%s1503 + $0x34] sm:$0xf]
    %v1518 = vld [vmem:[%s1503 + $0x38] sm:$0xf]
    %v1519 = vld [vmem:[%s1503 + $0x3c] sm:$0xf]
    %v1520 = vld [vmem:[%s1503 + $0x40] sm:$0xf]
    %v1521 = vld [vmem:[%s1503 + $0x44] sm:$0xf]
    %v1522 = vld [vmem:[%s1503 + $0x48] sm:$0xf]
    %v1523 = vld [vmem:[%s1503 + $0x4c] sm:$0xf]
    %v1524 = vld [vmem:[%s1503 + $0x50] sm:$0xf]
    %v1525 = vld [vmem:[%s1503 + $0x54] sm:$0xf]
    %v1526 = vld [vmem:[%s1503 + $0x58] sm:$0xf]
    %v1527 = vld [vmem:[%s1503 + $0x5c] sm:$0xf]
    %v1528 = vld [vmem:[%s1503 + $0x60] sm:$0xf]
    %v1529 = vld [vmem:[%s1503 + $0x64] sm:$0xf]
    %v1530 = vld [vmem:[%s1503 + $0x68] sm:$0xf]
    %v1531 = vld [vmem:[%s1503 + $0x6c] sm:$0xf]
    %v1532 = vld [vmem:[%s1503 + $0x70] sm:$0xf]
    %v1533 = vld [vmem:[%s1503 + $0x74] sm:$0xf]
    %v1534 = vld [vmem:[%s1503 + $0x78] sm:$0xf]
    %v1535 = vld [vmem:[%s1503 + $0x7c] sm:$0xf]
    %v1568 = vunpack.c.l.b16 %v1504
    %v1569 = vunpack.c.l.b16 %v1505
    %v1570 = vunpack.c.l.b16 %v1506
    %v1571 = vunpack.c.l.b16 %v1507
    %v1572 = vunpack.c.l.b16 %v1508
    %v1573 = vunpack.c.l.b16 %v1509
    %v1574 = vunpack.c.l.b16 %v1510
    %v1575 = vunpack.c.l.b16 %v1511
    %v1576 = vunpack.c.l.b16 %v1512
    %v1577 = vunpack.c.l.b16 %v1513
    %v1578 = vunpack.c.l.b16 %v1514
    %v1579 = vunpack.c.l.b16 %v1515
    %v1580 = vunpack.c.l.b16 %v1516
    %v1581 = vunpack.c.l.b16 %v1517
    %v1582 = vunpack.c.l.b16 %v1518
    %v1583 = vunpack.c.l.b16 %v1519
    %v1584 = vunpack.c.l.b16 %v1520
    %v1585 = vunpack.c.l.b16 %v1521
    %v1586 = vunpack.c.l.b16 %v1522
    %v1587 = vunpack.c.l.b16 %v1523
    %v1588 = vunpack.c.l.b16 %v1524
    %v1589 = vunpack.c.l.b16 %v1525
    %v1590 = vunpack.c.l.b16 %v1526
    %v1591 = vunpack.c.l.b16 %v1527
    %v1592 = vunpack.c.l.b16 %v1528
    %v1593 = vunpack.c.l.b16 %v1529
    %v1594 = vunpack.c.l.b16 %v1530
    %v1595 = vunpack.c.l.b16 %v1531
    %v1596 = vunpack.c.l.b16 %v1532
    %v1597 = vunpack.c.l.b16 %v1533
    %v1598 = vunpack.c.l.b16 %v1534
    %v1599 = vunpack.c.l.b16 %v1535
    %v1600 = vpack.c.b16 %v1569, %v1568
    %v1601 = vpack.c.b16 %v1571, %v1570
    %v1602 = vpack.c.b16 %v1573, %v1572
    %v1603 = vpack.c.b16 %v1575, %v1574
    %v1604 = vpack.c.b16 %v1577, %v1576
    %v1605 = vpack.c.b16 %v1579, %v1578
    %v1606 = vpack.c.b16 %v1581, %v1580
    %v1607 = vpack.c.b16 %v1583, %v1582
    %v1608 = vpack.c.b16 %v1585, %v1584
    %v1609 = vpack.c.b16 %v1587, %v1586
    %v1610 = vpack.c.b16 %v1589, %v1588
    %v1611 = vpack.c.b16 %v1591, %v1590
    %v1612 = vpack.c.b16 %v1593, %v1592
    %v1613 = vpack.c.b16 %v1595, %v1594
    %v1614 = vpack.c.b16 %v1597, %v1596
    %v1615 = vpack.c.b16 %v1599, %v1598
    %1632 = vmatpush.bf16.msra.mxu0 %v1607
    %1633 = vmatpush.bf16.msra.mxu0 %v1606
    %1634 = vmatpush.bf16.msra.mxu0 %v1605
    %1635 = vmatpush.bf16.msra.mxu0 %v1604
    %1636 = vmatpush.bf16.msra.mxu0 %v1603
    %1637 = vmatpush.bf16.msra.mxu0 %v1602
    %1638 = vmatpush.bf16.msra.mxu0 %v1601
    %1639 = vmatpush.bf16.msra.mxu0 %v1600
    %1640 = vmatmul.bf16.gmra.mxu0 %v1467
    %v1641 = vpop.f32.mrf.mxu0
    %v1642 = vadd.f32 0.0, %v1641
    %v1643 = vpop.f32.mrf.mxu0
    %v1644 = vadd.f32 0.0, %v1643
    %1645 = vdwg.mxu0
    %1646 = vmatpush.bf16.msra.mxu0 %v1615
    %1647 = vmatpush.bf16.msra.mxu0 %v1614
    %1648 = vmatpush.bf16.msra.mxu0 %v1613
    %1649 = vmatpush.bf16.msra.mxu0 %v1612
    %1650 = vmatpush.bf16.msra.mxu0 %v1611
    %1651 = vmatpush.bf16.msra.mxu0 %v1610
    %1652 = vmatpush.bf16.msra.mxu0 %v1609
    %1653 = vmatpush.bf16.msra.mxu0 %v1608
    %1654 = vmatmul.bf16.gmra.mxu0 %v1468
    %v1655 = vpop.f32.mrf.mxu0
    %v1656 = vadd.f32 %v1642, %v1655
    %v1657 = vpop.f32.mrf.mxu0
    %v1658 = vadd.f32 %v1644, %v1657
    %1659 = vdwg.mxu0
    %v1692 = vunpack.c.l.b16 %v1471
    %v1693 = vunpack.c.l.b16 %v1472
    %v1694 = vunpack.c.l.b16 %v1473
    %v1695 = vunpack.c.l.b16 %v1474
    %v1696 = vunpack.c.l.b16 %v1475
    %v1697 = vunpack.c.l.b16 %v1476
    %v1698 = vunpack.c.l.b16 %v1477
    %v1699 = vunpack.c.l.b16 %v1478
    %v1700 = vunpack.c.l.b16 %v1479
    %v1701 = vunpack.c.l.b16 %v1480
    %v1702 = vunpack.c.l.b16 %v1481
    %v1703 = vunpack.c.l.b16 %v1482
    %v1704 = vunpack.c.l.b16 %v1483
    %v1705 = vunpack.c.l.b16 %v1484
    %v1706 = vunpack.c.l.b16 %v1485
    %v1707 = vunpack.c.l.b16 %v1486
    %v1708 = vunpack.c.l.b16 %v1487
    %v1709 = vunpack.c.l.b16 %v1488
    %v1710 = vunpack.c.l.b16 %v1489
    %v1711 = vunpack.c.l.b16 %v1490
    %v1712 = vunpack.c.l.b16 %v1491
    %v1713 = vunpack.c.l.b16 %v1492
    %v1714 = vunpack.c.l.b16 %v1493
    %v1715 = vunpack.c.l.b16 %v1494
    %v1716 = vunpack.c.l.b16 %v1495
    %v1717 = vunpack.c.l.b16 %v1496
    %v1718 = vunpack.c.l.b16 %v1497
    %v1719 = vunpack.c.l.b16 %v1498
    %v1720 = vunpack.c.l.b16 %v1499
    %v1721 = vunpack.c.l.b16 %v1500
    %v1722 = vunpack.c.l.b16 %v1501
    %v1723 = vunpack.c.l.b16 %v1502
    %v1724 = vpack.c.b16 %v1693, %v1692
    %v1725 = vpack.c.b16 %v1695, %v1694
    %v1726 = vpack.c.b16 %v1697, %v1696
    %v1727 = vpack.c.b16 %v1699, %v1698
    %v1728 = vpack.c.b16 %v1701, %v1700
    %v1729 = vpack.c.b16 %v1703, %v1702
    %v1730 = vpack.c.b16 %v1705, %v1704
    %v1731 = vpack.c.b16 %v1707, %v1706
    %v1732 = vpack.c.b16 %v1709, %v1708
    %v1733 = vpack.c.b16 %v1711, %v1710
    %v1734 = vpack.c.b16 %v1713, %v1712
    %v1735 = vpack.c.b16 %v1715, %v1714
    %v1736 = vpack.c.b16 %v1717, %v1716
    %v1737 = vpack.c.b16 %v1719, %v1718
    %v1738 = vpack.c.b16 %v1721, %v1720
    %v1739 = vpack.c.b16 %v1723, %v1722
    %1756 = vmatpush.bf16.msra.mxu0 %v1731
    %1757 = vmatpush.bf16.msra.mxu0 %v1730
    %1758 = vmatpush.bf16.msra.mxu0 %v1729
    %1759 = vmatpush.bf16.msra.mxu0 %v1728
    %1760 = vmatpush.bf16.msra.mxu0 %v1727
    %1761 = vmatpush.bf16.msra.mxu0 %v1726
    %1762 = vmatpush.bf16.msra.mxu0 %v1725
    %1763 = vmatpush.bf16.msra.mxu0 %v1724
    %1764 = vmatmul.bf16.gmra.mxu0 %v1451
    %v1765 = vpop.f32.mrf.mxu0
    %v1766 = vadd.f32 %v1656, %v1765
    %v1767 = vpop.f32.mrf.mxu0
    %v1768 = vadd.f32 %v1658, %v1767
    %1769 = vdwg.mxu0
    %1770 = vmatpush.bf16.msra.mxu0 %v1739
    %1771 = vmatpush.bf16.msra.mxu0 %v1738
    %1772 = vmatpush.bf16.msra.mxu0 %v1737
    %1773 = vmatpush.bf16.msra.mxu0 %v1736
    %1774 = vmatpush.bf16.msra.mxu0 %v1735
    %1775 = vmatpush.bf16.msra.mxu0 %v1734
    %1776 = vmatpush.bf16.msra.mxu0 %v1733
    %1777 = vmatpush.bf16.msra.mxu0 %v1732
    %1778 = vmatmul.bf16.gmra.mxu0 %v1452
    %v1779 = vpop.f32.mrf.mxu0
    %v1780 = vadd.f32 %v1766, %v1779
    %v1781 = vpop.f32.mrf.mxu0
    %v1782 = vadd.f32 %v1768, %v1781
    %1783 = vdwg.mxu0
    %s1784 = scalar_lea.vmem [#allocation4], 256
    %v1785 = vld [vmem:[%s1784] sm:$0xf]
    %v1786 = vld [vmem:[%s1784 + $0x4] sm:$0xf]
    %v1787 = vld [vmem:[%s1784 + $0x8] sm:$0xf]
    %v1788 = vld [vmem:[%s1784 + $0xc] sm:$0xf]
    %v1789 = vld [vmem:[%s1784 + $0x10] sm:$0xf]
    %v1790 = vld [vmem:[%s1784 + $0x14] sm:$0xf]
    %v1791 = vld [vmem:[%s1784 + $0x18] sm:$0xf]
    %v1792 = vld [vmem:[%s1784 + $0x1c] sm:$0xf]
    %v1793 = vld [vmem:[%s1784 + $0x20] sm:$0xf]
    %v1794 = vld [vmem:[%s1784 + $0x24] sm:$0xf]
    %v1795 = vld [vmem:[%s1784 + $0x28] sm:$0xf]
    %v1796 = vld [vmem:[%s1784 + $0x2c] sm:$0xf]
    %v1797 = vld [vmem:[%s1784 + $0x30] sm:$0xf]
    %v1798 = vld [vmem:[%s1784 + $0x34] sm:$0xf]
    %v1799 = vld [vmem:[%s1784 + $0x38] sm:$0xf]
    %v1800 = vld [vmem:[%s1784 + $0x3c] sm:$0xf]
    %v1801 = vld [vmem:[%s1784 + $0x40] sm:$0xf]
    %v1802 = vld [vmem:[%s1784 + $0x44] sm:$0xf]
    %v1803 = vld [vmem:[%s1784 + $0x48] sm:$0xf]
    %v1804 = vld [vmem:[%s1784 + $0x4c] sm:$0xf]
    %v1805 = vld [vmem:[%s1784 + $0x50] sm:$0xf]
    %v1806 = vld [vmem:[%s1784 + $0x54] sm:$0xf]
    %v1807 = vld [vmem:[%s1784 + $0x58] sm:$0xf]
    %v1808 = vld [vmem:[%s1784 + $0x5c] sm:$0xf]
    %v1809 = vld [vmem:[%s1784 + $0x60] sm:$0xf]
    %v1810 = vld [vmem:[%s1784 + $0x64] sm:$0xf]
    %v1811 = vld [vmem:[%s1784 + $0x68] sm:$0xf]
    %v1812 = vld [vmem:[%s1784 + $0x6c] sm:$0xf]
    %v1813 = vld [vmem:[%s1784 + $0x70] sm:$0xf]
    %v1814 = vld [vmem:[%s1784 + $0x74] sm:$0xf]
    %v1815 = vld [vmem:[%s1784 + $0x78] sm:$0xf]
    %v1816 = vld [vmem:[%s1784 + $0x7c] sm:$0xf]
    %v1849 = vunpack.c.l.b16 %v1785
    %v1850 = vunpack.c.l.b16 %v1786
    %v1851 = vunpack.c.l.b16 %v1787
    %v1852 = vunpack.c.l.b16 %v1788
    %v1853 = vunpack.c.l.b16 %v1789
    %v1854 = vunpack.c.l.b16 %v1790
    %v1855 = vunpack.c.l.b16 %v1791
    %v1856 = vunpack.c.l.b16 %v1792
    %v1857 = vunpack.c.l.b16 %v1793
    %v1858 = vunpack.c.l.b16 %v1794
    %v1859 = vunpack.c.l.b16 %v1795
    %v1860 = vunpack.c.l.b16 %v1796
    %v1861 = vunpack.c.l.b16 %v1797
    %v1862 = vunpack.c.l.b16 %v1798
    %v1863 = vunpack.c.l.b16 %v1799
    %v1864 = vunpack.c.l.b16 %v1800
    %v1865 = vunpack.c.l.b16 %v1801
    %v1866 = vunpack.c.l.b16 %v1802
    %v1867 = vunpack.c.l.b16 %v1803
    %v1868 = vunpack.c.l.b16 %v1804
    %v1869 = vunpack.c.l.b16 %v1805
    %v1870 = vunpack.c.l.b16 %v1806
    %v1871 = vunpack.c.l.b16 %v1807
    %v1872 = vunpack.c.l.b16 %v1808
    %v1873 = vunpack.c.l.b16 %v1809
    %v1874 = vunpack.c.l.b16 %v1810
    %v1875 = vunpack.c.l.b16 %v1811
    %v1876 = vunpack.c.l.b16 %v1812
    %v1877 = vunpack.c.l.b16 %v1813
    %v1878 = vunpack.c.l.b16 %v1814
    %v1879 = vunpack.c.l.b16 %v1815
    %v1880 = vunpack.c.l.b16 %v1816
    %v1881 = vpack.c.b16 %v1850, %v1849
    %v1882 = vpack.c.b16 %v1852, %v1851
    %v1883 = vpack.c.b16 %v1854, %v1853
    %v1884 = vpack.c.b16 %v1856, %v1855
    %v1885 = vpack.c.b16 %v1858, %v1857
    %v1886 = vpack.c.b16 %v1860, %v1859
    %v1887 = vpack.c.b16 %v1862, %v1861
    %v1888 = vpack.c.b16 %v1864, %v1863
    %v1889 = vpack.c.b16 %v1866, %v1865
    %v1890 = vpack.c.b16 %v1868, %v1867
    %v1891 = vpack.c.b16 %v1870, %v1869
    %v1892 = vpack.c.b16 %v1872, %v1871
    %v1893 = vpack.c.b16 %v1874, %v1873
    %v1894 = vpack.c.b16 %v1876, %v1875
    %v1895 = vpack.c.b16 %v1878, %v1877
    %v1896 = vpack.c.b16 %v1880, %v1879
    %1913 = vmatpush.bf16.msra.mxu0 %v1888
    %1914 = vmatpush.bf16.msra.mxu0 %v1887
    %1915 = vmatpush.bf16.msra.mxu0 %v1886
    %1916 = vmatpush.bf16.msra.mxu0 %v1885
    %1917 = vmatpush.bf16.msra.mxu0 %v1884
    %1918 = vmatpush.bf16.msra.mxu0 %v1883
    %1919 = vmatpush.bf16.msra.mxu0 %v1882
    %1920 = vmatpush.bf16.msra.mxu0 %v1881
    %1921 = vmatmul.bf16.gmra.mxu0 %v1469
    %v1922 = vpop.f32.mrf.mxu0
    %v1923 = vadd.f32 0.0, %v1922
    %v1924 = vpop.f32.mrf.mxu0
    %v1925 = vadd.f32 0.0, %v1924
    %1926 = vdwg.mxu0
    %1927 = vmatpush.bf16.msra.mxu0 %v1896
    %1928 = vmatpush.bf16.msra.mxu0 %v1895
    %1929 = vmatpush.bf16.msra.mxu0 %v1894
    %1930 = vmatpush.bf16.msra.mxu0 %v1893
    %1931 = vmatpush.bf16.msra.mxu0 %v1892
    %1932 = vmatpush.bf16.msra.mxu0 %v1891
    %1933 = vmatpush.bf16.msra.mxu0 %v1890
    %1934 = vmatpush.bf16.msra.mxu0 %v1889
    %1935 = vmatmul.bf16.gmra.mxu0 %v1470
    %v1936 = vpop.f32.mrf.mxu0
    %v1937 = vadd.f32 %v1923, %v1936
    %v1938 = vpop.f32.mrf.mxu0
    %v1939 = vadd.f32 %v1925, %v1938
    %1940 = vdwg.mxu0
    %v1941 = vadd.f32 %v1780, %v1937
    %v1942 = vadd.f32 %v1782, %v1939
    %v1943 = vld [vmem:[%s7] sm:$0x1]
    %v1945 = vperm.slane %v1943, 0
    %v1947 = vadd.f32 %v1941, %v1945
    %v1948 = vadd.f32 %v1942, %v1945
    %1949 = vmatpush.bf16.msra.mxu0 %v1607
    %1950 = vmatpush.bf16.msra.mxu0 %v1606
    %1951 = vmatpush.bf16.msra.mxu0 %v1605
    %1952 = vmatpush.bf16.msra.mxu0 %v1604
    %1953 = vmatpush.bf16.msra.mxu0 %v1603
    %1954 = vmatpush.bf16.msra.mxu0 %v1602
    %1955 = vmatpush.bf16.msra.mxu0 %v1601
    %1956 = vmatpush.bf16.msra.mxu0 %v1600
    %1957 = vmatmul.bf16.gmra.mxu0 %v1469
    %v1958 = vpop.f32.mrf.mxu0
    %v1959 = vadd.f32 0.0, %v1958
    %v1960 = vpop.f32.mrf.mxu0
    %v1961 = vadd.f32 0.0, %v1960
    %1962 = vdwg.mxu0
    %1963 = vmatpush.bf16.msra.mxu0 %v1615
    %1964 = vmatpush.bf16.msra.mxu0 %v1614
    %1965 = vmatpush.bf16.msra.mxu0 %v1613
    %1966 = vmatpush.bf16.msra.mxu0 %v1612
    %1967 = vmatpush.bf16.msra.mxu0 %v1611
    %1968 = vmatpush.bf16.msra.mxu0 %v1610
    %1969 = vmatpush.bf16.msra.mxu0 %v1609
    %1970 = vmatpush.bf16.msra.mxu0 %v1608
    %1971 = vmatmul.bf16.gmra.mxu0 %v1470
    %v1972 = vpop.f32.mrf.mxu0
    %v1973 = vadd.f32 %v1959, %v1972
    %v1974 = vpop.f32.mrf.mxu0
    %v1975 = vadd.f32 %v1961, %v1974
    %1976 = vdwg.mxu0
    %1977 = vmatpush.bf16.msra.mxu0 %v1731
    %1978 = vmatpush.bf16.msra.mxu0 %v1730
    %1979 = vmatpush.bf16.msra.mxu0 %v1729
    %1980 = vmatpush.bf16.msra.mxu0 %v1728
    %1981 = vmatpush.bf16.msra.mxu0 %v1727
    %1982 = vmatpush.bf16.msra.mxu0 %v1726
    %1983 = vmatpush.bf16.msra.mxu0 %v1725
    %1984 = vmatpush.bf16.msra.mxu0 %v1724
    %1985 = vmatmul.bf16.gmra.mxu0 %v1467
    %v1986 = vpop.f32.mrf.mxu0
    %v1987 = vadd.f32 %v1973, %v1986
    %v1988 = vpop.f32.mrf.mxu0
    %v1989 = vadd.f32 %v1975, %v1988
    %1990 = vdwg.mxu0
    %1991 = vmatpush.bf16.msra.mxu0 %v1739
    %1992 = vmatpush.bf16.msra.mxu0 %v1738
    %1993 = vmatpush.bf16.msra.mxu0 %v1737
    %1994 = vmatpush.bf16.msra.mxu0 %v1736
    %1995 = vmatpush.bf16.msra.mxu0 %v1735
    %1996 = vmatpush.bf16.msra.mxu0 %v1734
    %1997 = vmatpush.bf16.msra.mxu0 %v1733
    %1998 = vmatpush.bf16.msra.mxu0 %v1732
    %1999 = vmatmul.bf16.gmra.mxu0 %v1468
    %v2000 = vpop.f32.mrf.mxu0
    %v2001 = vadd.f32 %v1987, %v2000
    %v2002 = vpop.f32.mrf.mxu0
    %v2003 = vadd.f32 %v1989, %v2002
    %2004 = vdwg.mxu0
    %2005 = vmatpush.bf16.msra.mxu0 %v1888
    %2006 = vmatpush.bf16.msra.mxu0 %v1887
    %2007 = vmatpush.bf16.msra.mxu0 %v1886
    %2008 = vmatpush.bf16.msra.mxu0 %v1885
    %2009 = vmatpush.bf16.msra.mxu0 %v1884
    %2010 = vmatpush.bf16.msra.mxu0 %v1883
    %2011 = vmatpush.bf16.msra.mxu0 %v1882
    %2012 = vmatpush.bf16.msra.mxu0 %v1881
    %2013 = vmatmul.bf16.gmra.mxu0 %v1465
    %v2014 = vpop.f32.mrf.mxu0
    %v2015 = vadd.f32 0.0, %v2014
    %v2016 = vpop.f32.mrf.mxu0
    %v2017 = vadd.f32 0.0, %v2016
    %2018 = vdwg.mxu0
    %2019 = vmatpush.bf16.msra.mxu0 %v1896
    %2020 = vmatpush.bf16.msra.mxu0 %v1895
    %2021 = vmatpush.bf16.msra.mxu0 %v1894
    %2022 = vmatpush.bf16.msra.mxu0 %v1893
    %2023 = vmatpush.bf16.msra.mxu0 %v1892
    %2024 = vmatpush.bf16.msra.mxu0 %v1891
    %2025 = vmatpush.bf16.msra.mxu0 %v1890
    %2026 = vmatpush.bf16.msra.mxu0 %v1889
    %2027 = vmatmul.bf16.gmra.mxu0 %v1466
    %v2028 = vpop.f32.mrf.mxu0
    %v2029 = vadd.f32 %v2015, %v2028
    %v2030 = vpop.f32.mrf.mxu0
    %v2031 = vadd.f32 %v2017, %v2030
    %2032 = vdwg.mxu0
    %v2033 = vadd.f32 %v2001, %v2029
    %v2034 = vadd.f32 %v2003, %v2031
    %v2035 = vadd.f32 %v2033, %v1945
    %v2036 = vadd.f32 %v2034, %v1945
    %v2037 = vld [vmem:[%s8] sm:$0x3]
    %v2039 = vrot.slane %v2037, 1
    %v2040 = vperm.slane %v2037, 0
    %v2041 = vperm.slane %v2039, 0
    %2042 = vset.pattern.permute.xlu0 0
    %2043 = vperm.xlu0 %2042, %v2040
    %v2044 = vpop.permute.xlu0 %2043
    %2046 = vset.pattern.permute.xlu0 0
    %2047 = vperm.xlu0 %2046, %v2041
    %v2048 = vpop.permute.xlu0 %2047
    %v2050 = vmul.f32 %v1947, %v2044
    %v2051 = vmul.f32 %v1948, %v2048
    %v2052 = vmul.f32 %v2035, %v2044
    %v2053 = vmul.f32 %v2036, %v2048
    %2054 = vst [vmem:[%s9] sm:$0xff] %v2050
    %2055 = vst [vmem:[%s9 + $0x10] sm:$0xff] %v2051
    %2056 = vst [vmem:[%s9 + $0x8] sm:$0xff] %v2052
    %2057 = vst [vmem:[%s9 + $0x18] sm:$0xff] %v2053
    // Predicated region
    $region46: #{score_net_forward.7} parent=1 // pred_check
      _
    $region47: #{score_net_forward.7} parent=1 // pred_check_branch
      %2059 = sbr.rel (0) target = $region49
    $region48: #{score_net_forward.7} parent=1 // pred_region
      _
    $region49: #{score_net_forward.7} parent=1 // pred_fallthru
      _
    // Predicated region
    $region50: #{score_net_forward.7} parent=1 // pred_check
      _
    $region51: #{score_net_forward.7} parent=1 // pred_check_branch
      %2061 = sbr.rel (0) target = $region53
    $region52: #{score_net_forward.7} parent=1 // pred_region
      _
    $region53: #{score_net_forward.7} parent=1 // pred_fallthru
      _
    %2062 = vsyncpa [#allocation3], 1
    %2063 = vsyncpa [#allocation5], 1

// kernel: score_net_forward.6
$region0: #{score_net_forward.6}
  #allocation0 [shape = 'u32[]', space=smem, size = 0x4, offset = 0x4, fixed_abs, tag = 'smem constant byte address 0x4 - core index']
  #allocation1 [shape = 'u32[72,128]{1,0:T(1,128)}', space=vmem, size = 0x9000, scoped, tag = 'internal scratch']
  %s0 = inlined_call_operand.vmem [shape: f32[16,384], index: 0, kind: input, shape index: {}]
  %s1 = inlined_call_operand.vmem [shape: f32[16,256], index: 1, kind: input, shape index: {}]
  %s2 = inlined_call_operand.hbm [shape: bf16[3,384,384], index: 2, kind: input, shape index: {}]
  %s3 = inlined_call_operand.vmem [shape: f32[1,384], index: 3, kind: input, shape index: {}]
  %s4 = inlined_call_operand.hbm [shape: bf16[3,384,384], index: 4, kind: input, shape index: {}]
  %s5 = inlined_call_operand.vmem [shape: f32[1,384], index: 5, kind: input, shape index: {}]
  %s6 = inlined_call_operand.vmem [shape: bf16[128,384], index: 6, kind: input, shape index: {}]
  %s7 = inlined_call_operand.vmem [shape: f32[1,384], index: 7, kind: input, shape index: {}]
  %s8 = inlined_call_operand.hbm [shape: bf16[384,256], index: 8, kind: input, shape index: {}]
  %s9 = inlined_call_operand.vmem [shape: f32[1,256], index: 9, kind: input, shape index: {}]
  %s10 = inlined_call_operand.hbm [shape: bf16[384,256], index: 10, kind: input, shape index: {}]
  %s11 = inlined_call_operand.vmem [shape: f32[1,256], index: 11, kind: input, shape index: {}]
  %s12 = inlined_call_operand.hbm [shape: bf16[256,256], index: 12, kind: input, shape index: {}]
  %s13 = inlined_call_operand.vmem [shape: f32[1,256], index: 13, kind: input, shape index: {}]
  %s14 = inlined_call_operand.hbm [shape: bf16[256,256], index: 14, kind: input, shape index: {}]
  %s15 = inlined_call_operand.vmem [shape: f32[1,256], index: 15, kind: input, shape index: {}]
  %s16 = inlined_call_operand.hbm [shape: bf16[256,384], index: 16, kind: input, shape index: {}]
  %s17 = inlined_call_operand.vmem [shape: f32[1,384], index: 17, kind: input, shape index: {}]
  %s18 = inlined_call_operand.vmem [shape: f32[1,384], index: 18, kind: input, shape index: {}]
  %s19 = inlined_call_operand.vmem [shape: f32[1,384], index: 19, kind: input, shape index: {}]
  %s20 = inlined_call_operand.vmem [shape: f32[16,384], index: 20, kind: output, shape index: {}]
  %s21 = sld [smem:[#allocation0]]
  $region118: #{score_net_forward.6} parent=0
    _
  %s23 = ssub.s32 1, %s21
  %s24 = scalar_select 0, %s23, %s21
  $region1: #{score_net_forward.6} parent=0
    #allocation2 [shape = 'u8[884736]{0}', space=vmem, size = 0xd8000, scoped, tag = 'input window, operand 2, single buffered']
    #allocation3 [shape = 's32[1]{0}', space=sflag, size = 0x4, scoped, tag = 'scoped memory for score_net_forward.6']
    #allocation4 [shape = 'u8[884736]{0}', space=vmem, size = 0xd8000, scoped, tag = 'input window, operand 4, single buffered']
    #allocation5 [shape = 's32[1]{0}', space=sflag, size = 0x4, scoped, tag = 'scoped memory for score_net_forward.6']
    #allocation6 [shape = 'u8[196608]{0}', space=vmem, size = 0x30000, scoped, tag = 'input window, operand 8, single buffered']
    #allocation7 [shape = 'u8[196608]{0}', space=vmem, size = 0x30000, scoped, tag = 'input window, operand 10, single buffered']
    #allocation8 [shape = 's32[1]{0}', space=sflag, size = 0x4, scoped, tag = 'scoped memory for score_net_forward.6']
    #allocation9 [shape = 'u8[131072]{0}', space=vmem, size = 0x20000, scoped, tag = 'input window, operand 12, single buffered']
    #allocation10 [shape = 'u8[131072]{0}', space=vmem, size = 0x20000, scoped, tag = 'input window, operand 14, single buffered']
    #allocation11 [shape = 's32[1]{0}', space=sflag, size = 0x4, scoped, tag = 'scoped memory for score_net_forward.6']
    #allocation12 [shape = 'u8[196608]{0}', space=vmem, size = 0x30000, scoped, tag = 'input window, operand 16, single buffered']
    %25 = vsyncpa [#allocation3], 0
    %26 = vsyncpa [#allocation5], 0
    %27 = vsyncpa [#allocation8], 0
    %28 = vsyncpa [#allocation11], 0
    // Predicated region
    $region2: #{score_net_forward.6} parent=1 // pred_check
      _
    $region3: #{score_net_forward.6} parent=1 // pred_check_branch
      %30 = sbr.rel (0) target = $region5
    $region4: #{score_net_forward.6} parent=1 // pred_region
      _
    $region5: #{score_net_forward.6} parent=1 // pred_fallthru
      _
    // Predicated region
    $region6: #{score_net_forward.6} parent=1 // pred_check
      _
    $region7: #{score_net_forward.6} parent=1 // pred_check_branch
      %32 = sbr.rel (0) target = $region9
    $region8: #{score_net_forward.6} parent=1 // pred_region
      _
    $region9: #{score_net_forward.6} parent=1 // pred_fallthru
      _
    // Predicated region
    $region10: #{score_net_forward.6} parent=1 // pred_check
      _
    $region11: #{score_net_forward.6} parent=1 // pred_check_branch
      %34 = sbr.rel (0) target = $region13
    $region12: #{score_net_forward.6} parent=1 // pred_region
      %36 = vsyncadd [#allocation3], 0
      %s37 = sshll.u32 %s2, 4
      %s38 = int_to_ptr.hbm [resolvable:$true] %s37
      %s39 = sshll.u32 [#allocation2], 4
      %s40 = int_to_ptr.vmem [resolvable:$true] %s39
      %45 = dma.hbm_to_vmem [thread:$0]  %s38, 27648, %s40, [#allocation3], 192, 192, 12
    $region13: #{score_net_forward.6} parent=1 // pred_fallthru
      _
    // Predicated region
    $region14: #{score_net_forward.6} parent=1 // pred_check
      _
    $region15: #{score_net_forward.6} parent=1 // pred_check_branch
      %47 = sbr.rel (0) target = $region17
    $region16: #{score_net_forward.6} parent=1 // pred_region
      _
    $region17: #{score_net_forward.6} parent=1 // pred_fallthru
      _
    // Predicated region
    $region18: #{score_net_forward.6} parent=1 // pred_check
      _
    $region19: #{score_net_forward.6} parent=1 // pred_check_branch
      %49 = sbr.rel (0) target = $region21
    $region20: #{score_net_forward.6} parent=1 // pred_region
      %51 = vsyncadd [#allocation5], 0
      %s52 = sshll.u32 %s4, 4
      %s53 = int_to_ptr.hbm [resolvable:$true] %s52
      %s54 = sshll.u32 [#allocation4], 4
      %s55 = int_to_ptr.vmem [resolvable:$true] %s54
      %60 = dma.hbm_to_vmem [thread:$0]  %s53, 27648, %s55, [#allocation5], 192, 192, 12
    $region21: #{score_net_forward.6} parent=1 // pred_fallthru
      _
    // Predicated region
    $region22: #{score_net_forward.6} parent=1 // pred_check
      _
    $region23: #{score_net_forward.6} parent=1 // pred_check_branch
      %62 = sbr.rel (0) target = $region25
    $region24: #{score_net_forward.6} parent=1 // pred_region
      _
    $region25: #{score_net_forward.6} parent=1 // pred_fallthru
      _
    // Predicated region
    $region26: #{score_net_forward.6} parent=1 // pred_check
      _
    $region27: #{score_net_forward.6} parent=1 // pred_check_branch
      %64 = sbr.rel (0) target = $region29
    $region28: #{score_net_forward.6} parent=1 // pred_region
      _
    $region29: #{score_net_forward.6} parent=1 // pred_fallthru
      _
    // Predicated region
    $region30: #{score_net_forward.6} parent=1 // pred_check
      _
    $region31: #{score_net_forward.6} parent=1 // pred_check_branch
      %66 = sbr.rel (0) target = $region33
    $region32: #{score_net_forward.6} parent=1 // pred_region
      _
    $region33: #{score_net_forward.6} parent=1 // pred_fallthru
      _
    // Predicated region
    $region34: #{score_net_forward.6} parent=1 // pred_check
      _
    $region35: #{score_net_forward.6} parent=1 // pred_check_branch
      %68 = sbr.rel (0) target = $region37
    $region36: #{score_net_forward.6} parent=1 // pred_region
      %70 = vsyncadd [#allocation5], 0
      %s71 = sshll.u32 %s8, 4
      %s72 = int_to_ptr.hbm [resolvable:$true] %s71
      %s73 = sshll.u32 [#allocation6], 4
      %s74 = int_to_ptr.vmem [resolvable:$true] %s73
      %79 = dma.hbm_to_vmem [thread:$0]  %s72, 6144, %s74, [#allocation5], 128, 128, 8
    $region37: #{score_net_forward.6} parent=1 // pred_fallthru
      _
    // Predicated region
    $region38: #{score_net_forward.6} parent=1 // pred_check
      _
    $region39: #{score_net_forward.6} parent=1 // pred_check_branch
      %81 = sbr.rel (0) target = $region41
    $region40: #{score_net_forward.6} parent=1 // pred_region
      _
    $region41: #{score_net_forward.6} parent=1 // pred_fallthru
      _
    // Predicated region
    $region42: #{score_net_forward.6} parent=1 // pred_check
      _
    $region43: #{score_net_forward.6} parent=1 // pred_check_branch
      %83 = sbr.rel (0) target = $region45
    $region44: #{score_net_forward.6} parent=1 // pred_region
      %85 = vsyncadd [#allocation8], 0
      %s86 = sshll.u32 %s10, 4
      %s87 = int_to_ptr.hbm [resolvable:$true] %s86
      %s88 = sshll.u32 [#allocation7], 4
      %s89 = int_to_ptr.vmem [resolvable:$true] %s88
      %94 = dma.hbm_to_vmem [thread:$0]  %s87, 6144, %s89, [#allocation8], 128, 128, 8
    $region45: #{score_net_forward.6} parent=1 // pred_fallthru
      _
    // Predicated region
    $region46: #{score_net_forward.6} parent=1 // pred_check
      _
    $region47: #{score_net_forward.6} parent=1 // pred_check_branch
      %96 = sbr.rel (0) target = $region49
    $region48: #{score_net_forward.6} parent=1 // pred_region
      _
    $region49: #{score_net_forward.6} parent=1 // pred_fallthru
      _
    // Predicated region
    $region50: #{score_net_forward.6} parent=1 // pred_check
      _
    $region51: #{score_net_forward.6} parent=1 // pred_check_branch
      %98 = sbr.rel (0) target = $region53
    $region52: #{score_net_forward.6} parent=1 // pred_region
      %100 = vsyncadd [#allocation8], 0
      %s101 = sshll.u32 %s12, 4
      %s102 = int_to_ptr.hbm [resolvable:$true] %s101
      %s103 = sshll.u32 [#allocation9], 4
      %s104 = int_to_ptr.vmem [resolvable:$true] %s103
      %109 = dma.hbm_to_vmem [thread:$0]  %s102, 4096, %s104, [#allocation8], 128, 128, 8
    $region53: #{score_net_forward.6} parent=1 // pred_fallthru
      _
    // Predicated region
    $region54: #{score_net_forward.6} parent=1 // pred_check
      _
    $region55: #{score_net_forward.6} parent=1 // pred_check_branch
      %111 = sbr.rel (0) target = $region57
    $region56: #{score_net_forward.6} parent=1 // pred_region
      _
    $region57: #{score_net_forward.6} parent=1 // pred_fallthru
      _
    // Predicated region
    $region58: #{score_net_forward.6} parent=1 // pred_check
      _
    $region59: #{score_net_forward.6} parent=1 // pred_check_branch
      %113 = sbr.rel (0) target = $region61
    $region60: #{score_net_forward.6} parent=1 // pred_region
      %115 = vsyncadd [#allocation11], 0
      %s116 = sshll.u32 %s14, 4
      %s117 = int_to_ptr.hbm [resolvable:$true] %s116
      %s118 = sshll.u32 [#allocation10], 4
      %s119 = int_to_ptr.vmem [resolvable:$true] %s118
      %124 = dma.hbm_to_vmem [thread:$0]  %s117, 4096, %s119, [#allocation11], 128, 128, 8
    $region61: #{score_net_forward.6} parent=1 // pred_fallthru
      _
    // Predicated region
    $region62: #{score_net_forward.6} parent=1 // pred_check
      _
    $region63: #{score_net_forward.6} parent=1 // pred_check_branch
      %126 = sbr.rel (0) target = $region65
    $region64: #{score_net_forward.6} parent=1 // pred_region
      _
    $region65: #{score_net_forward.6} parent=1 // pred_fallthru
      _
    // Predicated region
    $region66: #{score_net_forward.6} parent=1 // pred_check
      _
    $region67: #{score_net_forward.6} parent=1 // pred_check_branch
      %128 = sbr.rel (0) target = $region69
    $region68: #{score_net_forward.6} parent=1 // pred_region
      %130 = vsyncadd [#allocation11], 0
      %s131 = sshll.u32 %s16, 4
      %s132 = int_to_ptr.hbm [resolvable:$true] %s131
      %s133 = sshll.u32 [#allocation12], 4
      %s134 = int_to_ptr.vmem [resolvable:$true] %s133
      %139 = dma.hbm_to_vmem [thread:$0]  %s132, 6144, %s134, [#allocation11], 192, 192, 12
    $region69: #{score_net_forward.6} parent=1 // pred_fallthru
      _
    // Predicated region
    $region70: #{score_net_forward.6} parent=1 // pred_check
      _
    $region71: #{score_net_forward.6} parent=1 // pred_check_branch
      %141 = sbr.rel (0) target = $region73
    $region72: #{score_net_forward.6} parent=1 // pred_region
      _
    $region73: #{score_net_forward.6} parent=1 // pred_fallthru
      _
    // Predicated region
    $region74: #{score_net_forward.6} parent=1 // pred_check
      _
    $region75: #{score_net_forward.6} parent=1 // pred_check_branch
      %143 = sbr.rel (0) target = $region77
    $region76: #{score_net_forward.6} parent=1 // pred_region
      _
    $region77: #{score_net_forward.6} parent=1 // pred_fallthru
      _
    // Predicated region
    $region78: #{score_net_forward.6} parent=1 // pred_check
      _
    $region79: #{score_net_forward.6} parent=1 // pred_check_branch
      %145 = sbr.rel (0) target = $region81
    $region80: #{score_net_forward.6} parent=1 // pred_region
      _
    $region81: #{score_net_forward.6} parent=1 // pred_fallthru
      _
    // Predicated region
    $region82: #{score_net_forward.6} parent=1 // pred_check
      _
    $region83: #{score_net_forward.6} parent=1 // pred_check_branch
      %147 = sbr.rel (0) target = $region85
    $region84: #{score_net_forward.6} parent=1 // pred_region
      %149 = dma.done [#allocation3], 27648
    $region85: #{score_net_forward.6} parent=1 // pred_fallthru
      _
    // Predicated region
    $region86: #{score_net_forward.6} parent=1 // pred_check
      _
    $region87: #{score_net_forward.6} parent=1 // pred_check_branch
      %151 = sbr.rel (0) target = $region89
    $region88: #{score_net_forward.6} parent=1 // pred_region
      %153 = dma.done [#allocation5], 27648
    $region89: #{score_net_forward.6} parent=1 // pred_fallthru
      _
    // Predicated region
    $region90: #{score_net_forward.6} parent=1 // pred_check
      _
    $region91: #{score_net_forward.6} parent=1 // pred_check_branch
      %155 = sbr.rel (0) target = $region93
    $region92: #{score_net_forward.6} parent=1 // pred_region
      %157 = dma.done [#allocation5], 6144
    $region93: #{score_net_forward.6} parent=1 // pred_fallthru
      _
    // Predicated region
    $region94: #{score_net_forward.6} parent=1 // pred_check
      _
    $region95: #{score_net_forward.6} parent=1 // pred_check_branch
      %159 = sbr.rel (0) target = $region97
    $region96: #{score_net_forward.6} parent=1 // pred_region
      %161 = dma.done [#allocation8], 6144
    $region97: #{score_net_forward.6} parent=1 // pred_fallthru
      _
    // Predicated region
    $region98: #{score_net_forward.6} parent=1 // pred_check
      _
    $region99: #{score_net_forward.6} parent=1 // pred_check_branch
      %163 = sbr.rel (0) target = $region101
    $region100: #{score_net_forward.6} parent=1 // pred_region
      %165 = dma.done [#allocation8], 4096
    $region101: #{score_net_forward.6} parent=1 // pred_fallthru
      _
    // Predicated region
    $region102: #{score_net_forward.6} parent=1 // pred_check
      _
    $region103: #{score_net_forward.6} parent=1 // pred_check_branch
      %167 = sbr.rel (0) target = $region105
    $region104: #{score_net_forward.6} parent=1 // pred_region
      %169 = dma.done [#allocation11], 4096
    $region105: #{score_net_forward.6} parent=1 // pred_fallthru
      _
    // Predicated region
    $region106: #{score_net_forward.6} parent=1 // pred_check
      _
    $region107: #{score_net_forward.6} parent=1 // pred_check_branch
      %171 = sbr.rel (0) target = $region109
    $region108: #{score_net_forward.6} parent=1 // pred_region
      %173 = dma.done [#allocation11], 6144
    $region109: #{score_net_forward.6} parent=1 // pred_fallthru
      _
    %v175 = vld [vmem:[%s0] sm:$0xff]
    %v176 = vld [vmem:[%s0 + $0x8] sm:$0xff]
    %v177 = vld [vmem:[%s0 + $0x10] sm:$0xff]
    %v178 = vld [vmem:[%s0 + $0x18] sm:$0xff]
    %v179 = vld [vmem:[%s0 + $0x20] sm:$0xff]
    %v180 = vld [vmem:[%s0 + $0x28] sm:$0xff]
    %v181 = vrot.slane %v175, 7
    %v182 = vrot.slane %v176, 7
    %v183 = vrot.slane %v177, 7
    %v184 = vrot.slane %v178, 7
    %v185 = vrot.slane %v179, 7
    %v186 = vrot.slane %v180, 7
    %v187 = vlaneseq
    %v188 = vshrl.u32 %v187, 7
    %vm189 = vcmp.lt.s32.totalorder %v188, 1
    %v190 = vsel %vm189, %v181, %v184
    %v191 = vsel %vm189, %v182, %v185
    %v192 = vsel %vm189, %v183, %v186
    %v193 = vsel %vm189, %v184, %v181
    %v194 = vsel %vm189, %v185, %v182
    %v195 = vsel %vm189, %v186, %v183
    %v196 = vadd.s32 %v188, 8
    %vm197 = vcmp.lt.s32.totalorder %v188, 0
    %v198 = vsub.s32 0, %v188
    %v199 = vsel %vm197, %v198, %v188
    %v200 = vshrl.u32 %v199, 3
    %v201 = vand.u32 %v199, 7
    %v202 = vsub.s32 0, %v201
    %v203 = vsel %vm197, %v202, %v201
    %vm204 = vcmp.lt.s32.totalorder %v196, 0
    %v205 = vsub.s32 0, %v196
    %v206 = vsel %vm204, %v205, %v196
    %v207 = vshrl.u32 %v206, 3
    %v208 = vand.u32 %v206, 7
    %v209 = vsub.s32 0, %v208
    %v210 = vsel %vm204, %v209, %v208
    %vm211 = vcmp.ne.s32.totalorder %v203, 0
    %vm212 = vcmp.ne.s32.totalorder %v210, 0
    %vm213 = vcmp.lt.s32.totalorder %v203, 0
    %vm214 = vcmp.lt.s32.totalorder %v210, 0
    %vm215 = vmand %vm213, %vm211
    %vm216 = vmand %vm214, %vm212
    %v217 = vadd.s32 %v203, 8
    %v218 = vadd.s32 %v210, 8
    %v219 = vsel %vm215, %v217, %v203
    %v220 = vsel %vm216, %v218, %v210
    %vm221 = vcmp.ge.s32.totalorder %v219, 1
    %vm222 = vcmp.ge.s32.totalorder %v220, 1
    %v223 = vsel %vm221, 1, 0
    %v224 = vsel %vm222, 1, 0
    %vm225 = vcmp.eq.s32.totalorder %v223, 1
    %vm226 = vcmp.eq.s32.totalorder %v224, 1
    %v227 = vsel %vm225, %v193, 0.0
    %v228 = vsel %vm225, %v194, 0.0
    %v229 = vsel %vm225, %v195, 0.0
    %v230 = vsel %vm226, %v190, 0.0
    %v231 = vsel %vm226, %v191, 0.0
    %v232 = vsel %vm226, %v192, 0.0
    %v233 = vpack.c.bf16 %v230, %v227
    %v234 = vpack.c.bf16 %v231, %v228
    %v235 = vpack.c.bf16 %v232, %v229
    %v236 = vrot.slane %v175, 1
    %v237 = vrot.slane %v176, 1
    %v238 = vrot.slane %v177, 1
    %v239 = vrot.slane %v178, 1
    %v240 = vrot.slane %v179, 1
    %v241 = vrot.slane %v180, 1
    %vm242 = vcmp.lt.s32.totalorder %v188, 7
    %v243 = vsel %vm242, %v236, %v239
    %v244 = vsel %vm242, %v237, %v240
    %v245 = vsel %vm242, %v238, %v241
    %v246 = vsel %vm242, %v239, %v236
    %v247 = vsel %vm242, %v240, %v237
    %v248 = vsel %vm242, %v241, %v238
    %vm249 = vcmp.lt.s32.totalorder %v219, 7
    %vm250 = vcmp.lt.s32.totalorder %v220, 7
    %v251 = vsel %vm249, 1, 0
    %v252 = vsel %vm250, 1, 0
    %vm253 = vcmp.eq.s32.totalorder %v251, 1
    %vm254 = vcmp.eq.s32.totalorder %v252, 1
    %v255 = vsel %vm253, %v243, 0.0
    %v256 = vsel %vm253, %v244, 0.0
    %v257 = vsel %vm253, %v245, 0.0
    %v258 = vsel %vm254, %v246, 0.0
    %v259 = vsel %vm254, %v247, 0.0
    %v260 = vsel %vm254, %v248, 0.0
    %v261 = vpack.c.bf16 %v258, %v255
    %v262 = vpack.c.bf16 %v259, %v256
    %v263 = vpack.c.bf16 %v260, %v257
    %v264 = vpack.c.bf16 %v178, %v175
    %v265 = vpack.c.bf16 %v179, %v176
    %v266 = vpack.c.bf16 %v180, %v177
    %s267 = scalar_lea.vmem [#allocation2], 576
    %v268 = vld [vmem:[%s267] sm:$0xff]
    %v269 = vld [vmem:[%s267 + $0x8] sm:$0xf]
    %v270 = vld [vmem:[%s267 + $0xc] sm:$0xff]
    %v271 = vld [vmem:[%s267 + $0x14] sm:$0xf]
    %v272 = vld [vmem:[%s267 + $0x18] sm:$0xff]
    %v273 = vld [vmem:[%s267 + $0x20] sm:$0xf]
    %v274 = vld [vmem:[%s267 + $0x24] sm:$0xff]
    %v275 = vld [vmem:[%s267 + $0x2c] sm:$0xf]
    %v276 = vld [vmem:[%s267 + $0x30] sm:$0xff]
    %v277 = vld [vmem:[%s267 + $0x38] sm:$0xf]
    %v278 = vld [vmem:[%s267 + $0x3c] sm:$0xff]
    %v279 = vld [vmem:[%s267 + $0x44] sm:$0xf]
    %v280 = vld [vmem:[%s267 + $0x48] sm:$0xff]
    %v281 = vld [vmem:[%s267 + $0x50] sm:$0xf]
    %v282 = vld [vmem:[%s267 + $0x54] sm:$0xff]
    %v283 = vld [vmem:[%s267 + $0x5c] sm:$0xf]
    %v284 = vld [vmem:[%s267 + $0x60] sm:$0xff]
    %v285 = vld [vmem:[%s267 + $0x68] sm:$0xf]
    %v286 = vld [vmem:[%s267 + $0x6c] sm:$0xff]
    %v287 = vld [vmem:[%s267 + $0x74] sm:$0xf]
    %v288 = vld [vmem:[%s267 + $0x78] sm:$0xff]
    %v289 = vld [vmem:[%s267 + $0x80] sm:$0xf]
    %v290 = vld [vmem:[%s267 + $0x84] sm:$0xff]
    %v291 = vld [vmem:[%s267 + $0x8c] sm:$0xf]
    %v292 = vld [vmem:[%s267 + $0x90] sm:$0xff]
    %v293 = vld [vmem:[%s267 + $0x98] sm:$0xf]
    %v294 = vld [vmem:[%s267 + $0x9c] sm:$0xff]
    %v295 = vld [vmem:[%s267 + $0xa4] sm:$0xf]
    %v296 = vld [vmem:[%s267 + $0xa8] sm:$0xff]
    %v297 = vld [vmem:[%s267 + $0xb0] sm:$0xf]
    %v298 = vld [vmem:[%s267 + $0xb4] sm:$0xff]
    %v299 = vld [vmem:[%s267 + $0xbc] sm:$0xf]
    %v300 = vld [vmem:[%s267 + $0xc0] sm:$0xff]
    %v301 = vld [vmem:[%s267 + $0xc8] sm:$0xf]
    %v302 = vld [vmem:[%s267 + $0xcc] sm:$0xff]
    %v303 = vld [vmem:[%s267 + $0xd4] sm:$0xf]
    %v304 = vld [vmem:[%s267 + $0xd8] sm:$0xff]
    %v305 = vld [vmem:[%s267 + $0xe0] sm:$0xf]
    %v306 = vld [vmem:[%s267 + $0xe4] sm:$0xff]
    %v307 = vld [vmem:[%s267 + $0xec] sm:$0xf]
    %v308 = vld [vmem:[%s267 + $0xf0] sm:$0xff]
    %v309 = vld [vmem:[%s267 + $0xf8] sm:$0xf]
    %v310 = vld [vmem:[%s267 + $0xfc] sm:$0xff]
    %v311 = vld [vmem:[%s267 + $0x104] sm:$0xf]
    %v312 = vld [vmem:[%s267 + $0x108] sm:$0xff]
    %v313 = vld [vmem:[%s267 + $0x110] sm:$0xf]
    %v314 = vld [vmem:[%s267 + $0x114] sm:$0xff]
    %v315 = vld [vmem:[%s267 + $0x11c] sm:$0xf]
    %v316 = vld [vmem:[%s267 + $0x120] sm:$0xff]
    %v317 = vld [vmem:[%s267 + $0x128] sm:$0xf]
    %v318 = vld [vmem:[%s267 + $0x12c] sm:$0xff]
    %v319 = vld [vmem:[%s267 + $0x134] sm:$0xf]
    %v320 = vld [vmem:[%s267 + $0x138] sm:$0xff]
    %v321 = vld [vmem:[%s267 + $0x140] sm:$0xf]
    %v322 = vld [vmem:[%s267 + $0x144] sm:$0xff]
    %v323 = vld [vmem:[%s267 + $0x14c] sm:$0xf]
    %v324 = vld [vmem:[%s267 + $0x150] sm:$0xff]
    %v325 = vld [vmem:[%s267 + $0x158] sm:$0xf]
    %v326 = vld [vmem:[%s267 + $0x15c] sm:$0xff]
    %v327 = vld [vmem:[%s267 + $0x164] sm:$0xf]
    %v328 = vld [vmem:[%s267 + $0x168] sm:$0xff]
    %v329 = vld [vmem:[%s267 + $0x170] sm:$0xf]
    %v330 = vld [vmem:[%s267 + $0x174] sm:$0xff]
    %v331 = vld [vmem:[%s267 + $0x17c] sm:$0xf]
    %v332 = vld [vmem:[%s267 + $0x180] sm:$0xff]
    %v333 = vld [vmem:[%s267 + $0x188] sm:$0xf]
    %v334 = vld [vmem:[%s267 + $0x18c] sm:$0xff]
    %v335 = vld [vmem:[%s267 + $0x194] sm:$0xf]
    %v336 = vld [vmem:[%s267 + $0x198] sm:$0xff]
    %v337 = vld [vmem:[%s267 + $0x1a0] sm:$0xf]
    %v338 = vld [vmem:[%s267 + $0x1a4] sm:$0xff]
    %v339 = vld [vmem:[%s267 + $0x1ac] sm:$0xf]
    %v340 = vld [vmem:[%s267 + $0x1b0] sm:$0xff]
    %v341 = vld [vmem:[%s267 + $0x1b8] sm:$0xf]
    %v342 = vld [vmem:[%s267 + $0x1bc] sm:$0xff]
    %v343 = vld [vmem:[%s267 + $0x1c4] sm:$0xf]
    %v344 = vld [vmem:[%s267 + $0x1c8] sm:$0xff]
    %v345 = vld [vmem:[%s267 + $0x1d0] sm:$0xf]
    %v346 = vld [vmem:[%s267 + $0x1d4] sm:$0xff]
    %v347 = vld [vmem:[%s267 + $0x1dc] sm:$0xf]
    %v348 = vld [vmem:[%s267 + $0x1e0] sm:$0xff]
    %v349 = vld [vmem:[%s267 + $0x1e8] sm:$0xf]
    %v350 = vld [vmem:[%s267 + $0x1ec] sm:$0xff]
    %v351 = vld [vmem:[%s267 + $0x1f4] sm:$0xf]
    %v352 = vld [vmem:[%s267 + $0x1f8] sm:$0xff]
    %v353 = vld [vmem:[%s267 + $0x200] sm:$0xf]
    %v354 = vld [vmem:[%s267 + $0x204] sm:$0xff]
    %v355 = vld [vmem:[%s267 + $0x20c] sm:$0xf]
    %v356 = vld [vmem:[%s267 + $0x210] sm:$0xff]
    %v357 = vld [vmem:[%s267 + $0x218] sm:$0xf]
    %v358 = vld [vmem:[%s267 + $0x21c] sm:$0xff]
    %v359 = vld [vmem:[%s267 + $0x224] sm:$0xf]
    %v360 = vld [vmem:[%s267 + $0x228] sm:$0xff]
    %v361 = vld [vmem:[%s267 + $0x230] sm:$0xf]
    %v362 = vld [vmem:[%s267 + $0x234] sm:$0xff]
    %v363 = vld [vmem:[%s267 + $0x23c] sm:$0xf]
    %v364 = vld [vmem:[#allocation2] sm:$0xff]
    %v365 = vld [vmem:[#allocation2 + $0x8] sm:$0xf]
    %v366 = vld [vmem:[#allocation2 + $0xc] sm:$0xff]
    %v367 = vld [vmem:[#allocation2 + $0x14] sm:$0xf]
    %v368 = vld [vmem:[#allocation2 + $0x18] sm:$0xff]
    %v369 = vld [vmem:[#allocation2 + $0x20] sm:$0xf]
    %v370 = vld [vmem:[#allocation2 + $0x24] sm:$0xff]
    %v371 = vld [vmem:[#allocation2 + $0x2c] sm:$0xf]
    %v372 = vld [vmem:[#allocation2 + $0x30] sm:$0xff]
    %v373 = vld [vmem:[#allocation2 + $0x38] sm:$0xf]
    %v374 = vld [vmem:[#allocation2 + $0x3c] sm:$0xff]
    %v375 = vld [vmem:[#allocation2 + $0x44] sm:$0xf]
    %v376 = vld [vmem:[#allocation2 + $0x48] sm:$0xff]
    %v377 = vld [vmem:[#allocation2 + $0x50] sm:$0xf]
    %v378 = vld [vmem:[#allocation2 + $0x54] sm:$0xff]
    %v379 = vld [vmem:[#allocation2 + $0x5c] sm:$0xf]
    %v380 = vld [vmem:[#allocation2 + $0x60] sm:$0xff]
    %v381 = vld [vmem:[#allocation2 + $0x68] sm:$0xf]
    %v382 = vld [vmem:[#allocation2 + $0x6c] sm:$0xff]
    %v383 = vld [vmem:[#allocation2 + $0x74] sm:$0xf]
    %v384 = vld [vmem:[#allocation2 + $0x78] sm:$0xff]
    %v385 = vld [vmem:[#allocation2 + $0x80] sm:$0xf]
    %v386 = vld [vmem:[#allocation2 + $0x84] sm:$0xff]
    %v387 = vld [vmem:[#allocation2 + $0x8c] sm:$0xf]
    %v388 = vld [vmem:[#allocation2 + $0x90] sm:$0xff]
    %v389 = vld [vmem:[#allocation2 + $0x98] sm:$0xf]
    %v390 = vld [vmem:[#allocation2 + $0x9c] sm:$0xff]
    %v391 = vld [vmem:[#allocation2 + $0xa4] sm:$0xf]
    %v392 = vld [vmem:[#allocation2 + $0xa8] sm:$0xff]
    %v393 = vld [vmem:[#allocation2 + $0xb0] sm:$0xf]
    %v394 = vld [vmem:[#allocation2 + $0xb4] sm:$0xff]
    %v395 = vld [vmem:[#allocation2 + $0xbc] sm:$0xf]
    %v396 = vld [vmem:[#allocation2 + $0xc0] sm:$0xff]
    %v397 = vld [vmem:[#allocation2 + $0xc8] sm:$0xf]
    %v398 = vld [vmem:[#allocation2 + $0xcc] sm:$0xff]
    %v399 = vld [vmem:[#allocation2 + $0xd4] sm:$0xf]
    %v400 = vld [vmem:[#allocation2 + $0xd8] sm:$0xff]
    %v401 = vld [vmem:[#allocation2 + $0xe0] sm:$0xf]
    %v402 = vld [vmem:[#allocation2 + $0xe4] sm:$0xff]
    %v403 = vld [vmem:[#allocation2 + $0xec] sm:$0xf]
    %v404 = vld [vmem:[#allocation2 + $0xf0] sm:$0xff]
    %v405 = vld [vmem:[#allocation2 + $0xf8] sm:$0xf]
    %v406 = vld [vmem:[#allocation2 + $0xfc] sm:$0xff]
    %v407 = vld [vmem:[#allocation2 + $0x104] sm:$0xf]
    %v408 = vld [vmem:[#allocation2 + $0x108] sm:$0xff]
    %v409 = vld [vmem:[#allocation2 + $0x110] sm:$0xf]
    %v410 = vld [vmem:[#allocation2 + $0x114] sm:$0xff]
    %v411 = vld [vmem:[#allocation2 + $0x11c] sm:$0xf]
    %v412 = vld [vmem:[#allocation2 + $0x120] sm:$0xff]
    %v413 = vld [vmem:[#allocation2 + $0x128] sm:$0xf]
    %v414 = vld [vmem:[#allocation2 + $0x12c] sm:$0xff]
    %v415 = vld [vmem:[#allocation2 + $0x134] sm:$0xf]
    %v416 = vld [vmem:[#allocation2 + $0x138] sm:$0xff]
    %v417 = vld [vmem:[#allocation2 + $0x140] sm:$0xf]
    %v418 = vld [vmem:[#allocation2 + $0x144] sm:$0xff]
    %v419 = vld [vmem:[#allocation2 + $0x14c] sm:$0xf]
    %v420 = vld [vmem:[#allocation2 + $0x150] sm:$0xff]
    %v421 = vld [vmem:[#allocation2 + $0x158] sm:$0xf]
    %v422 = vld [vmem:[#allocation2 + $0x15c] sm:$0xff]
    %v423 = vld [vmem:[#allocation2 + $0x164] sm:$0xf]
    %v424 = vld [vmem:[#allocation2 + $0x168] sm:$0xff]
    %v425 = vld [vmem:[#allocation2 + $0x170] sm:$0xf]
    %v426 = vld [vmem:[#allocation2 + $0x174] sm:$0xff]
    %v427 = vld [vmem:[#allocation2 + $0x17c] sm:$0xf]
    %v428 = vld [vmem:[#allocation2 + $0x180] sm:$0xff]
    %v429 = vld [vmem:[#allocation2 + $0x188] sm:$0xf]
    %v430 = vld [vmem:[#allocation2 + $0x18c] sm:$0xff]
    %v431 = vld [vmem:[#allocation2 + $0x194] sm:$0xf]
    %v432 = vld [vmem:[#allocation2 + $0x198] sm:$0xff]
    %v433 = vld [vmem:[#allocation2 + $0x1a0] sm:$0xf]
    %v434 = vld [vmem:[#allocation2 + $0x1a4] sm:$0xff]
    %v435 = vld [vmem:[#allocation2 + $0x1ac] sm:$0xf]
    %v436 = vld [vmem:[#allocation2 + $0x1b0] sm:$0xff]
    %v437 = vld [vmem:[#allocation2 + $0x1b8] sm:$0xf]
    %v438 = vld [vmem:[#allocation2 + $0x1bc] sm:$0xff]
    %v439 = vld [vmem:[#allocation2 + $0x1c4] sm:$0xf]
    %v440 = vld [vmem:[#allocation2 + $0x1c8] sm:$0xff]
    %v441 = vld [vmem:[#allocation2 + $0x1d0] sm:$0xf]
    %v442 = vld [vmem:[#allocation2 + $0x1d4] sm:$0xff]
    %v443 = vld [vmem:[#allocation2 + $0x1dc] sm:$0xf]
    %v444 = vld [vmem:[#allocation2 + $0x1e0] sm:$0xff]
    %v445 = vld [vmem:[#allocation2 + $0x1e8] sm:$0xf]
    %v446 = vld [vmem:[#allocation2 + $0x1ec] sm:$0xff]
    %v447 = vld [vmem:[#allocation2 + $0x1f4] sm:$0xf]
    %v448 = vld [vmem:[#allocation2 + $0x1f8] sm:$0xff]
    %v449 = vld [vmem:[#allocation2 + $0x200] sm:$0xf]
    %v450 = vld [vmem:[#allocation2 + $0x204] sm:$0xff]
    %v451 = vld [vmem:[#allocation2 + $0x20c] sm:$0xf]
    %v452 = vld [vmem:[#allocation2 + $0x210] sm:$0xff]
    %v453 = vld [vmem:[#allocation2 + $0x218] sm:$0xf]
    %v454 = vld [vmem:[#allocation2 + $0x21c] sm:$0xff]
    %v455 = vld [vmem:[#allocation2 + $0x224] sm:$0xf]
    %v456 = vld [vmem:[#allocation2 + $0x228] sm:$0xff]
    %v457 = vld [vmem:[#allocation2 + $0x230] sm:$0xf]
    %v458 = vld [vmem:[#allocation2 + $0x234] sm:$0xff]
    %v459 = vld [vmem:[#allocation2 + $0x23c] sm:$0xf]
    %v556 = vunpack.c.l.b16 %v364
    %v557 = vunpack.c.h.b16 %v364
    %v558 = vunpack.c.l.b16 %v365
    %v559 = vunpack.c.l.b16 %v366
    %v560 = vunpack.c.h.b16 %v366
    %v561 = vunpack.c.l.b16 %v367
    %v562 = vunpack.c.l.b16 %v368
    %v563 = vunpack.c.h.b16 %v368
    %v564 = vunpack.c.l.b16 %v369
    %v565 = vunpack.c.l.b16 %v370
    %v566 = vunpack.c.h.b16 %v370
    %v567 = vunpack.c.l.b16 %v371
    %v568 = vunpack.c.l.b16 %v372
    %v569 = vunpack.c.h.b16 %v372
    %v570 = vunpack.c.l.b16 %v373
    %v571 = vunpack.c.l.b16 %v374
    %v572 = vunpack.c.h.b16 %v374
    %v573 = vunpack.c.l.b16 %v375
    %v574 = vunpack.c.l.b16 %v376
    %v575 = vunpack.c.h.b16 %v376
    %v576 = vunpack.c.l.b16 %v377
    %v577 = vunpack.c.l.b16 %v378
    %v578 = vunpack.c.h.b16 %v378
    %v579 = vunpack.c.l.b16 %v379
    %v580 = vunpack.c.l.b16 %v380
    %v581 = vunpack.c.h.b16 %v380
    %v582 = vunpack.c.l.b16 %v381
    %v583 = vunpack.c.l.b16 %v382
    %v584 = vunpack.c.h.b16 %v382
    %v585 = vunpack.c.l.b16 %v383
    %v586 = vunpack.c.l.b16 %v384
    %v587 = vunpack.c.h.b16 %v384
    %v588 = vunpack.c.l.b16 %v385
    %v589 = vunpack.c.l.b16 %v386
    %v590 = vunpack.c.h.b16 %v386
    %v591 = vunpack.c.l.b16 %v387
    %v592 = vunpack.c.l.b16 %v388
    %v593 = vunpack.c.h.b16 %v388
    %v594 = vunpack.c.l.b16 %v389
    %v595 = vunpack.c.l.b16 %v390
    %v596 = vunpack.c.h.b16 %v390
    %v597 = vunpack.c.l.b16 %v391
    %v598 = vunpack.c.l.b16 %v392
    %v599 = vunpack.c.h.b16 %v392
    %v600 = vunpack.c.l.b16 %v393
    %v601 = vunpack.c.l.b16 %v394
    %v602 = vunpack.c.h.b16 %v394
    %v603 = vunpack.c.l.b16 %v395
    %v604 = vunpack.c.l.b16 %v396
    %v605 = vunpack.c.h.b16 %v396
    %v606 = vunpack.c.l.b16 %v397
    %v607 = vunpack.c.l.b16 %v398
    %v608 = vunpack.c.h.b16 %v398
    %v609 = vunpack.c.l.b16 %v399
    %v610 = vunpack.c.l.b16 %v400
    %v611 = vunpack.c.h.b16 %v400
    %v612 = vunpack.c.l.b16 %v401
    %v613 = vunpack.c.l.b16 %v402
    %v614 = vunpack.c.h.b16 %v402
    %v615 = vunpack.c.l.b16 %v403
    %v616 = vunpack.c.l.b16 %v404
    %v617 = vunpack.c.h.b16 %v404
    %v618 = vunpack.c.l.b16 %v405
    %v619 = vunpack.c.l.b16 %v406
    %v620 = vunpack.c.h.b16 %v406
    %v621 = vunpack.c.l.b16 %v407
    %v622 = vunpack.c.l.b16 %v408
    %v623 = vunpack.c.h.b16 %v408
    %v624 = vunpack.c.l.b16 %v409
    %v625 = vunpack.c.l.b16 %v410
    %v626 = vunpack.c.h.b16 %v410
    %v627 = vunpack.c.l.b16 %v411
    %v628 = vunpack.c.l.b16 %v412
    %v629 = vunpack.c.h.b16 %v412
    %v630 = vunpack.c.l.b16 %v413
    %v631 = vunpack.c.l.b16 %v414
    %v632 = vunpack.c.h.b16 %v414
    %v633 = vunpack.c.l.b16 %v415
    %v634 = vunpack.c.l.b16 %v416
    %v635 = vunpack.c.h.b16 %v416
    %v636 = vunpack.c.l.b16 %v417
    %v637 = vunpack.c.l.b16 %v418
    %v638 = vunpack.c.h.b16 %v418
    %v639 = vunpack.c.l.b16 %v419
    %v640 = vunpack.c.l.b16 %v420
    %v641 = vunpack.c.h.b16 %v420
    %v642 = vunpack.c.l.b16 %v421
    %v643 = vunpack.c.l.b16 %v422
    %v644 = vunpack.c.h.b16 %v422
    %v645 = vunpack.c.l.b16 %v423
    %v646 = vunpack.c.l.b16 %v424
    %v647 = vunpack.c.h.b16 %v424
    %v648 = vunpack.c.l.b16 %v425
    %v649 = vunpack.c.l.b16 %v426
    %v650 = vunpack.c.h.b16 %v426
    %v651 = vunpack.c.l.b16 %v427
    %v652 = vunpack.c.l.b16 %v428
    %v653 = vunpack.c.h.b16 %v428
    %v654 = vunpack.c.l.b16 %v429
    %v655 = vunpack.c.l.b16 %v430
    %v656 = vunpack.c.h.b16 %v430
    %v657 = vunpack.c.l.b16 %v431
    %v658 = vunpack.c.l.b16 %v432
    %v659 = vunpack.c.h.b16 %v432
    %v660 = vunpack.c.l.b16 %v433
    %v661 = vunpack.c.l.b16 %v434
    %v662 = vunpack.c.h.b16 %v434
    %v663 = vunpack.c.l.b16 %v435
    %v664 = vunpack.c.l.b16 %v436
    %v665 = vunpack.c.h.b16 %v436
    %v666 = vunpack.c.l.b16 %v437
    %v667 = vunpack.c.l.b16 %v438
    %v668 = vunpack.c.h.b16 %v438
    %v669 = vunpack.c.l.b16 %v439
    %v670 = vunpack.c.l.b16 %v440
    %v671 = vunpack.c.h.b16 %v440
    %v672 = vunpack.c.l.b16 %v441
    %v673 = vunpack.c.l.b16 %v442
    %v674 = vunpack.c.h.b16 %v442
    %v675 = vunpack.c.l.b16 %v443
    %v676 = vunpack.c.l.b16 %v444
    %v677 = vunpack.c.h.b16 %v444
    %v678 = vunpack.c.l.b16 %v445
    %v679 = vunpack.c.l.b16 %v446
    %v680 = vunpack.c.h.b16 %v446
    %v681 = vunpack.c.l.b16 %v447
    %v682 = vunpack.c.l.b16 %v448
    %v683 = vunpack.c.h.b16 %v448
    %v684 = vunpack.c.l.b16 %v449
    %v685 = vunpack.c.l.b16 %v450
    %v686 = vunpack.c.h.b16 %v450
    %v687 = vunpack.c.l.b16 %v451
    %v688 = vunpack.c.l.b16 %v452
    %v689 = vunpack.c.h.b16 %v452
    %v690 = vunpack.c.l.b16 %v453
    %v691 = vunpack.c.l.b16 %v454
    %v692 = vunpack.c.h.b16 %v454
    %v693 = vunpack.c.l.b16 %v455
    %v694 = vunpack.c.l.b16 %v456
    %v695 = vunpack.c.h.b16 %v456
    %v696 = vunpack.c.l.b16 %v457
    %v697 = vunpack.c.l.b16 %v458
    %v698 = vunpack.c.h.b16 %v458
    %v699 = vunpack.c.l.b16 %v459
    %v700 = vpack.c.b16 %v559, %v556
    %v701 = vpack.c.b16 %v560, %v557
    %v702 = vpack.c.b16 %v561, %v558
    %v703 = vpack.c.b16 %v565, %v562
    %v704 = vpack.c.b16 %v566, %v563
    %v705 = vpack.c.b16 %v567, %v564
    %v706 = vpack.c.b16 %v571, %v568
    %v707 = vpack.c.b16 %v572, %v569
    %v708 = vpack.c.b16 %v573, %v570
    %v709 = vpack.c.b16 %v577, %v574
    %v710 = vpack.c.b16 %v578, %v575
    %v711 = vpack.c.b16 %v579, %v576
    %v712 = vpack.c.b16 %v583, %v580
    %v713 = vpack.c.b16 %v584, %v581
    %v714 = vpack.c.b16 %v585, %v582
    %v715 = vpack.c.b16 %v589, %v586
    %v716 = vpack.c.b16 %v590, %v587
    %v717 = vpack.c.b16 %v591, %v588
    %v718 = vpack.c.b16 %v595, %v592
    %v719 = vpack.c.b16 %v596, %v593
    %v720 = vpack.c.b16 %v597, %v594
    %v721 = vpack.c.b16 %v601, %v598
    %v722 = vpack.c.b16 %v602, %v599
    %v723 = vpack.c.b16 %v603, %v600
    %v724 = vpack.c.b16 %v607, %v604
    %v725 = vpack.c.b16 %v608, %v605
    %v726 = vpack.c.b16 %v609, %v606
    %v727 = vpack.c.b16 %v613, %v610
    %v728 = vpack.c.b16 %v614, %v611
    %v729 = vpack.c.b16 %v615, %v612
    %v730 = vpack.c.b16 %v619, %v616
    %v731 = vpack.c.b16 %v620, %v617
    %v732 = vpack.c.b16 %v621, %v618
    %v733 = vpack.c.b16 %v625, %v622
    %v734 = vpack.c.b16 %v626, %v623
    %v735 = vpack.c.b16 %v627, %v624
    %v736 = vpack.c.b16 %v631, %v628
    %v737 = vpack.c.b16 %v632, %v629
    %v738 = vpack.c.b16 %v633, %v630
    %v739 = vpack.c.b16 %v637, %v634
    %v740 = vpack.c.b16 %v638, %v635
    %v741 = vpack.c.b16 %v639, %v636
    %v742 = vpack.c.b16 %v643, %v640
    %v743 = vpack.c.b16 %v644, %v641
    %v744 = vpack.c.b16 %v645, %v642
    %v745 = vpack.c.b16 %v649, %v646
    %v746 = vpack.c.b16 %v650, %v647
    %v747 = vpack.c.b16 %v651, %v648
    %v748 = vpack.c.b16 %v655, %v652
    %v749 = vpack.c.b16 %v656, %v653
    %v750 = vpack.c.b16 %v657, %v654
    %v751 = vpack.c.b16 %v661, %v658
    %v752 = vpack.c.b16 %v662, %v659
    %v753 = vpack.c.b16 %v663, %v660
    %v754 = vpack.c.b16 %v667, %v664
    %v755 = vpack.c.b16 %v668, %v665
    %v756 = vpack.c.b16 %v669, %v666
    %v757 = vpack.c.b16 %v673, %v670
    %v758 = vpack.c.b16 %v674, %v671
    %v759 = vpack.c.b16 %v675, %v672
    %v760 = vpack.c.b16 %v679, %v676
    %v761 = vpack.c.b16 %v680, %v677
    %v762 = vpack.c.b16 %v681, %v678
    %v763 = vpack.c.b16 %v685, %v682
    %v764 = vpack.c.b16 %v686, %v683
    %v765 = vpack.c.b16 %v687, %v684
    %v766 = vpack.c.b16 %v691, %v688
    %v767 = vpack.c.b16 %v692, %v689
    %v768 = vpack.c.b16 %v693, %v690
    %v769 = vpack.c.b16 %v697, %v694
    %v770 = vpack.c.b16 %v698, %v695
    %v771 = vpack.c.b16 %v699, %v696
    %844 = vmatpush.bf16.msra.mxu0 %v721
    %845 = vmatpush.bf16.msra.mxu0 %v718
    %846 = vmatpush.bf16.msra.mxu0 %v715
    %847 = vmatpush.bf16.msra.mxu0 %v712
    %848 = vmatpush.bf16.msra.mxu0 %v709
    %849 = vmatpush.bf16.msra.mxu0 %v706
    %850 = vmatpush.bf16.msra.mxu0 %v703
    %851 = vmatpush.bf16.msra.mxu0 %v700
    %852 = vmatmul.bf16.gmra.mxu0 %v233
    %v853 = vpop.f32.mrf.mxu0
    %v854 = vadd.f32 0.0, %v853
    %v855 = vpop.f32.mrf.mxu0
    %v856 = vadd.f32 0.0, %v855
    %857 = vdwg.mxu0
    %858 = vmatpush.bf16.msra.mxu0 %v745
    %859 = vmatpush.bf16.msra.mxu0 %v742
    %860 = vmatpush.bf16.msra.mxu0 %v739
    %861 = vmatpush.bf16.msra.mxu0 %v736
    %862 = vmatpush.bf16.msra.mxu0 %v733
    %863 = vmatpush.bf16.msra.mxu0 %v730
    %864 = vmatpush.bf16.msra.mxu0 %v727
    %865 = vmatpush.bf16.msra.mxu0 %v724
    %866 = vmatmul.bf16.gmra.mxu0 %v234
    %v867 = vpop.f32.mrf.mxu0
    %v868 = vadd.f32 %v854, %v867
    %v869 = vpop.f32.mrf.mxu0
    %v870 = vadd.f32 %v856, %v869
    %871 = vdwg.mxu0
    %872 = vmatpush.bf16.msra.mxu0 %v769
    %873 = vmatpush.bf16.msra.mxu0 %v766
    %874 = vmatpush.bf16.msra.mxu0 %v763
    %875 = vmatpush.bf16.msra.mxu0 %v760
    %876 = vmatpush.bf16.msra.mxu0 %v757
    %877 = vmatpush.bf16.msra.mxu0 %v754
    %878 = vmatpush.bf16.msra.mxu0 %v751
    %879 = vmatpush.bf16.msra.mxu0 %v748
    %880 = vmatmul.bf16.gmra.mxu0 %v235
    %v881 = vpop.f32.mrf.mxu0
    %v882 = vadd.f32 %v868, %v881
    %v883 = vpop.f32.mrf.mxu0
    %v884 = vadd.f32 %v870, %v883
    %885 = vdwg.mxu0
    %886 = vmatpush.bf16.msra.mxu0 %v722
    %887 = vmatpush.bf16.msra.mxu0 %v719
    %888 = vmatpush.bf16.msra.mxu0 %v716
    %889 = vmatpush.bf16.msra.mxu0 %v713
    %890 = vmatpush.bf16.msra.mxu0 %v710
    %891 = vmatpush.bf16.msra.mxu0 %v707
    %892 = vmatpush.bf16.msra.mxu0 %v704
    %893 = vmatpush.bf16.msra.mxu0 %v701
    %894 = vmatmul.bf16.gmra.mxu0 %v233
    %v895 = vpop.f32.mrf.mxu0
    %v896 = vadd.f32 0.0, %v895
    %v897 = vpop.f32.mrf.mxu0
    %v898 = vadd.f32 0.0, %v897
    %899 = vdwg.mxu0
    %900 = vmatpush.bf16.msra.mxu0 %v746
    %901 = vmatpush.bf16.msra.mxu0 %v743
    %902 = vmatpush.bf16.msra.mxu0 %v740
    %903 = vmatpush.bf16.msra.mxu0 %v737
    %904 = vmatpush.bf16.msra.mxu0 %v734
    %905 = vmatpush.bf16.msra.mxu0 %v731
    %906 = vmatpush.bf16.msra.mxu0 %v728
    %907 = vmatpush.bf16.msra.mxu0 %v725
    %908 = vmatmul.bf16.gmra.mxu0 %v234
    %v909 = vpop.f32.mrf.mxu0
    %v910 = vadd.f32 %v896, %v909
    %v911 = vpop.f32.mrf.mxu0
    %v912 = vadd.f32 %v898, %v911
    %913 = vdwg.mxu0
    %914 = vmatpush.bf16.msra.mxu0 %v770
    %915 = vmatpush.bf16.msra.mxu0 %v767
    %916 = vmatpush.bf16.msra.mxu0 %v764
    %917 = vmatpush.bf16.msra.mxu0 %v761
    %918 = vmatpush.bf16.msra.mxu0 %v758
    %919 = vmatpush.bf16.msra.mxu0 %v755
    %920 = vmatpush.bf16.msra.mxu0 %v752
    %921 = vmatpush.bf16.msra.mxu0 %v749
    %922 = vmatmul.bf16.gmra.mxu0 %v235
    %v923 = vpop.f32.mrf.mxu0
    %v924 = vadd.f32 %v910, %v923
    %v925 = vpop.f32.mrf.mxu0
    %v926 = vadd.f32 %v912, %v925
    %927 = vdwg.mxu0
    %928 = vmatpush.bf16.msra.mxu0 %v723
    %929 = vmatpush.bf16.msra.mxu0 %v720
    %930 = vmatpush.bf16.msra.mxu0 %v717
    %931 = vmatpush.bf16.msra.mxu0 %v714
    %932 = vmatpush.bf16.msra.mxu0 %v711
    %933 = vmatpush.bf16.msra.mxu0 %v708
    %934 = vmatpush.bf16.msra.mxu0 %v705
    %935 = vmatpush.bf16.msra.mxu0 %v702
    %936 = vmatmul.bf16.gmra.mxu0 %v233
    %v937 = vpop.f32.mrf.mxu0
    %v938 = vadd.f32 0.0, %v937
    %v939 = vpop.f32.mrf.mxu0
    %v940 = vadd.f32 0.0, %v939
    %941 = vdwg.mxu0
    %942 = vmatpush.bf16.msra.mxu0 %v747
    %943 = vmatpush.bf16.msra.mxu0 %v744
    %944 = vmatpush.bf16.msra.mxu0 %v741
    %945 = vmatpush.bf16.msra.mxu0 %v738
    %946 = vmatpush.bf16.msra.mxu0 %v735
    %947 = vmatpush.bf16.msra.mxu0 %v732
    %948 = vmatpush.bf16.msra.mxu0 %v729
    %949 = vmatpush.bf16.msra.mxu0 %v726
    %950 = vmatmul.bf16.gmra.mxu0 %v234
    %v951 = vpop.f32.mrf.mxu0
    %v952 = vadd.f32 %v938, %v951
    %v953 = vpop.f32.mrf.mxu0
    %v954 = vadd.f32 %v940, %v953
    %955 = vdwg.mxu0
    %956 = vmatpush.bf16.msra.mxu0 %v771
    %957 = vmatpush.bf16.msra.mxu0 %v768
    %958 = vmatpush.bf16.msra.mxu0 %v765
    %959 = vmatpush.bf16.msra.mxu0 %v762
    %960 = vmatpush.bf16.msra.mxu0 %v759
    %961 = vmatpush.bf16.msra.mxu0 %v756
    %962 = vmatpush.bf16.msra.mxu0 %v753
    %963 = vmatpush.bf16.msra.mxu0 %v750
    %964 = vmatmul.bf16.gmra.mxu0 %v235
    %v965 = vpop.f32.mrf.mxu0
    %v966 = vadd.f32 %v952, %v965
    %v967 = vpop.f32.mrf.mxu0
    %v968 = vadd.f32 %v954, %v967
    %969 = vdwg.mxu0
    %v1066 = vunpack.c.l.b16 %v268
    %v1067 = vunpack.c.h.b16 %v268
    %v1068 = vunpack.c.l.b16 %v269
    %v1069 = vunpack.c.l.b16 %v270
    %v1070 = vunpack.c.h.b16 %v270
    %v1071 = vunpack.c.l.b16 %v271
    %v1072 = vunpack.c.l.b16 %v272
    %v1073 = vunpack.c.h.b16 %v272
    %v1074 = vunpack.c.l.b16 %v273
    %v1075 = vunpack.c.l.b16 %v274
    %v1076 = vunpack.c.h.b16 %v274
    %v1077 = vunpack.c.l.b16 %v275
    %v1078 = vunpack.c.l.b16 %v276
    %v1079 = vunpack.c.h.b16 %v276
    %v1080 = vunpack.c.l.b16 %v277
    %v1081 = vunpack.c.l.b16 %v278
    %v1082 = vunpack.c.h.b16 %v278
    %v1083 = vunpack.c.l.b16 %v279
    %v1084 = vunpack.c.l.b16 %v280
    %v1085 = vunpack.c.h.b16 %v280
    %v1086 = vunpack.c.l.b16 %v281
    %v1087 = vunpack.c.l.b16 %v282
    %v1088 = vunpack.c.h.b16 %v282
    %v1089 = vunpack.c.l.b16 %v283
    %v1090 = vunpack.c.l.b16 %v284
    %v1091 = vunpack.c.h.b16 %v284
    %v1092 = vunpack.c.l.b16 %v285
    %v1093 = vunpack.c.l.b16 %v286
    %v1094 = vunpack.c.h.b16 %v286
    %v1095 = vunpack.c.l.b16 %v287
    %v1096 = vunpack.c.l.b16 %v288
    %v1097 = vunpack.c.h.b16 %v288
    %v1098 = vunpack.c.l.b16 %v289
    %v1099 = vunpack.c.l.b16 %v290
    %v1100 = vunpack.c.h.b16 %v290
    %v1101 = vunpack.c.l.b16 %v291
    %v1102 = vunpack.c.l.b16 %v292
    %v1103 = vunpack.c.h.b16 %v292
    %v1104 = vunpack.c.l.b16 %v293
    %v1105 = vunpack.c.l.b16 %v294
    %v1106 = vunpack.c.h.b16 %v294
    %v1107 = vunpack.c.l.b16 %v295
    %v1108 = vunpack.c.l.b16 %v296
    %v1109 = vunpack.c.h.b16 %v296
    %v1110 = vunpack.c.l.b16 %v297
    %v1111 = vunpack.c.l.b16 %v298
    %v1112 = vunpack.c.h.b16 %v298
    %v1113 = vunpack.c.l.b16 %v299
    %v1114 = vunpack.c.l.b16 %v300
    %v1115 = vunpack.c.h.b16 %v300
    %v1116 = vunpack.c.l.b16 %v301
    %v1117 = vunpack.c.l.b16 %v302
    %v1118 = vunpack.c.h.b16 %v302
    %v1119 = vunpack.c.l.b16 %v303
    %v1120 = vunpack.c.l.b16 %v304
    %v1121 = vunpack.c.h.b16 %v304
    %v1122 = vunpack.c.l.b16 %v305
    %v1123 = vunpack.c.l.b16 %v306
    %v1124 = vunpack.c.h.b16 %v306
    %v1125 = vunpack.c.l.b16 %v307
    %v1126 = vunpack.c.l.b16 %v308
    %v1127 = vunpack.c.h.b16 %v308
    %v1128 = vunpack.c.l.b16 %v309
    %v1129 = vunpack.c.l.b16 %v310
    %v1130 = vunpack.c.h.b16 %v310
    %v1131 = vunpack.c.l.b16 %v311
    %v1132 = vunpack.c.l.b16 %v312
    %v1133 = vunpack.c.h.b16 %v312
    %v1134 = vunpack.c.l.b16 %v313
    %v1135 = vunpack.c.l.b16 %v314
    %v1136 = vunpack.c.h.b16 %v314
    %v1137 = vunpack.c.l.b16 %v315
    %v1138 = vunpack.c.l.b16 %v316
    %v1139 = vunpack.c.h.b16 %v316
    %v1140 = vunpack.c.l.b16 %v317
    %v1141 = vunpack.c.l.b16 %v318
    %v1142 = vunpack.c.h.b16 %v318
    %v1143 = vunpack.c.l.b16 %v319
    %v1144 = vunpack.c.l.b16 %v320
    %v1145 = vunpack.c.h.b16 %v320
    %v1146 = vunpack.c.l.b16 %v321
    %v1147 = vunpack.c.l.b16 %v322
    %v1148 = vunpack.c.h.b16 %v322
    %v1149 = vunpack.c.l.b16 %v323
    %v1150 = vunpack.c.l.b16 %v324
    %v1151 = vunpack.c.h.b16 %v324
    %v1152 = vunpack.c.l.b16 %v325
    %v1153 = vunpack.c.l.b16 %v326
    %v1154 = vunpack.c.h.b16 %v326
    %v1155 = vunpack.c.l.b16 %v327
    %v1156 = vunpack.c.l.b16 %v328
    %v1157 = vunpack.c.h.b16 %v328
    %v1158 = vunpack.c.l.b16 %v329
    %v1159 = vunpack.c.l.b16 %v330
    %v1160 = vunpack.c.h.b16 %v330
    %v1161 = vunpack.c.l.b16 %v331
    %v1162 = vunpack.c.l.b16 %v332
    %v1163 = vunpack.c.h.b16 %v332
    %v1164 = vunpack.c.l.b16 %v333
    %v1165 = vunpack.c.l.b16 %v334
    %v1166 = vunpack.c.h.b16 %v334
    %v1167 = vunpack.c.l.b16 %v335
    %v1168 = vunpack.c.l.b16 %v336
    %v1169 = vunpack.c.h.b16 %v336
    %v1170 = vunpack.c.l.b16 %v337
    %v1171 = vunpack.c.l.b16 %v338
    %v1172 = vunpack.c.h.b16 %v338
    %v1173 = vunpack.c.l.b16 %v339
    %v1174 = vunpack.c.l.b16 %v340
    %v1175 = vunpack.c.h.b16 %v340
    %v1176 = vunpack.c.l.b16 %v341
    %v1177 = vunpack.c.l.b16 %v342
    %v1178 = vunpack.c.h.b16 %v342
    %v1179 = vunpack.c.l.b16 %v343
    %v1180 = vunpack.c.l.b16 %v344
    %v1181 = vunpack.c.h.b16 %v344
    %v1182 = vunpack.c.l.b16 %v345
    %v1183 = vunpack.c.l.b16 %v346
    %v1184 = vunpack.c.h.b16 %v346
    %v1185 = vunpack.c.l.b16 %v347
    %v1186 = vunpack.c.l.b16 %v348
    %v1187 = vunpack.c.h.b16 %v348
    %v1188 = vunpack.c.l.b16 %v349
    %v1189 = vunpack.c.l.b16 %v350
    %v1190 = vunpack.c.h.b16 %v350
    %v1191 = vunpack.c.l.b16 %v351
    %v1192 = vunpack.c.l.b16 %v352
    %v1193 = vunpack.c.h.b16 %v352
    %v1194 = vunpack.c.l.b16 %v353
    %v1195 = vunpack.c.l.b16 %v354
    %v1196 = vunpack.c.h.b16 %v354
    %v1197 = vunpack.c.l.b16 %v355
    %v1198 = vunpack.c.l.b16 %v356
    %v1199 = vunpack.c.h.b16 %v356
    %v1200 = vunpack.c.l.b16 %v357
    %v1201 = vunpack.c.l.b16 %v358
    %v1202 = vunpack.c.h.b16 %v358
    %v1203 = vunpack.c.l.b16 %v359
    %v1204 = vunpack.c.l.b16 %v360
    %v1205 = vunpack.c.h.b16 %v360
    %v1206 = vunpack.c.l.b16 %v361
    %v1207 = vunpack.c.l.b16 %v362
    %v1208 = vunpack.c.h.b16 %v362
    %v1209 = vunpack.c.l.b16 %v363
    %v1210 = vpack.c.b16 %v1069, %v1066
    %v1211 = vpack.c.b16 %v1070, %v1067
    %v1212 = vpack.c.b16 %v1071, %v1068
    %v1213 = vpack.c.b16 %v1075, %v1072
    %v1214 = vpack.c.b16 %v1076, %v1073
    %v1215 = vpack.c.b16 %v1077, %v1074
    %v1216 = vpack.c.b16 %v1081, %v1078
    %v1217 = vpack.c.b16 %v1082, %v1079
    %v1218 = vpack.c.b16 %v1083, %v1080
    %v1219 = vpack.c.b16 %v1087, %v1084
    %v1220 = vpack.c.b16 %v1088, %v1085
    %v1221 = vpack.c.b16 %v1089, %v1086
    %v1222 = vpack.c.b16 %v1093, %v1090
    %v1223 = vpack.c.b16 %v1094, %v1091
    %v1224 = vpack.c.b16 %v1095, %v1092
    %v1225 = vpack.c.b16 %v1099, %v1096
    %v1226 = vpack.c.b16 %v1100, %v1097
    %v1227 = vpack.c.b16 %v1101, %v1098
    %v1228 = vpack.c.b16 %v1105, %v1102
    %v1229 = vpack.c.b16 %v1106, %v1103
    %v1230 = vpack.c.b16 %v1107, %v1104
    %v1231 = vpack.c.b16 %v1111, %v1108
    %v1232 = vpack.c.b16 %v1112, %v1109
    %v1233 = vpack.c.b16 %v1113, %v1110
    %v1234 = vpack.c.b16 %v1117, %v1114
    %v1235 = vpack.c.b16 %v1118, %v1115
    %v1236 = vpack.c.b16 %v1119, %v1116
    %v1237 = vpack.c.b16 %v1123, %v1120
    %v1238 = vpack.c.b16 %v1124, %v1121
    %v1239 = vpack.c.b16 %v1125, %v1122
    %v1240 = vpack.c.b16 %v1129, %v1126
    %v1241 = vpack.c.b16 %v1130, %v1127
    %v1242 = vpack.c.b16 %v1131, %v1128
    %v1243 = vpack.c.b16 %v1135, %v1132
    %v1244 = vpack.c.b16 %v1136, %v1133
    %v1245 = vpack.c.b16 %v1137, %v1134
    %v1246 = vpack.c.b16 %v1141, %v1138
    %v1247 = vpack.c.b16 %v1142, %v1139
    %v1248 = vpack.c.b16 %v1143, %v1140
    %v1249 = vpack.c.b16 %v1147, %v1144
    %v1250 = vpack.c.b16 %v1148, %v1145
    %v1251 = vpack.c.b16 %v1149, %v1146
    %v1252 = vpack.c.b16 %v1153, %v1150
    %v1253 = vpack.c.b16 %v1154, %v1151
    %v1254 = vpack.c.b16 %v1155, %v1152
    %v1255 = vpack.c.b16 %v1159, %v1156
    %v1256 = vpack.c.b16 %v1160, %v1157
    %v1257 = vpack.c.b16 %v1161, %v1158
    %v1258 = vpack.c.b16 %v1165, %v1162
    %v1259 = vpack.c.b16 %v1166, %v1163
    %v1260 = vpack.c.b16 %v1167, %v1164
    %v1261 = vpack.c.b16 %v1171, %v1168
    %v1262 = vpack.c.b16 %v1172, %v1169
    %v1263 = vpack.c.b16 %v1173, %v1170
    %v1264 = vpack.c.b16 %v1177, %v1174
    %v1265 = vpack.c.b16 %v1178, %v1175
    %v1266 = vpack.c.b16 %v1179, %v1176
    %v1267 = vpack.c.b16 %v1183, %v1180
    %v1268 = vpack.c.b16 %v1184, %v1181
    %v1269 = vpack.c.b16 %v1185, %v1182
    %v1270 = vpack.c.b16 %v1189, %v1186
    %v1271 = vpack.c.b16 %v1190, %v1187
    %v1272 = vpack.c.b16 %v1191, %v1188
    %v1273 = vpack.c.b16 %v1195, %v1192
    %v1274 = vpack.c.b16 %v1196, %v1193
    %v1275 = vpack.c.b16 %v1197, %v1194
    %v1276 = vpack.c.b16 %v1201, %v1198
    %v1277 = vpack.c.b16 %v1202, %v1199
    %v1278 = vpack.c.b16 %v1203, %v1200
    %v1279 = vpack.c.b16 %v1207, %v1204
    %v1280 = vpack.c.b16 %v1208, %v1205
    %v1281 = vpack.c.b16 %v1209, %v1206
    %1354 = vmatpush.bf16.msra.mxu0 %v1231
    %1355 = vmatpush.bf16.msra.mxu0 %v1228
    %1356 = vmatpush.bf16.msra.mxu0 %v1225
    %1357 = vmatpush.bf16.msra.mxu0 %v1222
    %1358 = vmatpush.bf16.msra.mxu0 %v1219
    %1359 = vmatpush.bf16.msra.mxu0 %v1216
    %1360 = vmatpush.bf16.msra.mxu0 %v1213
    %1361 = vmatpush.bf16.msra.mxu0 %v1210
    %1362 = vmatmul.bf16.gmra.mxu0 %v264
    %v1363 = vpop.f32.mrf.mxu0
    %v1364 = vadd.f32 %v882, %v1363
    %v1365 = vpop.f32.mrf.mxu0
    %v1366 = vadd.f32 %v884, %v1365
    %1367 = vdwg.mxu0
    %1368 = vmatpush.bf16.msra.mxu0 %v1255
    %1369 = vmatpush.bf16.msra.mxu0 %v1252
    %1370 = vmatpush.bf16.msra.mxu0 %v1249
    %1371 = vmatpush.bf16.msra.mxu0 %v1246
    %1372 = vmatpush.bf16.msra.mxu0 %v1243
    %1373 = vmatpush.bf16.msra.mxu0 %v1240
    %1374 = vmatpush.bf16.msra.mxu0 %v1237
    %1375 = vmatpush.bf16.msra.mxu0 %v1234
    %1376 = vmatmul.bf16.gmra.mxu0 %v265
    %v1377 = vpop.f32.mrf.mxu0
    %v1378 = vadd.f32 %v1364, %v1377
    %v1379 = vpop.f32.mrf.mxu0
    %v1380 = vadd.f32 %v1366, %v1379
    %1381 = vdwg.mxu0
    %1382 = vmatpush.bf16.msra.mxu0 %v1279
    %1383 = vmatpush.bf16.msra.mxu0 %v1276
    %1384 = vmatpush.bf16.msra.mxu0 %v1273
    %1385 = vmatpush.bf16.msra.mxu0 %v1270
    %1386 = vmatpush.bf16.msra.mxu0 %v1267
    %1387 = vmatpush.bf16.msra.mxu0 %v1264
    %1388 = vmatpush.bf16.msra.mxu0 %v1261
    %1389 = vmatpush.bf16.msra.mxu0 %v1258
    %1390 = vmatmul.bf16.gmra.mxu0 %v266
    %v1391 = vpop.f32.mrf.mxu0
    %v1392 = vadd.f32 %v1378, %v1391
    %v1393 = vpop.f32.mrf.mxu0
    %v1394 = vadd.f32 %v1380, %v1393
    %1395 = vdwg.mxu0
    %1396 = vmatpush.bf16.msra.mxu0 %v1232
    %1397 = vmatpush.bf16.msra.mxu0 %v1229
    %1398 = vmatpush.bf16.msra.mxu0 %v1226
    %1399 = vmatpush.bf16.msra.mxu0 %v1223
    %1400 = vmatpush.bf16.msra.mxu0 %v1220
    %1401 = vmatpush.bf16.msra.mxu0 %v1217
    %1402 = vmatpush.bf16.msra.mxu0 %v1214
    %1403 = vmatpush.bf16.msra.mxu0 %v1211
    %1404 = vmatmul.bf16.gmra.mxu0 %v264
    %v1405 = vpop.f32.mrf.mxu0
    %v1406 = vadd.f32 %v924, %v1405
    %v1407 = vpop.f32.mrf.mxu0
    %v1408 = vadd.f32 %v926, %v1407
    %1409 = vdwg.mxu0
    %1410 = vmatpush.bf16.msra.mxu0 %v1256
    %1411 = vmatpush.bf16.msra.mxu0 %v1253
    %1412 = vmatpush.bf16.msra.mxu0 %v1250
    %1413 = vmatpush.bf16.msra.mxu0 %v1247
    %1414 = vmatpush.bf16.msra.mxu0 %v1244
    %1415 = vmatpush.bf16.msra.mxu0 %v1241
    %1416 = vmatpush.bf16.msra.mxu0 %v1238
    %1417 = vmatpush.bf16.msra.mxu0 %v1235
    %1418 = vmatmul.bf16.gmra.mxu0 %v265
    %v1419 = vpop.f32.mrf.mxu0
    %v1420 = vadd.f32 %v1406, %v1419
    %v1421 = vpop.f32.mrf.mxu0
    %v1422 = vadd.f32 %v1408, %v1421
    %1423 = vdwg.mxu0
    %1424 = vmatpush.bf16.msra.mxu0 %v1280
    %1425 = vmatpush.bf16.msra.mxu0 %v1277
    %1426 = vmatpush.bf16.msra.mxu0 %v1274
    %1427 = vmatpush.bf16.msra.mxu0 %v1271
    %1428 = vmatpush.bf16.msra.mxu0 %v1268
    %1429 = vmatpush.bf16.msra.mxu0 %v1265
    %1430 = vmatpush.bf16.msra.mxu0 %v1262
    %1431 = vmatpush.bf16.msra.mxu0 %v1259
    %1432 = vmatmul.bf16.gmra.mxu0 %v266
    %v1433 = vpop.f32.mrf.mxu0
    %v1434 = vadd.f32 %v1420, %v1433
    %v1435 = vpop.f32.mrf.mxu0
    %v1436 = vadd.f32 %v1422, %v1435
    %1437 = vdwg.mxu0
    %1438 = vmatpush.bf16.msra.mxu0 %v1233
    %1439 = vmatpush.bf16.msra.mxu0 %v1230
    %1440 = vmatpush.bf16.msra.mxu0 %v1227
    %1441 = vmatpush.bf16.msra.mxu0 %v1224
    %1442 = vmatpush.bf16.msra.mxu0 %v1221
    %1443 = vmatpush.bf16.msra.mxu0 %v1218
    %1444 = vmatpush.bf16.msra.mxu0 %v1215
    %1445 = vmatpush.bf16.msra.mxu0 %v1212
    %1446 = vmatmul.bf16.gmra.mxu0 %v264
    %v1447 = vpop.f32.mrf.mxu0
    %v1448 = vadd.f32 %v966, %v1447
    %v1449 = vpop.f32.mrf.mxu0
    %v1450 = vadd.f32 %v968, %v1449
    %1451 = vdwg.mxu0
    %1452 = vmatpush.bf16.msra.mxu0 %v1257
    %1453 = vmatpush.bf16.msra.mxu0 %v1254
    %1454 = vmatpush.bf16.msra.mxu0 %v1251
    %1455 = vmatpush.bf16.msra.mxu0 %v1248
    %1456 = vmatpush.bf16.msra.mxu0 %v1245
    %1457 = vmatpush.bf16.msra.mxu0 %v1242
    %1458 = vmatpush.bf16.msra.mxu0 %v1239
    %1459 = vmatpush.bf16.msra.mxu0 %v1236
    %1460 = vmatmul.bf16.gmra.mxu0 %v265
    %v1461 = vpop.f32.mrf.mxu0
    %v1462 = vadd.f32 %v1448, %v1461
    %v1463 = vpop.f32.mrf.mxu0
    %v1464 = vadd.f32 %v1450, %v1463
    %1465 = vdwg.mxu0
    %1466 = vmatpush.bf16.msra.mxu0 %v1281
    %1467 = vmatpush.bf16.msra.mxu0 %v1278
    %1468 = vmatpush.bf16.msra.mxu0 %v1275
    %1469 = vmatpush.bf16.msra.mxu0 %v1272
    %1470 = vmatpush.bf16.msra.mxu0 %v1269
    %1471 = vmatpush.bf16.msra.mxu0 %v1266
    %1472 = vmatpush.bf16.msra.mxu0 %v1263
    %1473 = vmatpush.bf16.msra.mxu0 %v1260
    %1474 = vmatmul.bf16.gmra.mxu0 %v266
    %v1475 = vpop.f32.mrf.mxu0
    %v1476 = vadd.f32 %v1462, %v1475
    %v1477 = vpop.f32.mrf.mxu0
    %v1478 = vadd.f32 %v1464, %v1477
    %1479 = vdwg.mxu0
    %s1480 = scalar_lea.vmem [#allocation2], 1152
    %v1481 = vld [vmem:[%s1480] sm:$0xff]
    %v1482 = vld [vmem:[%s1480 + $0x8] sm:$0xf]
    %v1483 = vld [vmem:[%s1480 + $0xc] sm:$0xff]
    %v1484 = vld [vmem:[%s1480 + $0x14] sm:$0xf]
    %v1485 = vld [vmem:[%s1480 + $0x18] sm:$0xff]
    %v1486 = vld [vmem:[%s1480 + $0x20] sm:$0xf]
    %v1487 = vld [vmem:[%s1480 + $0x24] sm:$0xff]
    %v1488 = vld [vmem:[%s1480 + $0x2c] sm:$0xf]
    %v1489 = vld [vmem:[%s1480 + $0x30] sm:$0xff]
    %v1490 = vld [vmem:[%s1480 + $0x38] sm:$0xf]
    %v1491 = vld [vmem:[%s1480 + $0x3c] sm:$0xff]
    %v1492 = vld [vmem:[%s1480 + $0x44] sm:$0xf]
    %v1493 = vld [vmem:[%s1480 + $0x48] sm:$0xff]
    %v1494 = vld [vmem:[%s1480 + $0x50] sm:$0xf]
    %v1495 = vld [vmem:[%s1480 + $0x54] sm:$0xff]
    %v1496 = vld [vmem:[%s1480 + $0x5c] sm:$0xf]
    %v1497 = vld [vmem:[%s1480 + $0x60] sm:$0xff]
    %v1498 = vld [vmem:[%s1480 + $0x68] sm:$0xf]
    %v1499 = vld [vmem:[%s1480 + $0x6c] sm:$0xff]
    %v1500 = vld [vmem:[%s1480 + $0x74] sm:$0xf]
    %v1501 = vld [vmem:[%s1480 + $0x78] sm:$0xff]
    %v1502 = vld [vmem:[%s1480 + $0x80] sm:$0xf]
    %v1503 = vld [vmem:[%s1480 + $0x84] sm:$0xff]
    %v1504 = vld [vmem:[%s1480 + $0x8c] sm:$0xf]
    %v1505 = vld [vmem:[%s1480 + $0x90] sm:$0xff]
    %v1506 = vld [vmem:[%s1480 + $0x98] sm:$0xf]
    %v1507 = vld [vmem:[%s1480 + $0x9c] sm:$0xff]
    %v1508 = vld [vmem:[%s1480 + $0xa4] sm:$0xf]
    %v1509 = vld [vmem:[%s1480 + $0xa8] sm:$0xff]
    %v1510 = vld [vmem:[%s1480 + $0xb0] sm:$0xf]
    %v1511 = vld [vmem:[%s1480 + $0xb4] sm:$0xff]
    %v1512 = vld [vmem:[%s1480 + $0xbc] sm:$0xf]
    %v1513 = vld [vmem:[%s1480 + $0xc0] sm:$0xff]
    %v1514 = vld [vmem:[%s1480 + $0xc8] sm:$0xf]
    %v1515 = vld [vmem:[%s1480 + $0xcc] sm:$0xff]
    %v1516 = vld [vmem:[%s1480 + $0xd4] sm:$0xf]
    %v1517 = vld [vmem:[%s1480 + $0xd8] sm:$0xff]
    %v1518 = vld [vmem:[%s1480 + $0xe0] sm:$0xf]
    %v1519 = vld [vmem:[%s1480 + $0xe4] sm:$0xff]
    %v1520 = vld [vmem:[%s1480 + $0xec] sm:$0xf]
    %v1521 = vld [vmem:[%s1480 + $0xf0] sm:$0xff]
    %v1522 = vld [vmem:[%s1480 + $0xf8] sm:$0xf]
    %v1523 = vld [vmem:[%s1480 + $0xfc] sm:$0xff]
    %v1524 = vld [vmem:[%s1480 + $0x104] sm:$0xf]
    %v1525 = vld [vmem:[%s1480 + $0x108] sm:$0xff]
    %v1526 = vld [vmem:[%s1480 + $0x110] sm:$0xf]
    %v1527 = vld [vmem:[%s1480 + $0x114] sm:$0xff]
    %v1528 = vld [vmem:[%s1480 + $0x11c] sm:$0xf]
    %v1529 = vld [vmem:[%s1480 + $0x120] sm:$0xff]
    %v1530 = vld [vmem:[%s1480 + $0x128] sm:$0xf]
    %v1531 = vld [vmem:[%s1480 + $0x12c] sm:$0xff]
    %v1532 = vld [vmem:[%s1480 + $0x134] sm:$0xf]
    %v1533 = vld [vmem:[%s1480 + $0x138] sm:$0xff]
    %v1534 = vld [vmem:[%s1480 + $0x140] sm:$0xf]
    %v1535 = vld [vmem:[%s1480 + $0x144] sm:$0xff]
    %v1536 = vld [vmem:[%s1480 + $0x14c] sm:$0xf]
    %v1537 = vld [vmem:[%s1480 + $0x150] sm:$0xff]
    %v1538 = vld [vmem:[%s1480 + $0x158] sm:$0xf]
    %v1539 = vld [vmem:[%s1480 + $0x15c] sm:$0xff]
    %v1540 = vld [vmem:[%s1480 + $0x164] sm:$0xf]
    %v1541 = vld [vmem:[%s1480 + $0x168] sm:$0xff]
    %v1542 = vld [vmem:[%s1480 + $0x170] sm:$0xf]
    %v1543 = vld [vmem:[%s1480 + $0x174] sm:$0xff]
    %v1544 = vld [vmem:[%s1480 + $0x17c] sm:$0xf]
    %v1545 = vld [vmem:[%s1480 + $0x180] sm:$0xff]
    %v1546 = vld [vmem:[%s1480 + $0x188] sm:$0xf]
    %v1547 = vld [vmem:[%s1480 + $0x18c] sm:$0xff]
    %v1548 = vld [vmem:[%s1480 + $0x194] sm:$0xf]
    %v1549 = vld [vmem:[%s1480 + $0x198] sm:$0xff]
    %v1550 = vld [vmem:[%s1480 + $0x1a0] sm:$0xf]
    %v1551 = vld [vmem:[%s1480 + $0x1a4] sm:$0xff]
    %v1552 = vld [vmem:[%s1480 + $0x1ac] sm:$0xf]
    %v1553 = vld [vmem:[%s1480 + $0x1b0] sm:$0xff]
    %v1554 = vld [vmem:[%s1480 + $0x1b8] sm:$0xf]
    %v1555 = vld [vmem:[%s1480 + $0x1bc] sm:$0xff]
    %v1556 = vld [vmem:[%s1480 + $0x1c4] sm:$0xf]
    %v1557 = vld [vmem:[%s1480 + $0x1c8] sm:$0xff]
    %v1558 = vld [vmem:[%s1480 + $0x1d0] sm:$0xf]
    %v1559 = vld [vmem:[%s1480 + $0x1d4] sm:$0xff]
    %v1560 = vld [vmem:[%s1480 + $0x1dc] sm:$0xf]
    %v1561 = vld [vmem:[%s1480 + $0x1e0] sm:$0xff]
    %v1562 = vld [vmem:[%s1480 + $0x1e8] sm:$0xf]
    %v1563 = vld [vmem:[%s1480 + $0x1ec] sm:$0xff]
    %v1564 = vld [vmem:[%s1480 + $0x1f4] sm:$0xf]
    %v1565 = vld [vmem:[%s1480 + $0x1f8] sm:$0xff]
    %v1566 = vld [vmem:[%s1480 + $0x200] sm:$0xf]
    %v1567 = vld [vmem:[%s1480 + $0x204] sm:$0xff]
    %v1568 = vld [vmem:[%s1480 + $0x20c] sm:$0xf]
    %v1569 = vld [vmem:[%s1480 + $0x210] sm:$0xff]
    %v1570 = vld [vmem:[%s1480 + $0x218] sm:$0xf]
    %v1571 = vld [vmem:[%s1480 + $0x21c] sm:$0xff]
    %v1572 = vld [vmem:[%s1480 + $0x224] sm:$0xf]
    %v1573 = vld [vmem:[%s1480 + $0x228] sm:$0xff]
    %v1574 = vld [vmem:[%s1480 + $0x230] sm:$0xf]
    %v1575 = vld [vmem:[%s1480 + $0x234] sm:$0xff]
    %v1576 = vld [vmem:[%s1480 + $0x23c] sm:$0xf]
    %v1673 = vunpack.c.l.b16 %v1481
    %v1674 = vunpack.c.h.b16 %v1481
    %v1675 = vunpack.c.l.b16 %v1482
    %v1676 = vunpack.c.l.b16 %v1483
    %v1677 = vunpack.c.h.b16 %v1483
    %v1678 = vunpack.c.l.b16 %v1484
    %v1679 = vunpack.c.l.b16 %v1485
    %v1680 = vunpack.c.h.b16 %v1485
    %v1681 = vunpack.c.l.b16 %v1486
    %v1682 = vunpack.c.l.b16 %v1487
    %v1683 = vunpack.c.h.b16 %v1487
    %v1684 = vunpack.c.l.b16 %v1488
    %v1685 = vunpack.c.l.b16 %v1489
    %v1686 = vunpack.c.h.b16 %v1489
    %v1687 = vunpack.c.l.b16 %v1490
    %v1688 = vunpack.c.l.b16 %v1491
    %v1689 = vunpack.c.h.b16 %v1491
    %v1690 = vunpack.c.l.b16 %v1492
    %v1691 = vunpack.c.l.b16 %v1493
    %v1692 = vunpack.c.h.b16 %v1493
    %v1693 = vunpack.c.l.b16 %v1494
    %v1694 = vunpack.c.l.b16 %v1495
    %v1695 = vunpack.c.h.b16 %v1495
    %v1696 = vunpack.c.l.b16 %v1496
    %v1697 = vunpack.c.l.b16 %v1497
    %v1698 = vunpack.c.h.b16 %v1497
    %v1699 = vunpack.c.l.b16 %v1498
    %v1700 = vunpack.c.l.b16 %v1499
    %v1701 = vunpack.c.h.b16 %v1499
    %v1702 = vunpack.c.l.b16 %v1500
    %v1703 = vunpack.c.l.b16 %v1501
    %v1704 = vunpack.c.h.b16 %v1501
    %v1705 = vunpack.c.l.b16 %v1502
    %v1706 = vunpack.c.l.b16 %v1503
    %v1707 = vunpack.c.h.b16 %v1503
    %v1708 = vunpack.c.l.b16 %v1504
    %v1709 = vunpack.c.l.b16 %v1505
    %v1710 = vunpack.c.h.b16 %v1505
    %v1711 = vunpack.c.l.b16 %v1506
    %v1712 = vunpack.c.l.b16 %v1507
    %v1713 = vunpack.c.h.b16 %v1507
    %v1714 = vunpack.c.l.b16 %v1508
    %v1715 = vunpack.c.l.b16 %v1509
    %v1716 = vunpack.c.h.b16 %v1509
    %v1717 = vunpack.c.l.b16 %v1510
    %v1718 = vunpack.c.l.b16 %v1511
    %v1719 = vunpack.c.h.b16 %v1511
    %v1720 = vunpack.c.l.b16 %v1512
    %v1721 = vunpack.c.l.b16 %v1513
    %v1722 = vunpack.c.h.b16 %v1513
    %v1723 = vunpack.c.l.b16 %v1514
    %v1724 = vunpack.c.l.b16 %v1515
    %v1725 = vunpack.c.h.b16 %v1515
    %v1726 = vunpack.c.l.b16 %v1516
    %v1727 = vunpack.c.l.b16 %v1517
    %v1728 = vunpack.c.h.b16 %v1517
    %v1729 = vunpack.c.l.b16 %v1518
    %v1730 = vunpack.c.l.b16 %v1519
    %v1731 = vunpack.c.h.b16 %v1519
    %v1732 = vunpack.c.l.b16 %v1520
    %v1733 = vunpack.c.l.b16 %v1521
    %v1734 = vunpack.c.h.b16 %v1521
    %v1735 = vunpack.c.l.b16 %v1522
    %v1736 = vunpack.c.l.b16 %v1523
    %v1737 = vunpack.c.h.b16 %v1523
    %v1738 = vunpack.c.l.b16 %v1524
    %v1739 = vunpack.c.l.b16 %v1525
    %v1740 = vunpack.c.h.b16 %v1525
    %v1741 = vunpack.c.l.b16 %v1526
    %v1742 = vunpack.c.l.b16 %v1527
    %v1743 = vunpack.c.h.b16 %v1527
    %v1744 = vunpack.c.l.b16 %v1528
    %v1745 = vunpack.c.l.b16 %v1529
    %v1746 = vunpack.c.h.b16 %v1529
    %v1747 = vunpack.c.l.b16 %v1530
    %v1748 = vunpack.c.l.b16 %v1531
    %v1749 = vunpack.c.h.b16 %v1531
    %v1750 = vunpack.c.l.b16 %v1532
    %v1751 = vunpack.c.l.b16 %v1533
    %v1752 = vunpack.c.h.b16 %v1533
    %v1753 = vunpack.c.l.b16 %v1534
    %v1754 = vunpack.c.l.b16 %v1535
    %v1755 = vunpack.c.h.b16 %v1535
    %v1756 = vunpack.c.l.b16 %v1536
    %v1757 = vunpack.c.l.b16 %v1537
    %v1758 = vunpack.c.h.b16 %v1537
    %v1759 = vunpack.c.l.b16 %v1538
    %v1760 = vunpack.c.l.b16 %v1539
    %v1761 = vunpack.c.h.b16 %v1539
    %v1762 = vunpack.c.l.b16 %v1540
    %v1763 = vunpack.c.l.b16 %v1541
    %v1764 = vunpack.c.h.b16 %v1541
    %v1765 = vunpack.c.l.b16 %v1542
    %v1766 = vunpack.c.l.b16 %v1543
    %v1767 = vunpack.c.h.b16 %v1543
    %v1768 = vunpack.c.l.b16 %v1544
    %v1769 = vunpack.c.l.b16 %v1545
    %v1770 = vunpack.c.h.b16 %v1545
    %v1771 = vunpack.c.l.b16 %v1546
    %v1772 = vunpack.c.l.b16 %v1547
    %v1773 = vunpack.c.h.b16 %v1547
    %v1774 = vunpack.c.l.b16 %v1548
    %v1775 = vunpack.c.l.b16 %v1549
    %v1776 = vunpack.c.h.b16 %v1549
    %v1777 = vunpack.c.l.b16 %v1550
    %v1778 = vunpack.c.l.b16 %v1551
    %v1779 = vunpack.c.h.b16 %v1551
    %v1780 = vunpack.c.l.b16 %v1552
    %v1781 = vunpack.c.l.b16 %v1553
    %v1782 = vunpack.c.h.b16 %v1553
    %v1783 = vunpack.c.l.b16 %v1554
    %v1784 = vunpack.c.l.b16 %v1555
    %v1785 = vunpack.c.h.b16 %v1555
    %v1786 = vunpack.c.l.b16 %v1556
    %v1787 = vunpack.c.l.b16 %v1557
    %v1788 = vunpack.c.h.b16 %v1557
    %v1789 = vunpack.c.l.b16 %v1558
    %v1790 = vunpack.c.l.b16 %v1559
    %v1791 = vunpack.c.h.b16 %v1559
    %v1792 = vunpack.c.l.b16 %v1560
    %v1793 = vunpack.c.l.b16 %v1561
    %v1794 = vunpack.c.h.b16 %v1561
    %v1795 = vunpack.c.l.b16 %v1562
    %v1796 = vunpack.c.l.b16 %v1563
    %v1797 = vunpack.c.h.b16 %v1563
    %v1798 = vunpack.c.l.b16 %v1564
    %v1799 = vunpack.c.l.b16 %v1565
    %v1800 = vunpack.c.h.b16 %v1565
    %v1801 = vunpack.c.l.b16 %v1566
    %v1802 = vunpack.c.l.b16 %v1567
    %v1803 = vunpack.c.h.b16 %v1567
    %v1804 = vunpack.c.l.b16 %v1568
    %v1805 = vunpack.c.l.b16 %v1569
    %v1806 = vunpack.c.h.b16 %v1569
    %v1807 = vunpack.c.l.b16 %v1570
    %v1808 = vunpack.c.l.b16 %v1571
    %v1809 = vunpack.c.h.b16 %v1571
    %v1810 = vunpack.c.l.b16 %v1572
    %v1811 = vunpack.c.l.b16 %v1573
    %v1812 = vunpack.c.h.b16 %v1573
    %v1813 = vunpack.c.l.b16 %v1574
    %v1814 = vunpack.c.l.b16 %v1575
    %v1815 = vunpack.c.h.b16 %v1575
    %v1816 = vunpack.c.l.b16 %v1576
    %v1817 = vpack.c.b16 %v1676, %v1673
    %v1818 = vpack.c.b16 %v1677, %v1674
    %v1819 = vpack.c.b16 %v1678, %v1675
    %v1820 = vpack.c.b16 %v1682, %v1679
    %v1821 = vpack.c.b16 %v1683, %v1680
    %v1822 = vpack.c.b16 %v1684, %v1681
    %v1823 = vpack.c.b16 %v1688, %v1685
    %v1824 = vpack.c.b16 %v1689, %v1686
    %v1825 = vpack.c.b16 %v1690, %v1687
    %v1826 = vpack.c.b16 %v1694, %v1691
    %v1827 = vpack.c.b16 %v1695, %v1692
    %v1828 = vpack.c.b16 %v1696, %v1693
    %v1829 = vpack.c.b16 %v1700, %v1697
    %v1830 = vpack.c.b16 %v1701, %v1698
    %v1831 = vpack.c.b16 %v1702, %v1699
    %v1832 = vpack.c.b16 %v1706, %v1703
    %v1833 = vpack.c.b16 %v1707, %v1704
    %v1834 = vpack.c.b16 %v1708, %v1705
    %v1835 = vpack.c.b16 %v1712, %v1709
    %v1836 = vpack.c.b16 %v1713, %v1710
    %v1837 = vpack.c.b16 %v1714, %v1711
    %v1838 = vpack.c.b16 %v1718, %v1715
    %v1839 = vpack.c.b16 %v1719, %v1716
    %v1840 = vpack.c.b16 %v1720, %v1717
    %v1841 = vpack.c.b16 %v1724, %v1721
    %v1842 = vpack.c.b16 %v1725, %v1722
    %v1843 = vpack.c.b16 %v1726, %v1723
    %v1844 = vpack.c.b16 %v1730, %v1727
    %v1845 = vpack.c.b16 %v1731, %v1728
    %v1846 = vpack.c.b16 %v1732, %v1729
    %v1847 = vpack.c.b16 %v1736, %v1733
    %v1848 = vpack.c.b16 %v1737, %v1734
    %v1849 = vpack.c.b16 %v1738, %v1735
    %v1850 = vpack.c.b16 %v1742, %v1739
    %v1851 = vpack.c.b16 %v1743, %v1740
    %v1852 = vpack.c.b16 %v1744, %v1741
    %v1853 = vpack.c.b16 %v1748, %v1745
    %v1854 = vpack.c.b16 %v1749, %v1746
    %v1855 = vpack.c.b16 %v1750, %v1747
    %v1856 = vpack.c.b16 %v1754, %v1751
    %v1857 = vpack.c.b16 %v1755, %v1752
    %v1858 = vpack.c.b16 %v1756, %v1753
    %v1859 = vpack.c.b16 %v1760, %v1757
    %v1860 = vpack.c.b16 %v1761, %v1758
    %v1861 = vpack.c.b16 %v1762, %v1759
    %v1862 = vpack.c.b16 %v1766, %v1763
    %v1863 = vpack.c.b16 %v1767, %v1764
    %v1864 = vpack.c.b16 %v1768, %v1765
    %v1865 = vpack.c.b16 %v1772, %v1769
    %v1866 = vpack.c.b16 %v1773, %v1770
    %v1867 = vpack.c.b16 %v1774, %v1771
    %v1868 = vpack.c.b16 %v1778, %v1775
    %v1869 = vpack.c.b16 %v1779, %v1776
    %v1870 = vpack.c.b16 %v1780, %v1777
    %v1871 = vpack.c.b16 %v1784, %v1781
    %v1872 = vpack.c.b16 %v1785, %v1782
    %v1873 = vpack.c.b16 %v1786, %v1783
    %v1874 = vpack.c.b16 %v1790, %v1787
    %v1875 = vpack.c.b16 %v1791, %v1788
    %v1876 = vpack.c.b16 %v1792, %v1789
    %v1877 = vpack.c.b16 %v1796, %v1793
    %v1878 = vpack.c.b16 %v1797, %v1794
    %v1879 = vpack.c.b16 %v1798, %v1795
    %v1880 = vpack.c.b16 %v1802, %v1799
    %v1881 = vpack.c.b16 %v1803, %v1800
    %v1882 = vpack.c.b16 %v1804, %v1801
    %v1883 = vpack.c.b16 %v1808, %v1805
    %v1884 = vpack.c.b16 %v1809, %v1806
    %v1885 = vpack.c.b16 %v1810, %v1807
    %v1886 = vpack.c.b16 %v1814, %v1811
    %v1887 = vpack.c.b16 %v1815, %v1812
    %v1888 = vpack.c.b16 %v1816, %v1813
    %1961 = vmatpush.bf16.msra.mxu0 %v1838
    %1962 = vmatpush.bf16.msra.mxu0 %v1835
    %1963 = vmatpush.bf16.msra.mxu0 %v1832
    %1964 = vmatpush.bf16.msra.mxu0 %v1829
    %1965 = vmatpush.bf16.msra.mxu0 %v1826
    %1966 = vmatpush.bf16.msra.mxu0 %v1823
    %1967 = vmatpush.bf16.msra.mxu0 %v1820
    %1968 = vmatpush.bf16.msra.mxu0 %v1817
    %1969 = vmatmul.bf16.gmra.mxu0 %v261
    %v1970 = vpop.f32.mrf.mxu0
    %v1971 = vadd.f32 0.0, %v1970
    %v1972 = vpop.f32.mrf.mxu0
    %v1973 = vadd.f32 0.0, %v1972
    %1974 = vdwg.mxu0
    %1975 = vmatpush.bf16.msra.mxu0 %v1862
    %1976 = vmatpush.bf16.msra.mxu0 %v1859
    %1977 = vmatpush.bf16.msra.mxu0 %v1856
    %1978 = vmatpush.bf16.msra.mxu0 %v1853
    %1979 = vmatpush.bf16.msra.mxu0 %v1850
    %1980 = vmatpush.bf16.msra.mxu0 %v1847
    %1981 = vmatpush.bf16.msra.mxu0 %v1844
    %1982 = vmatpush.bf16.msra.mxu0 %v1841
    %1983 = vmatmul.bf16.gmra.mxu0 %v262
    %v1984 = vpop.f32.mrf.mxu0
    %v1985 = vadd.f32 %v1971, %v1984
    %v1986 = vpop.f32.mrf.mxu0
    %v1987 = vadd.f32 %v1973, %v1986
    %1988 = vdwg.mxu0
    %1989 = vmatpush.bf16.msra.mxu0 %v1886
    %1990 = vmatpush.bf16.msra.mxu0 %v1883
    %1991 = vmatpush.bf16.msra.mxu0 %v1880
    %1992 = vmatpush.bf16.msra.mxu0 %v1877
    %1993 = vmatpush.bf16.msra.mxu0 %v1874
    %1994 = vmatpush.bf16.msra.mxu0 %v1871
    %1995 = vmatpush.bf16.msra.mxu0 %v1868
    %1996 = vmatpush.bf16.msra.mxu0 %v1865
    %1997 = vmatmul.bf16.gmra.mxu0 %v263
    %v1998 = vpop.f32.mrf.mxu0
    %v1999 = vadd.f32 %v1985, %v1998
    %v2000 = vpop.f32.mrf.mxu0
    %v2001 = vadd.f32 %v1987, %v2000
    %2002 = vdwg.mxu0
    %2003 = vmatpush.bf16.msra.mxu0 %v1839
    %2004 = vmatpush.bf16.msra.mxu0 %v1836
    %2005 = vmatpush.bf16.msra.mxu0 %v1833
    %2006 = vmatpush.bf16.msra.mxu0 %v1830
    %2007 = vmatpush.bf16.msra.mxu0 %v1827
    %2008 = vmatpush.bf16.msra.mxu0 %v1824
    %2009 = vmatpush.bf16.msra.mxu0 %v1821
    %2010 = vmatpush.bf16.msra.mxu0 %v1818
    %2011 = vmatmul.bf16.gmra.mxu0 %v261
    %v2012 = vpop.f32.mrf.mxu0
    %v2013 = vadd.f32 0.0, %v2012
    %v2014 = vpop.f32.mrf.mxu0
    %v2015 = vadd.f32 0.0, %v2014
    %2016 = vdwg.mxu0
    %2017 = vmatpush.bf16.msra.mxu0 %v1863
    %2018 = vmatpush.bf16.msra.mxu0 %v1860
    %2019 = vmatpush.bf16.msra.mxu0 %v1857
    %2020 = vmatpush.bf16.msra.mxu0 %v1854
    %2021 = vmatpush.bf16.msra.mxu0 %v1851
    %2022 = vmatpush.bf16.msra.mxu0 %v1848
    %2023 = vmatpush.bf16.msra.mxu0 %v1845
    %2024 = vmatpush.bf16.msra.mxu0 %v1842
    %2025 = vmatmul.bf16.gmra.mxu0 %v262
    %v2026 = vpop.f32.mrf.mxu0
    %v2027 = vadd.f32 %v2013, %v2026
    %v2028 = vpop.f32.mrf.mxu0
    %v2029 = vadd.f32 %v2015, %v2028
    %2030 = vdwg.mxu0
    %2031 = vmatpush.bf16.msra.mxu0 %v1887
    %2032 = vmatpush.bf16.msra.mxu0 %v1884
    %2033 = vmatpush.bf16.msra.mxu0 %v1881
    %2034 = vmatpush.bf16.msra.mxu0 %v1878
    %2035 = vmatpush.bf16.msra.mxu0 %v1875
    %2036 = vmatpush.bf16.msra.mxu0 %v1872
    %2037 = vmatpush.bf16.msra.mxu0 %v1869
    %2038 = vmatpush.bf16.msra.mxu0 %v1866
    %2039 = vmatmul.bf16.gmra.mxu0 %v263
    %v2040 = vpop.f32.mrf.mxu0
    %v2041 = vadd.f32 %v2027, %v2040
    %v2042 = vpop.f32.mrf.mxu0
    %v2043 = vadd.f32 %v2029, %v2042
    %2044 = vdwg.mxu0
    %2045 = vmatpush.bf16.msra.mxu0 %v1840
    %2046 = vmatpush.bf16.msra.mxu0 %v1837
    %2047 = vmatpush.bf16.msra.mxu0 %v1834
    %2048 = vmatpush.bf16.msra.mxu0 %v1831
    %2049 = vmatpush.bf16.msra.mxu0 %v1828
    %2050 = vmatpush.bf16.msra.mxu0 %v1825
    %2051 = vmatpush.bf16.msra.mxu0 %v1822
    %2052 = vmatpush.bf16.msra.mxu0 %v1819
    %2053 = vmatmul.bf16.gmra.mxu0 %v261
    %v2054 = vpop.f32.mrf.mxu0
    %v2055 = vadd.f32 0.0, %v2054
    %v2056 = vpop.f32.mrf.mxu0
    %v2057 = vadd.f32 0.0, %v2056
    %2058 = vdwg.mxu0
    %2059 = vmatpush.bf16.msra.mxu0 %v1864
    %2060 = vmatpush.bf16.msra.mxu0 %v1861
    %2061 = vmatpush.bf16.msra.mxu0 %v1858
    %2062 = vmatpush.bf16.msra.mxu0 %v1855
    %2063 = vmatpush.bf16.msra.mxu0 %v1852
    %2064 = vmatpush.bf16.msra.mxu0 %v1849
    %2065 = vmatpush.bf16.msra.mxu0 %v1846
    %2066 = vmatpush.bf16.msra.mxu0 %v1843
    %2067 = vmatmul.bf16.gmra.mxu0 %v262
    %v2068 = vpop.f32.mrf.mxu0
    %v2069 = vadd.f32 %v2055, %v2068
    %v2070 = vpop.f32.mrf.mxu0
    %v2071 = vadd.f32 %v2057, %v2070
    %2072 = vdwg.mxu0
    %2073 = vmatpush.bf16.msra.mxu0 %v1888
    %2074 = vmatpush.bf16.msra.mxu0 %v1885
    %2075 = vmatpush.bf16.msra.mxu0 %v1882
    %2076 = vmatpush.bf16.msra.mxu0 %v1879
    %2077 = vmatpush.bf16.msra.mxu0 %v1876
    %2078 = vmatpush.bf16.msra.mxu0 %v1873
    %2079 = vmatpush.bf16.msra.mxu0 %v1870
    %2080 = vmatpush.bf16.msra.mxu0 %v1867
    %2081 = vmatmul.bf16.gmra.mxu0 %v263
    %v2082 = vpop.f32.mrf.mxu0
    %v2083 = vadd.f32 %v2069, %v2082
    %v2084 = vpop.f32.mrf.mxu0
    %v2085 = vadd.f32 %v2071, %v2084
    %2086 = vdwg.mxu0
    %v2087 = vadd.f32 %v1392, %v1999
    %v2088 = vadd.f32 %v1434, %v2041
    %v2089 = vadd.f32 %v1476, %v2083
    %v2090 = vadd.f32 %v1394, %v2001
    %v2091 = vadd.f32 %v1436, %v2043
    %v2092 = vadd.f32 %v1478, %v2085
    %v2093 = vld [vmem:[%s3] sm:$0x7]
    %v2095 = vperm.slane %v2093, 0
    %v2096 = vperm.slane %v2093, 1
    %v2097 = vperm.slane %v2093, 2
    %v2101 = vadd.f32 %v2087, %v2095
    %v2102 = vadd.f32 %v2088, %v2096
    %v2103 = vadd.f32 %v2089, %v2097
    %v2104 = vadd.f32 %v2090, %v2095
    %v2105 = vadd.f32 %v2091, %v2096
    %v2106 = vadd.f32 %v2092, %v2097
    %v2107 = vmax.f32 %v2101, 0.0
    %v2108 = vmax.f32 %v2102, 0.0
    %v2109 = vmax.f32 %v2103, 0.0
    %v2110 = vmax.f32 %v2104, 0.0
    %v2111 = vmax.f32 %v2105, 0.0
    %v2112 = vmax.f32 %v2106, 0.0
    %v2113 = vrot.slane %v2107, 7
    %v2114 = vrot.slane %v2108, 7
    %v2115 = vrot.slane %v2109, 7
    %v2116 = vrot.slane %v2110, 7
    %v2117 = vrot.slane %v2111, 7
    %v2118 = vrot.slane %v2112, 7
    %v2119 = vsel %vm189, %v2113, %v2116
    %v2120 = vsel %vm189, %v2114, %v2117
    %v2121 = vsel %vm189, %v2115, %v2118
    %v2122 = vsel %vm189, %v2116, %v2113
    %v2123 = vsel %vm189, %v2117, %v2114
    %v2124 = vsel %vm189, %v2118, %v2115
    %v2125 = vsel %vm225, %v2122, 0.0
    %v2126 = vsel %vm225, %v2123, 0.0
    %v2127 = vsel %vm225, %v2124, 0.0
    %v2128 = vsel %vm226, %v2119, 0.0
    %v2129 = vsel %vm226, %v2120, 0.0
    %v2130 = vsel %vm226, %v2121, 0.0
    %v2131 = vpack.c.bf16 %v2128, %v2125
    %v2132 = vpack.c.bf16 %v2129, %v2126
    %v2133 = vpack.c.bf16 %v2130, %v2127
    %v2134 = vrot.slane %v2107, 1
    %v2135 = vrot.slane %v2108, 1
    %v2136 = vrot.slane %v2109, 1
    %v2137 = vrot.slane %v2110, 1
    %v2138 = vrot.slane %v2111, 1
    %v2139 = vrot.slane %v2112, 1
    %v2140 = vsel %vm242, %v2134, %v2137
    %v2141 = vsel %vm242, %v2135, %v2138
    %v2142 = vsel %vm242, %v2136, %v2139
    %v2143 = vsel %vm242, %v2137, %v2134
    %v2144 = vsel %vm242, %v2138, %v2135
    %v2145 = vsel %vm242, %v2139, %v2136
    %v2146 = vsel %vm253, %v2140, 0.0
    %v2147 = vsel %vm253, %v2141, 0.0
    %v2148 = vsel %vm253, %v2142, 0.0
    %v2149 = vsel %vm254, %v2143, 0.0
    %v2150 = vsel %vm254, %v2144, 0.0
    %v2151 = vsel %vm254, %v2145, 0.0
    %v2152 = vpack.c.bf16 %v2149, %v2146
    %v2153 = vpack.c.bf16 %v2150, %v2147
    %v2154 = vpack.c.bf16 %v2151, %v2148
    %v2155 = vpack.c.bf16 %v2110, %v2107
    %v2156 = vpack.c.bf16 %v2111, %v2108
    %v2157 = vpack.c.bf16 %v2112, %v2109
    %s2158 = scalar_lea.vmem [#allocation4], 576
    %v2159 = vld [vmem:[%s2158] sm:$0xff]
    %v2160 = vld [vmem:[%s2158 + $0x8] sm:$0xf]
    %v2161 = vld [vmem:[%s2158 + $0xc] sm:$0xff]
    %v2162 = vld [vmem:[%s2158 + $0x14] sm:$0xf]
    %v2163 = vld [vmem:[%s2158 + $0x18] sm:$0xff]
    %v2164 = vld [vmem:[%s2158 + $0x20] sm:$0xf]
    %v2165 = vld [vmem:[%s2158 + $0x24] sm:$0xff]
    %v2166 = vld [vmem:[%s2158 + $0x2c] sm:$0xf]
    %v2167 = vld [vmem:[%s2158 + $0x30] sm:$0xff]
    %v2168 = vld [vmem:[%s2158 + $0x38] sm:$0xf]
    %v2169 = vld [vmem:[%s2158 + $0x3c] sm:$0xff]
    %v2170 = vld [vmem:[%s2158 + $0x44] sm:$0xf]
    %v2171 = vld [vmem:[%s2158 + $0x48] sm:$0xff]
    %v2172 = vld [vmem:[%s2158 + $0x50] sm:$0xf]
    %v2173 = vld [vmem:[%s2158 + $0x54] sm:$0xff]
    %v2174 = vld [vmem:[%s2158 + $0x5c] sm:$0xf]
    %v2175 = vld [vmem:[%s2158 + $0x60] sm:$0xff]
    %v2176 = vld [vmem:[%s2158 + $0x68] sm:$0xf]
    %v2177 = vld [vmem:[%s2158 + $0x6c] sm:$0xff]
    %v2178 = vld [vmem:[%s2158 + $0x74] sm:$0xf]
    %v2179 = vld [vmem:[%s2158 + $0x78] sm:$0xff]
    %v2180 = vld [vmem:[%s2158 + $0x80] sm:$0xf]
    %v2181 = vld [vmem:[%s2158 + $0x84] sm:$0xff]
    %v2182 = vld [vmem:[%s2158 + $0x8c] sm:$0xf]
    %v2183 = vld [vmem:[%s2158 + $0x90] sm:$0xff]
    %v2184 = vld [vmem:[%s2158 + $0x98] sm:$0xf]
    %v2185 = vld [vmem:[%s2158 + $0x9c] sm:$0xff]
    %v2186 = vld [vmem:[%s2158 + $0xa4] sm:$0xf]
    %v2187 = vld [vmem:[%s2158 + $0xa8] sm:$0xff]
    %v2188 = vld [vmem:[%s2158 + $0xb0] sm:$0xf]
    %v2189 = vld [vmem:[%s2158 + $0xb4] sm:$0xff]
    %v2190 = vld [vmem:[%s2158 + $0xbc] sm:$0xf]
    %v2191 = vld [vmem:[%s2158 + $0xc0] sm:$0xff]
    %v2192 = vld [vmem:[%s2158 + $0xc8] sm:$0xf]
    %v2193 = vld [vmem:[%s2158 + $0xcc] sm:$0xff]
    %v2194 = vld [vmem:[%s2158 + $0xd4] sm:$0xf]
    %v2195 = vld [vmem:[%s2158 + $0xd8] sm:$0xff]
    %v2196 = vld [vmem:[%s2158 + $0xe0] sm:$0xf]
    %v2197 = vld [vmem:[%s2158 + $0xe4] sm:$0xff]
    %v2198 = vld [vmem:[%s2158 + $0xec] sm:$0xf]
    %v2199 = vld [vmem:[%s2158 + $0xf0] sm:$0xff]
    %v2200 = vld [vmem:[%s2158 + $0xf8] sm:$0xf]
    %v2201 = vld [vmem:[%s2158 + $0xfc] sm:$0xff]
    %v2202 = vld [vmem:[%s2158 + $0x104] sm:$0xf]
    %v2203 = vld [vmem:[%s2158 + $0x108] sm:$0xff]
    %v2204 = vld [vmem:[%s2158 + $0x110] sm:$0xf]
    %v2205 = vld [vmem:[%s2158 + $0x114] sm:$0xff]
    %v2206 = vld [vmem:[%s2158 + $0x11c] sm:$0xf]
    %v2207 = vld [vmem:[%s2158 + $0x120] sm:$0xff]
    %v2208 = vld [vmem:[%s2158 + $0x128] sm:$0xf]
    %v2209 = vld [vmem:[%s2158 + $0x12c] sm:$0xff]
    %v2210 = vld [vmem:[%s2158 + $0x134] sm:$0xf]
    %v2211 = vld [vmem:[%s2158 + $0x138] sm:$0xff]
    %v2212 = vld [vmem:[%s2158 + $0x140] sm:$0xf]
    %v2213 = vld [vmem:[%s2158 + $0x144] sm:$0xff]
    %v2214 = vld [vmem:[%s2158 + $0x14c] sm:$0xf]
    %v2215 = vld [vmem:[%s2158 + $0x150] sm:$0xff]
    %v2216 = vld [vmem:[%s2158 + $0x158] sm:$0xf]
    %v2217 = vld [vmem:[%s2158 + $0x15c] sm:$0xff]
    %v2218 = vld [vmem:[%s2158 + $0x164] sm:$0xf]
    %v2219 = vld [vmem:[%s2158 + $0x168] sm:$0xff]
    %v2220 = vld [vmem:[%s2158 + $0x170] sm:$0xf]
    %v2221 = vld [vmem:[%s2158 + $0x174] sm:$0xff]
    %v2222 = vld [vmem:[%s2158 + $0x17c] sm:$0xf]
    %v2223 = vld [vmem:[%s2158 + $0x180] sm:$0xff]
    %v2224 = vld [vmem:[%s2158 + $0x188] sm:$0xf]
    %v2225 = vld [vmem:[%s2158 + $0x18c] sm:$0xff]
    %v2226 = vld [vmem:[%s2158 + $0x194] sm:$0xf]
    %v2227 = vld [vmem:[%s2158 + $0x198] sm:$0xff]
    %v2228 = vld [vmem:[%s2158 + $0x1a0] sm:$0xf]
    %v2229 = vld [vmem:[%s2158 + $0x1a4] sm:$0xff]
    %v2230 = vld [vmem:[%s2158 + $0x1ac] sm:$0xf]
    %v2231 = vld [vmem:[%s2158 + $0x1b0] sm:$0xff]
    %v2232 = vld [vmem:[%s2158 + $0x1b8] sm:$0xf]
    %v2233 = vld [vmem:[%s2158 + $0x1bc] sm:$0xff]
    %v2234 = vld [vmem:[%s2158 + $0x1c4] sm:$0xf]
    %v2235 = vld [vmem:[%s2158 + $0x1c8] sm:$0xff]
    %v2236 = vld [vmem:[%s2158 + $0x1d0] sm:$0xf]
    %v2237 = vld [vmem:[%s2158 + $0x1d4] sm:$0xff]
    %v2238 = vld [vmem:[%s2158 + $0x1dc] sm:$0xf]
    %v2239 = vld [vmem:[%s2158 + $0x1e0] sm:$0xff]
    %v2240 = vld [vmem:[%s2158 + $0x1e8] sm:$0xf]
    %v2241 = vld [vmem:[%s2158 + $0x1ec] sm:$0xff]
    %v2242 = vld [vmem:[%s2158 + $0x1f4] sm:$0xf]
    %v2243 = vld [vmem:[%s2158 + $0x1f8] sm:$0xff]
    %v2244 = vld [vmem:[%s2158 + $0x200] sm:$0xf]
    %v2245 = vld [vmem:[%s2158 + $0x204] sm:$0xff]
    %v2246 = vld [vmem:[%s2158 + $0x20c] sm:$0xf]
    %v2247 = vld [vmem:[%s2158 + $0x210] sm:$0xff]
    %v2248 = vld [vmem:[%s2158 + $0x218] sm:$0xf]
    %v2249 = vld [vmem:[%s2158 + $0x21c] sm:$0xff]
    %v2250 = vld [vmem:[%s2158 + $0x224] sm:$0xf]
    %v2251 = vld [vmem:[%s2158 + $0x228] sm:$0xff]
    %v2252 = vld [vmem:[%s2158 + $0x230] sm:$0xf]
    %v2253 = vld [vmem:[%s2158 + $0x234] sm:$0xff]
    %v2254 = vld [vmem:[%s2158 + $0x23c] sm:$0xf]
    %v2255 = vld [vmem:[#allocation4] sm:$0xff]
    %v2256 = vld [vmem:[#allocation4 + $0x8] sm:$0xf]
    %v2257 = vld [vmem:[#allocation4 + $0xc] sm:$0xff]
    %v2258 = vld [vmem:[#allocation4 + $0x14] sm:$0xf]
    %v2259 = vld [vmem:[#allocation4 + $0x18] sm:$0xff]
    %v2260 = vld [vmem:[#allocation4 + $0x20] sm:$0xf]
    %v2261 = vld [vmem:[#allocation4 + $0x24] sm:$0xff]
    %v2262 = vld [vmem:[#allocation4 + $0x2c] sm:$0xf]
    %v2263 = vld [vmem:[#allocation4 + $0x30] sm:$0xff]
    %v2264 = vld [vmem:[#allocation4 + $0x38] sm:$0xf]
    %v2265 = vld [vmem:[#allocation4 + $0x3c] sm:$0xff]
    %v2266 = vld [vmem:[#allocation4 + $0x44] sm:$0xf]
    %v2267 = vld [vmem:[#allocation4 + $0x48] sm:$0xff]
    %v2268 = vld [vmem:[#allocation4 + $0x50] sm:$0xf]
    %v2269 = vld [vmem:[#allocation4 + $0x54] sm:$0xff]
    %v2270 = vld [vmem:[#allocation4 + $0x5c] sm:$0xf]
    %v2271 = vld [vmem:[#allocation4 + $0x60] sm:$0xff]
    %v2272 = vld [vmem:[#allocation4 + $0x68] sm:$0xf]
    %v2273 = vld [vmem:[#allocation4 + $0x6c] sm:$0xff]
    %v2274 = vld [vmem:[#allocation4 + $0x74] sm:$0xf]
    %v2275 = vld [vmem:[#allocation4 + $0x78] sm:$0xff]
    %v2276 = vld [vmem:[#allocation4 + $0x80] sm:$0xf]
    %v2277 = vld [vmem:[#allocation4 + $0x84] sm:$0xff]
    %v2278 = vld [vmem:[#allocation4 + $0x8c] sm:$0xf]
    %v2279 = vld [vmem:[#allocation4 + $0x90] sm:$0xff]
    %v2280 = vld [vmem:[#allocation4 + $0x98] sm:$0xf]
    %v2281 = vld [vmem:[#allocation4 + $0x9c] sm:$0xff]
    %v2282 = vld [vmem:[#allocation4 + $0xa4] sm:$0xf]
    %v2283 = vld [vmem:[#allocation4 + $0xa8] sm:$0xff]
    %v2284 = vld [vmem:[#allocation4 + $0xb0] sm:$0xf]
    %v2285 = vld [vmem:[#allocation4 + $0xb4] sm:$0xff]
    %v2286 = vld [vmem:[#allocation4 + $0xbc] sm:$0xf]
    %v2287 = vld [vmem:[#allocation4 + $0xc0] sm:$0xff]
    %v2288 = vld [vmem:[#allocation4 + $0xc8] sm:$0xf]
    %v2289 = vld [vmem:[#allocation4 + $0xcc] sm:$0xff]
    %v2290 = vld [vmem:[#allocation4 + $0xd4] sm:$0xf]
    %v2291 = vld [vmem:[#allocation4 + $0xd8] sm:$0xff]
    %v2292 = vld [vmem:[#allocation4 + $0xe0] sm:$0xf]
    %v2293 = vld [vmem:[#allocation4 + $0xe4] sm:$0xff]
    %v2294 = vld [vmem:[#allocation4 + $0xec] sm:$0xf]
    %v2295 = vld [vmem:[#allocation4 + $0xf0] sm:$0xff]
    %v2296 = vld [vmem:[#allocation4 + $0xf8] sm:$0xf]
    %v2297 = vld [vmem:[#allocation4 + $0xfc] sm:$0xff]
    %v2298 = vld [vmem:[#allocation4 + $0x104] sm:$0xf]
    %v2299 = vld [vmem:[#allocation4 + $0x108] sm:$0xff]
    %v2300 = vld [vmem:[#allocation4 + $0x110] sm:$0xf]
    %v2301 = vld [vmem:[#allocation4 + $0x114] sm:$0xff]
    %v2302 = vld [vmem:[#allocation4 + $0x11c] sm:$0xf]
    %v2303 = vld [vmem:[#allocation4 + $0x120] sm:$0xff]
    %v2304 = vld [vmem:[#allocation4 + $0x128] sm:$0xf]
    %v2305 = vld [vmem:[#allocation4 + $0x12c] sm:$0xff]
    %v2306 = vld [vmem:[#allocation4 + $0x134] sm:$0xf]
    %v2307 = vld [vmem:[#allocation4 + $0x138] sm:$0xff]
    %v2308 = vld [vmem:[#allocation4 + $0x140] sm:$0xf]
    %v2309 = vld [vmem:[#allocation4 + $0x144] sm:$0xff]
    %v2310 = vld [vmem:[#allocation4 + $0x14c] sm:$0xf]
    %v2311 = vld [vmem:[#allocation4 + $0x150] sm:$0xff]
    %v2312 = vld [vmem:[#allocation4 + $0x158] sm:$0xf]
    %v2313 = vld [vmem:[#allocation4 + $0x15c] sm:$0xff]
    %v2314 = vld [vmem:[#allocation4 + $0x164] sm:$0xf]
    %v2315 = vld [vmem:[#allocation4 + $0x168] sm:$0xff]
    %v2316 = vld [vmem:[#allocation4 + $0x170] sm:$0xf]
    %v2317 = vld [vmem:[#allocation4 + $0x174] sm:$0xff]
    %v2318 = vld [vmem:[#allocation4 + $0x17c] sm:$0xf]
    %v2319 = vld [vmem:[#allocation4 + $0x180] sm:$0xff]
    %v2320 = vld [vmem:[#allocation4 + $0x188] sm:$0xf]
    %v2321 = vld [vmem:[#allocation4 + $0x18c] sm:$0xff]
    %v2322 = vld [vmem:[#allocation4 + $0x194] sm:$0xf]
    %v2323 = vld [vmem:[#allocation4 + $0x198] sm:$0xff]
    %v2324 = vld [vmem:[#allocation4 + $0x1a0] sm:$0xf]
    %v2325 = vld [vmem:[#allocation4 + $0x1a4] sm:$0xff]
    %v2326 = vld [vmem:[#allocation4 + $0x1ac] sm:$0xf]
    %v2327 = vld [vmem:[#allocation4 + $0x1b0] sm:$0xff]
    %v2328 = vld [vmem:[#allocation4 + $0x1b8] sm:$0xf]
    %v2329 = vld [vmem:[#allocation4 + $0x1bc] sm:$0xff]
    %v2330 = vld [vmem:[#allocation4 + $0x1c4] sm:$0xf]
    %v2331 = vld [vmem:[#allocation4 + $0x1c8] sm:$0xff]
    %v2332 = vld [vmem:[#allocation4 + $0x1d0] sm:$0xf]
    %v2333 = vld [vmem:[#allocation4 + $0x1d4] sm:$0xff]
    %v2334 = vld [vmem:[#allocation4 + $0x1dc] sm:$0xf]
    %v2335 = vld [vmem:[#allocation4 + $0x1e0] sm:$0xff]
    %v2336 = vld [vmem:[#allocation4 + $0x1e8] sm:$0xf]
    %v2337 = vld [vmem:[#allocation4 + $0x1ec] sm:$0xff]
    %v2338 = vld [vmem:[#allocation4 + $0x1f4] sm:$0xf]
    %v2339 = vld [vmem:[#allocation4 + $0x1f8] sm:$0xff]
    %v2340 = vld [vmem:[#allocation4 + $0x200] sm:$0xf]
    %v2341 = vld [vmem:[#allocation4 + $0x204] sm:$0xff]
    %v2342 = vld [vmem:[#allocation4 + $0x20c] sm:$0xf]
    %v2343 = vld [vmem:[#allocation4 + $0x210] sm:$0xff]
    %v2344 = vld [vmem:[#allocation4 + $0x218] sm:$0xf]
    %v2345 = vld [vmem:[#allocation4 + $0x21c] sm:$0xff]
    %v2346 = vld [vmem:[#allocation4 + $0x224] sm:$0xf]
    %v2347 = vld [vmem:[#allocation4 + $0x228] sm:$0xff]
    %v2348 = vld [vmem:[#allocation4 + $0x230] sm:$0xf]
    %v2349 = vld [vmem:[#allocation4 + $0x234] sm:$0xff]
    %v2350 = vld [vmem:[#allocation4 + $0x23c] sm:$0xf]
    %v2447 = vunpack.c.l.b16 %v2255
    %v2448 = vunpack.c.h.b16 %v2255
    %v2449 = vunpack.c.l.b16 %v2256
    %v2450 = vunpack.c.l.b16 %v2257
    %v2451 = vunpack.c.h.b16 %v2257
    %v2452 = vunpack.c.l.b16 %v2258
    %v2453 = vunpack.c.l.b16 %v2259
    %v2454 = vunpack.c.h.b16 %v2259
    %v2455 = vunpack.c.l.b16 %v2260
    %v2456 = vunpack.c.l.b16 %v2261
    %v2457 = vunpack.c.h.b16 %v2261
    %v2458 = vunpack.c.l.b16 %v2262
    %v2459 = vunpack.c.l.b16 %v2263
    %v2460 = vunpack.c.h.b16 %v2263
    %v2461 = vunpack.c.l.b16 %v2264
    %v2462 = vunpack.c.l.b16 %v2265
    %v2463 = vunpack.c.h.b16 %v2265
    %v2464 = vunpack.c.l.b16 %v2266
    %v2465 = vunpack.c.l.b16 %v2267
    %v2466 = vunpack.c.h.b16 %v2267
    %v2467 = vunpack.c.l.b16 %v2268
    %v2468 = vunpack.c.l.b16 %v2269
    %v2469 = vunpack.c.h.b16 %v2269
    %v2470 = vunpack.c.l.b16 %v2270
    %v2471 = vunpack.c.l.b16 %v2271
    %v2472 = vunpack.c.h.b16 %v2271
    %v2473 = vunpack.c.l.b16 %v2272
    %v2474 = vunpack.c.l.b16 %v2273
    %v2475 = vunpack.c.h.b16 %v2273
    %v2476 = vunpack.c.l.b16 %v2274
    %v2477 = vunpack.c.l.b16 %v2275
    %v2478 = vunpack.c.h.b16 %v2275
    %v2479 = vunpack.c.l.b16 %v2276
    %v2480 = vunpack.c.l.b16 %v2277
    %v2481 = vunpack.c.h.b16 %v2277
    %v2482 = vunpack.c.l.b16 %v2278
    %v2483 = vunpack.c.l.b16 %v2279
    %v2484 = vunpack.c.h.b16 %v2279
    %v2485 = vunpack.c.l.b16 %v2280
    %v2486 = vunpack.c.l.b16 %v2281
    %v2487 = vunpack.c.h.b16 %v2281
    %v2488 = vunpack.c.l.b16 %v2282
    %v2489 = vunpack.c.l.b16 %v2283
    %v2490 = vunpack.c.h.b16 %v2283
    %v2491 = vunpack.c.l.b16 %v2284
    %v2492 = vunpack.c.l.b16 %v2285
    %v2493 = vunpack.c.h.b16 %v2285
    %v2494 = vunpack.c.l.b16 %v2286
    %v2495 = vunpack.c.l.b16 %v2287
    %v2496 = vunpack.c.h.b16 %v2287
    %v2497 = vunpack.c.l.b16 %v2288
    %v2498 = vunpack.c.l.b16 %v2289
    %v2499 = vunpack.c.h.b16 %v2289
    %v2500 = vunpack.c.l.b16 %v2290
    %v2501 = vunpack.c.l.b16 %v2291
    %v2502 = vunpack.c.h.b16 %v2291
    %v2503 = vunpack.c.l.b16 %v2292
    %v2504 = vunpack.c.l.b16 %v2293
    %v2505 = vunpack.c.h.b16 %v2293
    %v2506 = vunpack.c.l.b16 %v2294
    %v2507 = vunpack.c.l.b16 %v2295
    %v2508 = vunpack.c.h.b16 %v2295
    %v2509 = vunpack.c.l.b16 %v2296
    %v2510 = vunpack.c.l.b16 %v2297
    %v2511 = vunpack.c.h.b16 %v2297
    %v2512 = vunpack.c.l.b16 %v2298
    %v2513 = vunpack.c.l.b16 %v2299
    %v2514 = vunpack.c.h.b16 %v2299
    %v2515 = vunpack.c.l.b16 %v2300
    %v2516 = vunpack.c.l.b16 %v2301
    %v2517 = vunpack.c.h.b16 %v2301
    %v2518 = vunpack.c.l.b16 %v2302
    %v2519 = vunpack.c.l.b16 %v2303
    %v2520 = vunpack.c.h.b16 %v2303
    %v2521 = vunpack.c.l.b16 %v2304
    %v2522 = vunpack.c.l.b16 %v2305
    %v2523 = vunpack.c.h.b16 %v2305
    %v2524 = vunpack.c.l.b16 %v2306
    %v2525 = vunpack.c.l.b16 %v2307
    %v2526 = vunpack.c.h.b16 %v2307
    %v2527 = vunpack.c.l.b16 %v2308
    %v2528 = vunpack.c.l.b16 %v2309
    %v2529 = vunpack.c.h.b16 %v2309
    %v2530 = vunpack.c.l.b16 %v2310
    %v2531 = vunpack.c.l.b16 %v2311
    %v2532 = vunpack.c.h.b16 %v2311
    %v2533 = vunpack.c.l.b16 %v2312
    %v2534 = vunpack.c.l.b16 %v2313
    %v2535 = vunpack.c.h.b16 %v2313
    %v2536 = vunpack.c.l.b16 %v2314
    %v2537 = vunpack.c.l.b16 %v2315
    %v2538 = vunpack.c.h.b16 %v2315
    %v2539 = vunpack.c.l.b16 %v2316
    %v2540 = vunpack.c.l.b16 %v2317
    %v2541 = vunpack.c.h.b16 %v2317
    %v2542 = vunpack.c.l.b16 %v2318
    %v2543 = vunpack.c.l.b16 %v2319
    %v2544 = vunpack.c.h.b16 %v2319
    %v2545 = vunpack.c.l.b16 %v2320
    %v2546 = vunpack.c.l.b16 %v2321
    %v2547 = vunpack.c.h.b16 %v2321
    %v2548 = vunpack.c.l.b16 %v2322
    %v2549 = vunpack.c.l.b16 %v2323
    %v2550 = vunpack.c.h.b16 %v2323
    %v2551 = vunpack.c.l.b16 %v2324
    %v2552 = vunpack.c.l.b16 %v2325
    %v2553 = vunpack.c.h.b16 %v2325
    %v2554 = vunpack.c.l.b16 %v2326
    %v2555 = vunpack.c.l.b16 %v2327
    %v2556 = vunpack.c.h.b16 %v2327
    %v2557 = vunpack.c.l.b16 %v2328
    %v2558 = vunpack.c.l.b16 %v2329
    %v2559 = vunpack.c.h.b16 %v2329
    %v2560 = vunpack.c.l.b16 %v2330
    %v2561 = vunpack.c.l.b16 %v2331
    %v2562 = vunpack.c.h.b16 %v2331
    %v2563 = vunpack.c.l.b16 %v2332
    %v2564 = vunpack.c.l.b16 %v2333
    %v2565 = vunpack.c.h.b16 %v2333
    %v2566 = vunpack.c.l.b16 %v2334
    %v2567 = vunpack.c.l.b16 %v2335
    %v2568 = vunpack.c.h.b16 %v2335
    %v2569 = vunpack.c.l.b16 %v2336
    %v2570 = vunpack.c.l.b16 %v2337
    %v2571 = vunpack.c.h.b16 %v2337
    %v2572 = vunpack.c.l.b16 %v2338
    %v2573 = vunpack.c.l.b16 %v2339
    %v2574 = vunpack.c.h.b16 %v2339
    %v2575 = vunpack.c.l.b16 %v2340
    %v2576 = vunpack.c.l.b16 %v2341
    %v2577 = vunpack.c.h.b16 %v2341
    %v2578 = vunpack.c.l.b16 %v2342
    %v2579 = vunpack.c.l.b16 %v2343
    %v2580 = vunpack.c.h.b16 %v2343
    %v2581 = vunpack.c.l.b16 %v2344
    %v2582 = vunpack.c.l.b16 %v2345
    %v2583 = vunpack.c.h.b16 %v2345
    %v2584 = vunpack.c.l.b16 %v2346
    %v2585 = vunpack.c.l.b16 %v2347
    %v2586 = vunpack.c.h.b16 %v2347
    %v2587 = vunpack.c.l.b16 %v2348
    %v2588 = vunpack.c.l.b16 %v2349
    %v2589 = vunpack.c.h.b16 %v2349
    %v2590 = vunpack.c.l.b16 %v2350
    %v2591 = vpack.c.b16 %v2450, %v2447
    %v2592 = vpack.c.b16 %v2451, %v2448
    %v2593 = vpack.c.b16 %v2452, %v2449
    %v2594 = vpack.c.b16 %v2456, %v2453
    %v2595 = vpack.c.b16 %v2457, %v2454
    %v2596 = vpack.c.b16 %v2458, %v2455
    %v2597 = vpack.c.b16 %v2462, %v2459
    %v2598 = vpack.c.b16 %v2463, %v2460
    %v2599 = vpack.c.b16 %v2464, %v2461
    %v2600 = vpack.c.b16 %v2468, %v2465
    %v2601 = vpack.c.b16 %v2469, %v2466
    %v2602 = vpack.c.b16 %v2470, %v2467
    %v2603 = vpack.c.b16 %v2474, %v2471
    %v2604 = vpack.c.b16 %v2475, %v2472
    %v2605 = vpack.c.b16 %v2476, %v2473
    %v2606 = vpack.c.b16 %v2480, %v2477
    %v2607 = vpack.c.b16 %v2481, %v2478
    %v2608 = vpack.c.b16 %v2482, %v2479
    %v2609 = vpack.c.b16 %v2486, %v2483
    %v2610 = vpack.c.b16 %v2487, %v2484
    %v2611 = vpack.c.b16 %v2488, %v2485
    %v2612 = vpack.c.b16 %v2492, %v2489
    %v2613 = vpack.c.b16 %v2493, %v2490
    %v2614 = vpack.c.b16 %v2494, %v2491
    %v2615 = vpack.c.b16 %v2498, %v2495
    %v2616 = vpack.c.b16 %v2499, %v2496
    %v2617 = vpack.c.b16 %v2500, %v2497
    %v2618 = vpack.c.b16 %v2504, %v2501
    %v2619 = vpack.c.b16 %v2505, %v2502
    %v2620 = vpack.c.b16 %v2506, %v2503
    %v2621 = vpack.c.b16 %v2510, %v2507
    %v2622 = vpack.c.b16 %v2511, %v2508
    %v2623 = vpack.c.b16 %v2512, %v2509
    %v2624 = vpack.c.b16 %v2516, %v2513
    %v2625 = vpack.c.b16 %v2517, %v2514
    %v2626 = vpack.c.b16 %v2518, %v2515
    %v2627 = vpack.c.b16 %v2522, %v2519
    %v2628 = vpack.c.b16 %v2523, %v2520
    %v2629 = vpack.c.b16 %v2524, %v2521
    %v2630 = vpack.c.b16 %v2528, %v2525
    %v2631 = vpack.c.b16 %v2529, %v2526
    %v2632 = vpack.c.b16 %v2530, %v2527
    %v2633 = vpack.c.b16 %v2534, %v2531
    %v2634 = vpack.c.b16 %v2535, %v2532
    %v2635 = vpack.c.b16 %v2536, %v2533
    %v2636 = vpack.c.b16 %v2540, %v2537
    %v2637 = vpack.c.b16 %v2541, %v2538
    %v2638 = vpack.c.b16 %v2542, %v2539
    %v2639 = vpack.c.b16 %v2546, %v2543
    %v2640 = vpack.c.b16 %v2547, %v2544
    %v2641 = vpack.c.b16 %v2548, %v2545
    %v2642 = vpack.c.b16 %v2552, %v2549
    %v2643 = vpack.c.b16 %v2553, %v2550
    %v2644 = vpack.c.b16 %v2554, %v2551
    %v2645 = vpack.c.b16 %v2558, %v2555
    %v2646 = vpack.c.b16 %v2559, %v2556
    %v2647 = vpack.c.b16 %v2560, %v2557
    %v2648 = vpack.c.b16 %v2564, %v2561
    %v2649 = vpack.c.b16 %v2565, %v2562
    %v2650 = vpack.c.b16 %v2566, %v2563
    %v2651 = vpack.c.b16 %v2570, %v2567
    %v2652 = vpack.c.b16 %v2571, %v2568
    %v2653 = vpack.c.b16 %v2572, %v2569
    %v2654 = vpack.c.b16 %v2576, %v2573
    %v2655 = vpack.c.b16 %v2577, %v2574
    %v2656 = vpack.c.b16 %v2578, %v2575
    %v2657 = vpack.c.b16 %v2582, %v2579
    %v2658 = vpack.c.b16 %v2583, %v2580
    %v2659 = vpack.c.b16 %v2584, %v2581
    %v2660 = vpack.c.b16 %v2588, %v2585
    %v2661 = vpack.c.b16 %v2589, %v2586
    %v2662 = vpack.c.b16 %v2590, %v2587
    %2735 = vmatpush.bf16.msra.mxu0 %v2612
    %2736 = vmatpush.bf16.msra.mxu0 %v2609
    %2737 = vmatpush.bf16.msra.mxu0 %v2606
    %2738 = vmatpush.bf16.msra.mxu0 %v2603
    %2739 = vmatpush.bf16.msra.mxu0 %v2600
    %2740 = vmatpush.bf16.msra.mxu0 %v2597
    %2741 = vmatpush.bf16.msra.mxu0 %v2594
    %2742 = vmatpush.bf16.msra.mxu0 %v2591
    %2743 = vmatmul.bf16.gmra.mxu0 %v2131
    %v2744 = vpop.f32.mrf.mxu0
    %v2745 = vadd.f32 0.0, %v2744
    %v2746 = vpop.f32.mrf.mxu0
    %v2747 = vadd.f32 0.0, %v2746
    %2748 = vdwg.mxu0
    %2749 = vmatpush.bf16.msra.mxu0 %v2636
    %2750 = vmatpush.bf16.msra.mxu0 %v2633
    %2751 = vmatpush.bf16.msra.mxu0 %v2630
    %2752 = vmatpush.bf16.msra.mxu0 %v2627
    %2753 = vmatpush.bf16.msra.mxu0 %v2624
    %2754 = vmatpush.bf16.msra.mxu0 %v2621
    %2755 = vmatpush.bf16.msra.mxu0 %v2618
    %2756 = vmatpush.bf16.msra.mxu0 %v2615
    %2757 = vmatmul.bf16.gmra.mxu0 %v2132
    %v2758 = vpop.f32.mrf.mxu0
    %v2759 = vadd.f32 %v2745, %v2758
    %v2760 = vpop.f32.mrf.mxu0
    %v2761 = vadd.f32 %v2747, %v2760
    %2762 = vdwg.mxu0
    %2763 = vmatpush.bf16.msra.mxu0 %v2660
    %2764 = vmatpush.bf16.msra.mxu0 %v2657
    %2765 = vmatpush.bf16.msra.mxu0 %v2654
    %2766 = vmatpush.bf16.msra.mxu0 %v2651
    %2767 = vmatpush.bf16.msra.mxu0 %v2648
    %2768 = vmatpush.bf16.msra.mxu0 %v2645
    %2769 = vmatpush.bf16.msra.mxu0 %v2642
    %2770 = vmatpush.bf16.msra.mxu0 %v2639
    %2771 = vmatmul.bf16.gmra.mxu0 %v2133
    %v2772 = vpop.f32.mrf.mxu0
    %v2773 = vadd.f32 %v2759, %v2772
    %v2774 = vpop.f32.mrf.mxu0
    %v2775 = vadd.f32 %v2761, %v2774
    %2776 = vdwg.mxu0
    %2777 = vmatpush.bf16.msra.mxu0 %v2613
    %2778 = vmatpush.bf16.msra.mxu0 %v2610
    %2779 = vmatpush.bf16.msra.mxu0 %v2607
    %2780 = vmatpush.bf16.msra.mxu0 %v2604
    %2781 = vmatpush.bf16.msra.mxu0 %v2601
    %2782 = vmatpush.bf16.msra.mxu0 %v2598
    %2783 = vmatpush.bf16.msra.mxu0 %v2595
    %2784 = vmatpush.bf16.msra.mxu0 %v2592
    %2785 = vmatmul.bf16.gmra.mxu0 %v2131
    %v2786 = vpop.f32.mrf.mxu0
    %v2787 = vadd.f32 0.0, %v2786
    %v2788 = vpop.f32.mrf.mxu0
    %v2789 = vadd.f32 0.0, %v2788
    %2790 = vdwg.mxu0
    %2791 = vmatpush.bf16.msra.mxu0 %v2637
    %2792 = vmatpush.bf16.msra.mxu0 %v2634
    %2793 = vmatpush.bf16.msra.mxu0 %v2631
    %2794 = vmatpush.bf16.msra.mxu0 %v2628
    %2795 = vmatpush.bf16.msra.mxu0 %v2625
    %2796 = vmatpush.bf16.msra.mxu0 %v2622
    %2797 = vmatpush.bf16.msra.mxu0 %v2619
    %2798 = vmatpush.bf16.msra.mxu0 %v2616
    %2799 = vmatmul.bf16.gmra.mxu0 %v2132
    %v2800 = vpop.f32.mrf.mxu0
    %v2801 = vadd.f32 %v2787, %v2800
    %v2802 = vpop.f32.mrf.mxu0
    %v2803 = vadd.f32 %v2789, %v2802
    %2804 = vdwg.mxu0
    %2805 = vmatpush.bf16.msra.mxu0 %v2661
    %2806 = vmatpush.bf16.msra.mxu0 %v2658
    %2807 = vmatpush.bf16.msra.mxu0 %v2655
    %2808 = vmatpush.bf16.msra.mxu0 %v2652
    %2809 = vmatpush.bf16.msra.mxu0 %v2649
    %2810 = vmatpush.bf16.msra.mxu0 %v2646
    %2811 = vmatpush.bf16.msra.mxu0 %v2643
    %2812 = vmatpush.bf16.msra.mxu0 %v2640
    %2813 = vmatmul.bf16.gmra.mxu0 %v2133
    %v2814 = vpop.f32.mrf.mxu0
    %v2815 = vadd.f32 %v2801, %v2814
    %v2816 = vpop.f32.mrf.mxu0
    %v2817 = vadd.f32 %v2803, %v2816
    %2818 = vdwg.mxu0
    %2819 = vmatpush.bf16.msra.mxu0 %v2614
    %2820 = vmatpush.bf16.msra.mxu0 %v2611
    %2821 = vmatpush.bf16.msra.mxu0 %v2608
    %2822 = vmatpush.bf16.msra.mxu0 %v2605
    %2823 = vmatpush.bf16.msra.mxu0 %v2602
    %2824 = vmatpush.bf16.msra.mxu0 %v2599
    %2825 = vmatpush.bf16.msra.mxu0 %v2596
    %2826 = vmatpush.bf16.msra.mxu0 %v2593
    %2827 = vmatmul.bf16.gmra.mxu0 %v2131
    %v2828 = vpop.f32.mrf.mxu0
    %v2829 = vadd.f32 0.0, %v2828
    %v2830 = vpop.f32.mrf.mxu0
    %v2831 = vadd.f32 0.0, %v2830
    %2832 = vdwg.mxu0
    %2833 = vmatpush.bf16.msra.mxu0 %v2638
    %2834 = vmatpush.bf16.msra.mxu0 %v2635
    %2835 = vmatpush.bf16.msra.mxu0 %v2632
    %2836 = vmatpush.bf16.msra.mxu0 %v2629
    %2837 = vmatpush.bf16.msra.mxu0 %v2626
    %2838 = vmatpush.bf16.msra.mxu0 %v2623
    %2839 = vmatpush.bf16.msra.mxu0 %v2620
    %2840 = vmatpush.bf16.msra.mxu0 %v2617
    %2841 = vmatmul.bf16.gmra.mxu0 %v2132
    %v2842 = vpop.f32.mrf.mxu0
    %v2843 = vadd.f32 %v2829, %v2842
    %v2844 = vpop.f32.mrf.mxu0
    %v2845 = vadd.f32 %v2831, %v2844
    %2846 = vdwg.mxu0
    %2847 = vmatpush.bf16.msra.mxu0 %v2662
    %2848 = vmatpush.bf16.msra.mxu0 %v2659
    %2849 = vmatpush.bf16.msra.mxu0 %v2656
    %2850 = vmatpush.bf16.msra.mxu0 %v2653
    %2851 = vmatpush.bf16.msra.mxu0 %v2650
    %2852 = vmatpush.bf16.msra.mxu0 %v2647
    %2853 = vmatpush.bf16.msra.mxu0 %v2644
    %2854 = vmatpush.bf16.msra.mxu0 %v2641
    %2855 = vmatmul.bf16.gmra.mxu0 %v2133
    %v2856 = vpop.f32.mrf.mxu0
    %v2857 = vadd.f32 %v2843, %v2856
    %v2858 = vpop.f32.mrf.mxu0
    %v2859 = vadd.f32 %v2845, %v2858
    %2860 = vdwg.mxu0
    %v2957 = vunpack.c.l.b16 %v2159
    %v2958 = vunpack.c.h.b16 %v2159
    %v2959 = vunpack.c.l.b16 %v2160
    %v2960 = vunpack.c.l.b16 %v2161
    %v2961 = vunpack.c.h.b16 %v2161
    %v2962 = vunpack.c.l.b16 %v2162
    %v2963 = vunpack.c.l.b16 %v2163
    %v2964 = vunpack.c.h.b16 %v2163
    %v2965 = vunpack.c.l.b16 %v2164
    %v2966 = vunpack.c.l.b16 %v2165
    %v2967 = vunpack.c.h.b16 %v2165
    %v2968 = vunpack.c.l.b16 %v2166
    %v2969 = vunpack.c.l.b16 %v2167
    %v2970 = vunpack.c.h.b16 %v2167
    %v2971 = vunpack.c.l.b16 %v2168
    %v2972 = vunpack.c.l.b16 %v2169
    %v2973 = vunpack.c.h.b16 %v2169
    %v2974 = vunpack.c.l.b16 %v2170
    %v2975 = vunpack.c.l.b16 %v2171
    %v2976 = vunpack.c.h.b16 %v2171
    %v2977 = vunpack.c.l.b16 %v2172
    %v2978 = vunpack.c.l.b16 %v2173
    %v2979 = vunpack.c.h.b16 %v2173
    %v2980 = vunpack.c.l.b16 %v2174
    %v2981 = vunpack.c.l.b16 %v2175
    %v2982 = vunpack.c.h.b16 %v2175
    %v2983 = vunpack.c.l.b16 %v2176
    %v2984 = vunpack.c.l.b16 %v2177
    %v2985 = vunpack.c.h.b16 %v2177
    %v2986 = vunpack.c.l.b16 %v2178
    %v2987 = vunpack.c.l.b16 %v2179
    %v2988 = vunpack.c.h.b16 %v2179
    %v2989 = vunpack.c.l.b16 %v2180
    %v2990 = vunpack.c.l.b16 %v2181
    %v2991 = vunpack.c.h.b16 %v2181
    %v2992 = vunpack.c.l.b16 %v2182
    %v2993 = vunpack.c.l.b16 %v2183
    %v2994 = vunpack.c.h.b16 %v2183
    %v2995 = vunpack.c.l.b16 %v2184
    %v2996 = vunpack.c.l.b16 %v2185
    %v2997 = vunpack.c.h.b16 %v2185
    %v2998 = vunpack.c.l.b16 %v2186
    %v2999 = vunpack.c.l.b16 %v2187
    %v3000 = vunpack.c.h.b16 %v2187
    %v3001 = vunpack.c.l.b16 %v2188
    %v3002 = vunpack.c.l.b16 %v2189
    %v3003 = vunpack.c.h.b16 %v2189
    %v3004 = vunpack.c.l.b16 %v2190
    %v3005 = vunpack.c.l.b16 %v2191
    %v3006 = vunpack.c.h.b16 %v2191
    %v3007 = vunpack.c.l.b16 %v2192
    %v3008 = vunpack.c.l.b16 %v2193
    %v3009 = vunpack.c.h.b16 %v2193
    %v3010 = vunpack.c.l.b16 %v2194
    %v3011 = vunpack.c.l.b16 %v2195
    %v3012 = vunpack.c.h.b16 %v2195
    %v3013 = vunpack.c.l.b16 %v2196
    %v3014 = vunpack.c.l.b16 %v2197
    %v3015 = vunpack.c.h.b16 %v2197
    %v3016 = vunpack.c.l.b16 %v2198
    %v3017 = vunpack.c.l.b16 %v2199
    %v3018 = vunpack.c.h.b16 %v2199
    %v3019 = vunpack.c.l.b16 %v2200
    %v3020 = vunpack.c.l.b16 %v2201
    %v3021 = vunpack.c.h.b16 %v2201
    %v3022 = vunpack.c.l.b16 %v2202
    %v3023 = vunpack.c.l.b16 %v2203
    %v3024 = vunpack.c.h.b16 %v2203
    %v3025 = vunpack.c.l.b16 %v2204
    %v3026 = vunpack.c.l.b16 %v2205
    %v3027 = vunpack.c.h.b16 %v2205
    %v3028 = vunpack.c.l.b16 %v2206
    %v3029 = vunpack.c.l.b16 %v2207
    %v3030 = vunpack.c.h.b16 %v2207
    %v3031 = vunpack.c.l.b16 %v2208
    %v3032 = vunpack.c.l.b16 %v2209
    %v3033 = vunpack.c.h.b16 %v2209
    %v3034 = vunpack.c.l.b16 %v2210
    %v3035 = vunpack.c.l.b16 %v2211
    %v3036 = vunpack.c.h.b16 %v2211
    %v3037 = vunpack.c.l.b16 %v2212
    %v3038 = vunpack.c.l.b16 %v2213
    %v3039 = vunpack.c.h.b16 %v2213
    %v3040 = vunpack.c.l.b16 %v2214
    %v3041 = vunpack.c.l.b16 %v2215
    %v3042 = vunpack.c.h.b16 %v2215
    %v3043 = vunpack.c.l.b16 %v2216
    %v3044 = vunpack.c.l.b16 %v2217
    %v3045 = vunpack.c.h.b16 %v2217
    %v3046 = vunpack.c.l.b16 %v2218
    %v3047 = vunpack.c.l.b16 %v2219
    %v3048 = vunpack.c.h.b16 %v2219
    %v3049 = vunpack.c.l.b16 %v2220
    %v3050 = vunpack.c.l.b16 %v2221
    %v3051 = vunpack.c.h.b16 %v2221
    %v3052 = vunpack.c.l.b16 %v2222
    %v3053 = vunpack.c.l.b16 %v2223
    %v3054 = vunpack.c.h.b16 %v2223
    %v3055 = vunpack.c.l.b16 %v2224
    %v3056 = vunpack.c.l.b16 %v2225
    %v3057 = vunpack.c.h.b16 %v2225
    %v3058 = vunpack.c.l.b16 %v2226
    %v3059 = vunpack.c.l.b16 %v2227
    %v3060 = vunpack.c.h.b16 %v2227
    %v3061 = vunpack.c.l.b16 %v2228
    %v3062 = vunpack.c.l.b16 %v2229
    %v3063 = vunpack.c.h.b16 %v2229
    %v3064 = vunpack.c.l.b16 %v2230
    %v3065 = vunpack.c.l.b16 %v2231
    %v3066 = vunpack.c.h.b16 %v2231
    %v3067 = vunpack.c.l.b16 %v2232
    %v3068 = vunpack.c.l.b16 %v2233
    %v3069 = vunpack.c.h.b16 %v2233
    %v3070 = vunpack.c.l.b16 %v2234
    %v3071 = vunpack.c.l.b16 %v2235
    %v3072 = vunpack.c.h.b16 %v2235
    %v3073 = vunpack.c.l.b16 %v2236
    %v3074 = vunpack.c.l.b16 %v2237
    %v3075 = vunpack.c.h.b16 %v2237
    %v3076 = vunpack.c.l.b16 %v2238
    %v3077 = vunpack.c.l.b16 %v2239
    %v3078 = vunpack.c.h.b16 %v2239
    %v3079 = vunpack.c.l.b16 %v2240
    %v3080 = vunpack.c.l.b16 %v2241
    %v3081 = vunpack.c.h.b16 %v2241
    %v3082 = vunpack.c.l.b16 %v2242
    %v3083 = vunpack.c.l.b16 %v2243
    %v3084 = vunpack.c.h.b16 %v2243
    %v3085 = vunpack.c.l.b16 %v2244
    %v3086 = vunpack.c.l.b16 %v2245
    %v3087 = vunpack.c.h.b16 %v2245
    %v3088 = vunpack.c.l.b16 %v2246
    %v3089 = vunpack.c.l.b16 %v2247
    %v3090 = vunpack.c.h.b16 %v2247
    %v3091 = vunpack.c.l.b16 %v2248
    %v3092 = vunpack.c.l.b16 %v2249
    %v3093 = vunpack.c.h.b16 %v2249
    %v3094 = vunpack.c.l.b16 %v2250
    %v3095 = vunpack.c.l.b16 %v2251
    %v3096 = vunpack.c.h.b16 %v2251
    %v3097 = vunpack.c.l.b16 %v2252
    %v3098 = vunpack.c.l.b16 %v2253
    %v3099 = vunpack.c.h.b16 %v2253
    %v3100 = vunpack.c.l.b16 %v2254
    %v3101 = vpack.c.b16 %v2960, %v2957
    %v3102 = vpack.c.b16 %v2961, %v2958
    %v3103 = vpack.c.b16 %v2962, %v2959
    %v3104 = vpack.c.b16 %v2966, %v2963
    %v3105 = vpack.c.b16 %v2967, %v2964
    %v3106 = vpack.c.b16 %v2968, %v2965
    %v3107 = vpack.c.b16 %v2972, %v2969
    %v3108 = vpack.c.b16 %v2973, %v2970
    %v3109 = vpack.c.b16 %v2974, %v2971
    %v3110 = vpack.c.b16 %v2978, %v2975
    %v3111 = vpack.c.b16 %v2979, %v2976
    %v3112 = vpack.c.b16 %v2980, %v2977
    %v3113 = vpack.c.b16 %v2984, %v2981
    %v3114 = vpack.c.b16 %v2985, %v2982
    %v3115 = vpack.c.b16 %v2986, %v2983
    %v3116 = vpack.c.b16 %v2990, %v2987
    %v3117 = vpack.c.b16 %v2991, %v2988
    %v3118 = vpack.c.b16 %v2992, %v2989
    %v3119 = vpack.c.b16 %v2996, %v2993
    %v3120 = vpack.c.b16 %v2997, %v2994
    %v3121 = vpack.c.b16 %v2998, %v2995
    %v3122 = vpack.c.b16 %v3002, %v2999
    %v3123 = vpack.c.b16 %v3003, %v3000
    %v3124 = vpack.c.b16 %v3004, %v3001
    %v3125 = vpack.c.b16 %v3008, %v3005
    %v3126 = vpack.c.b16 %v3009, %v3006
    %v3127 = vpack.c.b16 %v3010, %v3007
    %v3128 = vpack.c.b16 %v3014, %v3011
    %v3129 = vpack.c.b16 %v3015, %v3012
    %v3130 = vpack.c.b16 %v3016, %v3013
    %v3131 = vpack.c.b16 %v3020, %v3017
    %v3132 = vpack.c.b16 %v3021, %v3018
    %v3133 = vpack.c.b16 %v3022, %v3019
    %v3134 = vpack.c.b16 %v3026, %v3023
    %v3135 = vpack.c.b16 %v3027, %v3024
    %v3136 = vpack.c.b16 %v3028, %v3025
    %v3137 = vpack.c.b16 %v3032, %v3029
    %v3138 = vpack.c.b16 %v3033, %v3030
    %v3139 = vpack.c.b16 %v3034, %v3031
    %v3140 = vpack.c.b16 %v3038, %v3035
    %v3141 = vpack.c.b16 %v3039, %v3036
    %v3142 = vpack.c.b16 %v3040, %v3037
    %v3143 = vpack.c.b16 %v3044, %v3041
    %v3144 = vpack.c.b16 %v3045, %v3042
    %v3145 = vpack.c.b16 %v3046, %v3043
    %v3146 = vpack.c.b16 %v3050, %v3047
    %v3147 = vpack.c.b16 %v3051, %v3048
    %v3148 = vpack.c.b16 %v3052, %v3049
    %v3149 = vpack.c.b16 %v3056, %v3053
    %v3150 = vpack.c.b16 %v3057, %v3054
    %v3151 = vpack.c.b16 %v3058, %v3055
    %v3152 = vpack.c.b16 %v3062, %v3059
    %v3153 = vpack.c.b16 %v3063, %v3060
    %v3154 = vpack.c.b16 %v3064, %v3061
    %v3155 = vpack.c.b16 %v3068, %v3065
    %v3156 = vpack.c.b16 %v3069, %v3066
    %v3157 = vpack.c.b16 %v3070, %v3067
    %v3158 = vpack.c.b16 %v3074, %v3071
    %v3159 = vpack.c.b16 %v3075, %v3072
    %v3160 = vpack.c.b16 %v3076, %v3073
    %v3161 = vpack.c.b16 %v3080, %v3077
    %v3162 = vpack.c.b16 %v3081, %v3078
    %v3163 = vpack.c.b16 %v3082, %v3079
    %v3164 = vpack.c.b16 %v3086, %v3083
    %v3165 = vpack.c.b16 %v3087, %v3084
    %v3166 = vpack.c.b16 %v3088, %v3085
    %v3167 = vpack.c.b16 %v3092, %v3089
    %v3168 = vpack.c.b16 %v3093, %v3090
    %v3169 = vpack.c.b16 %v3094, %v3091
    %v3170 = vpack.c.b16 %v3098, %v3095
    %v3171 = vpack.c.b16 %v3099, %v3096
    %v3172 = vpack.c.b16 %v3100, %v3097
    %3245 = vmatpush.bf16.msra.mxu0 %v3122
    %3246 = vmatpush.bf16.msra.mxu0 %v3119
    %3247 = vmatpush.bf16.msra.mxu0 %v3116
    %3248 = vmatpush.bf16.msra.mxu0 %v3113
    %3249 = vmatpush.bf16.msra.mxu0 %v3110
    %3250 = vmatpush.bf16.msra.mxu0 %v3107
    %3251 = vmatpush.bf16.msra.mxu0 %v3104
    %3252 = vmatpush.bf16.msra.mxu0 %v3101
    %3253 = vmatmul.bf16.gmra.mxu0 %v2155
    %v3254 = vpop.f32.mrf.mxu0
    %v3255 = vadd.f32 %v2773, %v3254
    %v3256 = vpop.f32.mrf.mxu0
    %v3257 = vadd.f32 %v2775, %v3256
    %3258 = vdwg.mxu0
    %3259 = vmatpush.bf16.msra.mxu0 %v3146
    %3260 = vmatpush.bf16.msra.mxu0 %v3143
    %3261 = vmatpush.bf16.msra.mxu0 %v3140
    %3262 = vmatpush.bf16.msra.mxu0 %v3137
    %3263 = vmatpush.bf16.msra.mxu0 %v3134
    %3264 = vmatpush.bf16.msra.mxu0 %v3131
    %3265 = vmatpush.bf16.msra.mxu0 %v3128
    %3266 = vmatpush.bf16.msra.mxu0 %v3125
    %3267 = vmatmul.bf16.gmra.mxu0 %v2156
    %v3268 = vpop.f32.mrf.mxu0
    %v3269 = vadd.f32 %v3255, %v3268
    %v3270 = vpop.f32.mrf.mxu0
    %v3271 = vadd.f32 %v3257, %v3270
    %3272 = vdwg.mxu0
    %3273 = vmatpush.bf16.msra.mxu0 %v3170
    %3274 = vmatpush.bf16.msra.mxu0 %v3167
    %3275 = vmatpush.bf16.msra.mxu0 %v3164
    %3276 = vmatpush.bf16.msra.mxu0 %v3161
    %3277 = vmatpush.bf16.msra.mxu0 %v3158
    %3278 = vmatpush.bf16.msra.mxu0 %v3155
    %3279 = vmatpush.bf16.msra.mxu0 %v3152
    %3280 = vmatpush.bf16.msra.mxu0 %v3149
    %3281 = vmatmul.bf16.gmra.mxu0 %v2157
    %v3282 = vpop.f32.mrf.mxu0
    %v3283 = vadd.f32 %v3269, %v3282
    %v3284 = vpop.f32.mrf.mxu0
    %v3285 = vadd.f32 %v3271, %v3284
    %3286 = vdwg.mxu0
    %3287 = vmatpush.bf16.msra.mxu0 %v3123
    %3288 = vmatpush.bf16.msra.mxu0 %v3120
    %3289 = vmatpush.bf16.msra.mxu0 %v3117
    %3290 = vmatpush.bf16.msra.mxu0 %v3114
    %3291 = vmatpush.bf16.msra.mxu0 %v3111
    %3292 = vmatpush.bf16.msra.mxu0 %v3108
    %3293 = vmatpush.bf16.msra.mxu0 %v3105
    %3294 = vmatpush.bf16.msra.mxu0 %v3102
    %3295 = vmatmul.bf16.gmra.mxu0 %v2155
    %v3296 = vpop.f32.mrf.mxu0
    %v3297 = vadd.f32 %v2815, %v3296
    %v3298 = vpop.f32.mrf.mxu0
    %v3299 = vadd.f32 %v2817, %v3298
    %3300 = vdwg.mxu0
    %3301 = vmatpush.bf16.msra.mxu0 %v3147
    %3302 = vmatpush.bf16.msra.mxu0 %v3144
    %3303 = vmatpush.bf16.msra.mxu0 %v3141
    %3304 = vmatpush.bf16.msra.mxu0 %v3138
    %3305 = vmatpush.bf16.msra.mxu0 %v3135
    %3306 = vmatpush.bf16.msra.mxu0 %v3132
    %3307 = vmatpush.bf16.msra.mxu0 %v3129
    %3308 = vmatpush.bf16.msra.mxu0 %v3126
    %3309 = vmatmul.bf16.gmra.mxu0 %v2156
    %v3310 = vpop.f32.mrf.mxu0
    %v3311 = vadd.f32 %v3297, %v3310
    %v3312 = vpop.f32.mrf.mxu0
    %v3313 = vadd.f32 %v3299, %v3312
    %3314 = vdwg.mxu0
    %3315 = vmatpush.bf16.msra.mxu0 %v3171
    %3316 = vmatpush.bf16.msra.mxu0 %v3168
    %3317 = vmatpush.bf16.msra.mxu0 %v3165
    %3318 = vmatpush.bf16.msra.mxu0 %v3162
    %3319 = vmatpush.bf16.msra.mxu0 %v3159
    %3320 = vmatpush.bf16.msra.mxu0 %v3156
    %3321 = vmatpush.bf16.msra.mxu0 %v3153
    %3322 = vmatpush.bf16.msra.mxu0 %v3150
    %3323 = vmatmul.bf16.gmra.mxu0 %v2157
    %v3324 = vpop.f32.mrf.mxu0
    %v3325 = vadd.f32 %v3311, %v3324
    %v3326 = vpop.f32.mrf.mxu0
    %v3327 = vadd.f32 %v3313, %v3326
    %3328 = vdwg.mxu0
    %3329 = vmatpush.bf16.msra.mxu0 %v3124
    %3330 = vmatpush.bf16.msra.mxu0 %v3121
    %3331 = vmatpush.bf16.msra.mxu0 %v3118
    %3332 = vmatpush.bf16.msra.mxu0 %v3115
    %3333 = vmatpush.bf16.msra.mxu0 %v3112
    %3334 = vmatpush.bf16.msra.mxu0 %v3109
    %3335 = vmatpush.bf16.msra.mxu0 %v3106
    %3336 = vmatpush.bf16.msra.mxu0 %v3103
    %3337 = vmatmul.bf16.gmra.mxu0 %v2155
    %v3338 = vpop.f32.mrf.mxu0
    %v3339 = vadd.f32 %v2857, %v3338
    %v3340 = vpop.f32.mrf.mxu0
    %v3341 = vadd.f32 %v2859, %v3340
    %3342 = vdwg.mxu0
    %3343 = vmatpush.bf16.msra.mxu0 %v3148
    %3344 = vmatpush.bf16.msra.mxu0 %v3145
    %3345 = vmatpush.bf16.msra.mxu0 %v3142
    %3346 = vmatpush.bf16.msra.mxu0 %v3139
    %3347 = vmatpush.bf16.msra.mxu0 %v3136
    %3348 = vmatpush.bf16.msra.mxu0 %v3133
    %3349 = vmatpush.bf16.msra.mxu0 %v3130
    %3350 = vmatpush.bf16.msra.mxu0 %v3127
    %3351 = vmatmul.bf16.gmra.mxu0 %v2156
    %v3352 = vpop.f32.mrf.mxu0
    %v3353 = vadd.f32 %v3339, %v3352
    %v3354 = vpop.f32.mrf.mxu0
    %v3355 = vadd.f32 %v3341, %v3354
    %3356 = vdwg.mxu0
    %3357 = vmatpush.bf16.msra.mxu0 %v3172
    %3358 = vmatpush.bf16.msra.mxu0 %v3169
    %3359 = vmatpush.bf16.msra.mxu0 %v3166
    %3360 = vmatpush.bf16.msra.mxu0 %v3163
    %3361 = vmatpush.bf16.msra.mxu0 %v3160
    %3362 = vmatpush.bf16.msra.mxu0 %v3157
    %3363 = vmatpush.bf16.msra.mxu0 %v3154
    %3364 = vmatpush.bf16.msra.mxu0 %v3151
    %3365 = vmatmul.bf16.gmra.mxu0 %v2157
    %v3366 = vpop.f32.mrf.mxu0
    %v3367 = vadd.f32 %v3353, %v3366
    %v3368 = vpop.f32.mrf.mxu0
    %v3369 = vadd.f32 %v3355, %v3368
    %3370 = vdwg.mxu0
    %s3371 = scalar_lea.vmem [#allocation4], 1152
    %v3372 = vld [vmem:[%s3371] sm:$0xff]
    %v3373 = vld [vmem:[%s3371 + $0x8] sm:$0xf]
    %v3374 = vld [vmem:[%s3371 + $0xc] sm:$0xff]
    %v3375 = vld [vmem:[%s3371 + $0x14] sm:$0xf]
    %v3376 = vld [vmem:[%s3371 + $0x18] sm:$0xff]
    %v3377 = vld [vmem:[%s3371 + $0x20] sm:$0xf]
    %v3378 = vld [vmem:[%s3371 + $0x24] sm:$0xff]
    %v3379 = vld [vmem:[%s3371 + $0x2c] sm:$0xf]
    %v3380 = vld [vmem:[%s3371 + $0x30] sm:$0xff]
    %v3381 = vld [vmem:[%s3371 + $0x38] sm:$0xf]
    %v3382 = vld [vmem:[%s3371 + $0x3c] sm:$0xff]
    %v3383 = vld [vmem:[%s3371 + $0x44] sm:$0xf]
    %v3384 = vld [vmem:[%s3371 + $0x48] sm:$0xff]
    %v3385 = vld [vmem:[%s3371 + $0x50] sm:$0xf]
    %v3386 = vld [vmem:[%s3371 + $0x54] sm:$0xff]
    %v3387 = vld [vmem:[%s3371 + $0x5c] sm:$0xf]
    %v3388 = vld [vmem:[%s3371 + $0x60] sm:$0xff]
    %v3389 = vld [vmem:[%s3371 + $0x68] sm:$0xf]
    %v3390 = vld [vmem:[%s3371 + $0x6c] sm:$0xff]
    %v3391 = vld [vmem:[%s3371 + $0x74] sm:$0xf]
    %v3392 = vld [vmem:[%s3371 + $0x78] sm:$0xff]
    %v3393 = vld [vmem:[%s3371 + $0x80] sm:$0xf]
    %v3394 = vld [vmem:[%s3371 + $0x84] sm:$0xff]
    %v3395 = vld [vmem:[%s3371 + $0x8c] sm:$0xf]
    %v3396 = vld [vmem:[%s3371 + $0x90] sm:$0xff]
    %v3397 = vld [vmem:[%s3371 + $0x98] sm:$0xf]
    %v3398 = vld [vmem:[%s3371 + $0x9c] sm:$0xff]
    %v3399 = vld [vmem:[%s3371 + $0xa4] sm:$0xf]
    %v3400 = vld [vmem:[%s3371 + $0xa8] sm:$0xff]
    %v3401 = vld [vmem:[%s3371 + $0xb0] sm:$0xf]
    %v3402 = vld [vmem:[%s3371 + $0xb4] sm:$0xff]
    %v3403 = vld [vmem:[%s3371 + $0xbc] sm:$0xf]
    %v3404 = vld [vmem:[%s3371 + $0xc0] sm:$0xff]
    %v3405 = vld [vmem:[%s3371 + $0xc8] sm:$0xf]
    %v3406 = vld [vmem:[%s3371 + $0xcc] sm:$0xff]
    %v3407 = vld [vmem:[%s3371 + $0xd4] sm:$0xf]
    %v3408 = vld [vmem:[%s3371 + $0xd8] sm:$0xff]
    %v3409 = vld [vmem:[%s3371 + $0xe0] sm:$0xf]
    %v3410 = vld [vmem:[%s3371 + $0xe4] sm:$0xff]
    %v3411 = vld [vmem:[%s3371 + $0xec] sm:$0xf]
    %v3412 = vld [vmem:[%s3371 + $0xf0] sm:$0xff]
    %v3413 = vld [vmem:[%s3371 + $0xf8] sm:$0xf]
    %v3414 = vld [vmem:[%s3371 + $0xfc] sm:$0xff]
    %v3415 = vld [vmem:[%s3371 + $0x104] sm:$0xf]
    %v3416 = vld [vmem:[%s3371 + $0x108] sm:$0xff]
    %v3417 = vld [vmem:[%s3371 + $0x110] sm:$0xf]
    %v3418 = vld [vmem:[%s3371 + $0x114] sm:$0xff]
    %v3419 = vld [vmem:[%s3371 + $0x11c] sm:$0xf]
    %v3420 = vld [vmem:[%s3371 + $0x120] sm:$0xff]
    %v3421 = vld [vmem:[%s3371 + $0x128] sm:$0xf]
    %v3422 = vld [vmem:[%s3371 + $0x12c] sm:$0xff]
    %v3423 = vld [vmem:[%s3371 + $0x134] sm:$0xf]
    %v3424 = vld [vmem:[%s3371 + $0x138] sm:$0xff]
    %v3425 = vld [vmem:[%s3371 + $0x140] sm:$0xf]
    %v3426 = vld [vmem:[%s3371 + $0x144] sm:$0xff]
    %v3427 = vld [vmem:[%s3371 + $0x14c] sm:$0xf]
    %v3428 = vld [vmem:[%s3371 + $0x150] sm:$0xff]
    %v3429 = vld [vmem:[%s3371 + $0x158] sm:$0xf]
    %v3430 = vld [vmem:[%s3371 + $0x15c] sm:$0xff]
    %v3431 = vld [vmem:[%s3371 + $0x164] sm:$0xf]
    %v3432 = vld [vmem:[%s3371 + $0x168] sm:$0xff]
    %v3433 = vld [vmem:[%s3371 + $0x170] sm:$0xf]
    %v3434 = vld [vmem:[%s3371 + $0x174] sm:$0xff]
    %v3435 = vld [vmem:[%s3371 + $0x17c] sm:$0xf]
    %v3436 = vld [vmem:[%s3371 + $0x180] sm:$0xff]
    %v3437 = vld [vmem:[%s3371 + $0x188] sm:$0xf]
    %v3438 = vld [vmem:[%s3371 + $0x18c] sm:$0xff]
    %v3439 = vld [vmem:[%s3371 + $0x194] sm:$0xf]
    %v3440 = vld [vmem:[%s3371 + $0x198] sm:$0xff]
    %v3441 = vld [vmem:[%s3371 + $0x1a0] sm:$0xf]
    %v3442 = vld [vmem:[%s3371 + $0x1a4] sm:$0xff]
    %v3443 = vld [vmem:[%s3371 + $0x1ac] sm:$0xf]
    %v3444 = vld [vmem:[%s3371 + $0x1b0] sm:$0xff]
    %v3445 = vld [vmem:[%s3371 + $0x1b8] sm:$0xf]
    %v3446 = vld [vmem:[%s3371 + $0x1bc] sm:$0xff]
    %v3447 = vld [vmem:[%s3371 + $0x1c4] sm:$0xf]
    %v3448 = vld [vmem:[%s3371 + $0x1c8] sm:$0xff]
    %v3449 = vld [vmem:[%s3371 + $0x1d0] sm:$0xf]
    %v3450 = vld [vmem:[%s3371 + $0x1d4] sm:$0xff]
    %v3451 = vld [vmem:[%s3371 + $0x1dc] sm:$0xf]
    %v3452 = vld [vmem:[%s3371 + $0x1e0] sm:$0xff]
    %v3453 = vld [vmem:[%s3371 + $0x1e8] sm:$0xf]
    %v3454 = vld [vmem:[%s3371 + $0x1ec] sm:$0xff]
    %v3455 = vld [vmem:[%s3371 + $0x1f4] sm:$0xf]
    %v3456 = vld [vmem:[%s3371 + $0x1f8] sm:$0xff]
    %v3457 = vld [vmem:[%s3371 + $0x200] sm:$0xf]
    %v3458 = vld [vmem:[%s3371 + $0x204] sm:$0xff]
    %v3459 = vld [vmem:[%s3371 + $0x20c] sm:$0xf]
    %v3460 = vld [vmem:[%s3371 + $0x210] sm:$0xff]
    %v3461 = vld [vmem:[%s3371 + $0x218] sm:$0xf]
    %v3462 = vld [vmem:[%s3371 + $0x21c] sm:$0xff]
    %v3463 = vld [vmem:[%s3371 + $0x224] sm:$0xf]
    %v3464 = vld [vmem:[%s3371 + $0x228] sm:$0xff]
    %v3465 = vld [vmem:[%s3371 + $0x230] sm:$0xf]
    %v3466 = vld [vmem:[%s3371 + $0x234] sm:$0xff]
    %v3467 = vld [vmem:[%s3371 + $0x23c] sm:$0xf]
    %v3564 = vunpack.c.l.b16 %v3372
    %v3565 = vunpack.c.h.b16 %v3372
    %v3566 = vunpack.c.l.b16 %v3373
    %v3567 = vunpack.c.l.b16 %v3374
    %v3568 = vunpack.c.h.b16 %v3374
    %v3569 = vunpack.c.l.b16 %v3375
    %v3570 = vunpack.c.l.b16 %v3376
    %v3571 = vunpack.c.h.b16 %v3376
    %v3572 = vunpack.c.l.b16 %v3377
    %v3573 = vunpack.c.l.b16 %v3378
    %v3574 = vunpack.c.h.b16 %v3378
    %v3575 = vunpack.c.l.b16 %v3379
    %v3576 = vunpack.c.l.b16 %v3380
    %v3577 = vunpack.c.h.b16 %v3380
    %v3578 = vunpack.c.l.b16 %v3381
    %v3579 = vunpack.c.l.b16 %v3382
    %v3580 = vunpack.c.h.b16 %v3382
    %v3581 = vunpack.c.l.b16 %v3383
    %v3582 = vunpack.c.l.b16 %v3384
    %v3583 = vunpack.c.h.b16 %v3384
    %v3584 = vunpack.c.l.b16 %v3385
    %v3585 = vunpack.c.l.b16 %v3386
    %v3586 = vunpack.c.h.b16 %v3386
    %v3587 = vunpack.c.l.b16 %v3387
    %v3588 = vunpack.c.l.b16 %v3388
    %v3589 = vunpack.c.h.b16 %v3388
    %v3590 = vunpack.c.l.b16 %v3389
    %v3591 = vunpack.c.l.b16 %v3390
    %v3592 = vunpack.c.h.b16 %v3390
    %v3593 = vunpack.c.l.b16 %v3391
    %v3594 = vunpack.c.l.b16 %v3392
    %v3595 = vunpack.c.h.b16 %v3392
    %v3596 = vunpack.c.l.b16 %v3393
    %v3597 = vunpack.c.l.b16 %v3394
    %v3598 = vunpack.c.h.b16 %v3394
    %v3599 = vunpack.c.l.b16 %v3395
    %v3600 = vunpack.c.l.b16 %v3396
    %v3601 = vunpack.c.h.b16 %v3396
    %v3602 = vunpack.c.l.b16 %v3397
    %v3603 = vunpack.c.l.b16 %v3398
    %v3604 = vunpack.c.h.b16 %v3398
    %v3605 = vunpack.c.l.b16 %v3399
    %v3606 = vunpack.c.l.b16 %v3400
    %v3607 = vunpack.c.h.b16 %v3400
    %v3608 = vunpack.c.l.b16 %v3401
    %v3609 = vunpack.c.l.b16 %v3402
    %v3610 = vunpack.c.h.b16 %v3402
    %v3611 = vunpack.c.l.b16 %v3403
    %v3612 = vunpack.c.l.b16 %v3404
    %v3613 = vunpack.c.h.b16 %v3404
    %v3614 = vunpack.c.l.b16 %v3405
    %v3615 = vunpack.c.l.b16 %v3406
    %v3616 = vunpack.c.h.b16 %v3406
    %v3617 = vunpack.c.l.b16 %v3407
    %v3618 = vunpack.c.l.b16 %v3408
    %v3619 = vunpack.c.h.b16 %v3408
    %v3620 = vunpack.c.l.b16 %v3409
    %v3621 = vunpack.c.l.b16 %v3410
    %v3622 = vunpack.c.h.b16 %v3410
    %v3623 = vunpack.c.l.b16 %v3411
    %v3624 = vunpack.c.l.b16 %v3412
    %v3625 = vunpack.c.h.b16 %v3412
    %v3626 = vunpack.c.l.b16 %v3413
    %v3627 = vunpack.c.l.b16 %v3414
    %v3628 = vunpack.c.h.b16 %v3414
    %v3629 = vunpack.c.l.b16 %v3415
    %v3630 = vunpack.c.l.b16 %v3416
    %v3631 = vunpack.c.h.b16 %v3416
    %v3632 = vunpack.c.l.b16 %v3417
    %v3633 = vunpack.c.l.b16 %v3418
    %v3634 = vunpack.c.h.b16 %v3418
    %v3635 = vunpack.c.l.b16 %v3419
    %v3636 = vunpack.c.l.b16 %v3420
    %v3637 = vunpack.c.h.b16 %v3420
    %v3638 = vunpack.c.l.b16 %v3421
    %v3639 = vunpack.c.l.b16 %v3422
    %v3640 = vunpack.c.h.b16 %v3422
    %v3641 = vunpack.c.l.b16 %v3423
    %v3642 = vunpack.c.l.b16 %v3424
    %v3643 = vunpack.c.h.b16 %v3424
    %v3644 = vunpack.c.l.b16 %v3425
    %v3645 = vunpack.c.l.b16 %v3426
    %v3646 = vunpack.c.h.b16 %v3426
    %v3647 = vunpack.c.l.b16 %v3427
    %v3648 = vunpack.c.l.b16 %v3428
    %v3649 = vunpack.c.h.b16 %v3428
    %v3650 = vunpack.c.l.b16 %v3429
    %v3651 = vunpack.c.l.b16 %v3430
    %v3652 = vunpack.c.h.b16 %v3430
    %v3653 = vunpack.c.l.b16 %v3431
    %v3654 = vunpack.c.l.b16 %v3432
    %v3655 = vunpack.c.h.b16 %v3432
    %v3656 = vunpack.c.l.b16 %v3433
    %v3657 = vunpack.c.l.b16 %v3434
    %v3658 = vunpack.c.h.b16 %v3434
    %v3659 = vunpack.c.l.b16 %v3435
    %v3660 = vunpack.c.l.b16 %v3436
    %v3661 = vunpack.c.h.b16 %v3436
    %v3662 = vunpack.c.l.b16 %v3437
    %v3663 = vunpack.c.l.b16 %v3438
    %v3664 = vunpack.c.h.b16 %v3438
    %v3665 = vunpack.c.l.b16 %v3439
    %v3666 = vunpack.c.l.b16 %v3440
    %v3667 = vunpack.c.h.b16 %v3440
    %v3668 = vunpack.c.l.b16 %v3441
    %v3669 = vunpack.c.l.b16 %v3442
    %v3670 = vunpack.c.h.b16 %v3442
    %v3671 = vunpack.c.l.b16 %v3443
    %v3672 = vunpack.c.l.b16 %v3444
    %v3673 = vunpack.c.h.b16 %v3444
    %v3674 = vunpack.c.l.b16 %v3445
    %v3675 = vunpack.c.l.b16 %v3446
    %v3676 = vunpack.c.h.b16 %v3446
    %v3677 = vunpack.c.l.b16 %v3447
    %v3678 = vunpack.c.l.b16 %v3448
    %v3679 = vunpack.c.h.b16 %v3448
    %v3680 = vunpack.c.l.b16 %v3449
    %v3681 = vunpack.c.l.b16 %v3450
    %v3682 = vunpack.c.h.b16 %v3450
    %v3683 = vunpack.c.l.b16 %v3451
    %v3684 = vunpack.c.l.b16 %v3452
    %v3685 = vunpack.c.h.b16 %v3452
    %v3686 = vunpack.c.l.b16 %v3453
    %v3687 = vunpack.c.l.b16 %v3454
    %v3688 = vunpack.c.h.b16 %v3454
    %v3689 = vunpack.c.l.b16 %v3455
    %v3690 = vunpack.c.l.b16 %v3456
    %v3691 = vunpack.c.h.b16 %v3456
    %v3692 = vunpack.c.l.b16 %v3457
    %v3693 = vunpack.c.l.b16 %v3458
    %v3694 = vunpack.c.h.b16 %v3458
    %v3695 = vunpack.c.l.b16 %v3459
    %v3696 = vunpack.c.l.b16 %v3460
    %v3697 = vunpack.c.h.b16 %v3460
    %v3698 = vunpack.c.l.b16 %v3461
    %v3699 = vunpack.c.l.b16 %v3462
    %v3700 = vunpack.c.h.b16 %v3462
    %v3701 = vunpack.c.l.b16 %v3463
    %v3702 = vunpack.c.l.b16 %v3464
    %v3703 = vunpack.c.h.b16 %v3464
    %v3704 = vunpack.c.l.b16 %v3465
    %v3705 = vunpack.c.l.b16 %v3466
    %v3706 = vunpack.c.h.b16 %v3466
    %v3707 = vunpack.c.l.b16 %v3467
    %v3708 = vpack.c.b16 %v3567, %v3564
    %v3709 = vpack.c.b16 %v3568, %v3565
    %v3710 = vpack.c.b16 %v3569, %v3566
    %v3711 = vpack.c.b16 %v3573, %v3570
    %v3712 = vpack.c.b16 %v3574, %v3571
    %v3713 = vpack.c.b16 %v3575, %v3572
    %v3714 = vpack.c.b16 %v3579, %v3576
    %v3715 = vpack.c.b16 %v3580, %v3577
    %v3716 = vpack.c.b16 %v3581, %v3578
    %v3717 = vpack.c.b16 %v3585, %v3582
    %v3718 = vpack.c.b16 %v3586, %v3583
    %v3719 = vpack.c.b16 %v3587, %v3584
    %v3720 = vpack.c.b16 %v3591, %v3588
    %v3721 = vpack.c.b16 %v3592, %v3589
    %v3722 = vpack.c.b16 %v3593, %v3590
    %v3723 = vpack.c.b16 %v3597, %v3594
    %v3724 = vpack.c.b16 %v3598, %v3595
    %v3725 = vpack.c.b16 %v3599, %v3596
    %v3726 = vpack.c.b16 %v3603, %v3600
    %v3727 = vpack.c.b16 %v3604, %v3601
    %v3728 = vpack.c.b16 %v3605, %v3602
    %v3729 = vpack.c.b16 %v3609, %v3606
    %v3730 = vpack.c.b16 %v3610, %v3607
    %v3731 = vpack.c.b16 %v3611, %v3608
    %v3732 = vpack.c.b16 %v3615, %v3612
    %v3733 = vpack.c.b16 %v3616, %v3613
    %v3734 = vpack.c.b16 %v3617, %v3614
    %v3735 = vpack.c.b16 %v3621, %v3618
    %v3736 = vpack.c.b16 %v3622, %v3619
    %v3737 = vpack.c.b16 %v3623, %v3620
    %v3738 = vpack.c.b16 %v3627, %v3624
    %v3739 = vpack.c.b16 %v3628, %v3625
    %v3740 = vpack.c.b16 %v3629, %v3626
    %v3741 = vpack.c.b16 %v3633, %v3630
    %v3742 = vpack.c.b16 %v3634, %v3631
    %v3743 = vpack.c.b16 %v3635, %v3632
    %v3744 = vpack.c.b16 %v3639, %v3636
    %v3745 = vpack.c.b16 %v3640, %v3637
    %v3746 = vpack.c.b16 %v3641, %v3638
    %v3747 = vpack.c.b16 %v3645, %v3642
    %v3748 = vpack.c.b16 %v3646, %v3643
    %v3749 = vpack.c.b16 %v3647, %v3644
    %v3750 = vpack.c.b16 %v3651, %v3648
    %v3751 = vpack.c.b16 %v3652, %v3649
    %v3752 = vpack.c.b16 %v3653, %v3650
    %v3753 = vpack.c.b16 %v3657, %v3654
    %v3754 = vpack.c.b16 %v3658, %v3655
    %v3755 = vpack.c.b16 %v3659, %v3656
    %v3756 = vpack.c.b16 %v3663, %v3660
    %v3757 = vpack.c.b16 %v3664, %v3661
    %v3758 = vpack.c.b16 %v3665, %v3662
    %v3759 = vpack.c.b16 %v3669, %v3666
    %v3760 = vpack.c.b16 %v3670, %v3667
    %v3761 = vpack.c.b16 %v3671, %v3668
    %v3762 = vpack.c.b16 %v3675, %v3672
    %v3763 = vpack.c.b16 %v3676, %v3673
    %v3764 = vpack.c.b16 %v3677, %v3674
    %v3765 = vpack.c.b16 %v3681, %v3678
    %v3766 = vpack.c.b16 %v3682, %v3679
    %v3767 = vpack.c.b16 %v3683, %v3680
    %v3768 = vpack.c.b16 %v3687, %v3684
    %v3769 = vpack.c.b16 %v3688, %v3685
    %v3770 = vpack.c.b16 %v3689, %v3686
    %v3771 = vpack.c.b16 %v3693, %v3690
    %v3772 = vpack.c.b16 %v3694, %v3691
    %v3773 = vpack.c.b16 %v3695, %v3692
    %v3774 = vpack.c.b16 %v3699, %v3696
    %v3775 = vpack.c.b16 %v3700, %v3697
    %v3776 = vpack.c.b16 %v3701, %v3698
    %v3777 = vpack.c.b16 %v3705, %v3702
    %v3778 = vpack.c.b16 %v3706, %v3703
    %v3779 = vpack.c.b16 %v3707, %v3704
    %3852 = vmatpush.bf16.msra.mxu0 %v3729
    %3853 = vmatpush.bf16.msra.mxu0 %v3726
    %3854 = vmatpush.bf16.msra.mxu0 %v3723
    %3855 = vmatpush.bf16.msra.mxu0 %v3720
    %3856 = vmatpush.bf16.msra.mxu0 %v3717
    %3857 = vmatpush.bf16.msra.mxu0 %v3714
    %3858 = vmatpush.bf16.msra.mxu0 %v3711
    %3859 = vmatpush.bf16.msra.mxu0 %v3708
    %3860 = vmatmul.bf16.gmra.mxu0 %v2152
    %v3861 = vpop.f32.mrf.mxu0
    %v3862 = vadd.f32 0.0, %v3861
    %v3863 = vpop.f32.mrf.mxu0
    %v3864 = vadd.f32 0.0, %v3863
    %3865 = vdwg.mxu0
    %3866 = vmatpush.bf16.msra.mxu0 %v3753
    %3867 = vmatpush.bf16.msra.mxu0 %v3750
    %3868 = vmatpush.bf16.msra.mxu0 %v3747
    %3869 = vmatpush.bf16.msra.mxu0 %v3744
    %3870 = vmatpush.bf16.msra.mxu0 %v3741
    %3871 = vmatpush.bf16.msra.mxu0 %v3738
    %3872 = vmatpush.bf16.msra.mxu0 %v3735
    %3873 = vmatpush.bf16.msra.mxu0 %v3732
    %3874 = vmatmul.bf16.gmra.mxu0 %v2153
    %v3875 = vpop.f32.mrf.mxu0
    %v3876 = vadd.f32 %v3862, %v3875
    %v3877 = vpop.f32.mrf.mxu0
    %v3878 = vadd.f32 %v3864, %v3877
    %3879 = vdwg.mxu0
    %3880 = vmatpush.bf16.msra.mxu0 %v3777
    %3881 = vmatpush.bf16.msra.mxu0 %v3774
    %3882 = vmatpush.bf16.msra.mxu0 %v3771
    %3883 = vmatpush.bf16.msra.mxu0 %v3768
    %3884 = vmatpush.bf16.msra.mxu0 %v3765
    %3885 = vmatpush.bf16.msra.mxu0 %v3762
    %3886 = vmatpush.bf16.msra.mxu0 %v3759
    %3887 = vmatpush.bf16.msra.mxu0 %v3756
    %3888 = vmatmul.bf16.gmra.mxu0 %v2154
    %v3889 = vpop.f32.mrf.mxu0
    %v3890 = vadd.f32 %v3876, %v3889
    %v3891 = vpop.f32.mrf.mxu0
    %v3892 = vadd.f32 %v3878, %v3891
    %3893 = vdwg.mxu0
    %3894 = vmatpush.bf16.msra.mxu0 %v3730
    %3895 = vmatpush.bf16.msra.mxu0 %v3727
    %3896 = vmatpush.bf16.msra.mxu0 %v3724
    %3897 = vmatpush.bf16.msra.mxu0 %v3721
    %3898 = vmatpush.bf16.msra.mxu0 %v3718
    %3899 = vmatpush.bf16.msra.mxu0 %v3715
    %3900 = vmatpush.bf16.msra.mxu0 %v3712
    %3901 = vmatpush.bf16.msra.mxu0 %v3709
    %3902 = vmatmul.bf16.gmra.mxu0 %v2152
    %v3903 = vpop.f32.mrf.mxu0
    %v3904 = vadd.f32 0.0, %v3903
    %v3905 = vpop.f32.mrf.mxu0
    %v3906 = vadd.f32 0.0, %v3905
    %3907 = vdwg.mxu0
    %3908 = vmatpush.bf16.msra.mxu0 %v3754
    %3909 = vmatpush.bf16.msra.mxu0 %v3751
    %3910 = vmatpush.bf16.msra.mxu0 %v3748
    %3911 = vmatpush.bf16.msra.mxu0 %v3745
    %3912 = vmatpush.bf16.msra.mxu0 %v3742
    %3913 = vmatpush.bf16.msra.mxu0 %v3739
    %3914 = vmatpush.bf16.msra.mxu0 %v3736
    %3915 = vmatpush.bf16.msra.mxu0 %v3733
    %3916 = vmatmul.bf16.gmra.mxu0 %v2153
    %v3917 = vpop.f32.mrf.mxu0
    %v3918 = vadd.f32 %v3904, %v3917
    %v3919 = vpop.f32.mrf.mxu0
    %v3920 = vadd.f32 %v3906, %v3919
    %3921 = vdwg.mxu0
    %3922 = vmatpush.bf16.msra.mxu0 %v3778
    %3923 = vmatpush.bf16.msra.mxu0 %v3775
    %3924 = vmatpush.bf16.msra.mxu0 %v3772
    %3925 = vmatpush.bf16.msra.mxu0 %v3769
    %3926 = vmatpush.bf16.msra.mxu0 %v3766
    %3927 = vmatpush.bf16.msra.mxu0 %v3763
    %3928 = vmatpush.bf16.msra.mxu0 %v3760
    %3929 = vmatpush.bf16.msra.mxu0 %v3757
    %3930 = vmatmul.bf16.gmra.mxu0 %v2154
    %v3931 = vpop.f32.mrf.mxu0
    %v3932 = vadd.f32 %v3918, %v3931
    %v3933 = vpop.f32.mrf.mxu0
    %v3934 = vadd.f32 %v3920, %v3933
    %3935 = vdwg.mxu0
    %3936 = vmatpush.bf16.msra.mxu0 %v3731
    %3937 = vmatpush.bf16.msra.mxu0 %v3728
    %3938 = vmatpush.bf16.msra.mxu0 %v3725
    %3939 = vmatpush.bf16.msra.mxu0 %v3722
    %3940 = vmatpush.bf16.msra.mxu0 %v3719
    %3941 = vmatpush.bf16.msra.mxu0 %v3716
    %3942 = vmatpush.bf16.msra.mxu0 %v3713
    %3943 = vmatpush.bf16.msra.mxu0 %v3710
    %3944 = vmatmul.bf16.gmra.mxu0 %v2152
    %v3945 = vpop.f32.mrf.mxu0
    %v3946 = vadd.f32 0.0, %v3945
    %v3947 = vpop.f32.mrf.mxu0
    %v3948 = vadd.f32 0.0, %v3947
    %3949 = vdwg.mxu0
    %3950 = vmatpush.bf16.msra.mxu0 %v3755
    %3951 = vmatpush.bf16.msra.mxu0 %v3752
    %3952 = vmatpush.bf16.msra.mxu0 %v3749
    %3953 = vmatpush.bf16.msra.mxu0 %v3746
    %3954 = vmatpush.bf16.msra.mxu0 %v3743
    %3955 = vmatpush.bf16.msra.mxu0 %v3740
    %3956 = vmatpush.bf16.msra.mxu0 %v3737
    %3957 = vmatpush.bf16.msra.mxu0 %v3734
    %3958 = vmatmul.bf16.gmra.mxu0 %v2153
    %v3959 = vpop.f32.mrf.mxu0
    %v3960 = vadd.f32 %v3946, %v3959
    %v3961 = vpop.f32.mrf.mxu0
    %v3962 = vadd.f32 %v3948, %v3961
    %3963 = vdwg.mxu0
    %3964 = vmatpush.bf16.msra.mxu0 %v3779
    %3965 = vmatpush.bf16.msra.mxu0 %v3776
    %3966 = vmatpush.bf16.msra.mxu0 %v3773
    %3967 = vmatpush.bf16.msra.mxu0 %v3770
    %3968 = vmatpush.bf16.msra.mxu0 %v3767
    %3969 = vmatpush.bf16.msra.mxu0 %v3764
    %3970 = vmatpush.bf16.msra.mxu0 %v3761
    %3971 = vmatpush.bf16.msra.mxu0 %v3758
    %3972 = vmatmul.bf16.gmra.mxu0 %v2154
    %v3973 = vpop.f32.mrf.mxu0
    %v3974 = vadd.f32 %v3960, %v3973
    %v3975 = vpop.f32.mrf.mxu0
    %v3976 = vadd.f32 %v3962, %v3975
    %3977 = vdwg.mxu0
    %v3978 = vadd.f32 %v3283, %v3890
    %v3979 = vadd.f32 %v3325, %v3932
    %v3980 = vadd.f32 %v3367, %v3974
    %v3981 = vadd.f32 %v3285, %v3892
    %v3982 = vadd.f32 %v3327, %v3934
    %v3983 = vadd.f32 %v3369, %v3976
    %v3984 = vld [vmem:[%s5] sm:$0x7]
    %v3986 = vperm.slane %v3984, 0
    %v3987 = vperm.slane %v3984, 1
    %v3988 = vperm.slane %v3984, 2
    %v3992 = vadd.f32 %v3978, %v3986
    %v3993 = vadd.f32 %v3979, %v3987
    %v3994 = vadd.f32 %v3980, %v3988
    %v3995 = vadd.f32 %v3981, %v3986
    %v3996 = vadd.f32 %v3982, %v3987
    %v3997 = vadd.f32 %v3983, %v3988
    %v3998 = vld [vmem:[%s1] sm:$0xff]
    %v3999 = vld [vmem:[%s1 + $0x8] sm:$0xff]
    %v4000 = vld [vmem:[%s1 + $0x10] sm:$0xff]
    %v4001 = vld [vmem:[%s1 + $0x18] sm:$0xff]
    %v4002 = vadd.f32 %v3998, %v3999
    %v4003 = vadd.f32 %v4000, %v4001
    %v4004 = vmul.f32 %v4002, 0.5
    %v4005 = vmul.f32 %v4003, 0.5
    %v4006 = vpack.c.bf16 %v4005, %v4004
    %v4007 = vld [vmem:[%s6] sm:$0xff]
    %v4008 = vld [vmem:[%s6 + $0x8] sm:$0xf]
    %v4009 = vld [vmem:[%s6 + $0xc] sm:$0xff]
    %v4010 = vld [vmem:[%s6 + $0x14] sm:$0xf]
    %v4011 = vld [vmem:[%s6 + $0x18] sm:$0xff]
    %v4012 = vld [vmem:[%s6 + $0x20] sm:$0xf]
    %v4013 = vld [vmem:[%s6 + $0x24] sm:$0xff]
    %v4014 = vld [vmem:[%s6 + $0x2c] sm:$0xf]
    %v4015 = vld [vmem:[%s6 + $0x30] sm:$0xff]
    %v4016 = vld [vmem:[%s6 + $0x38] sm:$0xf]
    %v4017 = vld [vmem:[%s6 + $0x3c] sm:$0xff]
    %v4018 = vld [vmem:[%s6 + $0x44] sm:$0xf]
    %v4019 = vld [vmem:[%s6 + $0x48] sm:$0xff]
    %v4020 = vld [vmem:[%s6 + $0x50] sm:$0xf]
    %v4021 = vld [vmem:[%s6 + $0x54] sm:$0xff]
    %v4022 = vld [vmem:[%s6 + $0x5c] sm:$0xf]
    %v4023 = vld [vmem:[%s6 + $0x60] sm:$0xff]
    %v4024 = vld [vmem:[%s6 + $0x68] sm:$0xf]
    %v4025 = vld [vmem:[%s6 + $0x6c] sm:$0xff]
    %v4026 = vld [vmem:[%s6 + $0x74] sm:$0xf]
    %v4027 = vld [vmem:[%s6 + $0x78] sm:$0xff]
    %v4028 = vld [vmem:[%s6 + $0x80] sm:$0xf]
    %v4029 = vld [vmem:[%s6 + $0x84] sm:$0xff]
    %v4030 = vld [vmem:[%s6 + $0x8c] sm:$0xf]
    %v4031 = vld [vmem:[%s6 + $0x90] sm:$0xff]
    %v4032 = vld [vmem:[%s6 + $0x98] sm:$0xf]
    %v4033 = vld [vmem:[%s6 + $0x9c] sm:$0xff]
    %v4034 = vld [vmem:[%s6 + $0xa4] sm:$0xf]
    %v4035 = vld [vmem:[%s6 + $0xa8] sm:$0xff]
    %v4036 = vld [vmem:[%s6 + $0xb0] sm:$0xf]
    %v4037 = vld [vmem:[%s6 + $0xb4] sm:$0xff]
    %v4038 = vld [vmem:[%s6 + $0xbc] sm:$0xf]
    %v4039 = vld [vmem:[%s7] sm:$0x7]
    %v4041 = vperm.slane %v4039, 0
    %v4042 = vperm.slane %v4039, 1
    %v4043 = vperm.slane %v4039, 2
    %v4079 = vunpack.c.l.b16 %v4007
    %v4080 = vunpack.c.h.b16 %v4007
    %v4081 = vunpack.c.l.b16 %v4008
    %v4082 = vunpack.c.l.b16 %v4009
    %v4083 = vunpack.c.h.b16 %v4009
    %v4084 = vunpack.c.l.b16 %v4010
    %v4085 = vunpack.c.l.b16 %v4011
    %v4086 = vunpack.c.h.b16 %v4011
    %v4087 = vunpack.c.l.b16 %v4012
    %v4088 = vunpack.c.l.b16 %v4013
    %v4089 = vunpack.c.h.b16 %v4013
    %v4090 = vunpack.c.l.b16 %v4014
    %v4091 = vunpack.c.l.b16 %v4015
    %v4092 = vunpack.c.h.b16 %v4015
    %v4093 = vunpack.c.l.b16 %v4016
    %v4094 = vunpack.c.l.b16 %v4017
    %v4095 = vunpack.c.h.b16 %v4017
    %v4096 = vunpack.c.l.b16 %v4018
    %v4097 = vunpack.c.l.b16 %v4019
    %v4098 = vunpack.c.h.b16 %v4019
    %v4099 = vunpack.c.l.b16 %v4020
    %v4100 = vunpack.c.l.b16 %v4021
    %v4101 = vunpack.c.h.b16 %v4021
    %v4102 = vunpack.c.l.b16 %v4022
    %v4103 = vunpack.c.l.b16 %v4023
    %v4104 = vunpack.c.h.b16 %v4023
    %v4105 = vunpack.c.l.b16 %v4024
    %v4106 = vunpack.c.l.b16 %v4025
    %v4107 = vunpack.c.h.b16 %v4025
    %v4108 = vunpack.c.l.b16 %v4026
    %v4109 = vunpack.c.l.b16 %v4027
    %v4110 = vunpack.c.h.b16 %v4027
    %v4111 = vunpack.c.l.b16 %v4028
    %v4112 = vunpack.c.l.b16 %v4029
    %v4113 = vunpack.c.h.b16 %v4029
    %v4114 = vunpack.c.l.b16 %v4030
    %v4115 = vunpack.c.l.b16 %v4031
    %v4116 = vunpack.c.h.b16 %v4031
    %v4117 = vunpack.c.l.b16 %v4032
    %v4118 = vunpack.c.l.b16 %v4033
    %v4119 = vunpack.c.h.b16 %v4033
    %v4120 = vunpack.c.l.b16 %v4034
    %v4121 = vunpack.c.l.b16 %v4035
    %v4122 = vunpack.c.h.b16 %v4035
    %v4123 = vunpack.c.l.b16 %v4036
    %v4124 = vunpack.c.l.b16 %v4037
    %v4125 = vunpack.c.h.b16 %v4037
    %v4126 = vunpack.c.l.b16 %v4038
    %v4127 = vpack.c.b16 %v4082, %v4079
    %v4128 = vpack.c.b16 %v4083, %v4080
    %v4129 = vpack.c.b16 %v4084, %v4081
    %v4130 = vpack.c.b16 %v4088, %v4085
    %v4131 = vpack.c.b16 %v4089, %v4086
    %v4132 = vpack.c.b16 %v4090, %v4087
    %v4133 = vpack.c.b16 %v4094, %v4091
    %v4134 = vpack.c.b16 %v4095, %v4092
    %v4135 = vpack.c.b16 %v4096, %v4093
    %v4136 = vpack.c.b16 %v4100, %v4097
    %v4137 = vpack.c.b16 %v4101, %v4098
    %v4138 = vpack.c.b16 %v4102, %v4099
    %v4139 = vpack.c.b16 %v4106, %v4103
    %v4140 = vpack.c.b16 %v4107, %v4104
    %v4141 = vpack.c.b16 %v4108, %v4105
    %v4142 = vpack.c.b16 %v4112, %v4109
    %v4143 = vpack.c.b16 %v4113, %v4110
    %v4144 = vpack.c.b16 %v4114, %v4111
    %v4145 = vpack.c.b16 %v4118, %v4115
    %v4146 = vpack.c.b16 %v4119, %v4116
    %v4147 = vpack.c.b16 %v4120, %v4117
    %v4148 = vpack.c.b16 %v4124, %v4121
    %v4149 = vpack.c.b16 %v4125, %v4122
    %v4150 = vpack.c.b16 %v4126, %v4123
    %4175 = vmatpush.bf16.msra.mxu0 %v4148
    %4176 = vmatpush.bf16.msra.mxu0 %v4145
    %4177 = vmatpush.bf16.msra.mxu0 %v4142
    %4178 = vmatpush.bf16.msra.mxu0 %v4139
    %4179 = vmatpush.bf16.msra.mxu0 %v4136
    %4180 = vmatpush.bf16.msra.mxu0 %v4133
    %4181 = vmatpush.bf16.msra.mxu0 %v4130
    %4182 = vmatpush.bf16.msra.mxu0 %v4127
    %4183 = vmatmul.bf16.gmra.mxu0 %v4006
    %v4184 = vpop.f32.mrf.mxu0
    %v4185 = vadd.f32 %v4041, %v4184
    %v4186 = vpop.f32.mrf.mxu0
    %v4187 = vadd.f32 %v4041, %v4186
    %4188 = vdwg.mxu0
    %4189 = vmatpush.bf16.msra.mxu0 %v4149
    %4190 = vmatpush.bf16.msra.mxu0 %v4146
    %4191 = vmatpush.bf16.msra.mxu0 %v4143
    %4192 = vmatpush.bf16.msra.mxu0 %v4140
    %4193 = vmatpush.bf16.msra.mxu0 %v4137
    %4194 = vmatpush.bf16.msra.mxu0 %v4134
    %4195 = vmatpush.bf16.msra.mxu0 %v4131
    %4196 = vmatpush.bf16.msra.mxu0 %v4128
    %4197 = vmatmul.bf16.gmra.mxu0 %v4006
    %v4198 = vpop.f32.mrf.mxu0
    %v4199 = vadd.f32 %v4042, %v4198
    %v4200 = vpop.f32.mrf.mxu0
    %v4201 = vadd.f32 %v4042, %v4200
    %4202 = vdwg.mxu0
    %4203 = vmatpush.bf16.msra.mxu0 %v4150
    %4204 = vmatpush.bf16.msra.mxu0 %v4147
    %4205 = vmatpush.bf16.msra.mxu0 %v4144
    %4206 = vmatpush.bf16.msra.mxu0 %v4141
    %4207 = vmatpush.bf16.msra.mxu0 %v4138
    %4208 = vmatpush.bf16.msra.mxu0 %v4135
    %4209 = vmatpush.bf16.msra.mxu0 %v4132
    %4210 = vmatpush.bf16.msra.mxu0 %v4129
    %4211 = vmatmul.bf16.gmra.mxu0 %v4006
    %v4212 = vpop.f32.mrf.mxu0
    %v4213 = vadd.f32 %v4043, %v4212
    %v4214 = vpop.f32.mrf.mxu0
    %v4215 = vadd.f32 %v4043, %v4214
    %4216 = vdwg.mxu0
    %v4217 = vpack.c.bf16 %v3995, %v3992
    %v4218 = vpack.c.bf16 %v3996, %v3993
    %v4219 = vpack.c.bf16 %v3997, %v3994
    %v4220 = vld [vmem:[#allocation6] sm:$0xff]
    %v4221 = vld [vmem:[#allocation6 + $0x8] sm:$0xff]
    %v4222 = vld [vmem:[#allocation6 + $0x10] sm:$0xff]
    %v4223 = vld [vmem:[#allocation6 + $0x18] sm:$0xff]
    %v4224 = vld [vmem:[#allocation6 + $0x20] sm:$0xff]
    %v4225 = vld [vmem:[#allocation6 + $0x28] sm:$0xff]
    %v4226 = vld [vmem:[#allocation6 + $0x30] sm:$0xff]
    %v4227 = vld [vmem:[#allocation6 + $0x38] sm:$0xff]
    %v4228 = vld [vmem:[#allocation6 + $0x40] sm:$0xff]
    %v4229 = vld [vmem:[#allocation6 + $0x48] sm:$0xff]
    %v4230 = vld [vmem:[#allocation6 + $0x50] sm:$0xff]
    %v4231 = vld [vmem:[#allocation6 + $0x58] sm:$0xff]
    %v4232 = vld [vmem:[#allocation6 + $0x60] sm:$0xff]
    %v4233 = vld [vmem:[#allocation6 + $0x68] sm:$0xff]
    %v4234 = vld [vmem:[#allocation6 + $0x70] sm:$0xff]
    %v4235 = vld [vmem:[#allocation6 + $0x78] sm:$0xff]
    %v4236 = vld [vmem:[#allocation6 + $0x80] sm:$0xff]
    %v4237 = vld [vmem:[#allocation6 + $0x88] sm:$0xff]
    %v4238 = vld [vmem:[#allocation6 + $0x90] sm:$0xff]
    %v4239 = vld [vmem:[#allocation6 + $0x98] sm:$0xff]
    %v4240 = vld [vmem:[#allocation6 + $0xa0] sm:$0xff]
    %v4241 = vld [vmem:[#allocation6 + $0xa8] sm:$0xff]
    %v4242 = vld [vmem:[#allocation6 + $0xb0] sm:$0xff]
    %v4243 = vld [vmem:[#allocation6 + $0xb8] sm:$0xff]
    %v4244 = vld [vmem:[#allocation6 + $0xc0] sm:$0xff]
    %v4245 = vld [vmem:[#allocation6 + $0xc8] sm:$0xff]
    %v4246 = vld [vmem:[#allocation6 + $0xd0] sm:$0xff]
    %v4247 = vld [vmem:[#allocation6 + $0xd8] sm:$0xff]
    %v4248 = vld [vmem:[#allocation6 + $0xe0] sm:$0xff]
    %v4249 = vld [vmem:[#allocation6 + $0xe8] sm:$0xff]
    %v4250 = vld [vmem:[#allocation6 + $0xf0] sm:$0xff]
    %v4251 = vld [vmem:[#allocation6 + $0xf8] sm:$0xff]
    %v4252 = vld [vmem:[#allocation6 + $0x100] sm:$0xff]
    %v4253 = vld [vmem:[#allocation6 + $0x108] sm:$0xff]
    %v4254 = vld [vmem:[#allocation6 + $0x110] sm:$0xff]
    %v4255 = vld [vmem:[#allocation6 + $0x118] sm:$0xff]
    %v4256 = vld [vmem:[#allocation6 + $0x120] sm:$0xff]
    %v4257 = vld [vmem:[#allocation6 + $0x128] sm:$0xff]
    %v4258 = vld [vmem:[#allocation6 + $0x130] sm:$0xff]
    %v4259 = vld [vmem:[#allocation6 + $0x138] sm:$0xff]
    %v4260 = vld [vmem:[#allocation6 + $0x140] sm:$0xff]
    %v4261 = vld [vmem:[#allocation6 + $0x148] sm:$0xff]
    %v4262 = vld [vmem:[#allocation6 + $0x150] sm:$0xff]
    %v4263 = vld [vmem:[#allocation6 + $0x158] sm:$0xff]
    %v4264 = vld [vmem:[#allocation6 + $0x160] sm:$0xff]
    %v4265 = vld [vmem:[#allocation6 + $0x168] sm:$0xff]
    %v4266 = vld [vmem:[#allocation6 + $0x170] sm:$0xff]
    %v4267 = vld [vmem:[#allocation6 + $0x178] sm:$0xff]
    %v4268 = vld [vmem:[%s9] sm:$0x3]
    %v4270 = vperm.slane %v4268, 0
    %v4271 = vperm.slane %v4268, 1
    %v4322 = vunpack.c.l.b16 %v4220
    %v4323 = vunpack.c.h.b16 %v4220
    %v4324 = vunpack.c.l.b16 %v4221
    %v4325 = vunpack.c.h.b16 %v4221
    %v4326 = vunpack.c.l.b16 %v4222
    %v4327 = vunpack.c.h.b16 %v4222
    %v4328 = vunpack.c.l.b16 %v4223
    %v4329 = vunpack.c.h.b16 %v4223
    %v4330 = vunpack.c.l.b16 %v4224
    %v4331 = vunpack.c.h.b16 %v4224
    %v4332 = vunpack.c.l.b16 %v4225
    %v4333 = vunpack.c.h.b16 %v4225
    %v4334 = vunpack.c.l.b16 %v4226
    %v4335 = vunpack.c.h.b16 %v4226
    %v4336 = vunpack.c.l.b16 %v4227
    %v4337 = vunpack.c.h.b16 %v4227
    %v4338 = vunpack.c.l.b16 %v4228
    %v4339 = vunpack.c.h.b16 %v4228
    %v4340 = vunpack.c.l.b16 %v4229
    %v4341 = vunpack.c.h.b16 %v4229
    %v4342 = vunpack.c.l.b16 %v4230
    %v4343 = vunpack.c.h.b16 %v4230
    %v4344 = vunpack.c.l.b16 %v4231
    %v4345 = vunpack.c.h.b16 %v4231
    %v4346 = vunpack.c.l.b16 %v4232
    %v4347 = vunpack.c.h.b16 %v4232
    %v4348 = vunpack.c.l.b16 %v4233
    %v4349 = vunpack.c.h.b16 %v4233
    %v4350 = vunpack.c.l.b16 %v4234
    %v4351 = vunpack.c.h.b16 %v4234
    %v4352 = vunpack.c.l.b16 %v4235
    %v4353 = vunpack.c.h.b16 %v4235
    %v4354 = vunpack.c.l.b16 %v4236
    %v4355 = vunpack.c.h.b16 %v4236
    %v4356 = vunpack.c.l.b16 %v4237
    %v4357 = vunpack.c.h.b16 %v4237
    %v4358 = vunpack.c.l.b16 %v4238
    %v4359 = vunpack.c.h.b16 %v4238
    %v4360 = vunpack.c.l.b16 %v4239
    %v4361 = vunpack.c.h.b16 %v4239
    %v4362 = vunpack.c.l.b16 %v4240
    %v4363 = vunpack.c.h.b16 %v4240
    %v4364 = vunpack.c.l.b16 %v4241
    %v4365 = vunpack.c.h.b16 %v4241
    %v4366 = vunpack.c.l.b16 %v4242
    %v4367 = vunpack.c.h.b16 %v4242
    %v4368 = vunpack.c.l.b16 %v4243
    %v4369 = vunpack.c.h.b16 %v4243
    %v4370 = vunpack.c.l.b16 %v4244
    %v4371 = vunpack.c.h.b16 %v4244
    %v4372 = vunpack.c.l.b16 %v4245
    %v4373 = vunpack.c.h.b16 %v4245
    %v4374 = vunpack.c.l.b16 %v4246
    %v4375 = vunpack.c.h.b16 %v4246
    %v4376 = vunpack.c.l.b16 %v4247
    %v4377 = vunpack.c.h.b16 %v4247
    %v4378 = vunpack.c.l.b16 %v4248
    %v4379 = vunpack.c.h.b16 %v4248
    %v4380 = vunpack.c.l.b16 %v4249
    %v4381 = vunpack.c.h.b16 %v4249
    %v4382 = vunpack.c.l.b16 %v4250
    %v4383 = vunpack.c.h.b16 %v4250
    %v4384 = vunpack.c.l.b16 %v4251
    %v4385 = vunpack.c.h.b16 %v4251
    %v4386 = vunpack.c.l.b16 %v4252
    %v4387 = vunpack.c.h.b16 %v4252
    %v4388 = vunpack.c.l.b16 %v4253
    %v4389 = vunpack.c.h.b16 %v4253
    %v4390 = vunpack.c.l.b16 %v4254
    %v4391 = vunpack.c.h.b16 %v4254
    %v4392 = vunpack.c.l.b16 %v4255
    %v4393 = vunpack.c.h.b16 %v4255
    %v4394 = vunpack.c.l.b16 %v4256
    %v4395 = vunpack.c.h.b16 %v4256
    %v4396 = vunpack.c.l.b16 %v4257
    %v4397 = vunpack.c.h.b16 %v4257
    %v4398 = vunpack.c.l.b16 %v4258
    %v4399 = vunpack.c.h.b16 %v4258
    %v4400 = vunpack.c.l.b16 %v4259
    %v4401 = vunpack.c.h.b16 %v4259
    %v4402 = vunpack.c.l.b16 %v4260
    %v4403 = vunpack.c.h.b16 %v4260
    %v4404 = vunpack.c.l.b16 %v4261
    %v4405 = vunpack.c.h.b16 %v4261
    %v4406 = vunpack.c.l.b16 %v4262
    %v4407 = vunpack.c.h.b16 %v4262
    %v4408 = vunpack.c.l.b16 %v4263
    %v4409 = vunpack.c.h.b16 %v4263
    %v4410 = vunpack.c.l.b16 %v4264
    %v4411 = vunpack.c.h.b16 %v4264
    %v4412 = vunpack.c.l.b16 %v4265
    %v4413 = vunpack.c.h.b16 %v4265
    %v4414 = vunpack.c.l.b16 %v4266
    %v4415 = vunpack.c.h.b16 %v4266
    %v4416 = vunpack.c.l.b16 %v4267
    %v4417 = vunpack.c.h.b16 %v4267
    %v4418 = vpack.c.b16 %v4324, %v4322
    %v4419 = vpack.c.b16 %v4325, %v4323
    %v4420 = vpack.c.b16 %v4328, %v4326
    %v4421 = vpack.c.b16 %v4329, %v4327
    %v4422 = vpack.c.b16 %v4332, %v4330
    %v4423 = vpack.c.b16 %v4333, %v4331
    %v4424 = vpack.c.b16 %v4336, %v4334
    %v4425 = vpack.c.b16 %v4337, %v4335
    %v4426 = vpack.c.b16 %v4340, %v4338
    %v4427 = vpack.c.b16 %v4341, %v4339
    %v4428 = vpack.c.b16 %v4344, %v4342
    %v4429 = vpack.c.b16 %v4345, %v4343
    %v4430 = vpack.c.b16 %v4348, %v4346
    %v4431 = vpack.c.b16 %v4349, %v4347
    %v4432 = vpack.c.b16 %v4352, %v4350
    %v4433 = vpack.c.b16 %v4353, %v4351
    %v4434 = vpack.c.b16 %v4356, %v4354
    %v4435 = vpack.c.b16 %v4357, %v4355
    %v4436 = vpack.c.b16 %v4360, %v4358
    %v4437 = vpack.c.b16 %v4361, %v4359
    %v4438 = vpack.c.b16 %v4364, %v4362
    %v4439 = vpack.c.b16 %v4365, %v4363
    %v4440 = vpack.c.b16 %v4368, %v4366
    %v4441 = vpack.c.b16 %v4369, %v4367
    %v4442 = vpack.c.b16 %v4372, %v4370
    %v4443 = vpack.c.b16 %v4373, %v4371
    %v4444 = vpack.c.b16 %v4376, %v4374
    %v4445 = vpack.c.b16 %v4377, %v4375
    %v4446 = vpack.c.b16 %v4380, %v4378
    %v4447 = vpack.c.b16 %v4381, %v4379
    %v4448 = vpack.c.b16 %v4384, %v4382
    %v4449 = vpack.c.b16 %v4385, %v4383
    %v4450 = vpack.c.b16 %v4388, %v4386
    %v4451 = vpack.c.b16 %v4389, %v4387
    %v4452 = vpack.c.b16 %v4392, %v4390
    %v4453 = vpack.c.b16 %v4393, %v4391
    %v4454 = vpack.c.b16 %v4396, %v4394
    %v4455 = vpack.c.b16 %v4397, %v4395
    %v4456 = vpack.c.b16 %v4400, %v4398
    %v4457 = vpack.c.b16 %v4401, %v4399
    %v4458 = vpack.c.b16 %v4404, %v4402
    %v4459 = vpack.c.b16 %v4405, %v4403
    %v4460 = vpack.c.b16 %v4408, %v4406
    %v4461 = vpack.c.b16 %v4409, %v4407
    %v4462 = vpack.c.b16 %v4412, %v4410
    %v4463 = vpack.c.b16 %v4413, %v4411
    %v4464 = vpack.c.b16 %v4416, %v4414
    %v4465 = vpack.c.b16 %v4417, %v4415
    %4514 = vmatpush.bf16.msra.mxu0 %v4432
    %4515 = vmatpush.bf16.msra.mxu0 %v4430
    %4516 = vmatpush.bf16.msra.mxu0 %v4428
    %4517 = vmatpush.bf16.msra.mxu0 %v4426
    %4518 = vmatpush.bf16.msra.mxu0 %v4424
    %4519 = vmatpush.bf16.msra.mxu0 %v4422
    %4520 = vmatpush.bf16.msra.mxu0 %v4420
    %4521 = vmatpush.bf16.msra.mxu0 %v4418
    %4522 = vmatmul.bf16.gmra.mxu0 %v4217
    %v4523 = vpop.f32.mrf.mxu0
    %v4524 = vadd.f32 %v4270, %v4523
    %v4525 = vpop.f32.mrf.mxu0
    %v4526 = vadd.f32 %v4270, %v4525
    %4527 = vdwg.mxu0
    %4528 = vmatpush.bf16.msra.mxu0 %v4448
    %4529 = vmatpush.bf16.msra.mxu0 %v4446
    %4530 = vmatpush.bf16.msra.mxu0 %v4444
    %4531 = vmatpush.bf16.msra.mxu0 %v4442
    %4532 = vmatpush.bf16.msra.mxu0 %v4440
    %4533 = vmatpush.bf16.msra.mxu0 %v4438
    %4534 = vmatpush.bf16.msra.mxu0 %v4436
    %4535 = vmatpush.bf16.msra.mxu0 %v4434
    %4536 = vmatmul.bf16.gmra.mxu0 %v4218
    %v4537 = vpop.f32.mrf.mxu0
    %v4538 = vadd.f32 %v4524, %v4537
    %v4539 = vpop.f32.mrf.mxu0
    %v4540 = vadd.f32 %v4526, %v4539
    %4541 = vdwg.mxu0
    %4542 = vmatpush.bf16.msra.mxu0 %v4464
    %4543 = vmatpush.bf16.msra.mxu0 %v4462
    %4544 = vmatpush.bf16.msra.mxu0 %v4460
    %4545 = vmatpush.bf16.msra.mxu0 %v4458
    %4546 = vmatpush.bf16.msra.mxu0 %v4456
    %4547 = vmatpush.bf16.msra.mxu0 %v4454
    %4548 = vmatpush.bf16.msra.mxu0 %v4452
    %4549 = vmatpush.bf16.msra.mxu0 %v4450
    %4550 = vmatmul.bf16.gmra.mxu0 %v4219
    %v4551 = vpop.f32.mrf.mxu0
    %v4552 = vadd.f32 %v4538, %v4551
    %v4553 = vpop.f32.mrf.mxu0
    %v4554 = vadd.f32 %v4540, %v4553
    %4555 = vdwg.mxu0
    %4556 = vmatpush.bf16.msra.mxu0 %v4433
    %4557 = vmatpush.bf16.msra.mxu0 %v4431
    %4558 = vmatpush.bf16.msra.mxu0 %v4429
    %4559 = vmatpush.bf16.msra.mxu0 %v4427
    %4560 = vmatpush.bf16.msra.mxu0 %v4425
    %4561 = vmatpush.bf16.msra.mxu0 %v4423
    %4562 = vmatpush.bf16.msra.mxu0 %v4421
    %4563 = vmatpush.bf16.msra.mxu0 %v4419
    %4564 = vmatmul.bf16.gmra.mxu0 %v4217
    %v4565 = vpop.f32.mrf.mxu0
    %v4566 = vadd.f32 %v4271, %v4565
    %v4567 = vpop.f32.mrf.mxu0
    %v4568 = vadd.f32 %v4271, %v4567
    %4569 = vdwg.mxu0
    %4570 = vmatpush.bf16.msra.mxu0 %v4449
    %4571 = vmatpush.bf16.msra.mxu0 %v4447
    %4572 = vmatpush.bf16.msra.mxu0 %v4445
    %4573 = vmatpush.bf16.msra.mxu0 %v4443
    %4574 = vmatpush.bf16.msra.mxu0 %v4441
    %4575 = vmatpush.bf16.msra.mxu0 %v4439
    %4576 = vmatpush.bf16.msra.mxu0 %v4437
    %4577 = vmatpush.bf16.msra.mxu0 %v4435
    %4578 = vmatmul.bf16.gmra.mxu0 %v4218
    %v4579 = vpop.f32.mrf.mxu0
    %v4580 = vadd.f32 %v4566, %v4579
    %v4581 = vpop.f32.mrf.mxu0
    %v4582 = vadd.f32 %v4568, %v4581
    %4583 = vdwg.mxu0
    %4584 = vmatpush.bf16.msra.mxu0 %v4465
    %4585 = vmatpush.bf16.msra.mxu0 %v4463
    %4586 = vmatpush.bf16.msra.mxu0 %v4461
    %4587 = vmatpush.bf16.msra.mxu0 %v4459
    %4588 = vmatpush.bf16.msra.mxu0 %v4457
    %4589 = vmatpush.bf16.msra.mxu0 %v4455
    %4590 = vmatpush.bf16.msra.mxu0 %v4453
    %4591 = vmatpush.bf16.msra.mxu0 %v4451
    %4592 = vmatmul.bf16.gmra.mxu0 %v4219
    %v4593 = vpop.f32.mrf.mxu0
    %v4594 = vadd.f32 %v4580, %v4593
    %v4595 = vpop.f32.mrf.mxu0
    %v4596 = vadd.f32 %v4582, %v4595
    %4597 = vdwg.mxu0
    %v4598 = vpack.c.bf16 %v4187, %v4185
    %v4599 = vpack.c.bf16 %v4201, %v4199
    %v4600 = vpack.c.bf16 %v4215, %v4213
    %v4601 = vld [vmem:[#allocation7] sm:$0xff]
    %v4602 = vld [vmem:[#allocation7 + $0x8] sm:$0xff]
    %v4603 = vld [vmem:[#allocation7 + $0x10] sm:$0xff]
    %v4604 = vld [vmem:[#allocation7 + $0x18] sm:$0xff]
    %v4605 = vld [vmem:[#allocation7 + $0x20] sm:$0xff]
    %v4606 = vld [vmem:[#allocation7 + $0x28] sm:$0xff]
    %v4607 = vld [vmem:[#allocation7 + $0x30] sm:$0xff]
    %v4608 = vld [vmem:[#allocation7 + $0x38] sm:$0xff]
    %v4609 = vld [vmem:[#allocation7 + $0x40] sm:$0xff]
    %v4610 = vld [vmem:[#allocation7 + $0x48] sm:$0xff]
    %v4611 = vld [vmem:[#allocation7 + $0x50] sm:$0xff]
    %v4612 = vld [vmem:[#allocation7 + $0x58] sm:$0xff]
    %v4613 = vld [vmem:[#allocation7 + $0x60] sm:$0xff]
    %v4614 = vld [vmem:[#allocation7 + $0x68] sm:$0xff]
    %v4615 = vld [vmem:[#allocation7 + $0x70] sm:$0xff]
    %v4616 = vld [vmem:[#allocation7 + $0x78] sm:$0xff]
    %v4617 = vld [vmem:[#allocation7 + $0x80] sm:$0xff]
    %v4618 = vld [vmem:[#allocation7 + $0x88] sm:$0xff]
    %v4619 = vld [vmem:[#allocation7 + $0x90] sm:$0xff]
    %v4620 = vld [vmem:[#allocation7 + $0x98] sm:$0xff]
    %v4621 = vld [vmem:[#allocation7 + $0xa0] sm:$0xff]
    %v4622 = vld [vmem:[#allocation7 + $0xa8] sm:$0xff]
    %v4623 = vld [vmem:[#allocation7 + $0xb0] sm:$0xff]
    %v4624 = vld [vmem:[#allocation7 + $0xb8] sm:$0xff]
    %v4625 = vld [vmem:[#allocation7 + $0xc0] sm:$0xff]
    %v4626 = vld [vmem:[#allocation7 + $0xc8] sm:$0xff]
    %v4627 = vld [vmem:[#allocation7 + $0xd0] sm:$0xff]
    %v4628 = vld [vmem:[#allocation7 + $0xd8] sm:$0xff]
    %v4629 = vld [vmem:[#allocation7 + $0xe0] sm:$0xff]
    %v4630 = vld [vmem:[#allocation7 + $0xe8] sm:$0xff]
    %v4631 = vld [vmem:[#allocation7 + $0xf0] sm:$0xff]
    %v4632 = vld [vmem:[#allocation7 + $0xf8] sm:$0xff]
    %v4633 = vld [vmem:[#allocation7 + $0x100] sm:$0xff]
    %v4634 = vld [vmem:[#allocation7 + $0x108] sm:$0xff]
    %v4635 = vld [vmem:[#allocation7 + $0x110] sm:$0xff]
    %v4636 = vld [vmem:[#allocation7 + $0x118] sm:$0xff]
    %v4637 = vld [vmem:[#allocation7 + $0x120] sm:$0xff]
    %v4638 = vld [vmem:[#allocation7 + $0x128] sm:$0xff]
    %v4639 = vld [vmem:[#allocation7 + $0x130] sm:$0xff]
    %v4640 = vld [vmem:[#allocation7 + $0x138] sm:$0xff]
    %v4641 = vld [vmem:[#allocation7 + $0x140] sm:$0xff]
    %v4642 = vld [vmem:[#allocation7 + $0x148] sm:$0xff]
    %v4643 = vld [vmem:[#allocation7 + $0x150] sm:$0xff]
    %v4644 = vld [vmem:[#allocation7 + $0x158] sm:$0xff]
    %v4645 = vld [vmem:[#allocation7 + $0x160] sm:$0xff]
    %v4646 = vld [vmem:[#allocation7 + $0x168] sm:$0xff]
    %v4647 = vld [vmem:[#allocation7 + $0x170] sm:$0xff]
    %v4648 = vld [vmem:[#allocation7 + $0x178] sm:$0xff]
    %v4649 = vld [vmem:[%s11] sm:$0x3]
    %v4651 = vperm.slane %v4649, 0
    %v4652 = vperm.slane %v4649, 1
    %v4703 = vunpack.c.l.b16 %v4601
    %v4704 = vunpack.c.h.b16 %v4601
    %v4705 = vunpack.c.l.b16 %v4602
    %v4706 = vunpack.c.h.b16 %v4602
    %v4707 = vunpack.c.l.b16 %v4603
    %v4708 = vunpack.c.h.b16 %v4603
    %v4709 = vunpack.c.l.b16 %v4604
    %v4710 = vunpack.c.h.b16 %v4604
    %v4711 = vunpack.c.l.b16 %v4605
    %v4712 = vunpack.c.h.b16 %v4605
    %v4713 = vunpack.c.l.b16 %v4606
    %v4714 = vunpack.c.h.b16 %v4606
    %v4715 = vunpack.c.l.b16 %v4607
    %v4716 = vunpack.c.h.b16 %v4607
    %v4717 = vunpack.c.l.b16 %v4608
    %v4718 = vunpack.c.h.b16 %v4608
    %v4719 = vunpack.c.l.b16 %v4609
    %v4720 = vunpack.c.h.b16 %v4609
    %v4721 = vunpack.c.l.b16 %v4610
    %v4722 = vunpack.c.h.b16 %v4610
    %v4723 = vunpack.c.l.b16 %v4611
    %v4724 = vunpack.c.h.b16 %v4611
    %v4725 = vunpack.c.l.b16 %v4612
    %v4726 = vunpack.c.h.b16 %v4612
    %v4727 = vunpack.c.l.b16 %v4613
    %v4728 = vunpack.c.h.b16 %v4613
    %v4729 = vunpack.c.l.b16 %v4614
    %v4730 = vunpack.c.h.b16 %v4614
    %v4731 = vunpack.c.l.b16 %v4615
    %v4732 = vunpack.c.h.b16 %v4615
    %v4733 = vunpack.c.l.b16 %v4616
    %v4734 = vunpack.c.h.b16 %v4616
    %v4735 = vunpack.c.l.b16 %v4617
    %v4736 = vunpack.c.h.b16 %v4617
    %v4737 = vunpack.c.l.b16 %v4618
    %v4738 = vunpack.c.h.b16 %v4618
    %v4739 = vunpack.c.l.b16 %v4619
    %v4740 = vunpack.c.h.b16 %v4619
    %v4741 = vunpack.c.l.b16 %v4620
    %v4742 = vunpack.c.h.b16 %v4620
    %v4743 = vunpack.c.l.b16 %v4621
    %v4744 = vunpack.c.h.b16 %v4621
    %v4745 = vunpack.c.l.b16 %v4622
    %v4746 = vunpack.c.h.b16 %v4622
    %v4747 = vunpack.c.l.b16 %v4623
    %v4748 = vunpack.c.h.b16 %v4623
    %v4749 = vunpack.c.l.b16 %v4624
    %v4750 = vunpack.c.h.b16 %v4624
    %v4751 = vunpack.c.l.b16 %v4625
    %v4752 = vunpack.c.h.b16 %v4625
    %v4753 = vunpack.c.l.b16 %v4626
    %v4754 = vunpack.c.h.b16 %v4626
    %v4755 = vunpack.c.l.b16 %v4627
    %v4756 = vunpack.c.h.b16 %v4627
    %v4757 = vunpack.c.l.b16 %v4628
    %v4758 = vunpack.c.h.b16 %v4628
    %v4759 = vunpack.c.l.b16 %v4629
    %v4760 = vunpack.c.h.b16 %v4629
    %v4761 = vunpack.c.l.b16 %v4630
    %v4762 = vunpack.c.h.b16 %v4630
    %v4763 = vunpack.c.l.b16 %v4631
    %v4764 = vunpack.c.h.b16 %v4631
    %v4765 = vunpack.c.l.b16 %v4632
    %v4766 = vunpack.c.h.b16 %v4632
    %v4767 = vunpack.c.l.b16 %v4633
    %v4768 = vunpack.c.h.b16 %v4633
    %v4769 = vunpack.c.l.b16 %v4634
    %v4770 = vunpack.c.h.b16 %v4634
    %v4771 = vunpack.c.l.b16 %v4635
    %v4772 = vunpack.c.h.b16 %v4635
    %v4773 = vunpack.c.l.b16 %v4636
    %v4774 = vunpack.c.h.b16 %v4636
    %v4775 = vunpack.c.l.b16 %v4637
    %v4776 = vunpack.c.h.b16 %v4637
    %v4777 = vunpack.c.l.b16 %v4638
    %v4778 = vunpack.c.h.b16 %v4638
    %v4779 = vunpack.c.l.b16 %v4639
    %v4780 = vunpack.c.h.b16 %v4639
    %v4781 = vunpack.c.l.b16 %v4640
    %v4782 = vunpack.c.h.b16 %v4640
    %v4783 = vunpack.c.l.b16 %v4641
    %v4784 = vunpack.c.h.b16 %v4641
    %v4785 = vunpack.c.l.b16 %v4642
    %v4786 = vunpack.c.h.b16 %v4642
    %v4787 = vunpack.c.l.b16 %v4643
    %v4788 = vunpack.c.h.b16 %v4643
    %v4789 = vunpack.c.l.b16 %v4644
    %v4790 = vunpack.c.h.b16 %v4644
    %v4791 = vunpack.c.l.b16 %v4645
    %v4792 = vunpack.c.h.b16 %v4645
    %v4793 = vunpack.c.l.b16 %v4646
    %v4794 = vunpack.c.h.b16 %v4646
    %v4795 = vunpack.c.l.b16 %v4647
    %v4796 = vunpack.c.h.b16 %v4647
    %v4797 = vunpack.c.l.b16 %v4648
    %v4798 = vunpack.c.h.b16 %v4648
    %v4799 = vpack.c.b16 %v4705, %v4703
    %v4800 = vpack.c.b16 %v4706, %v4704
    %v4801 = vpack.c.b16 %v4709, %v4707
    %v4802 = vpack.c.b16 %v4710, %v4708
    %v4803 = vpack.c.b16 %v4713, %v4711
    %v4804 = vpack.c.b16 %v4714, %v4712
    %v4805 = vpack.c.b16 %v4717, %v4715
    %v4806 = vpack.c.b16 %v4718, %v4716
    %v4807 = vpack.c.b16 %v4721, %v4719
    %v4808 = vpack.c.b16 %v4722, %v4720
    %v4809 = vpack.c.b16 %v4725, %v4723
    %v4810 = vpack.c.b16 %v4726, %v4724
    %v4811 = vpack.c.b16 %v4729, %v4727
    %v4812 = vpack.c.b16 %v4730, %v4728
    %v4813 = vpack.c.b16 %v4733, %v4731
    %v4814 = vpack.c.b16 %v4734, %v4732
    %v4815 = vpack.c.b16 %v4737, %v4735
    %v4816 = vpack.c.b16 %v4738, %v4736
    %v4817 = vpack.c.b16 %v4741, %v4739
    %v4818 = vpack.c.b16 %v4742, %v4740
    %v4819 = vpack.c.b16 %v4745, %v4743
    %v4820 = vpack.c.b16 %v4746, %v4744
    %v4821 = vpack.c.b16 %v4749, %v4747
    %v4822 = vpack.c.b16 %v4750, %v4748
    %v4823 = vpack.c.b16 %v4753, %v4751
    %v4824 = vpack.c.b16 %v4754, %v4752
    %v4825 = vpack.c.b16 %v4757, %v4755
    %v4826 = vpack.c.b16 %v4758, %v4756
    %v4827 = vpack.c.b16 %v4761, %v4759
    %v4828 = vpack.c.b16 %v4762, %v4760
    %v4829 = vpack.c.b16 %v4765, %v4763
    %v4830 = vpack.c.b16 %v4766, %v4764
    %v4831 = vpack.c.b16 %v4769, %v4767
    %v4832 = vpack.c.b16 %v4770, %v4768
    %v4833 = vpack.c.b16 %v4773, %v4771
    %v4834 = vpack.c.b16 %v4774, %v4772
    %v4835 = vpack.c.b16 %v4777, %v4775
    %v4836 = vpack.c.b16 %v4778, %v4776
    %v4837 = vpack.c.b16 %v4781, %v4779
    %v4838 = vpack.c.b16 %v4782, %v4780
    %v4839 = vpack.c.b16 %v4785, %v4783
    %v4840 = vpack.c.b16 %v4786, %v4784
    %v4841 = vpack.c.b16 %v4789, %v4787
    %v4842 = vpack.c.b16 %v4790, %v4788
    %v4843 = vpack.c.b16 %v4793, %v4791
    %v4844 = vpack.c.b16 %v4794, %v4792
    %v4845 = vpack.c.b16 %v4797, %v4795
    %v4846 = vpack.c.b16 %v4798, %v4796
    %4895 = vmatpush.bf16.msra.mxu0 %v4813
    %4896 = vmatpush.bf16.msra.mxu0 %v4811
    %4897 = vmatpush.bf16.msra.mxu0 %v4809
    %4898 = vmatpush.bf16.msra.mxu0 %v4807
    %4899 = vmatpush.bf16.msra.mxu0 %v4805
    %4900 = vmatpush.bf16.msra.mxu0 %v4803
    %4901 = vmatpush.bf16.msra.mxu0 %v4801
    %4902 = vmatpush.bf16.msra.mxu0 %v4799
    %4903 = vmatmul.bf16.gmra.mxu0 %v4598
    %v4904 = vpop.f32.mrf.mxu0
    %v4905 = vadd.f32 %v4651, %v4904
    %v4906 = vpop.f32.mrf.mxu0
    %v4907 = vadd.f32 %v4651, %v4906
    %4908 = vdwg.mxu0
    %4909 = vmatpush.bf16.msra.mxu0 %v4829
    %4910 = vmatpush.bf16.msra.mxu0 %v4827
    %4911 = vmatpush.bf16.msra.mxu0 %v4825
    %4912 = vmatpush.bf16.msra.mxu0 %v4823
    %4913 = vmatpush.bf16.msra.mxu0 %v4821
    %4914 = vmatpush.bf16.msra.mxu0 %v4819
    %4915 = vmatpush.bf16.msra.mxu0 %v4817
    %4916 = vmatpush.bf16.msra.mxu0 %v4815
    %4917 = vmatmul.bf16.gmra.mxu0 %v4599
    %v4918 = vpop.f32.mrf.mxu0
    %v4919 = vadd.f32 %v4905, %v4918
    %v4920 = vpop.f32.mrf.mxu0
    %v4921 = vadd.f32 %v4907, %v4920
    %4922 = vdwg.mxu0
    %4923 = vmatpush.bf16.msra.mxu0 %v4845
    %4924 = vmatpush.bf16.msra.mxu0 %v4843
    %4925 = vmatpush.bf16.msra.mxu0 %v4841
    %4926 = vmatpush.bf16.msra.mxu0 %v4839
    %4927 = vmatpush.bf16.msra.mxu0 %v4837
    %4928 = vmatpush.bf16.msra.mxu0 %v4835
    %4929 = vmatpush.bf16.msra.mxu0 %v4833
    %4930 = vmatpush.bf16.msra.mxu0 %v4831
    %4931 = vmatmul.bf16.gmra.mxu0 %v4600
    %v4932 = vpop.f32.mrf.mxu0
    %v4933 = vadd.f32 %v4919, %v4932
    %v4934 = vpop.f32.mrf.mxu0
    %v4935 = vadd.f32 %v4921, %v4934
    %4936 = vdwg.mxu0
    %4937 = vmatpush.bf16.msra.mxu0 %v4814
    %4938 = vmatpush.bf16.msra.mxu0 %v4812
    %4939 = vmatpush.bf16.msra.mxu0 %v4810
    %4940 = vmatpush.bf16.msra.mxu0 %v4808
    %4941 = vmatpush.bf16.msra.mxu0 %v4806
    %4942 = vmatpush.bf16.msra.mxu0 %v4804
    %4943 = vmatpush.bf16.msra.mxu0 %v4802
    %4944 = vmatpush.bf16.msra.mxu0 %v4800
    %4945 = vmatmul.bf16.gmra.mxu0 %v4598
    %v4946 = vpop.f32.mrf.mxu0
    %v4947 = vadd.f32 %v4652, %v4946
    %v4948 = vpop.f32.mrf.mxu0
    %v4949 = vadd.f32 %v4652, %v4948
    %4950 = vdwg.mxu0
    %4951 = vmatpush.bf16.msra.mxu0 %v4830
    %4952 = vmatpush.bf16.msra.mxu0 %v4828
    %4953 = vmatpush.bf16.msra.mxu0 %v4826
    %4954 = vmatpush.bf16.msra.mxu0 %v4824
    %4955 = vmatpush.bf16.msra.mxu0 %v4822
    %4956 = vmatpush.bf16.msra.mxu0 %v4820
    %4957 = vmatpush.bf16.msra.mxu0 %v4818
    %4958 = vmatpush.bf16.msra.mxu0 %v4816
    %4959 = vmatmul.bf16.gmra.mxu0 %v4599
    %v4960 = vpop.f32.mrf.mxu0
    %v4961 = vadd.f32 %v4947, %v4960
    %v4962 = vpop.f32.mrf.mxu0
    %v4963 = vadd.f32 %v4949, %v4962
    %4964 = vdwg.mxu0
    %4965 = vmatpush.bf16.msra.mxu0 %v4846
    %4966 = vmatpush.bf16.msra.mxu0 %v4844
    %4967 = vmatpush.bf16.msra.mxu0 %v4842
    %4968 = vmatpush.bf16.msra.mxu0 %v4840
    %4969 = vmatpush.bf16.msra.mxu0 %v4838
    %4970 = vmatpush.bf16.msra.mxu0 %v4836
    %4971 = vmatpush.bf16.msra.mxu0 %v4834
    %4972 = vmatpush.bf16.msra.mxu0 %v4832
    %4973 = vmatmul.bf16.gmra.mxu0 %v4600
    %v4974 = vpop.f32.mrf.mxu0
    %v4975 = vadd.f32 %v4961, %v4974
    %v4976 = vpop.f32.mrf.mxu0
    %v4977 = vadd.f32 %v4963, %v4976
    %4978 = vdwg.mxu0
    %v4979 = vpack.c.bf16 %v4935, %v4933
    %v4980 = vpack.c.bf16 %v4977, %v4975
    %v4981 = vld [vmem:[#allocation9] sm:$0xff]
    %v4982 = vld [vmem:[#allocation9 + $0x8] sm:$0xff]
    %v4983 = vld [vmem:[#allocation9 + $0x10] sm:$0xff]
    %v4984 = vld [vmem:[#allocation9 + $0x18] sm:$0xff]
    %v4985 = vld [vmem:[#allocation9 + $0x20] sm:$0xff]
    %v4986 = vld [vmem:[#allocation9 + $0x28] sm:$0xff]
    %v4987 = vld [vmem:[#allocation9 + $0x30] sm:$0xff]
    %v4988 = vld [vmem:[#allocation9 + $0x38] sm:$0xff]
    %v4989 = vld [vmem:[#allocation9 + $0x40] sm:$0xff]
    %v4990 = vld [vmem:[#allocation9 + $0x48] sm:$0xff]
    %v4991 = vld [vmem:[#allocation9 + $0x50] sm:$0xff]
    %v4992 = vld [vmem:[#allocation9 + $0x58] sm:$0xff]
    %v4993 = vld [vmem:[#allocation9 + $0x60] sm:$0xff]
    %v4994 = vld [vmem:[#allocation9 + $0x68] sm:$0xff]
    %v4995 = vld [vmem:[#allocation9 + $0x70] sm:$0xff]
    %v4996 = vld [vmem:[#allocation9 + $0x78] sm:$0xff]
    %v4997 = vld [vmem:[#allocation9 + $0x80] sm:$0xff]
    %v4998 = vld [vmem:[#allocation9 + $0x88] sm:$0xff]
    %v4999 = vld [vmem:[#allocation9 + $0x90] sm:$0xff]
    %v5000 = vld [vmem:[#allocation9 + $0x98] sm:$0xff]
    %v5001 = vld [vmem:[#allocation9 + $0xa0] sm:$0xff]
    %v5002 = vld [vmem:[#allocation9 + $0xa8] sm:$0xff]
    %v5003 = vld [vmem:[#allocation9 + $0xb0] sm:$0xff]
    %v5004 = vld [vmem:[#allocation9 + $0xb8] sm:$0xff]
    %v5005 = vld [vmem:[#allocation9 + $0xc0] sm:$0xff]
    %v5006 = vld [vmem:[#allocation9 + $0xc8] sm:$0xff]
    %v5007 = vld [vmem:[#allocation9 + $0xd0] sm:$0xff]
    %v5008 = vld [vmem:[#allocation9 + $0xd8] sm:$0xff]
    %v5009 = vld [vmem:[#allocation9 + $0xe0] sm:$0xff]
    %v5010 = vld [vmem:[#allocation9 + $0xe8] sm:$0xff]
    %v5011 = vld [vmem:[#allocation9 + $0xf0] sm:$0xff]
    %v5012 = vld [vmem:[#allocation9 + $0xf8] sm:$0xff]
    %v5013 = vld [vmem:[%s13] sm:$0x3]
    %v5015 = vperm.slane %v5013, 0
    %v5016 = vperm.slane %v5013, 1
    %v5051 = vunpack.c.l.b16 %v4981
    %v5052 = vunpack.c.h.b16 %v4981
    %v5053 = vunpack.c.l.b16 %v4982
    %v5054 = vunpack.c.h.b16 %v4982
    %v5055 = vunpack.c.l.b16 %v4983
    %v5056 = vunpack.c.h.b16 %v4983
    %v5057 = vunpack.c.l.b16 %v4984
    %v5058 = vunpack.c.h.b16 %v4984
    %v5059 = vunpack.c.l.b16 %v4985
    %v5060 = vunpack.c.h.b16 %v4985
    %v5061 = vunpack.c.l.b16 %v4986
    %v5062 = vunpack.c.h.b16 %v4986
    %v5063 = vunpack.c.l.b16 %v4987
    %v5064 = vunpack.c.h.b16 %v4987
    %v5065 = vunpack.c.l.b16 %v4988
    %v5066 = vunpack.c.h.b16 %v4988
    %v5067 = vunpack.c.l.b16 %v4989
    %v5068 = vunpack.c.h.b16 %v4989
    %v5069 = vunpack.c.l.b16 %v4990
    %v5070 = vunpack.c.h.b16 %v4990
    %v5071 = vunpack.c.l.b16 %v4991
    %v5072 = vunpack.c.h.b16 %v4991
    %v5073 = vunpack.c.l.b16 %v4992
    %v5074 = vunpack.c.h.b16 %v4992
    %v5075 = vunpack.c.l.b16 %v4993
    %v5076 = vunpack.c.h.b16 %v4993
    %v5077 = vunpack.c.l.b16 %v4994
    %v5078 = vunpack.c.h.b16 %v4994
    %v5079 = vunpack.c.l.b16 %v4995
    %v5080 = vunpack.c.h.b16 %v4995
    %v5081 = vunpack.c.l.b16 %v4996
    %v5082 = vunpack.c.h.b16 %v4996
    %v5083 = vunpack.c.l.b16 %v4997
    %v5084 = vunpack.c.h.b16 %v4997
    %v5085 = vunpack.c.l.b16 %v4998
    %v5086 = vunpack.c.h.b16 %v4998
    %v5087 = vunpack.c.l.b16 %v4999
    %v5088 = vunpack.c.h.b16 %v4999
    %v5089 = vunpack.c.l.b16 %v5000
    %v5090 = vunpack.c.h.b16 %v5000
    %v5091 = vunpack.c.l.b16 %v5001
    %v5092 = vunpack.c.h.b16 %v5001
    %v5093 = vunpack.c.l.b16 %v5002
    %v5094 = vunpack.c.h.b16 %v5002
    %v5095 = vunpack.c.l.b16 %v5003
    %v5096 = vunpack.c.h.b16 %v5003
    %v5097 = vunpack.c.l.b16 %v5004
    %v5098 = vunpack.c.h.b16 %v5004
    %v5099 = vunpack.c.l.b16 %v5005
    %v5100 = vunpack.c.h.b16 %v5005
    %v5101 = vunpack.c.l.b16 %v5006
    %v5102 = vunpack.c.h.b16 %v5006
    %v5103 = vunpack.c.l.b16 %v5007
    %v5104 = vunpack.c.h.b16 %v5007
    %v5105 = vunpack.c.l.b16 %v5008
    %v5106 = vunpack.c.h.b16 %v5008
    %v5107 = vunpack.c.l.b16 %v5009
    %v5108 = vunpack.c.h.b16 %v5009
    %v5109 = vunpack.c.l.b16 %v5010
    %v5110 = vunpack.c.h.b16 %v5010
    %v5111 = vunpack.c.l.b16 %v5011
    %v5112 = vunpack.c.h.b16 %v5011
    %v5113 = vunpack.c.l.b16 %v5012
    %v5114 = vunpack.c.h.b16 %v5012
    %v5115 = vpack.c.b16 %v5053, %v5051
    %v5116 = vpack.c.b16 %v5054, %v5052
    %v5117 = vpack.c.b16 %v5057, %v5055
    %v5118 = vpack.c.b16 %v5058, %v5056
    %v5119 = vpack.c.b16 %v5061, %v5059
    %v5120 = vpack.c.b16 %v5062, %v5060
    %v5121 = vpack.c.b16 %v5065, %v5063
    %v5122 = vpack.c.b16 %v5066, %v5064
    %v5123 = vpack.c.b16 %v5069, %v5067
    %v5124 = vpack.c.b16 %v5070, %v5068
    %v5125 = vpack.c.b16 %v5073, %v5071
    %v5126 = vpack.c.b16 %v5074, %v5072
    %v5127 = vpack.c.b16 %v5077, %v5075
    %v5128 = vpack.c.b16 %v5078, %v5076
    %v5129 = vpack.c.b16 %v5081, %v5079
    %v5130 = vpack.c.b16 %v5082, %v5080
    %v5131 = vpack.c.b16 %v5085, %v5083
    %v5132 = vpack.c.b16 %v5086, %v5084
    %v5133 = vpack.c.b16 %v5089, %v5087
    %v5134 = vpack.c.b16 %v5090, %v5088
    %v5135 = vpack.c.b16 %v5093, %v5091
    %v5136 = vpack.c.b16 %v5094, %v5092
    %v5137 = vpack.c.b16 %v5097, %v5095
    %v5138 = vpack.c.b16 %v5098, %v5096
    %v5139 = vpack.c.b16 %v5101, %v5099
    %v5140 = vpack.c.b16 %v5102, %v5100
    %v5141 = vpack.c.b16 %v5105, %v5103
    %v5142 = vpack.c.b16 %v5106, %v5104
    %v5143 = vpack.c.b16 %v5109, %v5107
    %v5144 = vpack.c.b16 %v5110, %v5108
    %v5145 = vpack.c.b16 %v5113, %v5111
    %v5146 = vpack.c.b16 %v5114, %v5112
    %5179 = vmatpush.bf16.msra.mxu0 %v5129
    %5180 = vmatpush.bf16.msra.mxu0 %v5127
    %5181 = vmatpush.bf16.msra.mxu0 %v5125
    %5182 = vmatpush.bf16.msra.mxu0 %v5123
    %5183 = vmatpush.bf16.msra.mxu0 %v5121
    %5184 = vmatpush.bf16.msra.mxu0 %v5119
    %5185 = vmatpush.bf16.msra.mxu0 %v5117
    %5186 = vmatpush.bf16.msra.mxu0 %v5115
    %5187 = vmatmul.bf16.gmra.mxu0 %v4979
    %v5188 = vpop.f32.mrf.mxu0
    %v5189 = vadd.f32 %v5015, %v5188
    %v5190 = vpop.f32.mrf.mxu0
    %v5191 = vadd.f32 %v5015, %v5190
    %5192 = vdwg.mxu0
    %5193 = vmatpush.bf16.msra.mxu0 %v5145
    %5194 = vmatpush.bf16.msra.mxu0 %v5143
    %5195 = vmatpush.bf16.msra.mxu0 %v5141
    %5196 = vmatpush.bf16.msra.mxu0 %v5139
    %5197 = vmatpush.bf16.msra.mxu0 %v5137
    %5198 = vmatpush.bf16.msra.mxu0 %v5135
    %5199 = vmatpush.bf16.msra.mxu0 %v5133
    %5200 = vmatpush.bf16.msra.mxu0 %v5131
    %5201 = vmatmul.bf16.gmra.mxu0 %v4980
    %v5202 = vpop.f32.mrf.mxu0
    %v5203 = vadd.f32 %v5189, %v5202
    %v5204 = vpop.f32.mrf.mxu0
    %v5205 = vadd.f32 %v5191, %v5204
    %5206 = vdwg.mxu0
    %5207 = vmatpush.bf16.msra.mxu0 %v5130
    %5208 = vmatpush.bf16.msra.mxu0 %v5128
    %5209 = vmatpush.bf16.msra.mxu0 %v5126
    %5210 = vmatpush.bf16.msra.mxu0 %v5124
    %5211 = vmatpush.bf16.msra.mxu0 %v5122
    %5212 = vmatpush.bf16.msra.mxu0 %v5120
    %5213 = vmatpush.bf16.msra.mxu0 %v5118
    %5214 = vmatpush.bf16.msra.mxu0 %v5116
    %5215 = vmatmul.bf16.gmra.mxu0 %v4979
    %v5216 = vpop.f32.mrf.mxu0
    %v5217 = vadd.f32 %v5016, %v5216
    %v5218 = vpop.f32.mrf.mxu0
    %v5219 = vadd.f32 %v5016, %v5218
    %5220 = vdwg.mxu0
    %5221 = vmatpush.bf16.msra.mxu0 %v5146
    %5222 = vmatpush.bf16.msra.mxu0 %v5144
    %5223 = vmatpush.bf16.msra.mxu0 %v5142
    %5224 = vmatpush.bf16.msra.mxu0 %v5140
    %5225 = vmatpush.bf16.msra.mxu0 %v5138
    %5226 = vmatpush.bf16.msra.mxu0 %v5136
    %5227 = vmatpush.bf16.msra.mxu0 %v5134
    %5228 = vmatpush.bf16.msra.mxu0 %v5132
    %5229 = vmatmul.bf16.gmra.mxu0 %v4980
    %v5230 = vpop.f32.mrf.mxu0
    %v5231 = vadd.f32 %v5217, %v5230
    %v5232 = vpop.f32.mrf.mxu0
    %v5233 = vadd.f32 %v5219, %v5232
    %5234 = vdwg.mxu0
    %v5235 = vld [vmem:[#allocation10] sm:$0xff]
    %v5236 = vld [vmem:[#allocation10 + $0x8] sm:$0xff]
    %v5237 = vld [vmem:[#allocation10 + $0x10] sm:$0xff]
    %v5238 = vld [vmem:[#allocation10 + $0x18] sm:$0xff]
    %v5239 = vld [vmem:[#allocation10 + $0x20] sm:$0xff]
    %v5240 = vld [vmem:[#allocation10 + $0x28] sm:$0xff]
    %v5241 = vld [vmem:[#allocation10 + $0x30] sm:$0xff]
    %v5242 = vld [vmem:[#allocation10 + $0x38] sm:$0xff]
    %v5243 = vld [vmem:[#allocation10 + $0x40] sm:$0xff]
    %v5244 = vld [vmem:[#allocation10 + $0x48] sm:$0xff]
    %v5245 = vld [vmem:[#allocation10 + $0x50] sm:$0xff]
    %v5246 = vld [vmem:[#allocation10 + $0x58] sm:$0xff]
    %v5247 = vld [vmem:[#allocation10 + $0x60] sm:$0xff]
    %v5248 = vld [vmem:[#allocation10 + $0x68] sm:$0xff]
    %v5249 = vld [vmem:[#allocation10 + $0x70] sm:$0xff]
    %v5250 = vld [vmem:[#allocation10 + $0x78] sm:$0xff]
    %v5251 = vld [vmem:[#allocation10 + $0x80] sm:$0xff]
    %v5252 = vld [vmem:[#allocation10 + $0x88] sm:$0xff]
    %v5253 = vld [vmem:[#allocation10 + $0x90] sm:$0xff]
    %v5254 = vld [vmem:[#allocation10 + $0x98] sm:$0xff]
    %v5255 = vld [vmem:[#allocation10 + $0xa0] sm:$0xff]
    %v5256 = vld [vmem:[#allocation10 + $0xa8] sm:$0xff]
    %v5257 = vld [vmem:[#allocation10 + $0xb0] sm:$0xff]
    %v5258 = vld [vmem:[#allocation10 + $0xb8] sm:$0xff]
    %v5259 = vld [vmem:[#allocation10 + $0xc0] sm:$0xff]
    %v5260 = vld [vmem:[#allocation10 + $0xc8] sm:$0xff]
    %v5261 = vld [vmem:[#allocation10 + $0xd0] sm:$0xff]
    %v5262 = vld [vmem:[#allocation10 + $0xd8] sm:$0xff]
    %v5263 = vld [vmem:[#allocation10 + $0xe0] sm:$0xff]
    %v5264 = vld [vmem:[#allocation10 + $0xe8] sm:$0xff]
    %v5265 = vld [vmem:[#allocation10 + $0xf0] sm:$0xff]
    %v5266 = vld [vmem:[#allocation10 + $0xf8] sm:$0xff]
    %v5267 = vld [vmem:[%s15] sm:$0x3]
    %v5269 = vperm.slane %v5267, 0
    %v5270 = vperm.slane %v5267, 1
    %v5305 = vunpack.c.l.b16 %v5235
    %v5306 = vunpack.c.h.b16 %v5235
    %v5307 = vunpack.c.l.b16 %v5236
    %v5308 = vunpack.c.h.b16 %v5236
    %v5309 = vunpack.c.l.b16 %v5237
    %v5310 = vunpack.c.h.b16 %v5237
    %v5311 = vunpack.c.l.b16 %v5238
    %v5312 = vunpack.c.h.b16 %v5238
    %v5313 = vunpack.c.l.b16 %v5239
    %v5314 = vunpack.c.h.b16 %v5239
    %v5315 = vunpack.c.l.b16 %v5240
    %v5316 = vunpack.c.h.b16 %v5240
    %v5317 = vunpack.c.l.b16 %v5241
    %v5318 = vunpack.c.h.b16 %v5241
    %v5319 = vunpack.c.l.b16 %v5242
    %v5320 = vunpack.c.h.b16 %v5242
    %v5321 = vunpack.c.l.b16 %v5243
    %v5322 = vunpack.c.h.b16 %v5243
    %v5323 = vunpack.c.l.b16 %v5244
    %v5324 = vunpack.c.h.b16 %v5244
    %v5325 = vunpack.c.l.b16 %v5245
    %v5326 = vunpack.c.h.b16 %v5245
    %v5327 = vunpack.c.l.b16 %v5246
    %v5328 = vunpack.c.h.b16 %v5246
    %v5329 = vunpack.c.l.b16 %v5247
    %v5330 = vunpack.c.h.b16 %v5247
    %v5331 = vunpack.c.l.b16 %v5248
    %v5332 = vunpack.c.h.b16 %v5248
    %v5333 = vunpack.c.l.b16 %v5249
    %v5334 = vunpack.c.h.b16 %v5249
    %v5335 = vunpack.c.l.b16 %v5250
    %v5336 = vunpack.c.h.b16 %v5250
    %v5337 = vunpack.c.l.b16 %v5251
    %v5338 = vunpack.c.h.b16 %v5251
    %v5339 = vunpack.c.l.b16 %v5252
    %v5340 = vunpack.c.h.b16 %v5252
    %v5341 = vunpack.c.l.b16 %v5253
    %v5342 = vunpack.c.h.b16 %v5253
    %v5343 = vunpack.c.l.b16 %v5254
    %v5344 = vunpack.c.h.b16 %v5254
    %v5345 = vunpack.c.l.b16 %v5255
    %v5346 = vunpack.c.h.b16 %v5255
    %v5347 = vunpack.c.l.b16 %v5256
    %v5348 = vunpack.c.h.b16 %v5256
    %v5349 = vunpack.c.l.b16 %v5257
    %v5350 = vunpack.c.h.b16 %v5257
    %v5351 = vunpack.c.l.b16 %v5258
    %v5352 = vunpack.c.h.b16 %v5258
    %v5353 = vunpack.c.l.b16 %v5259
    %v5354 = vunpack.c.h.b16 %v5259
    %v5355 = vunpack.c.l.b16 %v5260
    %v5356 = vunpack.c.h.b16 %v5260
    %v5357 = vunpack.c.l.b16 %v5261
    %v5358 = vunpack.c.h.b16 %v5261
    %v5359 = vunpack.c.l.b16 %v5262
    %v5360 = vunpack.c.h.b16 %v5262
    %v5361 = vunpack.c.l.b16 %v5263
    %v5362 = vunpack.c.h.b16 %v5263
    %v5363 = vunpack.c.l.b16 %v5264
    %v5364 = vunpack.c.h.b16 %v5264
    %v5365 = vunpack.c.l.b16 %v5265
    %v5366 = vunpack.c.h.b16 %v5265
    %v5367 = vunpack.c.l.b16 %v5266
    %v5368 = vunpack.c.h.b16 %v5266
    %v5369 = vpack.c.b16 %v5307, %v5305
    %v5370 = vpack.c.b16 %v5308, %v5306
    %v5371 = vpack.c.b16 %v5311, %v5309
    %v5372 = vpack.c.b16 %v5312, %v5310
    %v5373 = vpack.c.b16 %v5315, %v5313
    %v5374 = vpack.c.b16 %v5316, %v5314
    %v5375 = vpack.c.b16 %v5319, %v5317
    %v5376 = vpack.c.b16 %v5320, %v5318
    %v5377 = vpack.c.b16 %v5323, %v5321
    %v5378 = vpack.c.b16 %v5324, %v5322
    %v5379 = vpack.c.b16 %v5327, %v5325
    %v5380 = vpack.c.b16 %v5328, %v5326
    %v5381 = vpack.c.b16 %v5331, %v5329
    %v5382 = vpack.c.b16 %v5332, %v5330
    %v5383 = vpack.c.b16 %v5335, %v5333
    %v5384 = vpack.c.b16 %v5336, %v5334
    %v5385 = vpack.c.b16 %v5339, %v5337
    %v5386 = vpack.c.b16 %v5340, %v5338
    %v5387 = vpack.c.b16 %v5343, %v5341
    %v5388 = vpack.c.b16 %v5344, %v5342
    %v5389 = vpack.c.b16 %v5347, %v5345
    %v5390 = vpack.c.b16 %v5348, %v5346
    %v5391 = vpack.c.b16 %v5351, %v5349
    %v5392 = vpack.c.b16 %v5352, %v5350
    %v5393 = vpack.c.b16 %v5355, %v5353
    %v5394 = vpack.c.b16 %v5356, %v5354
    %v5395 = vpack.c.b16 %v5359, %v5357
    %v5396 = vpack.c.b16 %v5360, %v5358
    %v5397 = vpack.c.b16 %v5363, %v5361
    %v5398 = vpack.c.b16 %v5364, %v5362
    %v5399 = vpack.c.b16 %v5367, %v5365
    %v5400 = vpack.c.b16 %v5368, %v5366
    %5433 = vmatpush.bf16.msra.mxu0 %v5383
    %5434 = vmatpush.bf16.msra.mxu0 %v5381
    %5435 = vmatpush.bf16.msra.mxu0 %v5379
    %5436 = vmatpush.bf16.msra.mxu0 %v5377
    %5437 = vmatpush.bf16.msra.mxu0 %v5375
    %5438 = vmatpush.bf16.msra.mxu0 %v5373
    %5439 = vmatpush.bf16.msra.mxu0 %v5371
    %5440 = vmatpush.bf16.msra.mxu0 %v5369
    %5441 = vmatmul.bf16.gmra.mxu0 %v4979
    %v5442 = vpop.f32.mrf.mxu0
    %v5443 = vadd.f32 %v5269, %v5442
    %v5444 = vpop.f32.mrf.mxu0
    %v5445 = vadd.f32 %v5269, %v5444
    %5446 = vdwg.mxu0
    %5447 = vmatpush.bf16.msra.mxu0 %v5399
    %5448 = vmatpush.bf16.msra.mxu0 %v5397
    %5449 = vmatpush.bf16.msra.mxu0 %v5395
    %5450 = vmatpush.bf16.msra.mxu0 %v5393
    %5451 = vmatpush.bf16.msra.mxu0 %v5391
    %5452 = vmatpush.bf16.msra.mxu0 %v5389
    %5453 = vmatpush.bf16.msra.mxu0 %v5387
    %5454 = vmatpush.bf16.msra.mxu0 %v5385
    %5455 = vmatmul.bf16.gmra.mxu0 %v4980
    %v5456 = vpop.f32.mrf.mxu0
    %v5457 = vadd.f32 %v5443, %v5456
    %v5458 = vpop.f32.mrf.mxu0
    %v5459 = vadd.f32 %v5445, %v5458
    %5460 = vdwg.mxu0
    %5461 = vmatpush.bf16.msra.mxu0 %v5384
    %5462 = vmatpush.bf16.msra.mxu0 %v5382
    %5463 = vmatpush.bf16.msra.mxu0 %v5380
    %5464 = vmatpush.bf16.msra.mxu0 %v5378
    %5465 = vmatpush.bf16.msra.mxu0 %v5376
    %5466 = vmatpush.bf16.msra.mxu0 %v5374
    %5467 = vmatpush.bf16.msra.mxu0 %v5372
    %5468 = vmatpush.bf16.msra.mxu0 %v5370
    %5469 = vmatmul.bf16.gmra.mxu0 %v4979
    %v5470 = vpop.f32.mrf.mxu0
    %v5471 = vadd.f32 %v5270, %v5470
    %v5472 = vpop.f32.mrf.mxu0
    %v5473 = vadd.f32 %v5270, %v5472
    %5474 = vdwg.mxu0
    %5475 = vmatpush.bf16.msra.mxu0 %v5400
    %5476 = vmatpush.bf16.msra.mxu0 %v5398
    %5477 = vmatpush.bf16.msra.mxu0 %v5396
    %5478 = vmatpush.bf16.msra.mxu0 %v5394
    %5479 = vmatpush.bf16.msra.mxu0 %v5392
    %5480 = vmatpush.bf16.msra.mxu0 %v5390
    %5481 = vmatpush.bf16.msra.mxu0 %v5388
    %5482 = vmatpush.bf16.msra.mxu0 %v5386
    %5483 = vmatmul.bf16.gmra.mxu0 %v4980
    %v5484 = vpop.f32.mrf.mxu0
    %v5485 = vadd.f32 %v5471, %v5484
    %v5486 = vpop.f32.mrf.mxu0
    %v5487 = vadd.f32 %v5473, %v5486
    %5488 = vdwg.mxu0
    %v5489 = vpack.c.bf16 %v4594, %v4552
    %v5490 = vpack.c.bf16 %v4596, %v4554
    %v5491 = vpack.c.bf16 %v5231, %v5203
    %v5492 = vpack.c.bf16 %v5233, %v5205
    %v5493 = vpack.c.bf16 %v5485, %v5457
    %v5494 = vpack.c.bf16 %v5487, %v5459
    %v5496 = vunpack.c.l.b16 %v5489
    %v5497 = vunpack.c.h.b16 %v5489
    %v5498 = vpack.c.b16 %v5496, %v5496
    %v5499 = vpack.c.b16 %v5497, %v5497
    %v5503 = vunpack.c.l.b16 %v5491
    %v5504 = vunpack.c.h.b16 %v5491
    %v5505 = vpack.c.b16 %v5503, %v5503
    %v5506 = vpack.c.b16 %v5504, %v5504
    %5509 = vmatpush.bf16.xpose.msra.mxu0 0
    %5510 = vmatpush.bf16.xpose.msra.mxu0 0
    %5511 = vmatpush.bf16.xpose.msra.mxu0 0
    %5512 = vmatpush.bf16.xpose.msra.mxu0 0
    %5513 = vmatpush.bf16.xpose.msra.mxu0 0
    %5514 = vmatpush.bf16.xpose.msra.mxu0 0
    %5515 = vmatpush.bf16.xpose.msra.mxu0 0
    %5516 = vmatpush.bf16.xpose.msra.mxu0 %v5505
    %5517 = vmatmul.bf16.gmra.mxu0 %v5498
    %v5518 = vpop.f32.mrf.mxu0
    %v5519 = vadd.f32 0.0, %v5518
    %v5520 = vpop.f32.mrf.mxu0
    %5521 = vdwg.mxu0
    %5522 = vmatpush.bf16.xpose.msra.mxu0 0
    %5523 = vmatpush.bf16.xpose.msra.mxu0 0
    %5524 = vmatpush.bf16.xpose.msra.mxu0 0
    %5525 = vmatpush.bf16.xpose.msra.mxu0 0
    %5526 = vmatpush.bf16.xpose.msra.mxu0 0
    %5527 = vmatpush.bf16.xpose.msra.mxu0 0
    %5528 = vmatpush.bf16.xpose.msra.mxu0 0
    %5529 = vmatpush.bf16.xpose.msra.mxu0 %v5506
    %5530 = vmatmul.bf16.gmra.mxu0 %v5499
    %v5531 = vpop.f32.mrf.mxu0
    %v5532 = vadd.f32 %v5519, %v5531
    %v5533 = vpop.f32.mrf.mxu0
    %5534 = vdwg.mxu0
    %v5536 = vunpack.c.l.b16 %v5490
    %v5537 = vunpack.c.h.b16 %v5490
    %v5538 = vpack.c.b16 %v5536, %v5536
    %v5539 = vpack.c.b16 %v5537, %v5537
    %v5543 = vunpack.c.l.b16 %v5492
    %v5544 = vunpack.c.h.b16 %v5492
    %v5545 = vpack.c.b16 %v5543, %v5543
    %v5546 = vpack.c.b16 %v5544, %v5544
    %5549 = vmatpush.bf16.xpose.msra.mxu0 0
    %5550 = vmatpush.bf16.xpose.msra.mxu0 0
    %5551 = vmatpush.bf16.xpose.msra.mxu0 0
    %5552 = vmatpush.bf16.xpose.msra.mxu0 0
    %5553 = vmatpush.bf16.xpose.msra.mxu0 0
    %5554 = vmatpush.bf16.xpose.msra.mxu0 0
    %5555 = vmatpush.bf16.xpose.msra.mxu0 0
    %5556 = vmatpush.bf16.xpose.msra.mxu0 %v5545
    %5557 = vmatmul.bf16.gmra.mxu0 %v5538
    %v5558 = vpop.f32.mrf.mxu0
    %v5559 = vadd.f32 0.0, %v5558
    %v5560 = vpop.f32.mrf.mxu0
    %5561 = vdwg.mxu0
    %5562 = vmatpush.bf16.xpose.msra.mxu0 0
    %5563 = vmatpush.bf16.xpose.msra.mxu0 0
    %5564 = vmatpush.bf16.xpose.msra.mxu0 0
    %5565 = vmatpush.bf16.xpose.msra.mxu0 0
    %5566 = vmatpush.bf16.xpose.msra.mxu0 0
    %5567 = vmatpush.bf16.xpose.msra.mxu0 0
    %5568 = vmatpush.bf16.xpose.msra.mxu0 0
    %5569 = vmatpush.bf16.xpose.msra.mxu0 %v5546
    %5570 = vmatmul.bf16.gmra.mxu0 %v5539
    %v5571 = vpop.f32.mrf.mxu0
    %v5572 = vadd.f32 %v5559, %v5571
    %v5573 = vpop.f32.mrf.mxu0
    %5574 = vdwg.mxu0
    %v5575 = vmul.f32 %v5532, 0.0625
    %v5576 = vmul.f32 %v5572, 0.0625
    %vm5577 = vcmask 64512
    %v5578 = vsel %vm5577, %v5575, -inf
    %5579 = vmax.xlane.f32.xlu0 %v5578
    %v5580 = vpop.xlane.xlu0 %5579
    %v5581 = vsel %vm5577, %v5576, -inf
    %5582 = vmax.xlane.f32.xlu0 %v5581
    %v5583 = vpop.xlane.xlu0 %5582
    %v5584 = vsub.f32 %v5575, %v5580
    %v5585 = vsub.f32 %v5576, %v5583
    %v5586 = vmul.f32 %v5584, 1.442695
    %v5587 = vpow.pop %v5586
    %v5588 = vmul.f32 %v5585, 1.442695
    %v5589 = vpow.pop %v5588
    %v5590 = vsel %vm5577, %v5587, 0.0
    %5591 = vadd.xlane.f32.xlu0 %v5590
    %v5592 = vpop.xlane.xlu0 %5591
    %v5593 = vsel %vm5577, %v5589, 0.0
    %5594 = vadd.xlane.f32.xlu0 %v5593
    %v5595 = vpop.xlane.xlu0 %5594
    %v5596 = vrcp.pop %v5592
    %v5597 = vmul.f32 %v5592, %v5596
    %v5598 = vsub.f32 1.0, %v5597
    %v5599 = vmul.f32 %v5596, %v5598
    %v5600 = vadd.f32 %v5596, %v5599
    %vm5601 = vweird.f32 %v5592
    %vm5602 = vweird.f32 %v5596
    %vm5603 = vmor %vm5601, %vm5602
    %v5604 = vsel %vm5603, %v5596, %v5600
    %v5605 = vand.u32 2147483647, %v5592
    %vm5606 = vcmp.eq.f32.partialorder %v5605, 8.507059e+37
    %v5607 = vand.u32 %v5592, 2147483648
    %v5608 = vor.u32 1.1754944e-38, %v5607
    %v5609 = vsel %vm5606, %v5608, %v5604
    %v5610 = vrcp.pop %v5595
    %v5611 = vmul.f32 %v5595, %v5610
    %v5612 = vsub.f32 1.0, %v5611
    %v5613 = vmul.f32 %v5610, %v5612
    %v5614 = vadd.f32 %v5610, %v5613
    %vm5615 = vweird.f32 %v5595
    %vm5616 = vweird.f32 %v5610
    %vm5617 = vmor %vm5615, %vm5616
    %v5618 = vsel %vm5617, %v5610, %v5614
    %v5619 = vand.u32 2147483647, %v5595
    %vm5620 = vcmp.eq.f32.partialorder %v5619, 8.507059e+37
    %v5621 = vand.u32 %v5595, 2147483648
    %v5622 = vor.u32 1.1754944e-38, %v5621
    %v5623 = vsel %vm5620, %v5622, %v5618
    %v5624 = vmul.f32 %v5587, %v5609
    %v5625 = vmul.f32 %v5589, %v5623
    %v5626 = vpack.c.bf16 %v5624, %v5624
    %v5627 = vpack.c.bf16 %v5625, %v5625
    %v5629 = vunpack.c.l.b16 %v5493
    %v5630 = vunpack.c.h.b16 %v5493
    %v5631 = vpack.c.b16 %v5629, %v5629
    %v5632 = vpack.c.b16 %v5630, %v5630
    %v5634 = vsel %vm5577, %v5626, 0
    %vm5636 = vcmask 1043456
    %v5638 = vsel %vm5636, %v5631, 0
    %v5641 = vsel %vm5636, %v5632, 0
    %5643 = vmatpush.bf16.msra.mxu0 0
    %5644 = vmatpush.bf16.msra.mxu0 0
    %5645 = vmatpush.bf16.msra.mxu0 0
    %5646 = vmatpush.bf16.msra.mxu0 0
    %5647 = vmatpush.bf16.msra.mxu0 0
    %5648 = vmatpush.bf16.msra.mxu0 0
    %5649 = vmatpush.bf16.msra.mxu0 0
    %5650 = vmatpush.bf16.msra.mxu0 %v5638
    %5651 = vmatmul.bf16.gmra.mxu0 %v5634
    %v5652 = vpop.f32.mrf.mxu0
    %v5653 = vadd.f32 0.0, %v5652
    %v5654 = vpop.f32.mrf.mxu0
    %5655 = vdwg.mxu0
    %5656 = vmatpush.bf16.msra.mxu0 0
    %5657 = vmatpush.bf16.msra.mxu0 0
    %5658 = vmatpush.bf16.msra.mxu0 0
    %5659 = vmatpush.bf16.msra.mxu0 0
    %5660 = vmatpush.bf16.msra.mxu0 0
    %5661 = vmatpush.bf16.msra.mxu0 0
    %5662 = vmatpush.bf16.msra.mxu0 0
    %5663 = vmatpush.bf16.msra.mxu0 %v5641
    %5664 = vmatmul.bf16.gmra.mxu0 %v5634
    %v5665 = vpop.f32.mrf.mxu0
    %v5666 = vadd.f32 0.0, %v5665
    %v5667 = vpop.f32.mrf.mxu0
    %5668 = vdwg.mxu0
    %v5670 = vunpack.c.l.b16 %v5494
    %v5671 = vunpack.c.h.b16 %v5494
    %v5672 = vpack.c.b16 %v5670, %v5670
    %v5673 = vpack.c.b16 %v5671, %v5671
    %v5675 = vsel %vm5577, %v5627, 0
    %v5678 = vsel %vm5636, %v5672, 0
    %v5681 = vsel %vm5636, %v5673, 0
    %5683 = vmatpush.bf16.msra.mxu0 0
    %5684 = vmatpush.bf16.msra.mxu0 0
    %5685 = vmatpush.bf16.msra.mxu0 0
    %5686 = vmatpush.bf16.msra.mxu0 0
    %5687 = vmatpush.bf16.msra.mxu0 0
    %5688 = vmatpush.bf16.msra.mxu0 0
    %5689 = vmatpush.bf16.msra.mxu0 0
    %5690 = vmatpush.bf16.msra.mxu0 %v5678
    %5691 = vmatmul.bf16.gmra.mxu0 %v5675
    %v5692 = vpop.f32.mrf.mxu0
    %v5693 = vadd.f32 0.0, %v5692
    %v5694 = vpop.f32.mrf.mxu0
    %5695 = vdwg.mxu0
    %5696 = vmatpush.bf16.msra.mxu0 0
    %5697 = vmatpush.bf16.msra.mxu0 0
    %5698 = vmatpush.bf16.msra.mxu0 0
    %5699 = vmatpush.bf16.msra.mxu0 0
    %5700 = vmatpush.bf16.msra.mxu0 0
    %5701 = vmatpush.bf16.msra.mxu0 0
    %5702 = vmatpush.bf16.msra.mxu0 0
    %5703 = vmatpush.bf16.msra.mxu0 %v5681
    %5704 = vmatmul.bf16.gmra.mxu0 %v5675
    %v5705 = vpop.f32.mrf.mxu0
    %v5706 = vadd.f32 0.0, %v5705
    %v5707 = vpop.f32.mrf.mxu0
    %5708 = vdwg.mxu0
    %v5709 = vpack.c.bf16 %v5693, %v5653
    %v5710 = vpack.c.bf16 %v5706, %v5666
    %v5711 = vld [vmem:[#allocation12] sm:$0xff]
    %v5712 = vld [vmem:[#allocation12 + $0x8] sm:$0xf]
    %v5713 = vld [vmem:[#allocation12 + $0xc] sm:$0xff]
    %v5714 = vld [vmem:[#allocation12 + $0x14] sm:$0xf]
    %v5715 = vld [vmem:[#allocation12 + $0x18] sm:$0xff]
    %v5716 = vld [vmem:[#allocation12 + $0x20] sm:$0xf]
    %v5717 = vld [vmem:[#allocation12 + $0x24] sm:$0xff]
    %v5718 = vld [vmem:[#allocation12 + $0x2c] sm:$0xf]
    %v5719 = vld [vmem:[#allocation12 + $0x30] sm:$0xff]
    %v5720 = vld [vmem:[#allocation12 + $0x38] sm:$0xf]
    %v5721 = vld [vmem:[#allocation12 + $0x3c] sm:$0xff]
    %v5722 = vld [vmem:[#allocation12 + $0x44] sm:$0xf]
    %v5723 = vld [vmem:[#allocation12 + $0x48] sm:$0xff]
    %v5724 = vld [vmem:[#allocation12 + $0x50] sm:$0xf]
    %v5725 = vld [vmem:[#allocation12 + $0x54] sm:$0xff]
    %v5726 = vld [vmem:[#allocation12 + $0x5c] sm:$0xf]
    %v5727 = vld [vmem:[#allocation12 + $0x60] sm:$0xff]
    %v5728 = vld [vmem:[#allocation12 + $0x68] sm:$0xf]
    %v5729 = vld [vmem:[#allocation12 + $0x6c] sm:$0xff]
    %v5730 = vld [vmem:[#allocation12 + $0x74] sm:$0xf]
    %v5731 = vld [vmem:[#allocation12 + $0x78] sm:$0xff]
    %v5732 = vld [vmem:[#allocation12 + $0x80] sm:$0xf]
    %v5733 = vld [vmem:[#allocation12 + $0x84] sm:$0xff]
    %v5734 = vld [vmem:[#allocation12 + $0x8c] sm:$0xf]
    %v5735 = vld [vmem:[#allocation12 + $0x90] sm:$0xff]
    %v5736 = vld [vmem:[#allocation12 + $0x98] sm:$0xf]
    %v5737 = vld [vmem:[#allocation12 + $0x9c] sm:$0xff]
    %v5738 = vld [vmem:[#allocation12 + $0xa4] sm:$0xf]
    %v5739 = vld [vmem:[#allocation12 + $0xa8] sm:$0xff]
    %v5740 = vld [vmem:[#allocation12 + $0xb0] sm:$0xf]
    %v5741 = vld [vmem:[#allocation12 + $0xb4] sm:$0xff]
    %v5742 = vld [vmem:[#allocation12 + $0xbc] sm:$0xf]
    %v5743 = vld [vmem:[#allocation12 + $0xc0] sm:$0xff]
    %v5744 = vld [vmem:[#allocation12 + $0xc8] sm:$0xf]
    %v5745 = vld [vmem:[#allocation12 + $0xcc] sm:$0xff]
    %v5746 = vld [vmem:[#allocation12 + $0xd4] sm:$0xf]
    %v5747 = vld [vmem:[#allocation12 + $0xd8] sm:$0xff]
    %v5748 = vld [vmem:[#allocation12 + $0xe0] sm:$0xf]
    %v5749 = vld [vmem:[#allocation12 + $0xe4] sm:$0xff]
    %v5750 = vld [vmem:[#allocation12 + $0xec] sm:$0xf]
    %v5751 = vld [vmem:[#allocation12 + $0xf0] sm:$0xff]
    %v5752 = vld [vmem:[#allocation12 + $0xf8] sm:$0xf]
    %v5753 = vld [vmem:[#allocation12 + $0xfc] sm:$0xff]
    %v5754 = vld [vmem:[#allocation12 + $0x104] sm:$0xf]
    %v5755 = vld [vmem:[#allocation12 + $0x108] sm:$0xff]
    %v5756 = vld [vmem:[#allocation12 + $0x110] sm:$0xf]
    %v5757 = vld [vmem:[#allocation12 + $0x114] sm:$0xff]
    %v5758 = vld [vmem:[#allocation12 + $0x11c] sm:$0xf]
    %v5759 = vld [vmem:[#allocation12 + $0x120] sm:$0xff]
    %v5760 = vld [vmem:[#allocation12 + $0x128] sm:$0xf]
    %v5761 = vld [vmem:[#allocation12 + $0x12c] sm:$0xff]
    %v5762 = vld [vmem:[#allocation12 + $0x134] sm:$0xf]
    %v5763 = vld [vmem:[#allocation12 + $0x138] sm:$0xff]
    %v5764 = vld [vmem:[#allocation12 + $0x140] sm:$0xf]
    %v5765 = vld [vmem:[#allocation12 + $0x144] sm:$0xff]
    %v5766 = vld [vmem:[#allocation12 + $0x14c] sm:$0xf]
    %v5767 = vld [vmem:[#allocation12 + $0x150] sm:$0xff]
    %v5768 = vld [vmem:[#allocation12 + $0x158] sm:$0xf]
    %v5769 = vld [vmem:[#allocation12 + $0x15c] sm:$0xff]
    %v5770 = vld [vmem:[#allocation12 + $0x164] sm:$0xf]
    %v5771 = vld [vmem:[#allocation12 + $0x168] sm:$0xff]
    %v5772 = vld [vmem:[#allocation12 + $0x170] sm:$0xf]
    %v5773 = vld [vmem:[#allocation12 + $0x174] sm:$0xff]
    %v5774 = vld [vmem:[#allocation12 + $0x17c] sm:$0xf]
    %v5775 = vld [vmem:[%s17] sm:$0x7]
    %v5777 = vperm.slane %v5775, 0
    %v5778 = vperm.slane %v5775, 1
    %v5779 = vperm.slane %v5775, 2
    %v5847 = vunpack.c.l.b16 %v5711
    %v5848 = vunpack.c.h.b16 %v5711
    %v5849 = vunpack.c.l.b16 %v5712
    %v5850 = vunpack.c.l.b16 %v5713
    %v5851 = vunpack.c.h.b16 %v5713
    %v5852 = vunpack.c.l.b16 %v5714
    %v5853 = vunpack.c.l.b16 %v5715
    %v5854 = vunpack.c.h.b16 %v5715
    %v5855 = vunpack.c.l.b16 %v5716
    %v5856 = vunpack.c.l.b16 %v5717
    %v5857 = vunpack.c.h.b16 %v5717
    %v5858 = vunpack.c.l.b16 %v5718
    %v5859 = vunpack.c.l.b16 %v5719
    %v5860 = vunpack.c.h.b16 %v5719
    %v5861 = vunpack.c.l.b16 %v5720
    %v5862 = vunpack.c.l.b16 %v5721
    %v5863 = vunpack.c.h.b16 %v5721
    %v5864 = vunpack.c.l.b16 %v5722
    %v5865 = vunpack.c.l.b16 %v5723
    %v5866 = vunpack.c.h.b16 %v5723
    %v5867 = vunpack.c.l.b16 %v5724
    %v5868 = vunpack.c.l.b16 %v5725
    %v5869 = vunpack.c.h.b16 %v5725
    %v5870 = vunpack.c.l.b16 %v5726
    %v5871 = vunpack.c.l.b16 %v5727
    %v5872 = vunpack.c.h.b16 %v5727
    %v5873 = vunpack.c.l.b16 %v5728
    %v5874 = vunpack.c.l.b16 %v5729
    %v5875 = vunpack.c.h.b16 %v5729
    %v5876 = vunpack.c.l.b16 %v5730
    %v5877 = vunpack.c.l.b16 %v5731
    %v5878 = vunpack.c.h.b16 %v5731
    %v5879 = vunpack.c.l.b16 %v5732
    %v5880 = vunpack.c.l.b16 %v5733
    %v5881 = vunpack.c.h.b16 %v5733
    %v5882 = vunpack.c.l.b16 %v5734
    %v5883 = vunpack.c.l.b16 %v5735
    %v5884 = vunpack.c.h.b16 %v5735
    %v5885 = vunpack.c.l.b16 %v5736
    %v5886 = vunpack.c.l.b16 %v5737
    %v5887 = vunpack.c.h.b16 %v5737
    %v5888 = vunpack.c.l.b16 %v5738
    %v5889 = vunpack.c.l.b16 %v5739
    %v5890 = vunpack.c.h.b16 %v5739
    %v5891 = vunpack.c.l.b16 %v5740
    %v5892 = vunpack.c.l.b16 %v5741
    %v5893 = vunpack.c.h.b16 %v5741
    %v5894 = vunpack.c.l.b16 %v5742
    %v5895 = vunpack.c.l.b16 %v5743
    %v5896 = vunpack.c.h.b16 %v5743
    %v5897 = vunpack.c.l.b16 %v5744
    %v5898 = vunpack.c.l.b16 %v5745
    %v5899 = vunpack.c.h.b16 %v5745
    %v5900 = vunpack.c.l.b16 %v5746
    %v5901 = vunpack.c.l.b16 %v5747
    %v5902 = vunpack.c.h.b16 %v5747
    %v5903 = vunpack.c.l.b16 %v5748
    %v5904 = vunpack.c.l.b16 %v5749
    %v5905 = vunpack.c.h.b16 %v5749
    %v5906 = vunpack.c.l.b16 %v5750
    %v5907 = vunpack.c.l.b16 %v5751
    %v5908 = vunpack.c.h.b16 %v5751
    %v5909 = vunpack.c.l.b16 %v5752
    %v5910 = vunpack.c.l.b16 %v5753
    %v5911 = vunpack.c.h.b16 %v5753
    %v5912 = vunpack.c.l.b16 %v5754
    %v5913 = vunpack.c.l.b16 %v5755
    %v5914 = vunpack.c.h.b16 %v5755
    %v5915 = vunpack.c.l.b16 %v5756
    %v5916 = vunpack.c.l.b16 %v5757
    %v5917 = vunpack.c.h.b16 %v5757
    %v5918 = vunpack.c.l.b16 %v5758
    %v5919 = vunpack.c.l.b16 %v5759
    %v5920 = vunpack.c.h.b16 %v5759
    %v5921 = vunpack.c.l.b16 %v5760
    %v5922 = vunpack.c.l.b16 %v5761
    %v5923 = vunpack.c.h.b16 %v5761
    %v5924 = vunpack.c.l.b16 %v5762
    %v5925 = vunpack.c.l.b16 %v5763
    %v5926 = vunpack.c.h.b16 %v5763
    %v5927 = vunpack.c.l.b16 %v5764
    %v5928 = vunpack.c.l.b16 %v5765
    %v5929 = vunpack.c.h.b16 %v5765
    %v5930 = vunpack.c.l.b16 %v5766
    %v5931 = vunpack.c.l.b16 %v5767
    %v5932 = vunpack.c.h.b16 %v5767
    %v5933 = vunpack.c.l.b16 %v5768
    %v5934 = vunpack.c.l.b16 %v5769
    %v5935 = vunpack.c.h.b16 %v5769
    %v5936 = vunpack.c.l.b16 %v5770
    %v5937 = vunpack.c.l.b16 %v5771
    %v5938 = vunpack.c.h.b16 %v5771
    %v5939 = vunpack.c.l.b16 %v5772
    %v5940 = vunpack.c.l.b16 %v5773
    %v5941 = vunpack.c.h.b16 %v5773
    %v5942 = vunpack.c.l.b16 %v5774
    %v5943 = vpack.c.b16 %v5850, %v5847
    %v5944 = vpack.c.b16 %v5851, %v5848
    %v5945 = vpack.c.b16 %v5852, %v5849
    %v5946 = vpack.c.b16 %v5856, %v5853
    %v5947 = vpack.c.b16 %v5857, %v5854
    %v5948 = vpack.c.b16 %v5858, %v5855
    %v5949 = vpack.c.b16 %v5862, %v5859
    %v5950 = vpack.c.b16 %v5863, %v5860
    %v5951 = vpack.c.b16 %v5864, %v5861
    %v5952 = vpack.c.b16 %v5868, %v5865
    %v5953 = vpack.c.b16 %v5869, %v5866
    %v5954 = vpack.c.b16 %v5870, %v5867
    %v5955 = vpack.c.b16 %v5874, %v5871
    %v5956 = vpack.c.b16 %v5875, %v5872
    %v5957 = vpack.c.b16 %v5876, %v5873
    %v5958 = vpack.c.b16 %v5880, %v5877
    %v5959 = vpack.c.b16 %v5881, %v5878
    %v5960 = vpack.c.b16 %v5882, %v5879
    %v5961 = vpack.c.b16 %v5886, %v5883
    %v5962 = vpack.c.b16 %v5887, %v5884
    %v5963 = vpack.c.b16 %v5888, %v5885
    %v5964 = vpack.c.b16 %v5892, %v5889
    %v5965 = vpack.c.b16 %v5893, %v5890
    %v5966 = vpack.c.b16 %v5894, %v5891
    %v5967 = vpack.c.b16 %v5898, %v5895
    %v5968 = vpack.c.b16 %v5899, %v5896
    %v5969 = vpack.c.b16 %v5900, %v5897
    %v5970 = vpack.c.b16 %v5904, %v5901
    %v5971 = vpack.c.b16 %v5905, %v5902
    %v5972 = vpack.c.b16 %v5906, %v5903
    %v5973 = vpack.c.b16 %v5910, %v5907
    %v5974 = vpack.c.b16 %v5911, %v5908
    %v5975 = vpack.c.b16 %v5912, %v5909
    %v5976 = vpack.c.b16 %v5916, %v5913
    %v5977 = vpack.c.b16 %v5917, %v5914
    %v5978 = vpack.c.b16 %v5918, %v5915
    %v5979 = vpack.c.b16 %v5922, %v5919
    %v5980 = vpack.c.b16 %v5923, %v5920
    %v5981 = vpack.c.b16 %v5924, %v5921
    %v5982 = vpack.c.b16 %v5928, %v5925
    %v5983 = vpack.c.b16 %v5929, %v5926
    %v5984 = vpack.c.b16 %v5930, %v5927
    %v5985 = vpack.c.b16 %v5934, %v5931
    %v5986 = vpack.c.b16 %v5935, %v5932
    %v5987 = vpack.c.b16 %v5936, %v5933
    %v5988 = vpack.c.b16 %v5940, %v5937
    %v5989 = vpack.c.b16 %v5941, %v5938
    %v5990 = vpack.c.b16 %v5942, %v5939
    %6039 = vmatpush.bf16.msra.mxu0 %v5964
    %6040 = vmatpush.bf16.msra.mxu0 %v5961
    %6041 = vmatpush.bf16.msra.mxu0 %v5958
    %6042 = vmatpush.bf16.msra.mxu0 %v5955
    %6043 = vmatpush.bf16.msra.mxu0 %v5952
    %6044 = vmatpush.bf16.msra.mxu0 %v5949
    %6045 = vmatpush.bf16.msra.mxu0 %v5946
    %6046 = vmatpush.bf16.msra.mxu0 %v5943
    %6047 = vmatmul.bf16.gmra.mxu0 %v5709
    %v6048 = vpop.f32.mrf.mxu0
    %v6049 = vadd.f32 %v5777, %v6048
    %v6050 = vpop.f32.mrf.mxu0
    %v6051 = vadd.f32 %v5777, %v6050
    %6052 = vdwg.mxu0
    %6053 = vmatpush.bf16.msra.mxu0 %v5988
    %6054 = vmatpush.bf16.msra.mxu0 %v5985
    %6055 = vmatpush.bf16.msra.mxu0 %v5982
    %6056 = vmatpush.bf16.msra.mxu0 %v5979
    %6057 = vmatpush.bf16.msra.mxu0 %v5976
    %6058 = vmatpush.bf16.msra.mxu0 %v5973
    %6059 = vmatpush.bf16.msra.mxu0 %v5970
    %6060 = vmatpush.bf16.msra.mxu0 %v5967
    %6061 = vmatmul.bf16.gmra.mxu0 %v5710
    %v6062 = vpop.f32.mrf.mxu0
    %v6063 = vadd.f32 %v6049, %v6062
    %v6064 = vpop.f32.mrf.mxu0
    %v6065 = vadd.f32 %v6051, %v6064
    %6066 = vdwg.mxu0
    %6067 = vmatpush.bf16.msra.mxu0 %v5965
    %6068 = vmatpush.bf16.msra.mxu0 %v5962
    %6069 = vmatpush.bf16.msra.mxu0 %v5959
    %6070 = vmatpush.bf16.msra.mxu0 %v5956
    %6071 = vmatpush.bf16.msra.mxu0 %v5953
    %6072 = vmatpush.bf16.msra.mxu0 %v5950
    %6073 = vmatpush.bf16.msra.mxu0 %v5947
    %6074 = vmatpush.bf16.msra.mxu0 %v5944
    %6075 = vmatmul.bf16.gmra.mxu0 %v5709
    %v6076 = vpop.f32.mrf.mxu0
    %v6077 = vadd.f32 %v5778, %v6076
    %v6078 = vpop.f32.mrf.mxu0
    %v6079 = vadd.f32 %v5778, %v6078
    %6080 = vdwg.mxu0
    %6081 = vmatpush.bf16.msra.mxu0 %v5989
    %6082 = vmatpush.bf16.msra.mxu0 %v5986
    %6083 = vmatpush.bf16.msra.mxu0 %v5983
    %6084 = vmatpush.bf16.msra.mxu0 %v5980
    %6085 = vmatpush.bf16.msra.mxu0 %v5977
    %6086 = vmatpush.bf16.msra.mxu0 %v5974
    %6087 = vmatpush.bf16.msra.mxu0 %v5971
    %6088 = vmatpush.bf16.msra.mxu0 %v5968
    %6089 = vmatmul.bf16.gmra.mxu0 %v5710
    %v6090 = vpop.f32.mrf.mxu0
    %v6091 = vadd.f32 %v6077, %v6090
    %v6092 = vpop.f32.mrf.mxu0
    %v6093 = vadd.f32 %v6079, %v6092
    %6094 = vdwg.mxu0
    %6095 = vmatpush.bf16.msra.mxu0 %v5966
    %6096 = vmatpush.bf16.msra.mxu0 %v5963
    %6097 = vmatpush.bf16.msra.mxu0 %v5960
    %6098 = vmatpush.bf16.msra.mxu0 %v5957
    %6099 = vmatpush.bf16.msra.mxu0 %v5954
    %6100 = vmatpush.bf16.msra.mxu0 %v5951
    %6101 = vmatpush.bf16.msra.mxu0 %v5948
    %6102 = vmatpush.bf16.msra.mxu0 %v5945
    %6103 = vmatmul.bf16.gmra.mxu0 %v5709
    %v6104 = vpop.f32.mrf.mxu0
    %v6105 = vadd.f32 %v5779, %v6104
    %v6106 = vpop.f32.mrf.mxu0
    %v6107 = vadd.f32 %v5779, %v6106
    %6108 = vdwg.mxu0
    %6109 = vmatpush.bf16.msra.mxu0 %v5990
    %6110 = vmatpush.bf16.msra.mxu0 %v5987
    %6111 = vmatpush.bf16.msra.mxu0 %v5984
    %6112 = vmatpush.bf16.msra.mxu0 %v5981
    %6113 = vmatpush.bf16.msra.mxu0 %v5978
    %6114 = vmatpush.bf16.msra.mxu0 %v5975
    %6115 = vmatpush.bf16.msra.mxu0 %v5972
    %6116 = vmatpush.bf16.msra.mxu0 %v5969
    %6117 = vmatmul.bf16.gmra.mxu0 %v5710
    %v6118 = vpop.f32.mrf.mxu0
    %v6119 = vadd.f32 %v6105, %v6118
    %v6120 = vpop.f32.mrf.mxu0
    %v6121 = vadd.f32 %v6107, %v6120
    %6122 = vdwg.mxu0
    %v6123 = vadd.f32 %v6063, %v3992
    %v6124 = vadd.f32 %v6091, %v3993
    %v6125 = vadd.f32 %v6119, %v3994
    %v6126 = vadd.f32 %v6065, %v3995
    %v6127 = vadd.f32 %v6093, %v3996
    %v6128 = vadd.f32 %v6121, %v3997
    %v6129 = vadd.f32 %v6123, %v175
    %v6130 = vadd.f32 %v6124, %v176
    %v6131 = vadd.f32 %v6125, %v177
    %v6132 = vadd.f32 %v6126, %v178
    %v6133 = vadd.f32 %v6127, %v179
    %v6134 = vadd.f32 %v6128, %v180
    %v6135 = vadd.f32 %v6129, %v6132
    %v6136 = vrot.slane %v6135, 4
    %v6137 = vadd.f32 %v6135, %v6136
    %v6138 = vrot.slane %v6137, 2
    %v6139 = vadd.f32 %v6137, %v6138
    %v6140 = vrot.slane %v6139, 1
    %v6141 = vadd.f32 %v6139, %v6140
    %v6142 = vadd.f32 %v6130, %v6133
    %v6143 = vrot.slane %v6142, 4
    %v6144 = vadd.f32 %v6142, %v6143
    %v6145 = vrot.slane %v6144, 2
    %v6146 = vadd.f32 %v6144, %v6145
    %v6147 = vrot.slane %v6146, 1
    %v6148 = vadd.f32 %v6146, %v6147
    %v6149 = vadd.f32 %v6131, %v6134
    %v6150 = vrot.slane %v6149, 4
    %v6151 = vadd.f32 %v6149, %v6150
    %v6152 = vrot.slane %v6151, 2
    %v6153 = vadd.f32 %v6151, %v6152
    %v6154 = vrot.slane %v6153, 1
    %v6155 = vadd.f32 %v6153, %v6154
    %v6156 = vrcp.pop 16.0
    %v6157 = vmul.f32 16.0, %v6156
    %v6158 = vsub.f32 1.0, %v6157
    %v6159 = vmul.f32 %v6156, %v6158
    %v6160 = vadd.f32 %v6156, %v6159
    %vm6161 = vweird.f32 %v6156
    %v6162 = vsel %vm6161, %v6156, %v6160
    %v6163 = vmul.f32 %v6141, %v6162
    %v6164 = vmul.f32 %v6148, %v6162
    %v6165 = vmul.f32 %v6155, %v6162
    %v6166 = vsub.f32 %v6129, %v6163
    %v6167 = vsub.f32 %v6130, %v6164
    %v6168 = vsub.f32 %v6131, %v6165
    %v6169 = vsub.f32 %v6132, %v6163
    %v6170 = vsub.f32 %v6133, %v6164
    %v6171 = vsub.f32 %v6134, %v6165
    %v6172 = vmul.f32 %v6166, %v6166
    %v6173 = vmul.f32 %v6167, %v6167
    %v6174 = vmul.f32 %v6168, %v6168
    %v6175 = vmul.f32 %v6169, %v6169
    %v6176 = vmul.f32 %v6170, %v6170
    %v6177 = vmul.f32 %v6171, %v6171
    %v6178 = vadd.f32 %v6172, %v6175
    %v6179 = vrot.slane %v6178, 4
    %v6180 = vadd.f32 %v6178, %v6179
    %v6181 = vrot.slane %v6180, 2
    %v6182 = vadd.f32 %v6180, %v6181
    %v6183 = vrot.slane %v6182, 1
    %v6184 = vadd.f32 %v6182, %v6183
    %v6185 = vadd.f32 %v6173, %v6176
    %v6186 = vrot.slane %v6185, 4
    %v6187 = vadd.f32 %v6185, %v6186
    %v6188 = vrot.slane %v6187, 2
    %v6189 = vadd.f32 %v6187, %v6188
    %v6190 = vrot.slane %v6189, 1
    %v6191 = vadd.f32 %v6189, %v6190
    %v6192 = vadd.f32 %v6174, %v6177
    %v6193 = vrot.slane %v6192, 4
    %v6194 = vadd.f32 %v6192, %v6193
    %v6195 = vrot.slane %v6194, 2
    %v6196 = vadd.f32 %v6194, %v6195
    %v6197 = vrot.slane %v6196, 1
    %v6198 = vadd.f32 %v6196, %v6197
    %v6199 = vmul.f32 %v6184, %v6162
    %v6200 = vmul.f32 %v6191, %v6162
    %v6201 = vmul.f32 %v6198, %v6162
    %v6202 = vld [vmem:[%s18] sm:$0x7]
    %v6203 = vadd.f32 %v6199, 1e-05
    %v6204 = vadd.f32 %v6200, 1e-05
    %v6205 = vadd.f32 %v6201, 1e-05
    %v6206 = vrsqrt.pop %v6203
    %v6207 = vmul.f32 %v6206, %v6203
    %v6208 = vmul.f32 %v6207, %v6206
    %v6209 = vmul.f32 0.5, %v6208
    %v6210 = vsub.f32 1.5, %v6209
    %v6211 = vmul.f32 %v6206, %v6210
    %vm6212 = vweird.f32 %v6203
    %vm6213 = vweird.f32 %v6206
    %vm6214 = vmor %vm6212, %vm6213
    %v6215 = vsel %vm6214, %v6206, %v6211
    %v6216 = vrsqrt.pop %v6204
    %v6217 = vmul.f32 %v6216, %v6204
    %v6218 = vmul.f32 %v6217, %v6216
    %v6219 = vmul.f32 0.5, %v6218
    %v6220 = vsub.f32 1.5, %v6219
    %v6221 = vmul.f32 %v6216, %v6220
    %vm6222 = vweird.f32 %v6204
    %vm6223 = vweird.f32 %v6216
    %vm6224 = vmor %vm6222, %vm6223
    %v6225 = vsel %vm6224, %v6216, %v6221
    %v6226 = vrsqrt.pop %v6205
    %v6227 = vmul.f32 %v6226, %v6205
    %v6228 = vmul.f32 %v6227, %v6226
    %v6229 = vmul.f32 0.5, %v6228
    %v6230 = vsub.f32 1.5, %v6229
    %v6231 = vmul.f32 %v6226, %v6230
    %vm6232 = vweird.f32 %v6205
    %vm6233 = vweird.f32 %v6226
    %vm6234 = vmor %vm6232, %vm6233
    %v6235 = vsel %vm6234, %v6226, %v6231
    %v6239 = vrot.slane %v6225, 7
    %v6240 = vrot.slane %v6235, 6
    %vm6241 = vcmask 1040384
    %v6242 = vsel %vm6241, %v6215, %v6239
    %vm6243 = vcmask 1041408
    %v6244 = vsel %vm6243, %v6242, %v6240
    %v6246 = vmul.f32 %v6202, %v6244
    %v6248 = vperm.slane %v6246, 0
    %v6249 = vperm.slane %v6246, 1
    %v6250 = vperm.slane %v6246, 2
    %v6254 = vmul.f32 %v6166, %v6248
    %v6255 = vmul.f32 %v6167, %v6249
    %v6256 = vmul.f32 %v6168, %v6250
    %v6257 = vmul.f32 %v6169, %v6248
    %v6258 = vmul.f32 %v6170, %v6249
    %v6259 = vmul.f32 %v6171, %v6250
    %v6260 = vld [vmem:[%s19] sm:$0x7]
    %v6262 = vperm.slane %v6260, 0
    %v6263 = vperm.slane %v6260, 1
    %v6264 = vperm.slane %v6260, 2
    %v6268 = vadd.f32 %v6254, %v6262
    %v6269 = vadd.f32 %v6255, %v6263
    %v6270 = vadd.f32 %v6256, %v6264
    %v6271 = vadd.f32 %v6257, %v6262
    %v6272 = vadd.f32 %v6258, %v6263
    %v6273 = vadd.f32 %v6259, %v6264
    %6274 = vst [vmem:[%s20] sm:$0xff] %v6268
    %6275 = vst [vmem:[%s20 + $0x8] sm:$0xff] %v6269
    %6276 = vst [vmem:[%s20 + $0x10] sm:$0xff] %v6270
    %6277 = vst [vmem:[%s20 + $0x18] sm:$0xff] %v6271
    %6278 = vst [vmem:[%s20 + $0x20] sm:$0xff] %v6272
    %6279 = vst [vmem:[%s20 + $0x28] sm:$0xff] %v6273
    // Predicated region
    $region110: #{score_net_forward.6} parent=1 // pred_check
      _
    $region111: #{score_net_forward.6} parent=1 // pred_check_branch
      %6281 = sbr.rel (0) target = $region113
    $region112: #{score_net_forward.6} parent=1 // pred_region
      _
    $region113: #{score_net_forward.6} parent=1 // pred_fallthru
      _
    // Predicated region
    $region114: #{score_net_forward.6} parent=1 // pred_check
      _
    $region115: #{score_net_forward.6} parent=1 // pred_check_branch
      %6283 = sbr.rel (0) target = $region117
    $region116: #{score_net_forward.6} parent=1 // pred_region
      _
    $region117: #{score_net_forward.6} parent=1 // pred_fallthru
      _
    %6284 = vsyncpa [#allocation3], 1
    %6285 = vsyncpa [#allocation5], 1
    %6286 = vsyncpa [#allocation8], 1
    %6287 = vsyncpa [#allocation11], 1

</llo_original>
